<compile_context>
chip_gen: v5e
topology: v5e:2x2
jax: 0.10.0
libtpu: 0.0.40
codegen_flags: <defaults>
</compile_context>

<pallas_src>
import functools

import jax
import jax.numpy as jnp
from jax.experimental import pallas as pl
from jax.experimental.pallas import tpu as pltpu

LANE = 128
VMEM_LIMIT = 48 * 1024 * 1024        # < 64 MiB physical on v7x, ample on v5e/v6e
PIPE_BUDGET = 24 * 1024 * 1024       # budget for double-buffered row tiles


def _rup(c, m=LANE):
    return ((c + m - 1) // m) * m


def _pad_to(a, shape):
    return jnp.pad(a, [(0, s - d) for d, s in zip(a.shape, shape)])


def _cparams(sem):
    return pltpu.CompilerParams(dimension_semantics=sem,
                                vmem_limit_bytes=VMEM_LIMIT)


def _const_spec(shape):
    # Weights / folded-BN vectors: constant index_map keeps them resident across
    # grid steps; single-buffer them (fetched once) to save VMEM headroom.
    nd = len(shape)
    imap = lambda i, _nd=nd: (0,) * _nd
    if hasattr(pl, "Buffered"):
        try:
            return pl.BlockSpec(shape, imap, pipeline_mode=pl.Buffered(1))
        except TypeError:            # older BlockSpec without pipeline_mode
            pass
    return pl.BlockSpec(shape, imap)


def _pick_rows_tile(rows, bytes_per_row, *, budget=PIPE_BUDGET,
                    target_steps=8, cap=2048):
    """Row tile for the matmul kernels: multiple of 16 (bf16 sublane pack),
    ideally a divisor of `rows` (no padding, no XLA re-slice), double-buffered
    footprint within `budget`, and >= `target_steps` grid steps when the
    problem is big enough (never shrunk below 256 rows just to make steps)."""
    cap_b = max(16, min(cap, (budget // max(1, 2 * bytes_per_row)) // 16 * 16))
    divisors = [t for t in range(16, cap_b + 1, 16) if rows % t == 0]
    for want_steps, floor in ((target_steps, 256), (2, 16), (1, 16)):
        cands = [t for t in divisors if rows // t >= want_steps and t >= floor]
        if cands:
            return max(cands)
    return min(256, cap_b)           # awkward row count: padded fallback


# ----------------------------- Pallas kernels ------------------------------ #

def _silu(y):
    # y * sigmoid(y) with a single EUP transcendental (exp) + approximate
    # reciprocal (separate VLIW slot) instead of jax.nn.sigmoid's f32 path.
    return y * pl.reciprocal(1.0 + jnp.exp(-y), approx=True)


def _head_kernel(x_ref, w_ref, s_ref, b_ref, y1_ref, y2_ref):
    # Fused cv1|cv2: one read of x, one K=ci_p dot into a 2*c_p-wide f32
    # result, split into two lane-dense bf16 outputs (no XLA slice round trip).
    c = y1_ref.shape[-1]
    y = jnp.dot(x_ref[...], w_ref[...], preferred_element_type=jnp.float32)
    y = _silu(y * s_ref[...] + b_ref[...])
    y1_ref[...] = y[:, :c].astype(y1_ref.dtype)
    y2_ref[...] = y[:, c:].astype(y2_ref.dtype)


def _tail_kernel(z_ref, y2_ref, w_ref, s_ref, b_ref, o_ref, cat_ref):
    # Fused channel-concat + cv3: build [z | y2] in VMEM and do a single
    # K = 2*c_p dot (better MXU fill on 256x256 MXUs); emit caller dtype (f32).
    c = z_ref.shape[-1]
    cat_ref[:, :c] = z_ref[...]
    cat_ref[:, c:] = y2_ref[...]
    y = jnp.dot(cat_ref[...], w_ref[...], preferred_element_type=jnp.float32)
    o_ref[...] = _silu(y * s_ref[...] + b_ref[...]).astype(o_ref.dtype)


def _bottleneck_kernel(z_ref, w1_ref, s1_ref, b1_ref, w2_ref, s2_ref, b2_ref,
                       o_ref, hpad_ref, *, H, W, add):
    # Fused Bottleneck for one image: 1x1 Conv+BN+SiLU -> 3x3 Conv+BN+SiLU
    # (+ residual).  `h` and its 3x3 halo live only in VMEM; the 3x3 is nine
    # shifted (H*W, C) @ (C, C) MXU dots accumulated in f32 (in-kernel im2col).
    C = z_ref.shape[-1]
    z = z_ref[0]                                              # (H*W, C) bf16

    # cv1 (1x1) — result stays in VMEM.
    h = jnp.dot(z, w1_ref[...], preferred_element_type=jnp.float32)
    h = _silu(h * s1_ref[...] + b1_ref[...])

    # Zero only the halo border, and do it every step (the scratch is per-core
    # under megacore "parallel" semantics, so a program_id==0 init is unsafe);
    # the interior is fully overwritten below.
    zrow = jnp.zeros((1, W + 2, C), hpad_ref.dtype)
    hpad_ref[0:1, :, :] = zrow
    hpad_ref[H + 1:H + 2, :, :] = zrow
    zcol = jnp.zeros((H + 2, 1, C), hpad_ref.dtype)
    hpad_ref[:, 0:1, :] = zcol
    hpad_ref[:, W + 1:W + 2, :] = zcol
    hpad_ref[1:H + 1, 1:W + 1, :] = h.astype(hpad_ref.dtype).reshape(H, W, C)

    # cv2 (3x3, stride 1, pad 1) as 9 tap dots against the resident weights.
    acc = jnp.zeros((H * W, C), jnp.float32)
    for t in range(9):
        dy, dx = divmod(t, 3)
        tap = hpad_ref[dy:dy + H, dx:dx + W, :].reshape(H * W, C)
        acc = acc + jnp.dot(tap, w2_ref[t], preferred_element_type=jnp.float32)

    y = _silu(acc * s2_ref[...] + b2_ref[...])
    if add:                                                   # shortcut (ci == co)
        y = y + z.astype(jnp.float32)
    o_ref[0] = y.astype(o_ref.dtype)


# ----------------------------- kernel wrappers ------------------------------ #

def head_call(x2d, w, scale, bias):
    rows, ci_p = x2d.shape
    c2 = w.shape[1]
    c_p = c2 // 2
    blk = _pick_rows_tile(rows, 2 * (ci_p + c2))      # bf16 in + two bf16 outs
    rows_p = pl.cdiv(rows, blk) * blk
    xp = x2d if rows_p == rows else jnp.pad(x2d, ((0, rows_p - rows), (0, 0)))
    y1, y2 = pl.pallas_call(
        _head_kernel,
        out_shape=(jax.ShapeDtypeStruct((rows_p, c_p), jnp.bfloat16),
                   jax.ShapeDtypeStruct((rows_p, c_p), jnp.bfloat16)),
        grid_spec=pltpu.PrefetchScalarGridSpec(
            num_scalar_prefetch=0,
            grid=(rows_p // blk,),
            in_specs=[pl.BlockSpec((blk, ci_p), lambda i: (i, 0)),
                      _const_spec(w.shape), _const_spec(scale.shape),
                      _const_spec(bias.shape)],
            out_specs=(pl.BlockSpec((blk, c_p), lambda i: (i, 0)),
                       pl.BlockSpec((blk, c_p), lambda i: (i, 0)))),
        compiler_params=_cparams(("parallel",)),
    )(xp, w, scale, bias)
    if rows_p != rows:
        y1, y2 = y1[:rows], y2[:rows]
    return y1, y2


def tail_call(z2d, y2_2d, w, scale, bias, out_dtype=jnp.float32):
    rows, c_p = z2d.shape
    co_p = w.shape[1]
    blk = _pick_rows_tile(rows, 8 * c_p + 4 * co_p)   # ins + cat scratch + f32 out
    rows_p = pl.cdiv(rows, blk) * blk
    if rows_p != rows:
        pad = ((0, rows_p - rows), (0, 0))
        z2d, y2_2d = jnp.pad(z2d, pad), jnp.pad(y2_2d, pad)
    out = pl.pallas_call(
        _tail_kernel,
        out_shape=jax.ShapeDtypeStruct((rows_p, co_p), out_dtype),
        grid_spec=pltpu.PrefetchScalarGridSpec(
            num_scalar_prefetch=0,
            grid=(rows_p // blk,),
            in_specs=[pl.BlockSpec((blk, c_p), lambda i: (i, 0)),
                      pl.BlockSpec((blk, c_p), lambda i: (i, 0)),
                      _const_spec(w.shape), _const_spec(scale.shape),
                      _const_spec(bias.shape)],
            out_specs=pl.BlockSpec((blk, co_p), lambda i: (i, 0)),
            scratch_shapes=[pltpu.VMEM((blk, 2 * c_p), jnp.bfloat16)]),
        compiler_params=_cparams(("parallel",)),
    )(z2d, y2_2d, w, scale, bias)
    return out[:rows] if rows_p != rows else out


def bottleneck_call(z_img, bp, *, H, W, add):
    # z_img: (N, H*W, C) bf16 -> same shape/dtype.  Grid over images: per-step
    # VMEM = one image tile + halo scratch + resident weights, well within the
    # explicit budget at production C3 shapes.
    N, HW, C = z_img.shape
    kern = functools.partial(_bottleneck_kernel, H=H, W=W, add=add)
    return pl.pallas_call(
        kern,
        out_shape=jax.ShapeDtypeStruct((N, HW, C), jnp.bfloat16),
        grid_spec=pltpu.PrefetchScalarGridSpec(
            num_scalar_prefetch=0,
            grid=(N,),
            in_specs=[pl.BlockSpec((1, HW, C), lambda n: (n, 0, 0)),
                      _const_spec(bp["w1"].shape),
                      _const_spec(bp["scale1"].shape),
                      _const_spec(bp["bias1"].shape),
                      _const_spec(bp["w2"].shape),
                      _const_spec(bp["scale2"].shape),
                      _const_spec(bp["bias2"].shape)],
            out_specs=pl.BlockSpec((1, HW, C), lambda n: (n, 0, 0)),
            scratch_shapes=[pltpu.VMEM((H + 2, W + 2, C), jnp.bfloat16)]),
        compiler_params=_cparams(("parallel",)),
    )(z_img, bp["w1"], bp["scale1"], bp["bias1"],
      bp["w2"], bp["scale2"], bp["bias2"])


# --------------------------- parameters (synthetic) ------------------------- #

def make_conv_params(key, cin, cout, k, cin_p, cout_p):
    kw_, kg, kb, km, kv = jax.random.split(key, 5)
    fan_in = cin * k * k
    w = jax.random.normal(kw_, (cout, cin, k, k), jnp.float32) * (2.0 / fan_in) ** 0.5
    # Quantize weights to bf16 once; kernel and reference use identical values,
    # so the accuracy check isolates the kernel's bf16-activation/f32-accum path.
    w = w.astype(jnp.bfloat16).astype(jnp.float32)
    gamma = 1.0 + 0.1 * jax.random.normal(kg, (cout,), jnp.float32)
    beta = 0.1 * jax.random.normal(kb, (cout,), jnp.float32)
    mean = 0.1 * jax.random.normal(km, (cout,), jnp.float32)
    var = jnp.abs(1.0 + 0.1 * jax.random.normal(kv, (cout,), jnp.float32))
    scale = gamma / jnp.sqrt(var + 1e-5)              # eval-mode BN folded
    bias = beta - mean * scale

    if k == 1:
        w2d = jnp.transpose(w[:, :, 0, 0], (1, 0))                    # (cin, cout)
        wk = _pad_to(w2d, (cin_p, cout_p)).astype(jnp.bfloat16)
    else:
        w2d = None
        wt = jnp.transpose(w, (2, 3, 1, 0))                           # (kh, kw, cin, cout)
        wt = _pad_to(wt, (k, k, cin_p, cout_p))
        wk = wt.reshape(k * k, cin_p, cout_p).astype(jnp.bfloat16)    # tap-major

    return {
        "wk": wk, "w2d": w2d,
        "scale_k": _pad_to(scale, (cout_p,)).reshape(1, cout_p),
        "bias_k": _pad_to(bias, (cout_p,)).reshape(1, cout_p),
        "w_ref": w, "scale_ref": scale, "bias_ref": bias,
    }


def make_c3_params(key, ci, co, n=1, e=0.5):
    c_ = int(co * e)
    ci_p, c_p, co_p = _rup(ci), _rup(c_), _rup(co)
    keys = jax.random.split(key, 3 + 2 * n)
    cv1 = make_conv_params(keys[0], ci, c_, 1, ci_p, c_p)
    cv2 = make_conv_params(keys[1], ci, c_, 1, ci_p, c_p)
    cv3 = make_conv_params(keys[2], 2 * c_, co, 1, _rup(2 * c_), co_p)
    m = [{"cv1": make_conv_params(keys[3 + 2 * i], c_, c_, 1, c_p, c_p),
          "cv2": make_conv_params(keys[4 + 2 * i], c_, c_, 3, c_p, c_p)}
         for i in range(n)]

    kparams = {
        # fused cv1|cv2 head (single read of x, two lane-dense outputs)
        "w12": jnp.concatenate([cv1["wk"], cv2["wk"]], axis=1),
        "scale12": jnp.concatenate([cv1["scale_k"], cv2["scale_k"]], axis=1),
        "bias12": jnp.concatenate([cv1["bias_k"], cv2["bias_k"]], axis=1),
        # cv3 with the channel concat folded in: weight stacked along K so the
        # tail kernel does one K = 2*c_p dot against [z | y2]
        "w3": jnp.concatenate(
            [_pad_to(cv3["w2d"][:c_], (c_p, co_p)),
             _pad_to(cv3["w2d"][c_:], (c_p, co_p))], axis=0).astype(jnp.bfloat16),
        "scale3": cv3["scale_k"], "bias3": cv3["bias_k"],
        "m": [{"w1": b["cv1"]["wk"], "scale1": b["cv1"]["scale_k"], "bias1": b["cv1"]["bias_k"],
               "w2": b["cv2"]["wk"], "scale2": b["cv2"]["scale_k"], "bias2": b["cv2"]["bias_k"]}
              for b in m],
    }
    rparams = {"cv1": cv1, "cv2": cv2, "cv3": cv3, "m": m}
    return kparams, rparams


# ------------------------------ C3 forward ---------------------------------- #

def c3_forward(x_nchw, kp, *, co, shortcut=True):
    # NCHW -> NHWC, pad channels to the lane-dense kernel layout, cast to bf16.
    x = jnp.transpose(x_nchw, (0, 2, 3, 1))
    N, H, W, ci = x.shape
    ci_p = kp["w12"].shape[0]
    c_p = kp["w12"].shape[1] // 2
    rows = N * H * W
    xf = _pad_to(x, (N, H, W, ci_p)).astype(jnp.bfloat16).reshape(rows, ci_p)

    # cv1 + cv2 fused into one matmul kernel with two lane-dense outputs.
    y1, y2 = head_call(xf, kp["w12"], kp["scale12"], kp["bias12"])

    # m(): n fused Bottlenecks (1x1 -> 3x3 (+shortcut)); h never leaves VMEM.
    z = y1.reshape(N, H * W, c_p)
    for bp in kp["m"]:
        z = bottleneck_call(z, bp, H=H, W=W, add=shortcut)
    z = z.reshape(rows, c_p)

    # channel concat + cv3 fused into one K=2*c_p matmul; kernel emits f32.
    out = tail_call(z, y2, kp["w3"], kp["scale3"], kp["bias3"])
    out = out[:, :co].reshape(N, H, W, co)
    return jnp.transpose(out, (0, 3, 1, 2))                  # back to NCHW


# --------------------------- pure-JAX reference ------------------------------ #

def _ref_conv(x, p, k):
    pad = (k - 1) // 2
    y = jax.lax.conv_general_dilated(
        x, p["w_ref"], (1, 1), [(pad, pad), (pad, pad)],
        dimension_numbers=("NCHW", "OIHW", "NCHW"),
        precision=jax.lax.Precision.HIGHEST)
    y = y * p["scale_ref"][None, :, None, None] + p["bias_ref"][None, :, None, None]
    return y * jax.nn.sigmoid(y)


def ref_c3(x, rp, shortcut=True):
    y1 = _ref_conv(x, rp["cv1"], 1)
    y2 = _ref_conv(x, rp["cv2"], 1)
    z = y1
    for b in rp["m"]:
        h = _ref_conv(z, b["cv1"], 1)
        h = _ref_conv(h, b["cv2"], 3)
        z = z + h if shortcut else h
    return _ref_conv(jnp.concatenate([z, y2], axis=1), rp["cv3"], 1)


# ---------------------------------- main ------------------------------------ #

if __name__ == "__main__":
    key = jax.random.PRNGKey(0)
    N, ci, co, H, W = 2, 16, 16, 16, 16
    n, e, shortcut = 1, 0.5, True

    kp_key, kx = jax.random.split(key)
    kparams, rparams = make_c3_params(kp_key, ci, co, n=n, e=e)
    x = jax.random.normal(kx, (N, ci, H, W), jnp.float32)

    fwd = jax.jit(functools.partial(c3_forward, co=co, shortcut=shortcut))
    out = jax.block_until_ready(fwd(x, kparams))
    assert out.shape == (N, co, H, W)

    ref = ref_c3(x, rparams, shortcut)
    err = float(jnp.max(jnp.abs(out - ref)))
    # bf16 activations with f32 accumulation (+ approx-reciprocal SiLU): 3% of
    # the output scale is a meaningful bound (a real bug gives O(1) rel error).
    tol = 3e-2 * max(1.0, float(jnp.max(jnp.abs(ref))))
    assert err < tol, f"max abs err {err} (tol {tol})"
    print("KERNEL_OK")
</pallas_src>

<mosaic_0001>
module attributes {stable_mosaic.version = 11 : i64} {
  func.func @_head_kernel(%arg0: i32, %arg1: memref<256x128xbf16, #tpu.memory_space<vmem>>, %arg2: memref<128x256xbf16, #tpu.memory_space<vmem>>, %arg3: memref<1x256xf32, #tpu.memory_space<vmem>>, %arg4: memref<1x256xf32, #tpu.memory_space<vmem>>, %arg5: memref<256x128xbf16, #tpu.memory_space<vmem>>, %arg6: memref<256x128xbf16, #tpu.memory_space<vmem>>) attributes {dimension_semantics = [#tpu.dimension_semantics<parallel>], iteration_bounds = array<i64: 2>, scalar_prefetch = 0 : i64, scratch_operands = 0 : i64, tpu.core_type = #tpu.core_type<tc>, window_params = [{transform_indices = @transform_0, window_bounds = array<i64: 256, 128>}, {pipeline_mode = #tpu.pipeline_mode<synchronous>, transform_indices = @transform_1, window_bounds = array<i64: 128, 256>}, {pipeline_mode = #tpu.pipeline_mode<synchronous>, transform_indices = @transform_2, window_bounds = array<i64: 1, 256>}, {pipeline_mode = #tpu.pipeline_mode<synchronous>, transform_indices = @transform_3, window_bounds = array<i64: 1, 256>}, {transform_indices = @transform_4, window_bounds = array<i64: 256, 128>}, {transform_indices = @transform_5, window_bounds = array<i64: 256, 128>}]} {
    %c0 = arith.constant 0 : index
    %c0_0 = arith.constant 0 : index
    %0 = vector.load %arg1[%c0, %c0_0] : memref<256x128xbf16, #tpu.memory_space<vmem>>, vector<256x128xbf16>
    %c0_1 = arith.constant 0 : index
    %c0_2 = arith.constant 0 : index
    %1 = vector.load %arg2[%c0_1, %c0_2] : memref<128x256xbf16, #tpu.memory_space<vmem>>, vector<128x256xbf16>
    %cst = arith.constant dense<0.000000e+00> : vector<256x256xf32>
    %2 = tpu.matmul %0, %1, %cst {dimension_numbers = #tpu.dot_dimension_numbers<[1], [0], [0], [1], [0, 0, 1, 1], [], []>} : vector<256x128xbf16>, vector<128x256xbf16>, vector<256x256xf32> -> vector<256x256xf32>
    %c0_3 = arith.constant 0 : index
    %c0_4 = arith.constant 0 : index
    %3 = vector.load %arg3[%c0_3, %c0_4] : memref<1x256xf32, #tpu.memory_space<vmem>>, vector<1x256xf32>
    %4 = vector.broadcast %3 : vector<1x256xf32> to vector<256x256xf32>
    %5 = arith.mulf %2, %4 : vector<256x256xf32>
    %c0_5 = arith.constant 0 : index
    %c0_6 = arith.constant 0 : index
    %6 = vector.load %arg4[%c0_5, %c0_6] : memref<1x256xf32, #tpu.memory_space<vmem>>, vector<1x256xf32>
    %7 = vector.broadcast %6 : vector<1x256xf32> to vector<256x256xf32>
    %8 = arith.addf %5, %7 : vector<256x256xf32>
    %cst_7 = arith.constant 0.000000e+00 : f32
    %9 = vector.broadcast %cst_7 : f32 to vector<256x256xf32>
    %10 = arith.subf %9, %8 : vector<256x256xf32>
    %11 = math.exp %10 : vector<256x256xf32>
    %cst_8 = arith.constant 1.000000e+00 : f32
    %12 = vector.broadcast %cst_8 : f32 to vector<256x256xf32>
    %13 = arith.addf %12, %11 : vector<256x256xf32>
    %14 = tpu.reciprocal %13 {approx = true} : vector<256x256xf32> -> vector<256x256xf32>
    %15 = arith.mulf %8, %14 : vector<256x256xf32>
    %16 = vector.extract_strided_slice %15 {offsets = [0, 0], sizes = [256, 128], strides = [1, 1]} : vector<256x256xf32> to vector<256x128xf32>
    %17 = arith.truncf %16 : vector<256x128xf32> to vector<256x128xbf16>
    %c0_9 = arith.constant 0 : index
    %c0_10 = arith.constant 0 : index
    %18 = vector.load %arg5[%c0_9, %c0_10] : memref<256x128xbf16, #tpu.memory_space<vmem>>, vector<256x128xbf16>
    tpu.vector_store %arg5[%c0_9, %c0_10], %17 {strides = array<i32>} : memref<256x128xbf16, #tpu.memory_space<vmem>>, vector<256x128xbf16>,
    %19 = vector.extract_strided_slice %15 {offsets = [0, 128], sizes = [256, 128], strides = [1, 1]} : vector<256x256xf32> to vector<256x128xf32>
    %20 = arith.truncf %19 : vector<256x128xf32> to vector<256x128xbf16>
    %c0_11 = arith.constant 0 : index
    %c0_12 = arith.constant 0 : index
    %21 = vector.load %arg6[%c0_11, %c0_12] : memref<256x128xbf16, #tpu.memory_space<vmem>>, vector<256x128xbf16>
    tpu.vector_store %arg6[%c0_11, %c0_12], %20 {strides = array<i32>} : memref<256x128xbf16, #tpu.memory_space<vmem>>, vector<256x128xbf16>,
    return
  }
  func.func @transform_0(%arg0: i32) -> (i32, i32) {
    %c0_i32 = arith.constant 0 : i32
    %c0_i32_0 = arith.constant 0 : i32
    return %arg0, %c0_i32 : i32, i32
  }
  func.func @transform_1(%arg0: i32) -> (i32, i32) {
    %c0_i32 = arith.constant 0 : i32
    %c0_i32_0 = arith.constant 0 : i32
    %c0_i32_1 = arith.constant 0 : i32
    return %c0_i32, %c0_i32_0 : i32, i32
  }
  func.func @transform_2(%arg0: i32) -> (i32, i32) {
    %c0_i32 = arith.constant 0 : i32
    %c0_i32_0 = arith.constant 0 : i32
    %c0_i32_1 = arith.constant 0 : i32
    return %c0_i32, %c0_i32_0 : i32, i32
  }
  func.func @transform_3(%arg0: i32) -> (i32, i32) {
    %c0_i32 = arith.constant 0 : i32
    %c0_i32_0 = arith.constant 0 : i32
    %c0_i32_1 = arith.constant 0 : i32
    return %c0_i32, %c0_i32_0 : i32, i32
  }
  func.func @transform_4(%arg0: i32) -> (i32, i32) {
    %c0_i32 = arith.constant 0 : i32
    %c0_i32_0 = arith.constant 0 : i32
    return %arg0, %c0_i32 : i32, i32
  }
  func.func @transform_5(%arg0: i32) -> (i32, i32) {
    %c0_i32 = arith.constant 0 : i32
    %c0_i32_0 = arith.constant 0 : i32
    return %arg0, %c0_i32 : i32, i32
  }
}

module attributes {stable_mosaic.version = 11 : i64} {
  func.func @_bottleneck_kernel(%arg0: i32, %arg1: memref<1x256x128xbf16, #tpu.memory_space<vmem>>, %arg2: memref<128x128xbf16, #tpu.memory_space<vmem>>, %arg3: memref<1x128xf32, #tpu.memory_space<vmem>>, %arg4: memref<1x128xf32, #tpu.memory_space<vmem>>, %arg5: memref<9x128x128xbf16, #tpu.memory_space<vmem>>, %arg6: memref<1x128xf32, #tpu.memory_space<vmem>>, %arg7: memref<1x128xf32, #tpu.memory_space<vmem>>, %arg8: memref<1x256x128xbf16, #tpu.memory_space<vmem>>, %arg9: memref<18x18x128xbf16, #tpu.memory_space<vmem>>) attributes {dimension_semantics = [#tpu.dimension_semantics<parallel>], iteration_bounds = array<i64: 2>, scalar_prefetch = 0 : i64, scratch_operands = 1 : i64, tpu.core_type = #tpu.core_type<tc>, window_params = [{transform_indices = @transform_0, window_bounds = array<i64: 1, 256, 128>}, {pipeline_mode = #tpu.pipeline_mode<synchronous>, transform_indices = @transform_1, window_bounds = array<i64: 128, 128>}, {pipeline_mode = #tpu.pipeline_mode<synchronous>, transform_indices = @transform_2, window_bounds = array<i64: 1, 128>}, {pipeline_mode = #tpu.pipeline_mode<synchronous>, transform_indices = @transform_3, window_bounds = array<i64: 1, 128>}, {pipeline_mode = #tpu.pipeline_mode<synchronous>, transform_indices = @transform_4, window_bounds = array<i64: 9, 128, 128>}, {pipeline_mode = #tpu.pipeline_mode<synchronous>, transform_indices = @transform_5, window_bounds = array<i64: 1, 128>}, {pipeline_mode = #tpu.pipeline_mode<synchronous>, transform_indices = @transform_6, window_bounds = array<i64: 1, 128>}, {transform_indices = @transform_7, window_bounds = array<i64: 1, 256, 128>}]} {
    %c0 = arith.constant 0 : index
    %c0_0 = arith.constant 0 : index
    %c0_1 = arith.constant 0 : index
    %0 = vector.load %arg1[%c0, %c0_0, %c0_1] : memref<1x256x128xbf16, #tpu.memory_space<vmem>>, vector<1x256x128xbf16>
    %1 = vector.shape_cast %0 : vector<1x256x128xbf16> to vector<256x128xbf16>
    %c0_2 = arith.constant 0 : index
    %c0_3 = arith.constant 0 : index
    %2 = vector.load %arg2[%c0_2, %c0_3] : memref<128x128xbf16, #tpu.memory_space<vmem>>, vector<128x128xbf16>
    %cst = arith.constant dense<0.000000e+00> : vector<256x128xf32>
    %3 = tpu.matmul %1, %2, %cst {dimension_numbers = #tpu.dot_dimension_numbers<[1], [0], [0], [1], [0, 0, 1, 1], [], []>} : vector<256x128xbf16>, vector<128x128xbf16>, vector<256x128xf32> -> vector<256x128xf32>
    %c0_4 = arith.constant 0 : index
    %c0_5 = arith.constant 0 : index
    %4 = vector.load %arg3[%c0_4, %c0_5] : memref<1x128xf32, #tpu.memory_space<vmem>>, vector<1x128xf32>
    %5 = vector.broadcast %4 : vector<1x128xf32> to vector<256x128xf32>
    %6 = arith.mulf %3, %5 : vector<256x128xf32>
    %c0_6 = arith.constant 0 : index
    %c0_7 = arith.constant 0 : index
    %7 = vector.load %arg4[%c0_6, %c0_7] : memref<1x128xf32, #tpu.memory_space<vmem>>, vector<1x128xf32>
    %8 = vector.broadcast %7 : vector<1x128xf32> to vector<256x128xf32>
    %9 = arith.addf %6, %8 : vector<256x128xf32>
    %cst_8 = arith.constant 0.000000e+00 : f32
    %10 = vector.broadcast %cst_8 : f32 to vector<256x128xf32>
    %11 = arith.subf %10, %9 : vector<256x128xf32>
    %12 = math.exp %11 : vector<256x128xf32>
    %cst_9 = arith.constant 1.000000e+00 : f32
    %13 = vector.broadcast %cst_9 : f32 to vector<256x128xf32>
    %14 = arith.addf %13, %12 : vector<256x128xf32>
    %15 = tpu.reciprocal %14 {approx = true} : vector<256x128xf32> -> vector<256x128xf32>
    %16 = arith.mulf %9, %15 : vector<256x128xf32>
    %cst_10 = arith.constant 0.000000e+00 : bf16
    %17 = vector.broadcast %cst_10 : bf16 to vector<1x18x128xbf16>
    %c0_11 = arith.constant 0 : index
    %c0_12 = arith.constant 0 : index
    %c0_13 = arith.constant 0 : index
    %18 = vector.load %arg9[%c0_11, %c0_12, %c0_13] : memref<18x18x128xbf16, #tpu.memory_space<vmem>>, vector<1x18x128xbf16>
    tpu.vector_store %arg9[%c0_11, %c0_12, %c0_13], %17 {strides = array<i32>} : memref<18x18x128xbf16, #tpu.memory_space<vmem>>, vector<1x18x128xbf16>,
    %c17 = arith.constant 17 : index
    %c0_14 = arith.constant 0 : index
    %c0_15 = arith.constant 0 : index
    %19 = vector.load %arg9[%c17, %c0_14, %c0_15] : memref<18x18x128xbf16, #tpu.memory_space<vmem>>, vector<1x18x128xbf16>
    tpu.vector_store %arg9[%c17, %c0_14, %c0_15], %17 {strides = array<i32>} : memref<18x18x128xbf16, #tpu.memory_space<vmem>>, vector<1x18x128xbf16>,
    %cst_16 = arith.constant 0.000000e+00 : bf16
    %20 = vector.broadcast %cst_16 : bf16 to vector<18x1x128xbf16>
    %c0_17 = arith.constant 0 : index
    %c0_18 = arith.constant 0 : index
    %c0_19 = arith.constant 0 : index
    %21 = vector.load %arg9[%c0_17, %c0_18, %c0_19] : memref<18x18x128xbf16, #tpu.memory_space<vmem>>, vector<18x1x128xbf16>
    tpu.vector_store %arg9[%c0_17, %c0_18, %c0_19], %20 {strides = array<i32>} : memref<18x18x128xbf16, #tpu.memory_space<vmem>>, vector<18x1x128xbf16>,
    %c0_20 = arith.constant 0 : index
    %c17_21 = arith.constant 17 : index
    %c0_22 = arith.constant 0 : index
    %22 = vector.load %arg9[%c0_20, %c17_21, %c0_22] : memref<18x18x128xbf16, #tpu.memory_space<vmem>>, vector<18x1x128xbf16>
    tpu.vector_store %arg9[%c0_20, %c17_21, %c0_22], %20 {strides = array<i32>} : memref<18x18x128xbf16, #tpu.memory_space<vmem>>, vector<18x1x128xbf16>,
    %23 = arith.truncf %16 : vector<256x128xf32> to vector<256x128xbf16>
    %24 = vector.shape_cast %23 : vector<256x128xbf16> to vector<16x16x128xbf16>
    %c1 = arith.constant 1 : index
    %c1_23 = arith.constant 1 : index
    %c0_24 = arith.constant 0 : index
    %25 = vector.load %arg9[%c1, %c1_23, %c0_24] : memref<18x18x128xbf16, #tpu.memory_space<vmem>>, vector<16x16x128xbf16>
    tpu.vector_store %arg9[%c1, %c1_23, %c0_24], %24 {strides = array<i32>} : memref<18x18x128xbf16, #tpu.memory_space<vmem>>, vector<16x16x128xbf16>,
    %cst_25 = arith.constant 0.000000e+00 : f32
    %26 = vector.broadcast %cst_25 : f32 to vector<256x128xf32>
    %c0_26 = arith.constant 0 : index
    %c0_27 = arith.constant 0 : index
    %c0_28 = arith.constant 0 : index
    %27 = vector.load %arg9[%c0_26, %c0_27, %c0_28] : memref<18x18x128xbf16, #tpu.memory_space<vmem>>, vector<16x16x128xbf16>
    %28 = vector.shape_cast %27 : vector<16x16x128xbf16> to vector<256x128xbf16>
    %c0_29 = arith.constant 0 : index
    %c0_30 = arith.constant 0 : index
    %c0_31 = arith.constant 0 : index
    %29 = vector.load %arg5[%c0_29, %c0_30, %c0_31] : memref<9x128x128xbf16, #tpu.memory_space<vmem>>, vector<1x128x128xbf16>
    %30 = vector.shape_cast %29 : vector<1x128x128xbf16> to vector<128x128xbf16>
    %cst_32 = arith.constant dense<0.000000e+00> : vector<256x128xf32>
    %31 = tpu.matmul %28, %30, %cst_32 {dimension_numbers = #tpu.dot_dimension_numbers<[1], [0], [0], [1], [0, 0, 1, 1], [], []>} : vector<256x128xbf16>, vector<128x128xbf16>, vector<256x128xf32> -> vector<256x128xf32>
    %32 = arith.addf %26, %31 : vector<256x128xf32>
    %c0_33 = arith.constant 0 : index
    %c1_34 = arith.constant 1 : index
    %c0_35 = arith.constant 0 : index
    %33 = vector.load %arg9[%c0_33, %c1_34, %c0_35] : memref<18x18x128xbf16, #tpu.memory_space<vmem>>, vector<16x16x128xbf16>
    %34 = vector.shape_cast %33 : vector<16x16x128xbf16> to vector<256x128xbf16>
    %c1_36 = arith.constant 1 : index
    %c0_37 = arith.constant 0 : index
    %c0_38 = arith.constant 0 : index
    %35 = vector.load %arg5[%c1_36, %c0_37, %c0_38] : memref<9x128x128xbf16, #tpu.memory_space<vmem>>, vector<1x128x128xbf16>
    %36 = vector.shape_cast %35 : vector<1x128x128xbf16> to vector<128x128xbf16>
    %cst_39 = arith.constant dense<0.000000e+00> : vector<256x128xf32>
    %37 = tpu.matmul %34, %36, %cst_39 {dimension_numbers = #tpu.dot_dimension_numbers<[1], [0], [0], [1], [0, 0, 1, 1], [], []>} : vector<256x128xbf16>, vector<128x128xbf16>, vector<256x128xf32> -> vector<256x128xf32>
    %38 = arith.addf %32, %37 : vector<256x128xf32>
    %c0_40 = arith.constant 0 : index
    %c2 = arith.constant 2 : index
    %c0_41 = arith.constant 0 : index
    %39 = vector.load %arg9[%c0_40, %c2, %c0_41] : memref<18x18x128xbf16, #tpu.memory_space<vmem>>, vector<16x16x128xbf16>
    %40 = vector.shape_cast %39 : vector<16x16x128xbf16> to vector<256x128xbf16>
    %c2_42 = arith.constant 2 : index
    %c0_43 = arith.constant 0 : index
    %c0_44 = arith.constant 0 : index
    %41 = vector.load %arg5[%c2_42, %c0_43, %c0_44] : memref<9x128x128xbf16, #tpu.memory_space<vmem>>, vector<1x128x128xbf16>
    %42 = vector.shape_cast %41 : vector<1x128x128xbf16> to vector<128x128xbf16>
    %cst_45 = arith.constant dense<0.000000e+00> : vector<256x128xf32>
    %43 = tpu.matmul %40, %42, %cst_45 {dimension_numbers = #tpu.dot_dimension_numbers<[1], [0], [0], [1], [0, 0, 1, 1], [], []>} : vector<256x128xbf16>, vector<128x128xbf16>, vector<256x128xf32> -> vector<256x128xf32>
    %44 = arith.addf %38, %43 : vector<256x128xf32>
    %c1_46 = arith.constant 1 : index
    %c0_47 = arith.constant 0 : index
    %c0_48 = arith.constant 0 : index
    %45 = vector.load %arg9[%c1_46, %c0_47, %c0_48] : memref<18x18x128xbf16, #tpu.memory_space<vmem>>, vector<16x16x128xbf16>
    %46 = vector.shape_cast %45 : vector<16x16x128xbf16> to vector<256x128xbf16>
    %c3 = arith.constant 3 : index
    %c0_49 = arith.constant 0 : index
    %c0_50 = arith.constant 0 : index
    %47 = vector.load %arg5[%c3, %c0_49, %c0_50] : memref<9x128x128xbf16, #tpu.memory_space<vmem>>, vector<1x128x128xbf16>
    %48 = vector.shape_cast %47 : vector<1x128x128xbf16> to vector<128x128xbf16>
    %cst_51 = arith.constant dense<0.000000e+00> : vector<256x128xf32>
    %49 = tpu.matmul %46, %48, %cst_51 {dimension_numbers = #tpu.dot_dimension_numbers<[1], [0], [0], [1], [0, 0, 1, 1], [], []>} : vector<256x128xbf16>, vector<128x128xbf16>, vector<256x128xf32> -> vector<256x128xf32>
    %50 = arith.addf %44, %49 : vector<256x128xf32>
    %c1_52 = arith.constant 1 : index
    %c1_53 = arith.constant 1 : index
    %c0_54 = arith.constant 0 : index
    %51 = vector.load %arg9[%c1_52, %c1_53, %c0_54] : memref<18x18x128xbf16, #tpu.memory_space<vmem>>, vector<16x16x128xbf16>
    %52 = vector.shape_cast %51 : vector<16x16x128xbf16> to vector<256x128xbf16>
    %c4 = arith.constant 4 : index
    %c0_55 = arith.constant 0 : index
    %c0_56 = arith.constant 0 : index
    %53 = vector.load %arg5[%c4, %c0_55, %c0_56] : memref<9x128x128xbf16, #tpu.memory_space<vmem>>, vector<1x128x128xbf16>
    %54 = vector.shape_cast %53 : vector<1x128x128xbf16> to vector<128x128xbf16>
    %cst_57 = arith.constant dense<0.000000e+00> : vector<256x128xf32>
    %55 = tpu.matmul %52, %54, %cst_57 {dimension_numbers = #tpu.dot_dimension_numbers<[1], [0], [0], [1], [0, 0, 1, 1], [], []>} : vector<256x128xbf16>, vector<128x128xbf16>, vector<256x128xf32> -> vector<256x128xf32>
    %56 = arith.addf %50, %55 : vector<256x128xf32>
    %c1_58 = arith.constant 1 : index
    %c2_59 = arith.constant 2 : index
    %c0_60 = arith.constant 0 : index
    %57 = vector.load %arg9[%c1_58, %c2_59, %c0_60] : memref<18x18x128xbf16, #tpu.memory_space<vmem>>, vector<16x16x128xbf16>
    %58 = vector.shape_cast %57 : vector<16x16x128xbf16> to vector<256x128xbf16>
    %c5 = arith.constant 5 : index
    %c0_61 = arith.constant 0 : index
    %c0_62 = arith.constant 0 : index
    %59 = vector.load %arg5[%c5, %c0_61, %c0_62] : memref<9x128x128xbf16, #tpu.memory_space<vmem>>, vector<1x128x128xbf16>
    %60 = vector.shape_cast %59 : vector<1x128x128xbf16> to vector<128x128xbf16>
    %cst_63 = arith.constant dense<0.000000e+00> : vector<256x128xf32>
    %61 = tpu.matmul %58, %60, %cst_63 {dimension_numbers = #tpu.dot_dimension_numbers<[1], [0], [0], [1], [0, 0, 1, 1], [], []>} : vector<256x128xbf16>, vector<128x128xbf16>, vector<256x128xf32> -> vector<256x128xf32>
    %62 = arith.addf %56, %61 : vector<256x128xf32>
    %c2_64 = arith.constant 2 : index
    %c0_65 = arith.constant 0 : index
    %c0_66 = arith.constant 0 : index
    %63 = vector.load %arg9[%c2_64, %c0_65, %c0_66] : memref<18x18x128xbf16, #tpu.memory_space<vmem>>, vector<16x16x128xbf16>
    %64 = vector.shape_cast %63 : vector<16x16x128xbf16> to vector<256x128xbf16>
    %c6 = arith.constant 6 : index
    %c0_67 = arith.constant 0 : index
    %c0_68 = arith.constant 0 : index
    %65 = vector.load %arg5[%c6, %c0_67, %c0_68] : memref<9x128x128xbf16, #tpu.memory_space<vmem>>, vector<1x128x128xbf16>
    %66 = vector.shape_cast %65 : vector<1x128x128xbf16> to vector<128x128xbf16>
    %cst_69 = arith.constant dense<0.000000e+00> : vector<256x128xf32>
    %67 = tpu.matmul %64, %66, %cst_69 {dimension_numbers = #tpu.dot_dimension_numbers<[1], [0], [0], [1], [0, 0, 1, 1], [], []>} : vector<256x128xbf16>, vector<128x128xbf16>, vector<256x128xf32> -> vector<256x128xf32>
    %68 = arith.addf %62, %67 : vector<256x128xf32>
    %c2_70 = arith.constant 2 : index
    %c1_71 = arith.constant 1 : index
    %c0_72 = arith.constant 0 : index
    %69 = vector.load %arg9[%c2_70, %c1_71, %c0_72] : memref<18x18x128xbf16, #tpu.memory_space<vmem>>, vector<16x16x128xbf16>
    %70 = vector.shape_cast %69 : vector<16x16x128xbf16> to vector<256x128xbf16>
    %c7 = arith.constant 7 : index
    %c0_73 = arith.constant 0 : index
    %c0_74 = arith.constant 0 : index
    %71 = vector.load %arg5[%c7, %c0_73, %c0_74] : memref<9x128x128xbf16, #tpu.memory_space<vmem>>, vector<1x128x128xbf16>
    %72 = vector.shape_cast %71 : vector<1x128x128xbf16> to vector<128x128xbf16>
    %cst_75 = arith.constant dense<0.000000e+00> : vector<256x128xf32>
    %73 = tpu.matmul %70, %72, %cst_75 {dimension_numbers = #tpu.dot_dimension_numbers<[1], [0], [0], [1], [0, 0, 1, 1], [], []>} : vector<256x128xbf16>, vector<128x128xbf16>, vector<256x128xf32> -> vector<256x128xf32>
    %74 = arith.addf %68, %73 : vector<256x128xf32>
    %c2_76 = arith.constant 2 : index
    %c2_77 = arith.constant 2 : index
    %c0_78 = arith.constant 0 : index
    %75 = vector.load %arg9[%c2_76, %c2_77, %c0_78] : memref<18x18x128xbf16, #tpu.memory_space<vmem>>, vector<16x16x128xbf16>
    %76 = vector.shape_cast %75 : vector<16x16x128xbf16> to vector<256x128xbf16>
    %c8 = arith.constant 8 : index
    %c0_79 = arith.constant 0 : index
    %c0_80 = arith.constant 0 : index
    %77 = vector.load %arg5[%c8, %c0_79, %c0_80] : memref<9x128x128xbf16, #tpu.memory_space<vmem>>, vector<1x128x128xbf16>
    %78 = vector.shape_cast %77 : vector<1x128x128xbf16> to vector<128x128xbf16>
    %cst_81 = arith.constant dense<0.000000e+00> : vector<256x128xf32>
    %79 = tpu.matmul %76, %78, %cst_81 {dimension_numbers = #tpu.dot_dimension_numbers<[1], [0], [0], [1], [0, 0, 1, 1], [], []>} : vector<256x128xbf16>, vector<128x128xbf16>, vector<256x128xf32> -> vector<256x128xf32>
    %80 = arith.addf %74, %79 : vector<256x128xf32>
    %c0_82 = arith.constant 0 : index
    %c0_83 = arith.constant 0 : index
    %81 = vector.load %arg6[%c0_82, %c0_83] : memref<1x128xf32, #tpu.memory_space<vmem>>, vector<1x128xf32>
    %82 = vector.broadcast %81 : vector<1x128xf32> to vector<256x128xf32>
    %83 = arith.mulf %80, %82 : vector<256x128xf32>
    %c0_84 = arith.constant 0 : index
    %c0_85 = arith.constant 0 : index
    %84 = vector.load %arg7[%c0_84, %c0_85] : memref<1x128xf32, #tpu.memory_space<vmem>>, vector<1x128xf32>
    %85 = vector.broadcast %84 : vector<1x128xf32> to vector<256x128xf32>
    %86 = arith.addf %83, %85 : vector<256x128xf32>
    %cst_86 = arith.constant 0.000000e+00 : f32
    %87 = vector.broadcast %cst_86 : f32 to vector<256x128xf32>
    %88 = arith.subf %87, %86 : vector<256x128xf32>
    %89 = math.exp %88 : vector<256x128xf32>
    %cst_87 = arith.constant 1.000000e+00 : f32
    %90 = vector.broadcast %cst_87 : f32 to vector<256x128xf32>
    %91 = arith.addf %90, %89 : vector<256x128xf32>
    %92 = tpu.reciprocal %91 {approx = true} : vector<256x128xf32> -> vector<256x128xf32>
    %93 = arith.mulf %86, %92 : vector<256x128xf32>
    %94 = arith.extf %1 : vector<256x128xbf16> to vector<256x128xf32>
    %95 = arith.addf %93, %94 : vector<256x128xf32>
    %96 = arith.truncf %95 : vector<256x128xf32> to vector<256x128xbf16>
    %c0_88 = arith.constant 0 : index
    %c0_89 = arith.constant 0 : index
    %c0_90 = arith.constant 0 : index
    %97 = vector.load %arg8[%c0_88, %c0_89, %c0_90] : memref<1x256x128xbf16, #tpu.memory_space<vmem>>, vector<1x256x128xbf16>
    %98 = vector.shape_cast %97 : vector<1x256x128xbf16> to vector<256x128xbf16>
    %99 = vector.shape_cast %96 : vector<256x128xbf16> to vector<1x256x128xbf16>
    tpu.vector_store %arg8[%c0_88, %c0_89, %c0_90], %99 {strides = array<i32>} : memref<1x256x128xbf16, #tpu.memory_space<vmem>>, vector<1x256x128xbf16>,
    return
  }
  func.func @transform_0(%arg0: i32) -> (i32, i32, i32) {
    %c0_i32 = arith.constant 0 : i32
    %c0_i32_0 = arith.constant 0 : i32
    %c0_i32_1 = arith.constant 0 : i32
    return %arg0, %c0_i32, %c0_i32_0 : i32, i32, i32
  }
  func.func @transform_1(%arg0: i32) -> (i32, i32) {
    %c0_i32 = arith.constant 0 : i32
    %c0_i32_0 = arith.constant 0 : i32
    %c0_i32_1 = arith.constant 0 : i32
    return %c0_i32, %c0_i32_0 : i32, i32
  }
  func.func @transform_2(%arg0: i32) -> (i32, i32) {
    %c0_i32 = arith.constant 0 : i32
    %c0_i32_0 = arith.constant 0 : i32
    %c0_i32_1 = arith.constant 0 : i32
    return %c0_i32, %c0_i32_0 : i32, i32
  }
  func.func @transform_3(%arg0: i32) -> (i32, i32) {
    %c0_i32 = arith.constant 0 : i32
    %c0_i32_0 = arith.constant 0 : i32
    %c0_i32_1 = arith.constant 0 : i32
    return %c0_i32, %c0_i32_0 : i32, i32
  }
  func.func @transform_4(%arg0: i32) -> (i32, i32, i32) {
    %c0_i32 = arith.constant 0 : i32
    %c0_i32_0 = arith.constant 0 : i32
    %c0_i32_1 = arith.constant 0 : i32
    %c0_i32_2 = arith.constant 0 : i32
    return %c0_i32, %c0_i32_0, %c0_i32_1 : i32, i32, i32
  }
  func.func @transform_5(%arg0: i32) -> (i32, i32) {
    %c0_i32 = arith.constant 0 : i32
    %c0_i32_0 = arith.constant 0 : i32
    %c0_i32_1 = arith.constant 0 : i32
    return %c0_i32, %c0_i32_0 : i32, i32
  }
  func.func @transform_6(%arg0: i32) -> (i32, i32) {
    %c0_i32 = arith.constant 0 : i32
    %c0_i32_0 = arith.constant 0 : i32
    %c0_i32_1 = arith.constant 0 : i32
    return %c0_i32, %c0_i32_0 : i32, i32
  }
  func.func @transform_7(%arg0: i32) -> (i32, i32, i32) {
    %c0_i32 = arith.constant 0 : i32
    %c0_i32_0 = arith.constant 0 : i32
    %c0_i32_1 = arith.constant 0 : i32
    return %arg0, %c0_i32, %c0_i32_0 : i32, i32, i32
  }
}

module attributes {stable_mosaic.version = 11 : i64} {
  func.func @_tail_kernel(%arg0: i32, %arg1: memref<256x128xbf16, #tpu.memory_space<vmem>>, %arg2: memref<256x128xbf16, #tpu.memory_space<vmem>>, %arg3: memref<256x128xbf16, #tpu.memory_space<vmem>>, %arg4: memref<1x128xf32, #tpu.memory_space<vmem>>, %arg5: memref<1x128xf32, #tpu.memory_space<vmem>>, %arg6: memref<256x128xf32, #tpu.memory_space<vmem>>, %arg7: memref<256x256xbf16, #tpu.memory_space<vmem>>) attributes {dimension_semantics = [#tpu.dimension_semantics<parallel>], iteration_bounds = array<i64: 2>, scalar_prefetch = 0 : i64, scratch_operands = 1 : i64, tpu.core_type = #tpu.core_type<tc>, window_params = [{transform_indices = @transform_0, window_bounds = array<i64: 256, 128>}, {transform_indices = @transform_1, window_bounds = array<i64: 256, 128>}, {pipeline_mode = #tpu.pipeline_mode<synchronous>, transform_indices = @transform_2, window_bounds = array<i64: 256, 128>}, {pipeline_mode = #tpu.pipeline_mode<synchronous>, transform_indices = @transform_3, window_bounds = array<i64: 1, 128>}, {pipeline_mode = #tpu.pipeline_mode<synchronous>, transform_indices = @transform_4, window_bounds = array<i64: 1, 128>}, {transform_indices = @transform_5, window_bounds = array<i64: 256, 128>}]} {
    %c0 = arith.constant 0 : index
    %c0_0 = arith.constant 0 : index
    %0 = vector.load %arg1[%c0, %c0_0] : memref<256x128xbf16, #tpu.memory_space<vmem>>, vector<256x128xbf16>
    %c0_1 = arith.constant 0 : index
    %c0_2 = arith.constant 0 : index
    %1 = vector.load %arg7[%c0_1, %c0_2] : memref<256x256xbf16, #tpu.memory_space<vmem>>, vector<256x128xbf16>
    tpu.vector_store %arg7[%c0_1, %c0_2], %0 {strides = array<i32>} : memref<256x256xbf16, #tpu.memory_space<vmem>>, vector<256x128xbf16>,
    %c0_3 = arith.constant 0 : index
    %c0_4 = arith.constant 0 : index
    %2 = vector.load %arg2[%c0_3, %c0_4] : memref<256x128xbf16, #tpu.memory_space<vmem>>, vector<256x128xbf16>
    %c0_5 = arith.constant 0 : index
    %c128 = arith.constant 128 : index
    %3 = vector.load %arg7[%c0_5, %c128] : memref<256x256xbf16, #tpu.memory_space<vmem>>, vector<256x128xbf16>
    tpu.vector_store %arg7[%c0_5, %c128], %2 {strides = array<i32>} : memref<256x256xbf16, #tpu.memory_space<vmem>>, vector<256x128xbf16>,
    %c0_6 = arith.constant 0 : index
    %c0_7 = arith.constant 0 : index
    %4 = vector.load %arg7[%c0_6, %c0_7] : memref<256x256xbf16, #tpu.memory_space<vmem>>, vector<256x256xbf16>
    %c0_8 = arith.constant 0 : index
    %c0_9 = arith.constant 0 : index
    %5 = vector.load %arg3[%c0_8, %c0_9] : memref<256x128xbf16, #tpu.memory_space<vmem>>, vector<256x128xbf16>
    %cst = arith.constant dense<0.000000e+00> : vector<256x128xf32>
    %6 = tpu.matmul %4, %5, %cst {dimension_numbers = #tpu.dot_dimension_numbers<[1], [0], [0], [1], [0, 0, 1, 1], [], []>} : vector<256x256xbf16>, vector<256x128xbf16>, vector<256x128xf32> -> vector<256x128xf32>
    %c0_10 = arith.constant 0 : index
    %c0_11 = arith.constant 0 : index
    %7 = vector.load %arg4[%c0_10, %c0_11] : memref<1x128xf32, #tpu.memory_space<vmem>>, vector<1x128xf32>
    %8 = vector.broadcast %7 : vector<1x128xf32> to vector<256x128xf32>
    %9 = arith.mulf %6, %8 : vector<256x128xf32>
    %c0_12 = arith.constant 0 : index
    %c0_13 = arith.constant 0 : index
    %10 = vector.load %arg5[%c0_12, %c0_13] : memref<1x128xf32, #tpu.memory_space<vmem>>, vector<1x128xf32>
    %11 = vector.broadcast %10 : vector<1x128xf32> to vector<256x128xf32>
    %12 = arith.addf %9, %11 : vector<256x128xf32>
    %cst_14 = arith.constant 0.000000e+00 : f32
    %13 = vector.broadcast %cst_14 : f32 to vector<256x128xf32>
    %14 = arith.subf %13, %12 : vector<256x128xf32>
    %15 = math.exp %14 : vector<256x128xf32>
    %cst_15 = arith.constant 1.000000e+00 : f32
    %16 = vector.broadcast %cst_15 : f32 to vector<256x128xf32>
    %17 = arith.addf %16, %15 : vector<256x128xf32>
    %18 = tpu.reciprocal %17 {approx = true} : vector<256x128xf32> -> vector<256x128xf32>
    %19 = arith.mulf %12, %18 : vector<256x128xf32>
    %c0_16 = arith.constant 0 : index
    %c0_17 = arith.constant 0 : index
    %20 = vector.load %arg6[%c0_16, %c0_17] : memref<256x128xf32, #tpu.memory_space<vmem>>, vector<256x128xf32>
    tpu.vector_store %arg6[%c0_16, %c0_17], %19 {strides = array<i32>} : memref<256x128xf32, #tpu.memory_space<vmem>>, vector<256x128xf32>,
    return
  }
  func.func @transform_0(%arg0: i32) -> (i32, i32) {
    %c0_i32 = arith.constant 0 : i32
    %c0_i32_0 = arith.constant 0 : i32
    return %arg0, %c0_i32 : i32, i32
  }
  func.func @transform_1(%arg0: i32) -> (i32, i32) {
    %c0_i32 = arith.constant 0 : i32
    %c0_i32_0 = arith.constant 0 : i32
    return %arg0, %c0_i32 : i32, i32
  }
  func.func @transform_2(%arg0: i32) -> (i32, i32) {
    %c0_i32 = arith.constant 0 : i32
    %c0_i32_0 = arith.constant 0 : i32
    %c0_i32_1 = arith.constant 0 : i32
    return %c0_i32, %c0_i32_0 : i32, i32
  }
  func.func @transform_3(%arg0: i32) -> (i32, i32) {
    %c0_i32 = arith.constant 0 : i32
    %c0_i32_0 = arith.constant 0 : i32
    %c0_i32_1 = arith.constant 0 : i32
    return %c0_i32, %c0_i32_0 : i32, i32
  }
  func.func @transform_4(%arg0: i32) -> (i32, i32) {
    %c0_i32 = arith.constant 0 : i32
    %c0_i32_0 = arith.constant 0 : i32
    %c0_i32_1 = arith.constant 0 : i32
    return %c0_i32, %c0_i32_0 : i32, i32
  }
  func.func @transform_5(%arg0: i32) -> (i32, i32) {
    %c0_i32 = arith.constant 0 : i32
    %c0_i32_0 = arith.constant 0 : i32
    return %arg0, %c0_i32 : i32, i32
  }
}

</mosaic_0001>

<llo_original>
// kernel: c3_forward.3
$region0: #{c3_forward.3}
  #allocation0 [shape = 'u32[]', space=smem, size = 0x4, offset = 0x4, fixed_abs, tag = 'smem constant byte address 0x4 - core index']
  #allocation1 [shape = 'u32[72,128]{1,0:T(1,128)}', space=vmem, size = 0x9000, scoped, tag = 'internal scratch']
  %s0 = inlined_call_operand.vmem [shape: bf16[512,128], index: 0, kind: input, shape index: {}]
  %s1 = inlined_call_operand.vmem [shape: bf16[128,256], index: 1, kind: input, shape index: {}]
  %s2 = inlined_call_operand.vmem [shape: f32[1,256], index: 2, kind: input, shape index: {}]
  %s3 = inlined_call_operand.vmem [shape: f32[1,256], index: 3, kind: input, shape index: {}]
  %s4 = inlined_call_operand.vmem [shape: bf16[512,128], index: 4, kind: output, shape index: {0}]
  %s5 = inlined_call_operand.vmem [shape: bf16[512,128], index: 5, kind: output, shape index: {1}]
  %6 = xla_tuple %s4, %s5
  %s7 = sld [smem:[#allocation0]]
  $region57: #{c3_forward.3} parent=0
    _
  %s9 = ssub.s32 1, %s7
  %s10 = scalar_select 0, %s9, %s7
  loop: start=0, step=1, limit=4
  $region2: #{c3_forward.3} parent=0 // loop_pre_header
    _
  $region3: #{c3_forward.3} parent=0 // loop_header
    %s12 = sphi 0, %s16
    %p13 = scmp.ge.s32.totalorder %s12, 4
    %s22 = sphi 0, %s24
    %s25 = sphi 0, %s22
    %s26 = sphi 0, %s25
    %s42 = sphi 0, %s26
    %s46 = sphi 0, %s46
    %s48 = sphi 0, %s46
    %s49 = sphi 0, %s48
    %s63 = sphi 0, %s49
    %s67 = sphi 0, %s67
    %s69 = sphi 0, %s67
    %s70 = sphi 0, %s69
    %s84 = sphi 0, %s70
    %s88 = sphi 0, %s88
    %s90 = sphi 0, %s88
    %s91 = sphi 0, %s90
    %s105 = sphi 0, %s91
    %s111 = sphi 0, %s113
    %s114 = sphi 0, %s111
    %s115 = sphi 0, %s114
    %s131 = sphi 0, %s115
    %s137 = sphi 0, %s139
    %s140 = sphi 0, %s137
    %s141 = sphi 0, %s140
    %s157 = sphi 0, %s141
  $region4: #{c3_forward.3} parent=0 // loop_header_branch
    %15 = sbr.rel (%p13) target = $region8
  $region5: #{c3_forward.3} parent=0 // loop_body
    %s17 = ssub.s32 %s12, 1
    %s18 = ssub.s32 %s12, 2
    %s19 = sadd.s32 %s12, 1
    %s20 = ssub.s32 %s12, %s19
    %p21 = scmp.eq.s32.totalorder %s20, 0
    %s23 = sadd.s32 %s22, 1
    %s24 = scalar_select %p21, %s22, %s23
    %p27 = pneg %p21
    %p28 = scmp.eq.s32.totalorder %s12, 1
    %p29 = por %p27, %p28
    %p30 = scmp.ne.s32.totalorder %s22, %s25
    %p31 = scmp.eq.s32.totalorder %s12, 0
    %p32 = por %p30, %p31
    %p33 = scmp.ne.s32.totalorder %s22, %s25
    %p34 = scmp.eq.s32.totalorder %s17, 1
    %p35 = por %p33, %p34
    %p36 = scmp.ne.s32.totalorder %s25, %s26
    %p37 = scmp.eq.s32.totalorder %s17, 0
    %p38 = por %p36, %p37
    %p39 = scmp.ne.s32.totalorder %s25, %s26
    %p40 = scmp.eq.s32.totalorder %s18, 1
    %p41 = por %p39, %p40
    %p43 = scmp.ne.s32.totalorder %s26, %s42
    %p44 = scmp.eq.s32.totalorder %s18, 0
    %p45 = por %p43, %p44
    %s47 = sadd.s32 %s46, 1
    %p50 = scmp.eq.s32.totalorder %s12, 1
    %p51 = scmp.ne.s32.totalorder %s46, %s48
    %p52 = scmp.eq.s32.totalorder %s12, 0
    %p53 = por %p51, %p52
    %p54 = scmp.ne.s32.totalorder %s46, %s48
    %p55 = scmp.eq.s32.totalorder %s17, 1
    %p56 = por %p54, %p55
    %p57 = scmp.ne.s32.totalorder %s48, %s49
    %p58 = scmp.eq.s32.totalorder %s17, 0
    %p59 = por %p57, %p58
    %p60 = scmp.ne.s32.totalorder %s48, %s49
    %p61 = scmp.eq.s32.totalorder %s18, 1
    %p62 = por %p60, %p61
    %p64 = scmp.ne.s32.totalorder %s49, %s63
    %p65 = scmp.eq.s32.totalorder %s18, 0
    %p66 = por %p64, %p65
    %s68 = sadd.s32 %s67, 1
    %p71 = scmp.eq.s32.totalorder %s12, 1
    %p72 = scmp.ne.s32.totalorder %s67, %s69
    %p73 = scmp.eq.s32.totalorder %s12, 0
    %p74 = por %p72, %p73
    %p75 = scmp.ne.s32.totalorder %s67, %s69
    %p76 = scmp.eq.s32.totalorder %s17, 1
    %p77 = por %p75, %p76
    %p78 = scmp.ne.s32.totalorder %s69, %s70
    %p79 = scmp.eq.s32.totalorder %s17, 0
    %p80 = por %p78, %p79
    %p81 = scmp.ne.s32.totalorder %s69, %s70
    %p82 = scmp.eq.s32.totalorder %s18, 1
    %p83 = por %p81, %p82
    %p85 = scmp.ne.s32.totalorder %s70, %s84
    %p86 = scmp.eq.s32.totalorder %s18, 0
    %p87 = por %p85, %p86
    %s89 = sadd.s32 %s88, 1
    %p92 = scmp.eq.s32.totalorder %s12, 1
    %p93 = scmp.ne.s32.totalorder %s88, %s90
    %p94 = scmp.eq.s32.totalorder %s12, 0
    %p95 = por %p93, %p94
    %p96 = scmp.ne.s32.totalorder %s88, %s90
    %p97 = scmp.eq.s32.totalorder %s17, 1
    %p98 = por %p96, %p97
    %p99 = scmp.ne.s32.totalorder %s90, %s91
    %p100 = scmp.eq.s32.totalorder %s17, 0
    %p101 = por %p99, %p100
    %p102 = scmp.ne.s32.totalorder %s90, %s91
    %p103 = scmp.eq.s32.totalorder %s18, 1
    %p104 = por %p102, %p103
    %p106 = scmp.ne.s32.totalorder %s91, %s105
    %p107 = scmp.eq.s32.totalorder %s18, 0
    %p108 = por %p106, %p107
    %s109 = ssub.s32 %s12, %s19
    %p110 = scmp.eq.s32.totalorder %s109, 0
    %s112 = sadd.s32 %s111, 1
    %s113 = scalar_select %p110, %s111, %s112
    %p116 = pneg %p110
    %p117 = scmp.eq.s32.totalorder %s12, 1
    %p118 = por %p116, %p117
    %p119 = scmp.ne.s32.totalorder %s111, %s114
    %p120 = scmp.eq.s32.totalorder %s12, 0
    %p121 = por %p119, %p120
    %p122 = scmp.ne.s32.totalorder %s111, %s114
    %p123 = scmp.eq.s32.totalorder %s17, 1
    %p124 = por %p122, %p123
    %p125 = scmp.ne.s32.totalorder %s114, %s115
    %p126 = scmp.eq.s32.totalorder %s17, 0
    %p127 = por %p125, %p126
    %p128 = scmp.ne.s32.totalorder %s114, %s115
    %p129 = scmp.eq.s32.totalorder %s18, 1
    %p130 = por %p128, %p129
    %p132 = scmp.ne.s32.totalorder %s115, %s131
    %p133 = scmp.eq.s32.totalorder %s18, 0
    %p134 = por %p132, %p133
    %s135 = ssub.s32 %s12, %s19
    %p136 = scmp.eq.s32.totalorder %s135, 0
    %s138 = sadd.s32 %s137, 1
    %s139 = scalar_select %p136, %s137, %s138
    %p142 = pneg %p136
    %p143 = scmp.eq.s32.totalorder %s12, 1
    %p144 = por %p142, %p143
    %p145 = scmp.ne.s32.totalorder %s137, %s140
    %p146 = scmp.eq.s32.totalorder %s12, 0
    %p147 = por %p145, %p146
    %p148 = scmp.ne.s32.totalorder %s137, %s140
    %p149 = scmp.eq.s32.totalorder %s17, 1
    %p150 = por %p148, %p149
    %p151 = scmp.ne.s32.totalorder %s140, %s141
    %p152 = scmp.eq.s32.totalorder %s17, 0
    %p153 = por %p151, %p152
    %p154 = scmp.ne.s32.totalorder %s140, %s141
    %p155 = scmp.eq.s32.totalorder %s18, 1
    %p156 = por %p154, %p155
    %p158 = scmp.ne.s32.totalorder %s141, %s157
    %p159 = scmp.eq.s32.totalorder %s18, 0
    %p160 = por %p158, %p159
    %p161 = scmp.le.s32.totalorder 1, %s12
    %p162 = scmp.lt.s32.totalorder %s12, 3
    %p163 = pnand %p161, %p162
    %p164 = pneg %p163
    // Predicated region
    $region9: #{c3_forward.3} parent=5 // pred_check
      _
    $region10: #{c3_forward.3} parent=5 // pred_check_branch
      %166 = sbr.rel (%p163) target = $region12
    $region11: #{c3_forward.3} parent=5 // pred_region
      %s167 = ssub.s32 %s12, 1
      // Predicated region
      $region13: #{c3_forward.3} parent=11 // pred_check
        %p168 = pneg %p59
      $region14: #{c3_forward.3} parent=11 // pred_check_branch
        %170 = sbr.rel (%p168) target = $region16
      $region15: #{c3_forward.3} parent=11 // pred_region
        _
      $region16: #{c3_forward.3} parent=11 // pred_fallthru
        _
      // Predicated region
      $region17: #{c3_forward.3} parent=11 // pred_check
        %p171 = pneg %p80
      $region18: #{c3_forward.3} parent=11 // pred_check_branch
        %173 = sbr.rel (%p171) target = $region20
      $region19: #{c3_forward.3} parent=11 // pred_region
        _
      $region20: #{c3_forward.3} parent=11 // pred_fallthru
        _
      // Predicated region
      $region21: #{c3_forward.3} parent=11 // pred_check
        %p174 = pneg %p101
      $region22: #{c3_forward.3} parent=11 // pred_check_branch
        %176 = sbr.rel (%p174) target = $region24
      $region23: #{c3_forward.3} parent=11 // pred_region
        _
      $region24: #{c3_forward.3} parent=11 // pred_fallthru
        _
    $region12: #{c3_forward.3} parent=5 // pred_fallthru
      _
    %p177 = scmp.lt.s32.totalorder %s12, 2
    // Predicated region
    $region25: #{c3_forward.3} parent=5 // pred_check
      %p178 = pneg %p177
    $region26: #{c3_forward.3} parent=5 // pred_check_branch
      %180 = sbr.rel (%p178) target = $region28
    $region27: #{c3_forward.3} parent=5 // pred_region
      // Predicated region
      $region29: #{c3_forward.3} parent=27 // pred_check
        %p181 = pneg %p32
      $region30: #{c3_forward.3} parent=27 // pred_check_branch
        %183 = sbr.rel (%p181) target = $region32
      $region31: #{c3_forward.3} parent=27 // pred_region
        %s184 = smul.u32 32, %s12
        %p185 = scmp.lt.s32.totalorder %s184, 63
        %s186 = scalar_select %p185, %s184, 63
        %s187 = smul.addr %s186, 4
        %s188 = scalar_lea.vmem %s0, %s187
        %s189 = smul.u32 32, %s12
      $region32: #{c3_forward.3} parent=27 // pred_fallthru
        _
    $region28: #{c3_forward.3} parent=5 // pred_fallthru
      _
    %p190 = scmp.le.s32.totalorder 1, %s12
    %p191 = scmp.lt.s32.totalorder %s12, 3
    %p192 = pnand %p190, %p191
    %p193 = pneg %p192
    // Predicated region
    $region33: #{c3_forward.3} parent=5 // pred_check
      _
    $region34: #{c3_forward.3} parent=5 // pred_check_branch
      %195 = sbr.rel (%p192) target = $region36
    $region35: #{c3_forward.3} parent=5 // pred_region
      %s196 = ssub.s32 %s12, 1
      %s197 = smul.u32 32, %s17
      %p198 = scmp.lt.s32.totalorder %s197, 63
      %s199 = scalar_select %p198, %s197, 63
      %s200 = smul.addr %s199, 4
      %s201 = scalar_lea.vmem %s0, %s200
      %p202 = pneg %p38
      %p203 = pneg %p35
      %p204 = pneg %p59
      %p205 = pneg %p56
      %p206 = pneg %p80
      %p207 = pneg %p77
      %p208 = pneg %p101
      %p209 = pneg %p98
      %p210 = pneg %p127
      %p211 = pneg %p124
      %s212 = smul.u32 32, %s17
      %p213 = scmp.lt.s32.totalorder %s212, 63
      %s214 = scalar_select %p213, %s212, 63
      %s215 = smul.addr %s214, 4
      %s216 = scalar_lea.vmem %s4, %s215
      %p217 = pneg %p153
      %p218 = pneg %p150
      %s219 = smul.u32 32, %s17
      %p220 = scmp.lt.s32.totalorder %s219, 63
      %s221 = scalar_select %p220, %s219, 63
      %s222 = smul.addr %s221, 4
      %s223 = scalar_lea.vmem %s5, %s222
      %s224 = smul.u32 32, %s17
      %p225 = scmp.lt.s32.totalorder %s224, 63
      %s226 = scalar_select %p225, %s224, 63
      %s227 = smul.addr %s226, 4
      %s228 = scalar_lea.vmem %s0, %s227
      %s229 = smul.u32 32, %s17
      %s230 = smul.u32 32, %s17
      %p231 = scmp.lt.s32.totalorder %s230, 63
      %s232 = scalar_select %p231, %s230, 63
      %s233 = smul.addr %s232, 4
      %s234 = scalar_lea.vmem %s4, %s233
      %s235 = smul.u32 32, %s17
      %s236 = smul.u32 32, %s17
      %p237 = scmp.lt.s32.totalorder %s236, 63
      %s238 = scalar_select %p237, %s236, 63
      %s239 = smul.addr %s238, 4
      %s240 = scalar_lea.vmem %s5, %s239
      %s241 = smul.u32 32, %s17
      %v242 = vld [vmem:[%s228] sm:$0xf]
      %v243 = vld [vmem:[%s228 + $0x4] sm:$0xf]
      %v244 = vld [vmem:[%s228 + $0x8] sm:$0xf]
      %v245 = vld [vmem:[%s228 + $0xc] sm:$0xf]
      %v246 = vld [vmem:[%s228 + $0x10] sm:$0xf]
      %v247 = vld [vmem:[%s228 + $0x14] sm:$0xf]
      %v248 = vld [vmem:[%s228 + $0x18] sm:$0xf]
      %v249 = vld [vmem:[%s228 + $0x1c] sm:$0xf]
      %v250 = vld [vmem:[%s228 + $0x20] sm:$0xf]
      %v251 = vld [vmem:[%s228 + $0x24] sm:$0xf]
      %v252 = vld [vmem:[%s228 + $0x28] sm:$0xf]
      %v253 = vld [vmem:[%s228 + $0x2c] sm:$0xf]
      %v254 = vld [vmem:[%s228 + $0x30] sm:$0xf]
      %v255 = vld [vmem:[%s228 + $0x34] sm:$0xf]
      %v256 = vld [vmem:[%s228 + $0x38] sm:$0xf]
      %v257 = vld [vmem:[%s228 + $0x3c] sm:$0xf]
      %v258 = vld [vmem:[%s228 + $0x40] sm:$0xf]
      %v259 = vld [vmem:[%s228 + $0x44] sm:$0xf]
      %v260 = vld [vmem:[%s228 + $0x48] sm:$0xf]
      %v261 = vld [vmem:[%s228 + $0x4c] sm:$0xf]
      %v262 = vld [vmem:[%s228 + $0x50] sm:$0xf]
      %v263 = vld [vmem:[%s228 + $0x54] sm:$0xf]
      %v264 = vld [vmem:[%s228 + $0x58] sm:$0xf]
      %v265 = vld [vmem:[%s228 + $0x5c] sm:$0xf]
      %v266 = vld [vmem:[%s228 + $0x60] sm:$0xf]
      %v267 = vld [vmem:[%s228 + $0x64] sm:$0xf]
      %v268 = vld [vmem:[%s228 + $0x68] sm:$0xf]
      %v269 = vld [vmem:[%s228 + $0x6c] sm:$0xf]
      %v270 = vld [vmem:[%s228 + $0x70] sm:$0xf]
      %v271 = vld [vmem:[%s228 + $0x74] sm:$0xf]
      %v272 = vld [vmem:[%s228 + $0x78] sm:$0xf]
      %v273 = vld [vmem:[%s228 + $0x7c] sm:$0xf]
      %v274 = vld [vmem:[%s1] sm:$0xff]
      %v275 = vld [vmem:[%s1 + $0x8] sm:$0xff]
      %v276 = vld [vmem:[%s1 + $0x10] sm:$0xff]
      %v277 = vld [vmem:[%s1 + $0x18] sm:$0xff]
      %v278 = vld [vmem:[%s1 + $0x20] sm:$0xff]
      %v279 = vld [vmem:[%s1 + $0x28] sm:$0xff]
      %v280 = vld [vmem:[%s1 + $0x30] sm:$0xff]
      %v281 = vld [vmem:[%s1 + $0x38] sm:$0xff]
      %v282 = vld [vmem:[%s1 + $0x40] sm:$0xff]
      %v283 = vld [vmem:[%s1 + $0x48] sm:$0xff]
      %v284 = vld [vmem:[%s1 + $0x50] sm:$0xff]
      %v285 = vld [vmem:[%s1 + $0x58] sm:$0xff]
      %v286 = vld [vmem:[%s1 + $0x60] sm:$0xff]
      %v287 = vld [vmem:[%s1 + $0x68] sm:$0xff]
      %v288 = vld [vmem:[%s1 + $0x70] sm:$0xff]
      %v289 = vld [vmem:[%s1 + $0x78] sm:$0xff]
      %v322 = vunpack.c.l.b16 %v242
      %v323 = vunpack.c.l.b16 %v243
      %v324 = vunpack.c.l.b16 %v244
      %v325 = vunpack.c.l.b16 %v245
      %v326 = vunpack.c.l.b16 %v246
      %v327 = vunpack.c.l.b16 %v247
      %v328 = vunpack.c.l.b16 %v248
      %v329 = vunpack.c.l.b16 %v249
      %v330 = vunpack.c.l.b16 %v250
      %v331 = vunpack.c.l.b16 %v251
      %v332 = vunpack.c.l.b16 %v252
      %v333 = vunpack.c.l.b16 %v253
      %v334 = vunpack.c.l.b16 %v254
      %v335 = vunpack.c.l.b16 %v255
      %v336 = vunpack.c.l.b16 %v256
      %v337 = vunpack.c.l.b16 %v257
      %v338 = vunpack.c.l.b16 %v258
      %v339 = vunpack.c.l.b16 %v259
      %v340 = vunpack.c.l.b16 %v260
      %v341 = vunpack.c.l.b16 %v261
      %v342 = vunpack.c.l.b16 %v262
      %v343 = vunpack.c.l.b16 %v263
      %v344 = vunpack.c.l.b16 %v264
      %v345 = vunpack.c.l.b16 %v265
      %v346 = vunpack.c.l.b16 %v266
      %v347 = vunpack.c.l.b16 %v267
      %v348 = vunpack.c.l.b16 %v268
      %v349 = vunpack.c.l.b16 %v269
      %v350 = vunpack.c.l.b16 %v270
      %v351 = vunpack.c.l.b16 %v271
      %v352 = vunpack.c.l.b16 %v272
      %v353 = vunpack.c.l.b16 %v273
      %v354 = vpack.c.b16 %v323, %v322
      %v355 = vpack.c.b16 %v325, %v324
      %v356 = vpack.c.b16 %v327, %v326
      %v357 = vpack.c.b16 %v329, %v328
      %v358 = vpack.c.b16 %v331, %v330
      %v359 = vpack.c.b16 %v333, %v332
      %v360 = vpack.c.b16 %v335, %v334
      %v361 = vpack.c.b16 %v337, %v336
      %v362 = vpack.c.b16 %v339, %v338
      %v363 = vpack.c.b16 %v341, %v340
      %v364 = vpack.c.b16 %v343, %v342
      %v365 = vpack.c.b16 %v345, %v344
      %v366 = vpack.c.b16 %v347, %v346
      %v367 = vpack.c.b16 %v349, %v348
      %v368 = vpack.c.b16 %v351, %v350
      %v369 = vpack.c.b16 %v353, %v352
      %v402 = vunpack.c.l.b16 %v274
      %v403 = vunpack.c.h.b16 %v274
      %v404 = vunpack.c.l.b16 %v275
      %v405 = vunpack.c.h.b16 %v275
      %v406 = vunpack.c.l.b16 %v276
      %v407 = vunpack.c.h.b16 %v276
      %v408 = vunpack.c.l.b16 %v277
      %v409 = vunpack.c.h.b16 %v277
      %v410 = vunpack.c.l.b16 %v278
      %v411 = vunpack.c.h.b16 %v278
      %v412 = vunpack.c.l.b16 %v279
      %v413 = vunpack.c.h.b16 %v279
      %v414 = vunpack.c.l.b16 %v280
      %v415 = vunpack.c.h.b16 %v280
      %v416 = vunpack.c.l.b16 %v281
      %v417 = vunpack.c.h.b16 %v281
      %v418 = vunpack.c.l.b16 %v282
      %v419 = vunpack.c.h.b16 %v282
      %v420 = vunpack.c.l.b16 %v283
      %v421 = vunpack.c.h.b16 %v283
      %v422 = vunpack.c.l.b16 %v284
      %v423 = vunpack.c.h.b16 %v284
      %v424 = vunpack.c.l.b16 %v285
      %v425 = vunpack.c.h.b16 %v285
      %v426 = vunpack.c.l.b16 %v286
      %v427 = vunpack.c.h.b16 %v286
      %v428 = vunpack.c.l.b16 %v287
      %v429 = vunpack.c.h.b16 %v287
      %v430 = vunpack.c.l.b16 %v288
      %v431 = vunpack.c.h.b16 %v288
      %v432 = vunpack.c.l.b16 %v289
      %v433 = vunpack.c.h.b16 %v289
      %v434 = vpack.c.b16 %v404, %v402
      %v435 = vpack.c.b16 %v405, %v403
      %v436 = vpack.c.b16 %v408, %v406
      %v437 = vpack.c.b16 %v409, %v407
      %v438 = vpack.c.b16 %v412, %v410
      %v439 = vpack.c.b16 %v413, %v411
      %v440 = vpack.c.b16 %v416, %v414
      %v441 = vpack.c.b16 %v417, %v415
      %v442 = vpack.c.b16 %v420, %v418
      %v443 = vpack.c.b16 %v421, %v419
      %v444 = vpack.c.b16 %v424, %v422
      %v445 = vpack.c.b16 %v425, %v423
      %v446 = vpack.c.b16 %v428, %v426
      %v447 = vpack.c.b16 %v429, %v427
      %v448 = vpack.c.b16 %v432, %v430
      %v449 = vpack.c.b16 %v433, %v431
      %466 = vmatpush.bf16.msra.mxu0 %v448
      %467 = vmatpush.bf16.msra.mxu0 %v446
      %468 = vmatpush.bf16.msra.mxu0 %v444
      %469 = vmatpush.bf16.msra.mxu0 %v442
      %470 = vmatpush.bf16.msra.mxu0 %v440
      %471 = vmatpush.bf16.msra.mxu0 %v438
      %472 = vmatpush.bf16.msra.mxu0 %v436
      %473 = vmatpush.bf16.msra.mxu0 %v434
      %474 = vmatmul.bf16.gmra.mxu0 %v354
      %v475 = vpop.f32.mrf.mxu0
      %v476 = vadd.f32 0.0, %v475
      %v477 = vpop.f32.mrf.mxu0
      %v478 = vadd.f32 0.0, %v477
      %479 = vmatmul.bf16.gmra.mxu0 %v355
      %v480 = vpop.f32.mrf.mxu0
      %v481 = vadd.f32 0.0, %v480
      %v482 = vpop.f32.mrf.mxu0
      %v483 = vadd.f32 0.0, %v482
      %484 = vmatmul.bf16.gmra.mxu0 %v356
      %v485 = vpop.f32.mrf.mxu0
      %v486 = vadd.f32 0.0, %v485
      %v487 = vpop.f32.mrf.mxu0
      %v488 = vadd.f32 0.0, %v487
      %489 = vmatmul.bf16.gmra.mxu0 %v357
      %v490 = vpop.f32.mrf.mxu0
      %v491 = vadd.f32 0.0, %v490
      %v492 = vpop.f32.mrf.mxu0
      %v493 = vadd.f32 0.0, %v492
      %494 = vmatmul.bf16.gmra.mxu0 %v358
      %v495 = vpop.f32.mrf.mxu0
      %v496 = vadd.f32 0.0, %v495
      %v497 = vpop.f32.mrf.mxu0
      %v498 = vadd.f32 0.0, %v497
      %499 = vmatmul.bf16.gmra.mxu0 %v359
      %v500 = vpop.f32.mrf.mxu0
      %v501 = vadd.f32 0.0, %v500
      %v502 = vpop.f32.mrf.mxu0
      %v503 = vadd.f32 0.0, %v502
      %504 = vmatmul.bf16.gmra.mxu0 %v360
      %v505 = vpop.f32.mrf.mxu0
      %v506 = vadd.f32 0.0, %v505
      %v507 = vpop.f32.mrf.mxu0
      %v508 = vadd.f32 0.0, %v507
      %509 = vmatmul.bf16.gmra.mxu0 %v361
      %v510 = vpop.f32.mrf.mxu0
      %v511 = vadd.f32 0.0, %v510
      %v512 = vpop.f32.mrf.mxu0
      %v513 = vadd.f32 0.0, %v512
      %514 = vmatmul.bf16.gmra.mxu0 %v362
      %v515 = vpop.f32.mrf.mxu0
      %v516 = vadd.f32 0.0, %v515
      %v517 = vpop.f32.mrf.mxu0
      %v518 = vadd.f32 0.0, %v517
      %519 = vmatmul.bf16.gmra.mxu0 %v363
      %v520 = vpop.f32.mrf.mxu0
      %v521 = vadd.f32 0.0, %v520
      %v522 = vpop.f32.mrf.mxu0
      %v523 = vadd.f32 0.0, %v522
      %524 = vmatmul.bf16.gmra.mxu0 %v364
      %v525 = vpop.f32.mrf.mxu0
      %v526 = vadd.f32 0.0, %v525
      %v527 = vpop.f32.mrf.mxu0
      %v528 = vadd.f32 0.0, %v527
      %529 = vmatmul.bf16.gmra.mxu0 %v365
      %v530 = vpop.f32.mrf.mxu0
      %v531 = vadd.f32 0.0, %v530
      %v532 = vpop.f32.mrf.mxu0
      %v533 = vadd.f32 0.0, %v532
      %534 = vmatmul.bf16.gmra.mxu0 %v366
      %v535 = vpop.f32.mrf.mxu0
      %v536 = vadd.f32 0.0, %v535
      %v537 = vpop.f32.mrf.mxu0
      %v538 = vadd.f32 0.0, %v537
      %539 = vmatmul.bf16.gmra.mxu0 %v367
      %v540 = vpop.f32.mrf.mxu0
      %v541 = vadd.f32 0.0, %v540
      %v542 = vpop.f32.mrf.mxu0
      %v543 = vadd.f32 0.0, %v542
      %544 = vmatmul.bf16.gmra.mxu0 %v368
      %v545 = vpop.f32.mrf.mxu0
      %v546 = vadd.f32 0.0, %v545
      %v547 = vpop.f32.mrf.mxu0
      %v548 = vadd.f32 0.0, %v547
      %549 = vmatmul.bf16.gmra.mxu0 %v369
      %v550 = vpop.f32.mrf.mxu0
      %v551 = vadd.f32 0.0, %v550
      %v552 = vpop.f32.mrf.mxu0
      %v553 = vadd.f32 0.0, %v552
      %554 = vdwg.mxu0
      %555 = vmatpush.bf16.msra.mxu0 %v449
      %556 = vmatpush.bf16.msra.mxu0 %v447
      %557 = vmatpush.bf16.msra.mxu0 %v445
      %558 = vmatpush.bf16.msra.mxu0 %v443
      %559 = vmatpush.bf16.msra.mxu0 %v441
      %560 = vmatpush.bf16.msra.mxu0 %v439
      %561 = vmatpush.bf16.msra.mxu0 %v437
      %562 = vmatpush.bf16.msra.mxu0 %v435
      %563 = vmatmul.bf16.gmra.mxu0 %v354
      %v564 = vpop.f32.mrf.mxu0
      %v565 = vadd.f32 0.0, %v564
      %v566 = vpop.f32.mrf.mxu0
      %v567 = vadd.f32 0.0, %v566
      %568 = vmatmul.bf16.gmra.mxu0 %v355
      %v569 = vpop.f32.mrf.mxu0
      %v570 = vadd.f32 0.0, %v569
      %v571 = vpop.f32.mrf.mxu0
      %v572 = vadd.f32 0.0, %v571
      %573 = vmatmul.bf16.gmra.mxu0 %v356
      %v574 = vpop.f32.mrf.mxu0
      %v575 = vadd.f32 0.0, %v574
      %v576 = vpop.f32.mrf.mxu0
      %v577 = vadd.f32 0.0, %v576
      %578 = vmatmul.bf16.gmra.mxu0 %v357
      %v579 = vpop.f32.mrf.mxu0
      %v580 = vadd.f32 0.0, %v579
      %v581 = vpop.f32.mrf.mxu0
      %v582 = vadd.f32 0.0, %v581
      %583 = vmatmul.bf16.gmra.mxu0 %v358
      %v584 = vpop.f32.mrf.mxu0
      %v585 = vadd.f32 0.0, %v584
      %v586 = vpop.f32.mrf.mxu0
      %v587 = vadd.f32 0.0, %v586
      %588 = vmatmul.bf16.gmra.mxu0 %v359
      %v589 = vpop.f32.mrf.mxu0
      %v590 = vadd.f32 0.0, %v589
      %v591 = vpop.f32.mrf.mxu0
      %v592 = vadd.f32 0.0, %v591
      %593 = vmatmul.bf16.gmra.mxu0 %v360
      %v594 = vpop.f32.mrf.mxu0
      %v595 = vadd.f32 0.0, %v594
      %v596 = vpop.f32.mrf.mxu0
      %v597 = vadd.f32 0.0, %v596
      %598 = vmatmul.bf16.gmra.mxu0 %v361
      %v599 = vpop.f32.mrf.mxu0
      %v600 = vadd.f32 0.0, %v599
      %v601 = vpop.f32.mrf.mxu0
      %v602 = vadd.f32 0.0, %v601
      %603 = vmatmul.bf16.gmra.mxu0 %v362
      %v604 = vpop.f32.mrf.mxu0
      %v605 = vadd.f32 0.0, %v604
      %v606 = vpop.f32.mrf.mxu0
      %v607 = vadd.f32 0.0, %v606
      %608 = vmatmul.bf16.gmra.mxu0 %v363
      %v609 = vpop.f32.mrf.mxu0
      %v610 = vadd.f32 0.0, %v609
      %v611 = vpop.f32.mrf.mxu0
      %v612 = vadd.f32 0.0, %v611
      %613 = vmatmul.bf16.gmra.mxu0 %v364
      %v614 = vpop.f32.mrf.mxu0
      %v615 = vadd.f32 0.0, %v614
      %v616 = vpop.f32.mrf.mxu0
      %v617 = vadd.f32 0.0, %v616
      %618 = vmatmul.bf16.gmra.mxu0 %v365
      %v619 = vpop.f32.mrf.mxu0
      %v620 = vadd.f32 0.0, %v619
      %v621 = vpop.f32.mrf.mxu0
      %v622 = vadd.f32 0.0, %v621
      %623 = vmatmul.bf16.gmra.mxu0 %v366
      %v624 = vpop.f32.mrf.mxu0
      %v625 = vadd.f32 0.0, %v624
      %v626 = vpop.f32.mrf.mxu0
      %v627 = vadd.f32 0.0, %v626
      %628 = vmatmul.bf16.gmra.mxu0 %v367
      %v629 = vpop.f32.mrf.mxu0
      %v630 = vadd.f32 0.0, %v629
      %v631 = vpop.f32.mrf.mxu0
      %v632 = vadd.f32 0.0, %v631
      %633 = vmatmul.bf16.gmra.mxu0 %v368
      %v634 = vpop.f32.mrf.mxu0
      %v635 = vadd.f32 0.0, %v634
      %v636 = vpop.f32.mrf.mxu0
      %v637 = vadd.f32 0.0, %v636
      %638 = vmatmul.bf16.gmra.mxu0 %v369
      %v639 = vpop.f32.mrf.mxu0
      %v640 = vadd.f32 0.0, %v639
      %v641 = vpop.f32.mrf.mxu0
      %v642 = vadd.f32 0.0, %v641
      %643 = vdwg.mxu0
      %v644 = vld [vmem:[%s2] sm:$0x3]
      %v646 = vperm.slane %v644, 0
      %v647 = vperm.slane %v644, 1
      %v650 = vmul.f32 %v476, %v646
      %v651 = vmul.f32 %v565, %v647
      %v652 = vmul.f32 %v478, %v646
      %v653 = vmul.f32 %v567, %v647
      %v654 = vmul.f32 %v481, %v646
      %v655 = vmul.f32 %v570, %v647
      %v656 = vmul.f32 %v483, %v646
      %v657 = vmul.f32 %v572, %v647
      %v658 = vmul.f32 %v486, %v646
      %v659 = vmul.f32 %v575, %v647
      %v660 = vmul.f32 %v488, %v646
      %v661 = vmul.f32 %v577, %v647
      %v662 = vmul.f32 %v491, %v646
      %v663 = vmul.f32 %v580, %v647
      %v664 = vmul.f32 %v493, %v646
      %v665 = vmul.f32 %v582, %v647
      %v666 = vmul.f32 %v496, %v646
      %v667 = vmul.f32 %v585, %v647
      %v668 = vmul.f32 %v498, %v646
      %v669 = vmul.f32 %v587, %v647
      %v670 = vmul.f32 %v501, %v646
      %v671 = vmul.f32 %v590, %v647
      %v672 = vmul.f32 %v503, %v646
      %v673 = vmul.f32 %v592, %v647
      %v674 = vmul.f32 %v506, %v646
      %v675 = vmul.f32 %v595, %v647
      %v676 = vmul.f32 %v508, %v646
      %v677 = vmul.f32 %v597, %v647
      %v678 = vmul.f32 %v511, %v646
      %v679 = vmul.f32 %v600, %v647
      %v680 = vmul.f32 %v513, %v646
      %v681 = vmul.f32 %v602, %v647
      %v682 = vmul.f32 %v516, %v646
      %v683 = vmul.f32 %v605, %v647
      %v684 = vmul.f32 %v518, %v646
      %v685 = vmul.f32 %v607, %v647
      %v686 = vmul.f32 %v521, %v646
      %v687 = vmul.f32 %v610, %v647
      %v688 = vmul.f32 %v523, %v646
      %v689 = vmul.f32 %v612, %v647
      %v690 = vmul.f32 %v526, %v646
      %v691 = vmul.f32 %v615, %v647
      %v692 = vmul.f32 %v528, %v646
      %v693 = vmul.f32 %v617, %v647
      %v694 = vmul.f32 %v531, %v646
      %v695 = vmul.f32 %v620, %v647
      %v696 = vmul.f32 %v533, %v646
      %v697 = vmul.f32 %v622, %v647
      %v698 = vmul.f32 %v536, %v646
      %v699 = vmul.f32 %v625, %v647
      %v700 = vmul.f32 %v538, %v646
      %v701 = vmul.f32 %v627, %v647
      %v702 = vmul.f32 %v541, %v646
      %v703 = vmul.f32 %v630, %v647
      %v704 = vmul.f32 %v543, %v646
      %v705 = vmul.f32 %v632, %v647
      %v706 = vmul.f32 %v546, %v646
      %v707 = vmul.f32 %v635, %v647
      %v708 = vmul.f32 %v548, %v646
      %v709 = vmul.f32 %v637, %v647
      %v710 = vmul.f32 %v551, %v646
      %v711 = vmul.f32 %v640, %v647
      %v712 = vmul.f32 %v553, %v646
      %v713 = vmul.f32 %v642, %v647
      %v714 = vld [vmem:[%s3] sm:$0x3]
      %v716 = vperm.slane %v714, 0
      %v717 = vperm.slane %v714, 1
      %v720 = vadd.f32 %v650, %v716
      %v721 = vadd.f32 %v651, %v717
      %v722 = vadd.f32 %v652, %v716
      %v723 = vadd.f32 %v653, %v717
      %v724 = vadd.f32 %v654, %v716
      %v725 = vadd.f32 %v655, %v717
      %v726 = vadd.f32 %v656, %v716
      %v727 = vadd.f32 %v657, %v717
      %v728 = vadd.f32 %v658, %v716
      %v729 = vadd.f32 %v659, %v717
      %v730 = vadd.f32 %v660, %v716
      %v731 = vadd.f32 %v661, %v717
      %v732 = vadd.f32 %v662, %v716
      %v733 = vadd.f32 %v663, %v717
      %v734 = vadd.f32 %v664, %v716
      %v735 = vadd.f32 %v665, %v717
      %v736 = vadd.f32 %v666, %v716
      %v737 = vadd.f32 %v667, %v717
      %v738 = vadd.f32 %v668, %v716
      %v739 = vadd.f32 %v669, %v717
      %v740 = vadd.f32 %v670, %v716
      %v741 = vadd.f32 %v671, %v717
      %v742 = vadd.f32 %v672, %v716
      %v743 = vadd.f32 %v673, %v717
      %v744 = vadd.f32 %v674, %v716
      %v745 = vadd.f32 %v675, %v717
      %v746 = vadd.f32 %v676, %v716
      %v747 = vadd.f32 %v677, %v717
      %v748 = vadd.f32 %v678, %v716
      %v749 = vadd.f32 %v679, %v717
      %v750 = vadd.f32 %v680, %v716
      %v751 = vadd.f32 %v681, %v717
      %v752 = vadd.f32 %v682, %v716
      %v753 = vadd.f32 %v683, %v717
      %v754 = vadd.f32 %v684, %v716
      %v755 = vadd.f32 %v685, %v717
      %v756 = vadd.f32 %v686, %v716
      %v757 = vadd.f32 %v687, %v717
      %v758 = vadd.f32 %v688, %v716
      %v759 = vadd.f32 %v689, %v717
      %v760 = vadd.f32 %v690, %v716
      %v761 = vadd.f32 %v691, %v717
      %v762 = vadd.f32 %v692, %v716
      %v763 = vadd.f32 %v693, %v717
      %v764 = vadd.f32 %v694, %v716
      %v765 = vadd.f32 %v695, %v717
      %v766 = vadd.f32 %v696, %v716
      %v767 = vadd.f32 %v697, %v717
      %v768 = vadd.f32 %v698, %v716
      %v769 = vadd.f32 %v699, %v717
      %v770 = vadd.f32 %v700, %v716
      %v771 = vadd.f32 %v701, %v717
      %v772 = vadd.f32 %v702, %v716
      %v773 = vadd.f32 %v703, %v717
      %v774 = vadd.f32 %v704, %v716
      %v775 = vadd.f32 %v705, %v717
      %v776 = vadd.f32 %v706, %v716
      %v777 = vadd.f32 %v707, %v717
      %v778 = vadd.f32 %v708, %v716
      %v779 = vadd.f32 %v709, %v717
      %v780 = vadd.f32 %v710, %v716
      %v781 = vadd.f32 %v711, %v717
      %v782 = vadd.f32 %v712, %v716
      %v783 = vadd.f32 %v713, %v717
      %v784 = vsub.f32 0.0, %v720
      %v785 = vsub.f32 0.0, %v721
      %v786 = vsub.f32 0.0, %v722
      %v787 = vsub.f32 0.0, %v723
      %v788 = vsub.f32 0.0, %v724
      %v789 = vsub.f32 0.0, %v725
      %v790 = vsub.f32 0.0, %v726
      %v791 = vsub.f32 0.0, %v727
      %v792 = vsub.f32 0.0, %v728
      %v793 = vsub.f32 0.0, %v729
      %v794 = vsub.f32 0.0, %v730
      %v795 = vsub.f32 0.0, %v731
      %v796 = vsub.f32 0.0, %v732
      %v797 = vsub.f32 0.0, %v733
      %v798 = vsub.f32 0.0, %v734
      %v799 = vsub.f32 0.0, %v735
      %v800 = vsub.f32 0.0, %v736
      %v801 = vsub.f32 0.0, %v737
      %v802 = vsub.f32 0.0, %v738
      %v803 = vsub.f32 0.0, %v739
      %v804 = vsub.f32 0.0, %v740
      %v805 = vsub.f32 0.0, %v741
      %v806 = vsub.f32 0.0, %v742
      %v807 = vsub.f32 0.0, %v743
      %v808 = vsub.f32 0.0, %v744
      %v809 = vsub.f32 0.0, %v745
      %v810 = vsub.f32 0.0, %v746
      %v811 = vsub.f32 0.0, %v747
      %v812 = vsub.f32 0.0, %v748
      %v813 = vsub.f32 0.0, %v749
      %v814 = vsub.f32 0.0, %v750
      %v815 = vsub.f32 0.0, %v751
      %v816 = vsub.f32 0.0, %v752
      %v817 = vsub.f32 0.0, %v753
      %v818 = vsub.f32 0.0, %v754
      %v819 = vsub.f32 0.0, %v755
      %v820 = vsub.f32 0.0, %v756
      %v821 = vsub.f32 0.0, %v757
      %v822 = vsub.f32 0.0, %v758
      %v823 = vsub.f32 0.0, %v759
      %v824 = vsub.f32 0.0, %v760
      %v825 = vsub.f32 0.0, %v761
      %v826 = vsub.f32 0.0, %v762
      %v827 = vsub.f32 0.0, %v763
      %v828 = vsub.f32 0.0, %v764
      %v829 = vsub.f32 0.0, %v765
      %v830 = vsub.f32 0.0, %v766
      %v831 = vsub.f32 0.0, %v767
      %v832 = vsub.f32 0.0, %v768
      %v833 = vsub.f32 0.0, %v769
      %v834 = vsub.f32 0.0, %v770
      %v835 = vsub.f32 0.0, %v771
      %v836 = vsub.f32 0.0, %v772
      %v837 = vsub.f32 0.0, %v773
      %v838 = vsub.f32 0.0, %v774
      %v839 = vsub.f32 0.0, %v775
      %v840 = vsub.f32 0.0, %v776
      %v841 = vsub.f32 0.0, %v777
      %v842 = vsub.f32 0.0, %v778
      %v843 = vsub.f32 0.0, %v779
      %v844 = vsub.f32 0.0, %v780
      %v845 = vsub.f32 0.0, %v781
      %v846 = vsub.f32 0.0, %v782
      %v847 = vsub.f32 0.0, %v783
      %v848 = vmul.f32 %v784, 1.442695
      %v849 = vpow.pop %v848
      %v850 = vmul.f32 %v785, 1.442695
      %v851 = vpow.pop %v850
      %v852 = vmul.f32 %v786, 1.442695
      %v853 = vpow.pop %v852
      %v854 = vmul.f32 %v787, 1.442695
      %v855 = vpow.pop %v854
      %v856 = vmul.f32 %v788, 1.442695
      %v857 = vpow.pop %v856
      %v858 = vmul.f32 %v789, 1.442695
      %v859 = vpow.pop %v858
      %v860 = vmul.f32 %v790, 1.442695
      %v861 = vpow.pop %v860
      %v862 = vmul.f32 %v791, 1.442695
      %v863 = vpow.pop %v862
      %v864 = vmul.f32 %v792, 1.442695
      %v865 = vpow.pop %v864
      %v866 = vmul.f32 %v793, 1.442695
      %v867 = vpow.pop %v866
      %v868 = vmul.f32 %v794, 1.442695
      %v869 = vpow.pop %v868
      %v870 = vmul.f32 %v795, 1.442695
      %v871 = vpow.pop %v870
      %v872 = vmul.f32 %v796, 1.442695
      %v873 = vpow.pop %v872
      %v874 = vmul.f32 %v797, 1.442695
      %v875 = vpow.pop %v874
      %v876 = vmul.f32 %v798, 1.442695
      %v877 = vpow.pop %v876
      %v878 = vmul.f32 %v799, 1.442695
      %v879 = vpow.pop %v878
      %v880 = vmul.f32 %v800, 1.442695
      %v881 = vpow.pop %v880
      %v882 = vmul.f32 %v801, 1.442695
      %v883 = vpow.pop %v882
      %v884 = vmul.f32 %v802, 1.442695
      %v885 = vpow.pop %v884
      %v886 = vmul.f32 %v803, 1.442695
      %v887 = vpow.pop %v886
      %v888 = vmul.f32 %v804, 1.442695
      %v889 = vpow.pop %v888
      %v890 = vmul.f32 %v805, 1.442695
      %v891 = vpow.pop %v890
      %v892 = vmul.f32 %v806, 1.442695
      %v893 = vpow.pop %v892
      %v894 = vmul.f32 %v807, 1.442695
      %v895 = vpow.pop %v894
      %v896 = vmul.f32 %v808, 1.442695
      %v897 = vpow.pop %v896
      %v898 = vmul.f32 %v809, 1.442695
      %v899 = vpow.pop %v898
      %v900 = vmul.f32 %v810, 1.442695
      %v901 = vpow.pop %v900
      %v902 = vmul.f32 %v811, 1.442695
      %v903 = vpow.pop %v902
      %v904 = vmul.f32 %v812, 1.442695
      %v905 = vpow.pop %v904
      %v906 = vmul.f32 %v813, 1.442695
      %v907 = vpow.pop %v906
      %v908 = vmul.f32 %v814, 1.442695
      %v909 = vpow.pop %v908
      %v910 = vmul.f32 %v815, 1.442695
      %v911 = vpow.pop %v910
      %v912 = vmul.f32 %v816, 1.442695
      %v913 = vpow.pop %v912
      %v914 = vmul.f32 %v817, 1.442695
      %v915 = vpow.pop %v914
      %v916 = vmul.f32 %v818, 1.442695
      %v917 = vpow.pop %v916
      %v918 = vmul.f32 %v819, 1.442695
      %v919 = vpow.pop %v918
      %v920 = vmul.f32 %v820, 1.442695
      %v921 = vpow.pop %v920
      %v922 = vmul.f32 %v821, 1.442695
      %v923 = vpow.pop %v922
      %v924 = vmul.f32 %v822, 1.442695
      %v925 = vpow.pop %v924
      %v926 = vmul.f32 %v823, 1.442695
      %v927 = vpow.pop %v926
      %v928 = vmul.f32 %v824, 1.442695
      %v929 = vpow.pop %v928
      %v930 = vmul.f32 %v825, 1.442695
      %v931 = vpow.pop %v930
      %v932 = vmul.f32 %v826, 1.442695
      %v933 = vpow.pop %v932
      %v934 = vmul.f32 %v827, 1.442695
      %v935 = vpow.pop %v934
      %v936 = vmul.f32 %v828, 1.442695
      %v937 = vpow.pop %v936
      %v938 = vmul.f32 %v829, 1.442695
      %v939 = vpow.pop %v938
      %v940 = vmul.f32 %v830, 1.442695
      %v941 = vpow.pop %v940
      %v942 = vmul.f32 %v831, 1.442695
      %v943 = vpow.pop %v942
      %v944 = vmul.f32 %v832, 1.442695
      %v945 = vpow.pop %v944
      %v946 = vmul.f32 %v833, 1.442695
      %v947 = vpow.pop %v946
      %v948 = vmul.f32 %v834, 1.442695
      %v949 = vpow.pop %v948
      %v950 = vmul.f32 %v835, 1.442695
      %v951 = vpow.pop %v950
      %v952 = vmul.f32 %v836, 1.442695
      %v953 = vpow.pop %v952
      %v954 = vmul.f32 %v837, 1.442695
      %v955 = vpow.pop %v954
      %v956 = vmul.f32 %v838, 1.442695
      %v957 = vpow.pop %v956
      %v958 = vmul.f32 %v839, 1.442695
      %v959 = vpow.pop %v958
      %v960 = vmul.f32 %v840, 1.442695
      %v961 = vpow.pop %v960
      %v962 = vmul.f32 %v841, 1.442695
      %v963 = vpow.pop %v962
      %v964 = vmul.f32 %v842, 1.442695
      %v965 = vpow.pop %v964
      %v966 = vmul.f32 %v843, 1.442695
      %v967 = vpow.pop %v966
      %v968 = vmul.f32 %v844, 1.442695
      %v969 = vpow.pop %v968
      %v970 = vmul.f32 %v845, 1.442695
      %v971 = vpow.pop %v970
      %v972 = vmul.f32 %v846, 1.442695
      %v973 = vpow.pop %v972
      %v974 = vmul.f32 %v847, 1.442695
      %v975 = vpow.pop %v974
      %v976 = vadd.f32 %v849, 1.0
      %v977 = vadd.f32 %v851, 1.0
      %v978 = vadd.f32 %v853, 1.0
      %v979 = vadd.f32 %v855, 1.0
      %v980 = vadd.f32 %v857, 1.0
      %v981 = vadd.f32 %v859, 1.0
      %v982 = vadd.f32 %v861, 1.0
      %v983 = vadd.f32 %v863, 1.0
      %v984 = vadd.f32 %v865, 1.0
      %v985 = vadd.f32 %v867, 1.0
      %v986 = vadd.f32 %v869, 1.0
      %v987 = vadd.f32 %v871, 1.0
      %v988 = vadd.f32 %v873, 1.0
      %v989 = vadd.f32 %v875, 1.0
      %v990 = vadd.f32 %v877, 1.0
      %v991 = vadd.f32 %v879, 1.0
      %v992 = vadd.f32 %v881, 1.0
      %v993 = vadd.f32 %v883, 1.0
      %v994 = vadd.f32 %v885, 1.0
      %v995 = vadd.f32 %v887, 1.0
      %v996 = vadd.f32 %v889, 1.0
      %v997 = vadd.f32 %v891, 1.0
      %v998 = vadd.f32 %v893, 1.0
      %v999 = vadd.f32 %v895, 1.0
      %v1000 = vadd.f32 %v897, 1.0
      %v1001 = vadd.f32 %v899, 1.0
      %v1002 = vadd.f32 %v901, 1.0
      %v1003 = vadd.f32 %v903, 1.0
      %v1004 = vadd.f32 %v905, 1.0
      %v1005 = vadd.f32 %v907, 1.0
      %v1006 = vadd.f32 %v909, 1.0
      %v1007 = vadd.f32 %v911, 1.0
      %v1008 = vadd.f32 %v913, 1.0
      %v1009 = vadd.f32 %v915, 1.0
      %v1010 = vadd.f32 %v917, 1.0
      %v1011 = vadd.f32 %v919, 1.0
      %v1012 = vadd.f32 %v921, 1.0
      %v1013 = vadd.f32 %v923, 1.0
      %v1014 = vadd.f32 %v925, 1.0
      %v1015 = vadd.f32 %v927, 1.0
      %v1016 = vadd.f32 %v929, 1.0
      %v1017 = vadd.f32 %v931, 1.0
      %v1018 = vadd.f32 %v933, 1.0
      %v1019 = vadd.f32 %v935, 1.0
      %v1020 = vadd.f32 %v937, 1.0
      %v1021 = vadd.f32 %v939, 1.0
      %v1022 = vadd.f32 %v941, 1.0
      %v1023 = vadd.f32 %v943, 1.0
      %v1024 = vadd.f32 %v945, 1.0
      %v1025 = vadd.f32 %v947, 1.0
      %v1026 = vadd.f32 %v949, 1.0
      %v1027 = vadd.f32 %v951, 1.0
      %v1028 = vadd.f32 %v953, 1.0
      %v1029 = vadd.f32 %v955, 1.0
      %v1030 = vadd.f32 %v957, 1.0
      %v1031 = vadd.f32 %v959, 1.0
      %v1032 = vadd.f32 %v961, 1.0
      %v1033 = vadd.f32 %v963, 1.0
      %v1034 = vadd.f32 %v965, 1.0
      %v1035 = vadd.f32 %v967, 1.0
      %v1036 = vadd.f32 %v969, 1.0
      %v1037 = vadd.f32 %v971, 1.0
      %v1038 = vadd.f32 %v973, 1.0
      %v1039 = vadd.f32 %v975, 1.0
      %v1040 = vrcp.pop %v976
      %v1041 = vrcp.pop %v977
      %v1042 = vrcp.pop %v978
      %v1043 = vrcp.pop %v979
      %v1044 = vrcp.pop %v980
      %v1045 = vrcp.pop %v981
      %v1046 = vrcp.pop %v982
      %v1047 = vrcp.pop %v983
      %v1048 = vrcp.pop %v984
      %v1049 = vrcp.pop %v985
      %v1050 = vrcp.pop %v986
      %v1051 = vrcp.pop %v987
      %v1052 = vrcp.pop %v988
      %v1053 = vrcp.pop %v989
      %v1054 = vrcp.pop %v990
      %v1055 = vrcp.pop %v991
      %v1056 = vrcp.pop %v992
      %v1057 = vrcp.pop %v993
      %v1058 = vrcp.pop %v994
      %v1059 = vrcp.pop %v995
      %v1060 = vrcp.pop %v996
      %v1061 = vrcp.pop %v997
      %v1062 = vrcp.pop %v998
      %v1063 = vrcp.pop %v999
      %v1064 = vrcp.pop %v1000
      %v1065 = vrcp.pop %v1001
      %v1066 = vrcp.pop %v1002
      %v1067 = vrcp.pop %v1003
      %v1068 = vrcp.pop %v1004
      %v1069 = vrcp.pop %v1005
      %v1070 = vrcp.pop %v1006
      %v1071 = vrcp.pop %v1007
      %v1072 = vrcp.pop %v1008
      %v1073 = vrcp.pop %v1009
      %v1074 = vrcp.pop %v1010
      %v1075 = vrcp.pop %v1011
      %v1076 = vrcp.pop %v1012
      %v1077 = vrcp.pop %v1013
      %v1078 = vrcp.pop %v1014
      %v1079 = vrcp.pop %v1015
      %v1080 = vrcp.pop %v1016
      %v1081 = vrcp.pop %v1017
      %v1082 = vrcp.pop %v1018
      %v1083 = vrcp.pop %v1019
      %v1084 = vrcp.pop %v1020
      %v1085 = vrcp.pop %v1021
      %v1086 = vrcp.pop %v1022
      %v1087 = vrcp.pop %v1023
      %v1088 = vrcp.pop %v1024
      %v1089 = vrcp.pop %v1025
      %v1090 = vrcp.pop %v1026
      %v1091 = vrcp.pop %v1027
      %v1092 = vrcp.pop %v1028
      %v1093 = vrcp.pop %v1029
      %v1094 = vrcp.pop %v1030
      %v1095 = vrcp.pop %v1031
      %v1096 = vrcp.pop %v1032
      %v1097 = vrcp.pop %v1033
      %v1098 = vrcp.pop %v1034
      %v1099 = vrcp.pop %v1035
      %v1100 = vrcp.pop %v1036
      %v1101 = vrcp.pop %v1037
      %v1102 = vrcp.pop %v1038
      %v1103 = vrcp.pop %v1039
      %v1104 = vmul.f32 %v720, %v1040
      %v1105 = vmul.f32 %v721, %v1041
      %v1106 = vmul.f32 %v722, %v1042
      %v1107 = vmul.f32 %v723, %v1043
      %v1108 = vmul.f32 %v724, %v1044
      %v1109 = vmul.f32 %v725, %v1045
      %v1110 = vmul.f32 %v726, %v1046
      %v1111 = vmul.f32 %v727, %v1047
      %v1112 = vmul.f32 %v728, %v1048
      %v1113 = vmul.f32 %v729, %v1049
      %v1114 = vmul.f32 %v730, %v1050
      %v1115 = vmul.f32 %v731, %v1051
      %v1116 = vmul.f32 %v732, %v1052
      %v1117 = vmul.f32 %v733, %v1053
      %v1118 = vmul.f32 %v734, %v1054
      %v1119 = vmul.f32 %v735, %v1055
      %v1120 = vmul.f32 %v736, %v1056
      %v1121 = vmul.f32 %v737, %v1057
      %v1122 = vmul.f32 %v738, %v1058
      %v1123 = vmul.f32 %v739, %v1059
      %v1124 = vmul.f32 %v740, %v1060
      %v1125 = vmul.f32 %v741, %v1061
      %v1126 = vmul.f32 %v742, %v1062
      %v1127 = vmul.f32 %v743, %v1063
      %v1128 = vmul.f32 %v744, %v1064
      %v1129 = vmul.f32 %v745, %v1065
      %v1130 = vmul.f32 %v746, %v1066
      %v1131 = vmul.f32 %v747, %v1067
      %v1132 = vmul.f32 %v748, %v1068
      %v1133 = vmul.f32 %v749, %v1069
      %v1134 = vmul.f32 %v750, %v1070
      %v1135 = vmul.f32 %v751, %v1071
      %v1136 = vmul.f32 %v752, %v1072
      %v1137 = vmul.f32 %v753, %v1073
      %v1138 = vmul.f32 %v754, %v1074
      %v1139 = vmul.f32 %v755, %v1075
      %v1140 = vmul.f32 %v756, %v1076
      %v1141 = vmul.f32 %v757, %v1077
      %v1142 = vmul.f32 %v758, %v1078
      %v1143 = vmul.f32 %v759, %v1079
      %v1144 = vmul.f32 %v760, %v1080
      %v1145 = vmul.f32 %v761, %v1081
      %v1146 = vmul.f32 %v762, %v1082
      %v1147 = vmul.f32 %v763, %v1083
      %v1148 = vmul.f32 %v764, %v1084
      %v1149 = vmul.f32 %v765, %v1085
      %v1150 = vmul.f32 %v766, %v1086
      %v1151 = vmul.f32 %v767, %v1087
      %v1152 = vmul.f32 %v768, %v1088
      %v1153 = vmul.f32 %v769, %v1089
      %v1154 = vmul.f32 %v770, %v1090
      %v1155 = vmul.f32 %v771, %v1091
      %v1156 = vmul.f32 %v772, %v1092
      %v1157 = vmul.f32 %v773, %v1093
      %v1158 = vmul.f32 %v774, %v1094
      %v1159 = vmul.f32 %v775, %v1095
      %v1160 = vmul.f32 %v776, %v1096
      %v1161 = vmul.f32 %v777, %v1097
      %v1162 = vmul.f32 %v778, %v1098
      %v1163 = vmul.f32 %v779, %v1099
      %v1164 = vmul.f32 %v780, %v1100
      %v1165 = vmul.f32 %v781, %v1101
      %v1166 = vmul.f32 %v782, %v1102
      %v1167 = vmul.f32 %v783, %v1103
      %v1168 = vpack.c.bf16 %v1104, %v1104
      %v1169 = vpack.c.bf16 %v1106, %v1106
      %v1170 = vpack.c.bf16 %v1108, %v1108
      %v1171 = vpack.c.bf16 %v1110, %v1110
      %v1172 = vpack.c.bf16 %v1112, %v1112
      %v1173 = vpack.c.bf16 %v1114, %v1114
      %v1174 = vpack.c.bf16 %v1116, %v1116
      %v1175 = vpack.c.bf16 %v1118, %v1118
      %v1176 = vpack.c.bf16 %v1120, %v1120
      %v1177 = vpack.c.bf16 %v1122, %v1122
      %v1178 = vpack.c.bf16 %v1124, %v1124
      %v1179 = vpack.c.bf16 %v1126, %v1126
      %v1180 = vpack.c.bf16 %v1128, %v1128
      %v1181 = vpack.c.bf16 %v1130, %v1130
      %v1182 = vpack.c.bf16 %v1132, %v1132
      %v1183 = vpack.c.bf16 %v1134, %v1134
      %v1184 = vpack.c.bf16 %v1136, %v1136
      %v1185 = vpack.c.bf16 %v1138, %v1138
      %v1186 = vpack.c.bf16 %v1140, %v1140
      %v1187 = vpack.c.bf16 %v1142, %v1142
      %v1188 = vpack.c.bf16 %v1144, %v1144
      %v1189 = vpack.c.bf16 %v1146, %v1146
      %v1190 = vpack.c.bf16 %v1148, %v1148
      %v1191 = vpack.c.bf16 %v1150, %v1150
      %v1192 = vpack.c.bf16 %v1152, %v1152
      %v1193 = vpack.c.bf16 %v1154, %v1154
      %v1194 = vpack.c.bf16 %v1156, %v1156
      %v1195 = vpack.c.bf16 %v1158, %v1158
      %v1196 = vpack.c.bf16 %v1160, %v1160
      %v1197 = vpack.c.bf16 %v1162, %v1162
      %v1198 = vpack.c.bf16 %v1164, %v1164
      %v1199 = vpack.c.bf16 %v1166, %v1166
      %1200 = vst [vmem:[%s234] sm:$0xf] %v1168
      %1201 = vst [vmem:[%s234 + $0x4] sm:$0xf] %v1169
      %1202 = vst [vmem:[%s234 + $0x8] sm:$0xf] %v1170
      %1203 = vst [vmem:[%s234 + $0xc] sm:$0xf] %v1171
      %1204 = vst [vmem:[%s234 + $0x10] sm:$0xf] %v1172
      %1205 = vst [vmem:[%s234 + $0x14] sm:$0xf] %v1173
      %1206 = vst [vmem:[%s234 + $0x18] sm:$0xf] %v1174
      %1207 = vst [vmem:[%s234 + $0x1c] sm:$0xf] %v1175
      %1208 = vst [vmem:[%s234 + $0x20] sm:$0xf] %v1176
      %1209 = vst [vmem:[%s234 + $0x24] sm:$0xf] %v1177
      %1210 = vst [vmem:[%s234 + $0x28] sm:$0xf] %v1178
      %1211 = vst [vmem:[%s234 + $0x2c] sm:$0xf] %v1179
      %1212 = vst [vmem:[%s234 + $0x30] sm:$0xf] %v1180
      %1213 = vst [vmem:[%s234 + $0x34] sm:$0xf] %v1181
      %1214 = vst [vmem:[%s234 + $0x38] sm:$0xf] %v1182
      %1215 = vst [vmem:[%s234 + $0x3c] sm:$0xf] %v1183
      %1216 = vst [vmem:[%s234 + $0x40] sm:$0xf] %v1184
      %1217 = vst [vmem:[%s234 + $0x44] sm:$0xf] %v1185
      %1218 = vst [vmem:[%s234 + $0x48] sm:$0xf] %v1186
      %1219 = vst [vmem:[%s234 + $0x4c] sm:$0xf] %v1187
      %1220 = vst [vmem:[%s234 + $0x50] sm:$0xf] %v1188
      %1221 = vst [vmem:[%s234 + $0x54] sm:$0xf] %v1189
      %1222 = vst [vmem:[%s234 + $0x58] sm:$0xf] %v1190
      %1223 = vst [vmem:[%s234 + $0x5c] sm:$0xf] %v1191
      %1224 = vst [vmem:[%s234 + $0x60] sm:$0xf] %v1192
      %1225 = vst [vmem:[%s234 + $0x64] sm:$0xf] %v1193
      %1226 = vst [vmem:[%s234 + $0x68] sm:$0xf] %v1194
      %1227 = vst [vmem:[%s234 + $0x6c] sm:$0xf] %v1195
      %1228 = vst [vmem:[%s234 + $0x70] sm:$0xf] %v1196
      %1229 = vst [vmem:[%s234 + $0x74] sm:$0xf] %v1197
      %1230 = vst [vmem:[%s234 + $0x78] sm:$0xf] %v1198
      %1231 = vst [vmem:[%s234 + $0x7c] sm:$0xf] %v1199
      %v1232 = vpack.c.bf16 %v1105, %v1105
      %v1233 = vpack.c.bf16 %v1107, %v1107
      %v1234 = vpack.c.bf16 %v1109, %v1109
      %v1235 = vpack.c.bf16 %v1111, %v1111
      %v1236 = vpack.c.bf16 %v1113, %v1113
      %v1237 = vpack.c.bf16 %v1115, %v1115
      %v1238 = vpack.c.bf16 %v1117, %v1117
      %v1239 = vpack.c.bf16 %v1119, %v1119
      %v1240 = vpack.c.bf16 %v1121, %v1121
      %v1241 = vpack.c.bf16 %v1123, %v1123
      %v1242 = vpack.c.bf16 %v1125, %v1125
      %v1243 = vpack.c.bf16 %v1127, %v1127
      %v1244 = vpack.c.bf16 %v1129, %v1129
      %v1245 = vpack.c.bf16 %v1131, %v1131
      %v1246 = vpack.c.bf16 %v1133, %v1133
      %v1247 = vpack.c.bf16 %v1135, %v1135
      %v1248 = vpack.c.bf16 %v1137, %v1137
      %v1249 = vpack.c.bf16 %v1139, %v1139
      %v1250 = vpack.c.bf16 %v1141, %v1141
      %v1251 = vpack.c.bf16 %v1143, %v1143
      %v1252 = vpack.c.bf16 %v1145, %v1145
      %v1253 = vpack.c.bf16 %v1147, %v1147
      %v1254 = vpack.c.bf16 %v1149, %v1149
      %v1255 = vpack.c.bf16 %v1151, %v1151
      %v1256 = vpack.c.bf16 %v1153, %v1153
      %v1257 = vpack.c.bf16 %v1155, %v1155
      %v1258 = vpack.c.bf16 %v1157, %v1157
      %v1259 = vpack.c.bf16 %v1159, %v1159
      %v1260 = vpack.c.bf16 %v1161, %v1161
      %v1261 = vpack.c.bf16 %v1163, %v1163
      %v1262 = vpack.c.bf16 %v1165, %v1165
      %v1263 = vpack.c.bf16 %v1167, %v1167
      %1264 = vst [vmem:[%s240] sm:$0xf] %v1232
      %1265 = vst [vmem:[%s240 + $0x4] sm:$0xf] %v1233
      %1266 = vst [vmem:[%s240 + $0x8] sm:$0xf] %v1234
      %1267 = vst [vmem:[%s240 + $0xc] sm:$0xf] %v1235
      %1268 = vst [vmem:[%s240 + $0x10] sm:$0xf] %v1236
      %1269 = vst [vmem:[%s240 + $0x14] sm:$0xf] %v1237
      %1270 = vst [vmem:[%s240 + $0x18] sm:$0xf] %v1238
      %1271 = vst [vmem:[%s240 + $0x1c] sm:$0xf] %v1239
      %1272 = vst [vmem:[%s240 + $0x20] sm:$0xf] %v1240
      %1273 = vst [vmem:[%s240 + $0x24] sm:$0xf] %v1241
      %1274 = vst [vmem:[%s240 + $0x28] sm:$0xf] %v1242
      %1275 = vst [vmem:[%s240 + $0x2c] sm:$0xf] %v1243
      %1276 = vst [vmem:[%s240 + $0x30] sm:$0xf] %v1244
      %1277 = vst [vmem:[%s240 + $0x34] sm:$0xf] %v1245
      %1278 = vst [vmem:[%s240 + $0x38] sm:$0xf] %v1246
      %1279 = vst [vmem:[%s240 + $0x3c] sm:$0xf] %v1247
      %1280 = vst [vmem:[%s240 + $0x40] sm:$0xf] %v1248
      %1281 = vst [vmem:[%s240 + $0x44] sm:$0xf] %v1249
      %1282 = vst [vmem:[%s240 + $0x48] sm:$0xf] %v1250
      %1283 = vst [vmem:[%s240 + $0x4c] sm:$0xf] %v1251
      %1284 = vst [vmem:[%s240 + $0x50] sm:$0xf] %v1252
      %1285 = vst [vmem:[%s240 + $0x54] sm:$0xf] %v1253
      %1286 = vst [vmem:[%s240 + $0x58] sm:$0xf] %v1254
      %1287 = vst [vmem:[%s240 + $0x5c] sm:$0xf] %v1255
      %1288 = vst [vmem:[%s240 + $0x60] sm:$0xf] %v1256
      %1289 = vst [vmem:[%s240 + $0x64] sm:$0xf] %v1257
      %1290 = vst [vmem:[%s240 + $0x68] sm:$0xf] %v1258
      %1291 = vst [vmem:[%s240 + $0x6c] sm:$0xf] %v1259
      %1292 = vst [vmem:[%s240 + $0x70] sm:$0xf] %v1260
      %1293 = vst [vmem:[%s240 + $0x74] sm:$0xf] %v1261
      %1294 = vst [vmem:[%s240 + $0x78] sm:$0xf] %v1262
      %1295 = vst [vmem:[%s240 + $0x7c] sm:$0xf] %v1263
      %s1296 = smul.u32 32, %s17
      %p1297 = scmp.lt.s32.totalorder %s1296, 63
      %s1298 = scalar_select %p1297, %s1296, 63
      %s1299 = smul.addr %s1298, 4
      %s1300 = scalar_lea.vmem %s4, %s1299
      %s1301 = smul.u32 32, %s17
      %p1302 = scmp.lt.s32.totalorder %s1301, 63
      %s1303 = scalar_select %p1302, %s1301, 63
      %s1304 = smul.addr %s1303, 4
      %s1305 = scalar_lea.vmem %s5, %s1304
      // Predicated region
      $region37: #{c3_forward.3} parent=35 // pred_check
        %p1306 = pneg %p124
      $region38: #{c3_forward.3} parent=35 // pred_check_branch
        %1308 = sbr.rel (%p1306) target = $region40
      $region39: #{c3_forward.3} parent=35 // pred_region
        %s1309 = smul.u32 32, %s17
      $region40: #{c3_forward.3} parent=35 // pred_fallthru
        _
      // Predicated region
      $region41: #{c3_forward.3} parent=35 // pred_check
        %p1310 = pneg %p150
      $region42: #{c3_forward.3} parent=35 // pred_check_branch
        %1312 = sbr.rel (%p1310) target = $region44
      $region43: #{c3_forward.3} parent=35 // pred_region
        %s1313 = smul.u32 32, %s17
      $region44: #{c3_forward.3} parent=35 // pred_fallthru
        _
    $region36: #{c3_forward.3} parent=5 // pred_fallthru
      _
    %p1314 = scmp.le.s32.totalorder 2, %s12
    // Predicated region
    $region45: #{c3_forward.3} parent=5 // pred_check
      %p1315 = pneg %p1314
    $region46: #{c3_forward.3} parent=5 // pred_check_branch
      %1317 = sbr.rel (%p1315) target = $region48
    $region47: #{c3_forward.3} parent=5 // pred_region
      %s1318 = ssub.s32 %s12, 2
      // Predicated region
      $region49: #{c3_forward.3} parent=47 // pred_check
        %p1319 = pneg %p130
      $region50: #{c3_forward.3} parent=47 // pred_check_branch
        %1321 = sbr.rel (%p1319) target = $region52
      $region51: #{c3_forward.3} parent=47 // pred_region
        %s1322 = smul.u32 32, %s18
        %p1323 = scmp.lt.s32.totalorder %s1322, 63
        %s1324 = scalar_select %p1323, %s1322, 63
        %s1325 = smul.addr %s1324, 4
        %s1326 = scalar_lea.vmem %s4, %s1325
      $region52: #{c3_forward.3} parent=47 // pred_fallthru
        _
      // Predicated region
      $region53: #{c3_forward.3} parent=47 // pred_check
        %p1327 = pneg %p156
      $region54: #{c3_forward.3} parent=47 // pred_check_branch
        %1329 = sbr.rel (%p1327) target = $region56
      $region55: #{c3_forward.3} parent=47 // pred_region
        %s1330 = smul.u32 32, %s18
        %p1331 = scmp.lt.s32.totalorder %s1330, 63
        %s1332 = scalar_select %p1331, %s1330, 63
        %s1333 = smul.addr %s1332, 4
        %s1334 = scalar_lea.vmem %s5, %s1333
      $region56: #{c3_forward.3} parent=47 // pred_fallthru
        _
    $region48: #{c3_forward.3} parent=5 // pred_fallthru
      _
  $region6: #{c3_forward.3} parent=0 // loop_footer
    %s16 = sadd.s32 1, %s12
  $region7: #{c3_forward.3} parent=0 // loop_footer_branch
    %11 = sbr.rel target = $region3
  $region8: #{c3_forward.3} parent=0 // loop_exit
    _

// kernel: c3_forward.5
$region0: #{c3_forward.5}
  #allocation0 [shape = 'u32[]', space=smem, size = 0x4, offset = 0x4, fixed_abs, tag = 'smem constant byte address 0x4 - core index']
  #allocation1 [shape = 'u32[72,128]{1,0:T(1,128)}', space=vmem, size = 0x9000, scoped, tag = 'internal scratch']
  #allocation2 [shape = 'bf16[256,256]{1,0:T(8,128)(2,1)}', space=vmem, size = 0x20000, scoped, tag = 'scratch operand']
  %s0 = inlined_call_operand.vmem [shape: bf16[512,128], index: 0, kind: input, shape index: {}]
  %s1 = inlined_call_operand.vmem [shape: bf16[512,128], index: 1, kind: input, shape index: {}]
  %s2 = inlined_call_operand.vmem [shape: bf16[256,128], index: 2, kind: input, shape index: {}]
  %s3 = inlined_call_operand.vmem [shape: f32[1,128], index: 3, kind: input, shape index: {}]
  %s4 = inlined_call_operand.vmem [shape: f32[1,128], index: 4, kind: input, shape index: {}]
  %s5 = inlined_call_operand.vmem [shape: f32[512,128], index: 5, kind: output, shape index: {}]
  %s6 = sld [smem:[#allocation0]]
  $region53: #{c3_forward.5} parent=0
    _
  %s8 = ssub.s32 1, %s6
  %s9 = scalar_select 0, %s8, %s6
  loop: start=0, step=1, limit=4
  $region2: #{c3_forward.5} parent=0 // loop_pre_header
    _
  $region3: #{c3_forward.5} parent=0 // loop_header
    %s11 = sphi 0, %s15
    %p12 = scmp.ge.s32.totalorder %s11, 4
    %s21 = sphi 0, %s23
    %s24 = sphi 0, %s21
    %s25 = sphi 0, %s24
    %s41 = sphi 0, %s25
    %s47 = sphi 0, %s49
    %s50 = sphi 0, %s47
    %s51 = sphi 0, %s50
    %s67 = sphi 0, %s51
    %s71 = sphi 0, %s71
    %s73 = sphi 0, %s71
    %s74 = sphi 0, %s73
    %s88 = sphi 0, %s74
    %s92 = sphi 0, %s92
    %s94 = sphi 0, %s92
    %s95 = sphi 0, %s94
    %s109 = sphi 0, %s95
    %s113 = sphi 0, %s113
    %s115 = sphi 0, %s113
    %s116 = sphi 0, %s115
    %s130 = sphi 0, %s116
    %s136 = sphi 0, %s138
    %s139 = sphi 0, %s136
    %s140 = sphi 0, %s139
    %s156 = sphi 0, %s140
  $region4: #{c3_forward.5} parent=0 // loop_header_branch
    %14 = sbr.rel (%p12) target = $region8
  $region5: #{c3_forward.5} parent=0 // loop_body
    %s16 = ssub.s32 %s11, 1
    %s17 = ssub.s32 %s11, 2
    %s18 = sadd.s32 %s11, 1
    %s19 = ssub.s32 %s11, %s18
    %p20 = scmp.eq.s32.totalorder %s19, 0
    %s22 = sadd.s32 %s21, 1
    %s23 = scalar_select %p20, %s21, %s22
    %p26 = pneg %p20
    %p27 = scmp.eq.s32.totalorder %s11, 1
    %p28 = por %p26, %p27
    %p29 = scmp.ne.s32.totalorder %s21, %s24
    %p30 = scmp.eq.s32.totalorder %s11, 0
    %p31 = por %p29, %p30
    %p32 = scmp.ne.s32.totalorder %s21, %s24
    %p33 = scmp.eq.s32.totalorder %s16, 1
    %p34 = por %p32, %p33
    %p35 = scmp.ne.s32.totalorder %s24, %s25
    %p36 = scmp.eq.s32.totalorder %s16, 0
    %p37 = por %p35, %p36
    %p38 = scmp.ne.s32.totalorder %s24, %s25
    %p39 = scmp.eq.s32.totalorder %s17, 1
    %p40 = por %p38, %p39
    %p42 = scmp.ne.s32.totalorder %s25, %s41
    %p43 = scmp.eq.s32.totalorder %s17, 0
    %p44 = por %p42, %p43
    %s45 = ssub.s32 %s11, %s18
    %p46 = scmp.eq.s32.totalorder %s45, 0
    %s48 = sadd.s32 %s47, 1
    %s49 = scalar_select %p46, %s47, %s48
    %p52 = pneg %p46
    %p53 = scmp.eq.s32.totalorder %s11, 1
    %p54 = por %p52, %p53
    %p55 = scmp.ne.s32.totalorder %s47, %s50
    %p56 = scmp.eq.s32.totalorder %s11, 0
    %p57 = por %p55, %p56
    %p58 = scmp.ne.s32.totalorder %s47, %s50
    %p59 = scmp.eq.s32.totalorder %s16, 1
    %p60 = por %p58, %p59
    %p61 = scmp.ne.s32.totalorder %s50, %s51
    %p62 = scmp.eq.s32.totalorder %s16, 0
    %p63 = por %p61, %p62
    %p64 = scmp.ne.s32.totalorder %s50, %s51
    %p65 = scmp.eq.s32.totalorder %s17, 1
    %p66 = por %p64, %p65
    %p68 = scmp.ne.s32.totalorder %s51, %s67
    %p69 = scmp.eq.s32.totalorder %s17, 0
    %p70 = por %p68, %p69
    %s72 = sadd.s32 %s71, 1
    %p75 = scmp.eq.s32.totalorder %s11, 1
    %p76 = scmp.ne.s32.totalorder %s71, %s73
    %p77 = scmp.eq.s32.totalorder %s11, 0
    %p78 = por %p76, %p77
    %p79 = scmp.ne.s32.totalorder %s71, %s73
    %p80 = scmp.eq.s32.totalorder %s16, 1
    %p81 = por %p79, %p80
    %p82 = scmp.ne.s32.totalorder %s73, %s74
    %p83 = scmp.eq.s32.totalorder %s16, 0
    %p84 = por %p82, %p83
    %p85 = scmp.ne.s32.totalorder %s73, %s74
    %p86 = scmp.eq.s32.totalorder %s17, 1
    %p87 = por %p85, %p86
    %p89 = scmp.ne.s32.totalorder %s74, %s88
    %p90 = scmp.eq.s32.totalorder %s17, 0
    %p91 = por %p89, %p90
    %s93 = sadd.s32 %s92, 1
    %p96 = scmp.eq.s32.totalorder %s11, 1
    %p97 = scmp.ne.s32.totalorder %s92, %s94
    %p98 = scmp.eq.s32.totalorder %s11, 0
    %p99 = por %p97, %p98
    %p100 = scmp.ne.s32.totalorder %s92, %s94
    %p101 = scmp.eq.s32.totalorder %s16, 1
    %p102 = por %p100, %p101
    %p103 = scmp.ne.s32.totalorder %s94, %s95
    %p104 = scmp.eq.s32.totalorder %s16, 0
    %p105 = por %p103, %p104
    %p106 = scmp.ne.s32.totalorder %s94, %s95
    %p107 = scmp.eq.s32.totalorder %s17, 1
    %p108 = por %p106, %p107
    %p110 = scmp.ne.s32.totalorder %s95, %s109
    %p111 = scmp.eq.s32.totalorder %s17, 0
    %p112 = por %p110, %p111
    %s114 = sadd.s32 %s113, 1
    %p117 = scmp.eq.s32.totalorder %s11, 1
    %p118 = scmp.ne.s32.totalorder %s113, %s115
    %p119 = scmp.eq.s32.totalorder %s11, 0
    %p120 = por %p118, %p119
    %p121 = scmp.ne.s32.totalorder %s113, %s115
    %p122 = scmp.eq.s32.totalorder %s16, 1
    %p123 = por %p121, %p122
    %p124 = scmp.ne.s32.totalorder %s115, %s116
    %p125 = scmp.eq.s32.totalorder %s16, 0
    %p126 = por %p124, %p125
    %p127 = scmp.ne.s32.totalorder %s115, %s116
    %p128 = scmp.eq.s32.totalorder %s17, 1
    %p129 = por %p127, %p128
    %p131 = scmp.ne.s32.totalorder %s116, %s130
    %p132 = scmp.eq.s32.totalorder %s17, 0
    %p133 = por %p131, %p132
    %s134 = ssub.s32 %s11, %s18
    %p135 = scmp.eq.s32.totalorder %s134, 0
    %s137 = sadd.s32 %s136, 1
    %s138 = scalar_select %p135, %s136, %s137
    %p141 = pneg %p135
    %p142 = scmp.eq.s32.totalorder %s11, 1
    %p143 = por %p141, %p142
    %p144 = scmp.ne.s32.totalorder %s136, %s139
    %p145 = scmp.eq.s32.totalorder %s11, 0
    %p146 = por %p144, %p145
    %p147 = scmp.ne.s32.totalorder %s136, %s139
    %p148 = scmp.eq.s32.totalorder %s16, 1
    %p149 = por %p147, %p148
    %p150 = scmp.ne.s32.totalorder %s139, %s140
    %p151 = scmp.eq.s32.totalorder %s16, 0
    %p152 = por %p150, %p151
    %p153 = scmp.ne.s32.totalorder %s139, %s140
    %p154 = scmp.eq.s32.totalorder %s17, 1
    %p155 = por %p153, %p154
    %p157 = scmp.ne.s32.totalorder %s140, %s156
    %p158 = scmp.eq.s32.totalorder %s17, 0
    %p159 = por %p157, %p158
    %p160 = scmp.le.s32.totalorder 1, %s11
    %p161 = scmp.lt.s32.totalorder %s11, 3
    %p162 = pnand %p160, %p161
    %p163 = pneg %p162
    // Predicated region
    $region9: #{c3_forward.5} parent=5 // pred_check
      _
    $region10: #{c3_forward.5} parent=5 // pred_check_branch
      %165 = sbr.rel (%p162) target = $region12
    $region11: #{c3_forward.5} parent=5 // pred_region
      %s166 = ssub.s32 %s11, 1
      // Predicated region
      $region13: #{c3_forward.5} parent=11 // pred_check
        %p167 = pneg %p84
      $region14: #{c3_forward.5} parent=11 // pred_check_branch
        %169 = sbr.rel (%p167) target = $region16
      $region15: #{c3_forward.5} parent=11 // pred_region
        _
      $region16: #{c3_forward.5} parent=11 // pred_fallthru
        _
      // Predicated region
      $region17: #{c3_forward.5} parent=11 // pred_check
        %p170 = pneg %p105
      $region18: #{c3_forward.5} parent=11 // pred_check_branch
        %172 = sbr.rel (%p170) target = $region20
      $region19: #{c3_forward.5} parent=11 // pred_region
        _
      $region20: #{c3_forward.5} parent=11 // pred_fallthru
        _
      // Predicated region
      $region21: #{c3_forward.5} parent=11 // pred_check
        %p173 = pneg %p126
      $region22: #{c3_forward.5} parent=11 // pred_check_branch
        %175 = sbr.rel (%p173) target = $region24
      $region23: #{c3_forward.5} parent=11 // pred_region
        _
      $region24: #{c3_forward.5} parent=11 // pred_fallthru
        _
    $region12: #{c3_forward.5} parent=5 // pred_fallthru
      _
    %p176 = scmp.lt.s32.totalorder %s11, 2
    // Predicated region
    $region25: #{c3_forward.5} parent=5 // pred_check
      %p177 = pneg %p176
    $region26: #{c3_forward.5} parent=5 // pred_check_branch
      %179 = sbr.rel (%p177) target = $region28
    $region27: #{c3_forward.5} parent=5 // pred_region
      // Predicated region
      $region29: #{c3_forward.5} parent=27 // pred_check
        %p180 = pneg %p31
      $region30: #{c3_forward.5} parent=27 // pred_check_branch
        %182 = sbr.rel (%p180) target = $region32
      $region31: #{c3_forward.5} parent=27 // pred_region
        %s183 = smul.u32 32, %s11
        %p184 = scmp.lt.s32.totalorder %s183, 63
        %s185 = scalar_select %p184, %s183, 63
        %s186 = smul.addr %s185, 4
        %s187 = scalar_lea.vmem %s0, %s186
        %s188 = smul.u32 32, %s11
      $region32: #{c3_forward.5} parent=27 // pred_fallthru
        _
      // Predicated region
      $region33: #{c3_forward.5} parent=27 // pred_check
        %p189 = pneg %p57
      $region34: #{c3_forward.5} parent=27 // pred_check_branch
        %191 = sbr.rel (%p189) target = $region36
      $region35: #{c3_forward.5} parent=27 // pred_region
        %s192 = smul.u32 32, %s11
        %p193 = scmp.lt.s32.totalorder %s192, 63
        %s194 = scalar_select %p193, %s192, 63
        %s195 = smul.addr %s194, 4
        %s196 = scalar_lea.vmem %s1, %s195
        %s197 = smul.u32 32, %s11
      $region36: #{c3_forward.5} parent=27 // pred_fallthru
        _
    $region28: #{c3_forward.5} parent=5 // pred_fallthru
      _
    %p198 = scmp.le.s32.totalorder 1, %s11
    %p199 = scmp.lt.s32.totalorder %s11, 3
    %p200 = pnand %p198, %p199
    %p201 = pneg %p200
    // Predicated region
    $region37: #{c3_forward.5} parent=5 // pred_check
      _
    $region38: #{c3_forward.5} parent=5 // pred_check_branch
      %203 = sbr.rel (%p200) target = $region40
    $region39: #{c3_forward.5} parent=5 // pred_region
      %s204 = ssub.s32 %s11, 1
      %s205 = smul.u32 32, %s16
      %p206 = scmp.lt.s32.totalorder %s205, 63
      %s207 = scalar_select %p206, %s205, 63
      %s208 = smul.addr %s207, 4
      %s209 = scalar_lea.vmem %s0, %s208
      %p210 = pneg %p37
      %p211 = pneg %p34
      %s212 = smul.u32 32, %s16
      %p213 = scmp.lt.s32.totalorder %s212, 63
      %s214 = scalar_select %p213, %s212, 63
      %s215 = smul.addr %s214, 4
      %s216 = scalar_lea.vmem %s1, %s215
      %p217 = pneg %p63
      %p218 = pneg %p60
      %p219 = pneg %p84
      %p220 = pneg %p81
      %p221 = pneg %p105
      %p222 = pneg %p102
      %p223 = pneg %p126
      %p224 = pneg %p123
      %p225 = pneg %p152
      %p226 = pneg %p149
      %s227 = smul.u32 32, %s16
      %p228 = scmp.lt.s32.totalorder %s227, 63
      %s229 = scalar_select %p228, %s227, 63
      %s230 = smul.addr %s229, 8
      %s231 = scalar_lea.vmem %s5, %s230
      %s232 = smul.u32 32, %s16
      %p233 = scmp.lt.s32.totalorder %s232, 63
      %s234 = scalar_select %p233, %s232, 63
      %s235 = smul.addr %s234, 4
      %s236 = scalar_lea.vmem %s0, %s235
      %s237 = smul.u32 32, %s16
      %s238 = smul.u32 32, %s16
      %p239 = scmp.lt.s32.totalorder %s238, 63
      %s240 = scalar_select %p239, %s238, 63
      %s241 = smul.addr %s240, 4
      %s242 = scalar_lea.vmem %s1, %s241
      %s243 = smul.u32 32, %s16
      %s244 = smul.u32 32, %s16
      %p245 = scmp.lt.s32.totalorder %s244, 63
      %s246 = scalar_select %p245, %s244, 63
      %s247 = smul.addr %s246, 8
      %s248 = scalar_lea.vmem %s5, %s247
      %s249 = smul.u32 32, %s16
      %v250 = vld [vmem:[%s236] sm:$0xf]
      %v251 = vld [vmem:[%s236 + $0x4] sm:$0xf]
      %v252 = vld [vmem:[%s236 + $0x8] sm:$0xf]
      %v253 = vld [vmem:[%s236 + $0xc] sm:$0xf]
      %v254 = vld [vmem:[%s236 + $0x10] sm:$0xf]
      %v255 = vld [vmem:[%s236 + $0x14] sm:$0xf]
      %v256 = vld [vmem:[%s236 + $0x18] sm:$0xf]
      %v257 = vld [vmem:[%s236 + $0x1c] sm:$0xf]
      %v258 = vld [vmem:[%s236 + $0x20] sm:$0xf]
      %v259 = vld [vmem:[%s236 + $0x24] sm:$0xf]
      %v260 = vld [vmem:[%s236 + $0x28] sm:$0xf]
      %v261 = vld [vmem:[%s236 + $0x2c] sm:$0xf]
      %v262 = vld [vmem:[%s236 + $0x30] sm:$0xf]
      %v263 = vld [vmem:[%s236 + $0x34] sm:$0xf]
      %v264 = vld [vmem:[%s236 + $0x38] sm:$0xf]
      %v265 = vld [vmem:[%s236 + $0x3c] sm:$0xf]
      %v266 = vld [vmem:[%s236 + $0x40] sm:$0xf]
      %v267 = vld [vmem:[%s236 + $0x44] sm:$0xf]
      %v268 = vld [vmem:[%s236 + $0x48] sm:$0xf]
      %v269 = vld [vmem:[%s236 + $0x4c] sm:$0xf]
      %v270 = vld [vmem:[%s236 + $0x50] sm:$0xf]
      %v271 = vld [vmem:[%s236 + $0x54] sm:$0xf]
      %v272 = vld [vmem:[%s236 + $0x58] sm:$0xf]
      %v273 = vld [vmem:[%s236 + $0x5c] sm:$0xf]
      %v274 = vld [vmem:[%s236 + $0x60] sm:$0xf]
      %v275 = vld [vmem:[%s236 + $0x64] sm:$0xf]
      %v276 = vld [vmem:[%s236 + $0x68] sm:$0xf]
      %v277 = vld [vmem:[%s236 + $0x6c] sm:$0xf]
      %v278 = vld [vmem:[%s236 + $0x70] sm:$0xf]
      %v279 = vld [vmem:[%s236 + $0x74] sm:$0xf]
      %v280 = vld [vmem:[%s236 + $0x78] sm:$0xf]
      %v281 = vld [vmem:[%s236 + $0x7c] sm:$0xf]
      %282 = vst [vmem:[#allocation2] sm:$0xf] %v250
      %283 = vst [vmem:[#allocation2 + $0x8] sm:$0xf] %v251
      %284 = vst [vmem:[#allocation2 + $0x10] sm:$0xf] %v252
      %285 = vst [vmem:[#allocation2 + $0x18] sm:$0xf] %v253
      %286 = vst [vmem:[#allocation2 + $0x20] sm:$0xf] %v254
      %287 = vst [vmem:[#allocation2 + $0x28] sm:$0xf] %v255
      %288 = vst [vmem:[#allocation2 + $0x30] sm:$0xf] %v256
      %289 = vst [vmem:[#allocation2 + $0x38] sm:$0xf] %v257
      %290 = vst [vmem:[#allocation2 + $0x40] sm:$0xf] %v258
      %291 = vst [vmem:[#allocation2 + $0x48] sm:$0xf] %v259
      %292 = vst [vmem:[#allocation2 + $0x50] sm:$0xf] %v260
      %293 = vst [vmem:[#allocation2 + $0x58] sm:$0xf] %v261
      %294 = vst [vmem:[#allocation2 + $0x60] sm:$0xf] %v262
      %295 = vst [vmem:[#allocation2 + $0x68] sm:$0xf] %v263
      %296 = vst [vmem:[#allocation2 + $0x70] sm:$0xf] %v264
      %297 = vst [vmem:[#allocation2 + $0x78] sm:$0xf] %v265
      %298 = vst [vmem:[#allocation2 + $0x80] sm:$0xf] %v266
      %299 = vst [vmem:[#allocation2 + $0x88] sm:$0xf] %v267
      %300 = vst [vmem:[#allocation2 + $0x90] sm:$0xf] %v268
      %301 = vst [vmem:[#allocation2 + $0x98] sm:$0xf] %v269
      %302 = vst [vmem:[#allocation2 + $0xa0] sm:$0xf] %v270
      %303 = vst [vmem:[#allocation2 + $0xa8] sm:$0xf] %v271
      %304 = vst [vmem:[#allocation2 + $0xb0] sm:$0xf] %v272
      %305 = vst [vmem:[#allocation2 + $0xb8] sm:$0xf] %v273
      %306 = vst [vmem:[#allocation2 + $0xc0] sm:$0xf] %v274
      %307 = vst [vmem:[#allocation2 + $0xc8] sm:$0xf] %v275
      %308 = vst [vmem:[#allocation2 + $0xd0] sm:$0xf] %v276
      %309 = vst [vmem:[#allocation2 + $0xd8] sm:$0xf] %v277
      %310 = vst [vmem:[#allocation2 + $0xe0] sm:$0xf] %v278
      %311 = vst [vmem:[#allocation2 + $0xe8] sm:$0xf] %v279
      %312 = vst [vmem:[#allocation2 + $0xf0] sm:$0xf] %v280
      %313 = vst [vmem:[#allocation2 + $0xf8] sm:$0xf] %v281
      %v314 = vld [vmem:[%s242] sm:$0xf]
      %v315 = vld [vmem:[%s242 + $0x4] sm:$0xf]
      %v316 = vld [vmem:[%s242 + $0x8] sm:$0xf]
      %v317 = vld [vmem:[%s242 + $0xc] sm:$0xf]
      %v318 = vld [vmem:[%s242 + $0x10] sm:$0xf]
      %v319 = vld [vmem:[%s242 + $0x14] sm:$0xf]
      %v320 = vld [vmem:[%s242 + $0x18] sm:$0xf]
      %v321 = vld [vmem:[%s242 + $0x1c] sm:$0xf]
      %v322 = vld [vmem:[%s242 + $0x20] sm:$0xf]
      %v323 = vld [vmem:[%s242 + $0x24] sm:$0xf]
      %v324 = vld [vmem:[%s242 + $0x28] sm:$0xf]
      %v325 = vld [vmem:[%s242 + $0x2c] sm:$0xf]
      %v326 = vld [vmem:[%s242 + $0x30] sm:$0xf]
      %v327 = vld [vmem:[%s242 + $0x34] sm:$0xf]
      %v328 = vld [vmem:[%s242 + $0x38] sm:$0xf]
      %v329 = vld [vmem:[%s242 + $0x3c] sm:$0xf]
      %v330 = vld [vmem:[%s242 + $0x40] sm:$0xf]
      %v331 = vld [vmem:[%s242 + $0x44] sm:$0xf]
      %v332 = vld [vmem:[%s242 + $0x48] sm:$0xf]
      %v333 = vld [vmem:[%s242 + $0x4c] sm:$0xf]
      %v334 = vld [vmem:[%s242 + $0x50] sm:$0xf]
      %v335 = vld [vmem:[%s242 + $0x54] sm:$0xf]
      %v336 = vld [vmem:[%s242 + $0x58] sm:$0xf]
      %v337 = vld [vmem:[%s242 + $0x5c] sm:$0xf]
      %v338 = vld [vmem:[%s242 + $0x60] sm:$0xf]
      %v339 = vld [vmem:[%s242 + $0x64] sm:$0xf]
      %v340 = vld [vmem:[%s242 + $0x68] sm:$0xf]
      %v341 = vld [vmem:[%s242 + $0x6c] sm:$0xf]
      %v342 = vld [vmem:[%s242 + $0x70] sm:$0xf]
      %v343 = vld [vmem:[%s242 + $0x74] sm:$0xf]
      %v344 = vld [vmem:[%s242 + $0x78] sm:$0xf]
      %v345 = vld [vmem:[%s242 + $0x7c] sm:$0xf]
      %346 = vst [vmem:[#allocation2 + $0x4] sm:$0xf] %v314
      %347 = vst [vmem:[#allocation2 + $0xc] sm:$0xf] %v315
      %348 = vst [vmem:[#allocation2 + $0x14] sm:$0xf] %v316
      %349 = vst [vmem:[#allocation2 + $0x1c] sm:$0xf] %v317
      %350 = vst [vmem:[#allocation2 + $0x24] sm:$0xf] %v318
      %351 = vst [vmem:[#allocation2 + $0x2c] sm:$0xf] %v319
      %352 = vst [vmem:[#allocation2 + $0x34] sm:$0xf] %v320
      %353 = vst [vmem:[#allocation2 + $0x3c] sm:$0xf] %v321
      %354 = vst [vmem:[#allocation2 + $0x44] sm:$0xf] %v322
      %355 = vst [vmem:[#allocation2 + $0x4c] sm:$0xf] %v323
      %356 = vst [vmem:[#allocation2 + $0x54] sm:$0xf] %v324
      %357 = vst [vmem:[#allocation2 + $0x5c] sm:$0xf] %v325
      %358 = vst [vmem:[#allocation2 + $0x64] sm:$0xf] %v326
      %359 = vst [vmem:[#allocation2 + $0x6c] sm:$0xf] %v327
      %360 = vst [vmem:[#allocation2 + $0x74] sm:$0xf] %v328
      %361 = vst [vmem:[#allocation2 + $0x7c] sm:$0xf] %v329
      %362 = vst [vmem:[#allocation2 + $0x84] sm:$0xf] %v330
      %363 = vst [vmem:[#allocation2 + $0x8c] sm:$0xf] %v331
      %364 = vst [vmem:[#allocation2 + $0x94] sm:$0xf] %v332
      %365 = vst [vmem:[#allocation2 + $0x9c] sm:$0xf] %v333
      %366 = vst [vmem:[#allocation2 + $0xa4] sm:$0xf] %v334
      %367 = vst [vmem:[#allocation2 + $0xac] sm:$0xf] %v335
      %368 = vst [vmem:[#allocation2 + $0xb4] sm:$0xf] %v336
      %369 = vst [vmem:[#allocation2 + $0xbc] sm:$0xf] %v337
      %370 = vst [vmem:[#allocation2 + $0xc4] sm:$0xf] %v338
      %371 = vst [vmem:[#allocation2 + $0xcc] sm:$0xf] %v339
      %372 = vst [vmem:[#allocation2 + $0xd4] sm:$0xf] %v340
      %373 = vst [vmem:[#allocation2 + $0xdc] sm:$0xf] %v341
      %374 = vst [vmem:[#allocation2 + $0xe4] sm:$0xf] %v342
      %375 = vst [vmem:[#allocation2 + $0xec] sm:$0xf] %v343
      %376 = vst [vmem:[#allocation2 + $0xf4] sm:$0xf] %v344
      %377 = vst [vmem:[#allocation2 + $0xfc] sm:$0xf] %v345
      %v378 = vld [vmem:[#allocation2] sm:$0xff]
      %v379 = vld [vmem:[#allocation2 + $0x8] sm:$0xff]
      %v380 = vld [vmem:[#allocation2 + $0x10] sm:$0xff]
      %v381 = vld [vmem:[#allocation2 + $0x18] sm:$0xff]
      %v382 = vld [vmem:[#allocation2 + $0x20] sm:$0xff]
      %v383 = vld [vmem:[#allocation2 + $0x28] sm:$0xff]
      %v384 = vld [vmem:[#allocation2 + $0x30] sm:$0xff]
      %v385 = vld [vmem:[#allocation2 + $0x38] sm:$0xff]
      %v386 = vld [vmem:[#allocation2 + $0x40] sm:$0xff]
      %v387 = vld [vmem:[#allocation2 + $0x48] sm:$0xff]
      %v388 = vld [vmem:[#allocation2 + $0x50] sm:$0xff]
      %v389 = vld [vmem:[#allocation2 + $0x58] sm:$0xff]
      %v390 = vld [vmem:[#allocation2 + $0x60] sm:$0xff]
      %v391 = vld [vmem:[#allocation2 + $0x68] sm:$0xff]
      %v392 = vld [vmem:[#allocation2 + $0x70] sm:$0xff]
      %v393 = vld [vmem:[#allocation2 + $0x78] sm:$0xff]
      %v394 = vld [vmem:[#allocation2 + $0x80] sm:$0xff]
      %v395 = vld [vmem:[#allocation2 + $0x88] sm:$0xff]
      %v396 = vld [vmem:[#allocation2 + $0x90] sm:$0xff]
      %v397 = vld [vmem:[#allocation2 + $0x98] sm:$0xff]
      %v398 = vld [vmem:[#allocation2 + $0xa0] sm:$0xff]
      %v399 = vld [vmem:[#allocation2 + $0xa8] sm:$0xff]
      %v400 = vld [vmem:[#allocation2 + $0xb0] sm:$0xff]
      %v401 = vld [vmem:[#allocation2 + $0xb8] sm:$0xff]
      %v402 = vld [vmem:[#allocation2 + $0xc0] sm:$0xff]
      %v403 = vld [vmem:[#allocation2 + $0xc8] sm:$0xff]
      %v404 = vld [vmem:[#allocation2 + $0xd0] sm:$0xff]
      %v405 = vld [vmem:[#allocation2 + $0xd8] sm:$0xff]
      %v406 = vld [vmem:[#allocation2 + $0xe0] sm:$0xff]
      %v407 = vld [vmem:[#allocation2 + $0xe8] sm:$0xff]
      %v408 = vld [vmem:[#allocation2 + $0xf0] sm:$0xff]
      %v409 = vld [vmem:[#allocation2 + $0xf8] sm:$0xff]
      %v410 = vld [vmem:[%s2] sm:$0xf]
      %v411 = vld [vmem:[%s2 + $0x4] sm:$0xf]
      %v412 = vld [vmem:[%s2 + $0x8] sm:$0xf]
      %v413 = vld [vmem:[%s2 + $0xc] sm:$0xf]
      %v414 = vld [vmem:[%s2 + $0x10] sm:$0xf]
      %v415 = vld [vmem:[%s2 + $0x14] sm:$0xf]
      %v416 = vld [vmem:[%s2 + $0x18] sm:$0xf]
      %v417 = vld [vmem:[%s2 + $0x1c] sm:$0xf]
      %v418 = vld [vmem:[%s2 + $0x20] sm:$0xf]
      %v419 = vld [vmem:[%s2 + $0x24] sm:$0xf]
      %v420 = vld [vmem:[%s2 + $0x28] sm:$0xf]
      %v421 = vld [vmem:[%s2 + $0x2c] sm:$0xf]
      %v422 = vld [vmem:[%s2 + $0x30] sm:$0xf]
      %v423 = vld [vmem:[%s2 + $0x34] sm:$0xf]
      %v424 = vld [vmem:[%s2 + $0x38] sm:$0xf]
      %v425 = vld [vmem:[%s2 + $0x3c] sm:$0xf]
      %v426 = vld [vmem:[%s2 + $0x40] sm:$0xf]
      %v427 = vld [vmem:[%s2 + $0x44] sm:$0xf]
      %v428 = vld [vmem:[%s2 + $0x48] sm:$0xf]
      %v429 = vld [vmem:[%s2 + $0x4c] sm:$0xf]
      %v430 = vld [vmem:[%s2 + $0x50] sm:$0xf]
      %v431 = vld [vmem:[%s2 + $0x54] sm:$0xf]
      %v432 = vld [vmem:[%s2 + $0x58] sm:$0xf]
      %v433 = vld [vmem:[%s2 + $0x5c] sm:$0xf]
      %v434 = vld [vmem:[%s2 + $0x60] sm:$0xf]
      %v435 = vld [vmem:[%s2 + $0x64] sm:$0xf]
      %v436 = vld [vmem:[%s2 + $0x68] sm:$0xf]
      %v437 = vld [vmem:[%s2 + $0x6c] sm:$0xf]
      %v438 = vld [vmem:[%s2 + $0x70] sm:$0xf]
      %v439 = vld [vmem:[%s2 + $0x74] sm:$0xf]
      %v440 = vld [vmem:[%s2 + $0x78] sm:$0xf]
      %v441 = vld [vmem:[%s2 + $0x7c] sm:$0xf]
      %v474 = vunpack.c.l.b16 %v378
      %v475 = vunpack.c.h.b16 %v378
      %v476 = vunpack.c.l.b16 %v379
      %v477 = vunpack.c.h.b16 %v379
      %v478 = vunpack.c.l.b16 %v380
      %v479 = vunpack.c.h.b16 %v380
      %v480 = vunpack.c.l.b16 %v381
      %v481 = vunpack.c.h.b16 %v381
      %v482 = vunpack.c.l.b16 %v382
      %v483 = vunpack.c.h.b16 %v382
      %v484 = vunpack.c.l.b16 %v383
      %v485 = vunpack.c.h.b16 %v383
      %v486 = vunpack.c.l.b16 %v384
      %v487 = vunpack.c.h.b16 %v384
      %v488 = vunpack.c.l.b16 %v385
      %v489 = vunpack.c.h.b16 %v385
      %v490 = vunpack.c.l.b16 %v386
      %v491 = vunpack.c.h.b16 %v386
      %v492 = vunpack.c.l.b16 %v387
      %v493 = vunpack.c.h.b16 %v387
      %v494 = vunpack.c.l.b16 %v388
      %v495 = vunpack.c.h.b16 %v388
      %v496 = vunpack.c.l.b16 %v389
      %v497 = vunpack.c.h.b16 %v389
      %v498 = vunpack.c.l.b16 %v390
      %v499 = vunpack.c.h.b16 %v390
      %v500 = vunpack.c.l.b16 %v391
      %v501 = vunpack.c.h.b16 %v391
      %v502 = vunpack.c.l.b16 %v392
      %v503 = vunpack.c.h.b16 %v392
      %v504 = vunpack.c.l.b16 %v393
      %v505 = vunpack.c.h.b16 %v393
      %v506 = vunpack.c.l.b16 %v394
      %v507 = vunpack.c.h.b16 %v394
      %v508 = vunpack.c.l.b16 %v395
      %v509 = vunpack.c.h.b16 %v395
      %v510 = vunpack.c.l.b16 %v396
      %v511 = vunpack.c.h.b16 %v396
      %v512 = vunpack.c.l.b16 %v397
      %v513 = vunpack.c.h.b16 %v397
      %v514 = vunpack.c.l.b16 %v398
      %v515 = vunpack.c.h.b16 %v398
      %v516 = vunpack.c.l.b16 %v399
      %v517 = vunpack.c.h.b16 %v399
      %v518 = vunpack.c.l.b16 %v400
      %v519 = vunpack.c.h.b16 %v400
      %v520 = vunpack.c.l.b16 %v401
      %v521 = vunpack.c.h.b16 %v401
      %v522 = vunpack.c.l.b16 %v402
      %v523 = vunpack.c.h.b16 %v402
      %v524 = vunpack.c.l.b16 %v403
      %v525 = vunpack.c.h.b16 %v403
      %v526 = vunpack.c.l.b16 %v404
      %v527 = vunpack.c.h.b16 %v404
      %v528 = vunpack.c.l.b16 %v405
      %v529 = vunpack.c.h.b16 %v405
      %v530 = vunpack.c.l.b16 %v406
      %v531 = vunpack.c.h.b16 %v406
      %v532 = vunpack.c.l.b16 %v407
      %v533 = vunpack.c.h.b16 %v407
      %v534 = vunpack.c.l.b16 %v408
      %v535 = vunpack.c.h.b16 %v408
      %v536 = vunpack.c.l.b16 %v409
      %v537 = vunpack.c.h.b16 %v409
      %v538 = vpack.c.b16 %v476, %v474
      %v539 = vpack.c.b16 %v477, %v475
      %v540 = vpack.c.b16 %v480, %v478
      %v541 = vpack.c.b16 %v481, %v479
      %v542 = vpack.c.b16 %v484, %v482
      %v543 = vpack.c.b16 %v485, %v483
      %v544 = vpack.c.b16 %v488, %v486
      %v545 = vpack.c.b16 %v489, %v487
      %v546 = vpack.c.b16 %v492, %v490
      %v547 = vpack.c.b16 %v493, %v491
      %v548 = vpack.c.b16 %v496, %v494
      %v549 = vpack.c.b16 %v497, %v495
      %v550 = vpack.c.b16 %v500, %v498
      %v551 = vpack.c.b16 %v501, %v499
      %v552 = vpack.c.b16 %v504, %v502
      %v553 = vpack.c.b16 %v505, %v503
      %v554 = vpack.c.b16 %v508, %v506
      %v555 = vpack.c.b16 %v509, %v507
      %v556 = vpack.c.b16 %v512, %v510
      %v557 = vpack.c.b16 %v513, %v511
      %v558 = vpack.c.b16 %v516, %v514
      %v559 = vpack.c.b16 %v517, %v515
      %v560 = vpack.c.b16 %v520, %v518
      %v561 = vpack.c.b16 %v521, %v519
      %v562 = vpack.c.b16 %v524, %v522
      %v563 = vpack.c.b16 %v525, %v523
      %v564 = vpack.c.b16 %v528, %v526
      %v565 = vpack.c.b16 %v529, %v527
      %v566 = vpack.c.b16 %v532, %v530
      %v567 = vpack.c.b16 %v533, %v531
      %v568 = vpack.c.b16 %v536, %v534
      %v569 = vpack.c.b16 %v537, %v535
      %v634 = vunpack.c.l.b16 %v410
      %v635 = vunpack.c.l.b16 %v411
      %v636 = vunpack.c.l.b16 %v412
      %v637 = vunpack.c.l.b16 %v413
      %v638 = vunpack.c.l.b16 %v414
      %v639 = vunpack.c.l.b16 %v415
      %v640 = vunpack.c.l.b16 %v416
      %v641 = vunpack.c.l.b16 %v417
      %v642 = vunpack.c.l.b16 %v418
      %v643 = vunpack.c.l.b16 %v419
      %v644 = vunpack.c.l.b16 %v420
      %v645 = vunpack.c.l.b16 %v421
      %v646 = vunpack.c.l.b16 %v422
      %v647 = vunpack.c.l.b16 %v423
      %v648 = vunpack.c.l.b16 %v424
      %v649 = vunpack.c.l.b16 %v425
      %v650 = vunpack.c.l.b16 %v426
      %v651 = vunpack.c.l.b16 %v427
      %v652 = vunpack.c.l.b16 %v428
      %v653 = vunpack.c.l.b16 %v429
      %v654 = vunpack.c.l.b16 %v430
      %v655 = vunpack.c.l.b16 %v431
      %v656 = vunpack.c.l.b16 %v432
      %v657 = vunpack.c.l.b16 %v433
      %v658 = vunpack.c.l.b16 %v434
      %v659 = vunpack.c.l.b16 %v435
      %v660 = vunpack.c.l.b16 %v436
      %v661 = vunpack.c.l.b16 %v437
      %v662 = vunpack.c.l.b16 %v438
      %v663 = vunpack.c.l.b16 %v439
      %v664 = vunpack.c.l.b16 %v440
      %v665 = vunpack.c.l.b16 %v441
      %v666 = vpack.c.b16 %v635, %v634
      %v667 = vpack.c.b16 %v637, %v636
      %v668 = vpack.c.b16 %v639, %v638
      %v669 = vpack.c.b16 %v641, %v640
      %v670 = vpack.c.b16 %v643, %v642
      %v671 = vpack.c.b16 %v645, %v644
      %v672 = vpack.c.b16 %v647, %v646
      %v673 = vpack.c.b16 %v649, %v648
      %v674 = vpack.c.b16 %v651, %v650
      %v675 = vpack.c.b16 %v653, %v652
      %v676 = vpack.c.b16 %v655, %v654
      %v677 = vpack.c.b16 %v657, %v656
      %v678 = vpack.c.b16 %v659, %v658
      %v679 = vpack.c.b16 %v661, %v660
      %v680 = vpack.c.b16 %v663, %v662
      %v681 = vpack.c.b16 %v665, %v664
      %698 = vmatpush.bf16.msra.mxu0 %v673
      %699 = vmatpush.bf16.msra.mxu0 %v672
      %700 = vmatpush.bf16.msra.mxu0 %v671
      %701 = vmatpush.bf16.msra.mxu0 %v670
      %702 = vmatpush.bf16.msra.mxu0 %v669
      %703 = vmatpush.bf16.msra.mxu0 %v668
      %704 = vmatpush.bf16.msra.mxu0 %v667
      %705 = vmatpush.bf16.msra.mxu0 %v666
      %706 = vmatmul.bf16.gmra.mxu0 %v538
      %v707 = vpop.f32.mrf.mxu0
      %v708 = vadd.f32 0.0, %v707
      %v709 = vpop.f32.mrf.mxu0
      %v710 = vadd.f32 0.0, %v709
      %711 = vmatmul.bf16.gmra.mxu0 %v540
      %v712 = vpop.f32.mrf.mxu0
      %v713 = vadd.f32 0.0, %v712
      %v714 = vpop.f32.mrf.mxu0
      %v715 = vadd.f32 0.0, %v714
      %716 = vmatmul.bf16.gmra.mxu0 %v542
      %v717 = vpop.f32.mrf.mxu0
      %v718 = vadd.f32 0.0, %v717
      %v719 = vpop.f32.mrf.mxu0
      %v720 = vadd.f32 0.0, %v719
      %721 = vmatmul.bf16.gmra.mxu0 %v544
      %v722 = vpop.f32.mrf.mxu0
      %v723 = vadd.f32 0.0, %v722
      %v724 = vpop.f32.mrf.mxu0
      %v725 = vadd.f32 0.0, %v724
      %726 = vmatmul.bf16.gmra.mxu0 %v546
      %v727 = vpop.f32.mrf.mxu0
      %v728 = vadd.f32 0.0, %v727
      %v729 = vpop.f32.mrf.mxu0
      %v730 = vadd.f32 0.0, %v729
      %731 = vmatmul.bf16.gmra.mxu0 %v548
      %v732 = vpop.f32.mrf.mxu0
      %v733 = vadd.f32 0.0, %v732
      %v734 = vpop.f32.mrf.mxu0
      %v735 = vadd.f32 0.0, %v734
      %736 = vmatmul.bf16.gmra.mxu0 %v550
      %v737 = vpop.f32.mrf.mxu0
      %v738 = vadd.f32 0.0, %v737
      %v739 = vpop.f32.mrf.mxu0
      %v740 = vadd.f32 0.0, %v739
      %741 = vmatmul.bf16.gmra.mxu0 %v552
      %v742 = vpop.f32.mrf.mxu0
      %v743 = vadd.f32 0.0, %v742
      %v744 = vpop.f32.mrf.mxu0
      %v745 = vadd.f32 0.0, %v744
      %746 = vmatmul.bf16.gmra.mxu0 %v554
      %v747 = vpop.f32.mrf.mxu0
      %v748 = vadd.f32 0.0, %v747
      %v749 = vpop.f32.mrf.mxu0
      %v750 = vadd.f32 0.0, %v749
      %751 = vmatmul.bf16.gmra.mxu0 %v556
      %v752 = vpop.f32.mrf.mxu0
      %v753 = vadd.f32 0.0, %v752
      %v754 = vpop.f32.mrf.mxu0
      %v755 = vadd.f32 0.0, %v754
      %756 = vmatmul.bf16.gmra.mxu0 %v558
      %v757 = vpop.f32.mrf.mxu0
      %v758 = vadd.f32 0.0, %v757
      %v759 = vpop.f32.mrf.mxu0
      %v760 = vadd.f32 0.0, %v759
      %761 = vmatmul.bf16.gmra.mxu0 %v560
      %v762 = vpop.f32.mrf.mxu0
      %v763 = vadd.f32 0.0, %v762
      %v764 = vpop.f32.mrf.mxu0
      %v765 = vadd.f32 0.0, %v764
      %766 = vmatmul.bf16.gmra.mxu0 %v562
      %v767 = vpop.f32.mrf.mxu0
      %v768 = vadd.f32 0.0, %v767
      %v769 = vpop.f32.mrf.mxu0
      %v770 = vadd.f32 0.0, %v769
      %771 = vmatmul.bf16.gmra.mxu0 %v564
      %v772 = vpop.f32.mrf.mxu0
      %v773 = vadd.f32 0.0, %v772
      %v774 = vpop.f32.mrf.mxu0
      %v775 = vadd.f32 0.0, %v774
      %776 = vmatmul.bf16.gmra.mxu0 %v566
      %v777 = vpop.f32.mrf.mxu0
      %v778 = vadd.f32 0.0, %v777
      %v779 = vpop.f32.mrf.mxu0
      %v780 = vadd.f32 0.0, %v779
      %781 = vmatmul.bf16.gmra.mxu0 %v568
      %v782 = vpop.f32.mrf.mxu0
      %v783 = vadd.f32 0.0, %v782
      %v784 = vpop.f32.mrf.mxu0
      %v785 = vadd.f32 0.0, %v784
      %786 = vdwg.mxu0
      %787 = vmatpush.bf16.msra.mxu0 %v681
      %788 = vmatpush.bf16.msra.mxu0 %v680
      %789 = vmatpush.bf16.msra.mxu0 %v679
      %790 = vmatpush.bf16.msra.mxu0 %v678
      %791 = vmatpush.bf16.msra.mxu0 %v677
      %792 = vmatpush.bf16.msra.mxu0 %v676
      %793 = vmatpush.bf16.msra.mxu0 %v675
      %794 = vmatpush.bf16.msra.mxu0 %v674
      %795 = vmatmul.bf16.gmra.mxu0 %v539
      %v796 = vpop.f32.mrf.mxu0
      %v797 = vadd.f32 %v708, %v796
      %v798 = vpop.f32.mrf.mxu0
      %v799 = vadd.f32 %v710, %v798
      %800 = vmatmul.bf16.gmra.mxu0 %v541
      %v801 = vpop.f32.mrf.mxu0
      %v802 = vadd.f32 %v713, %v801
      %v803 = vpop.f32.mrf.mxu0
      %v804 = vadd.f32 %v715, %v803
      %805 = vmatmul.bf16.gmra.mxu0 %v543
      %v806 = vpop.f32.mrf.mxu0
      %v807 = vadd.f32 %v718, %v806
      %v808 = vpop.f32.mrf.mxu0
      %v809 = vadd.f32 %v720, %v808
      %810 = vmatmul.bf16.gmra.mxu0 %v545
      %v811 = vpop.f32.mrf.mxu0
      %v812 = vadd.f32 %v723, %v811
      %v813 = vpop.f32.mrf.mxu0
      %v814 = vadd.f32 %v725, %v813
      %815 = vmatmul.bf16.gmra.mxu0 %v547
      %v816 = vpop.f32.mrf.mxu0
      %v817 = vadd.f32 %v728, %v816
      %v818 = vpop.f32.mrf.mxu0
      %v819 = vadd.f32 %v730, %v818
      %820 = vmatmul.bf16.gmra.mxu0 %v549
      %v821 = vpop.f32.mrf.mxu0
      %v822 = vadd.f32 %v733, %v821
      %v823 = vpop.f32.mrf.mxu0
      %v824 = vadd.f32 %v735, %v823
      %825 = vmatmul.bf16.gmra.mxu0 %v551
      %v826 = vpop.f32.mrf.mxu0
      %v827 = vadd.f32 %v738, %v826
      %v828 = vpop.f32.mrf.mxu0
      %v829 = vadd.f32 %v740, %v828
      %830 = vmatmul.bf16.gmra.mxu0 %v553
      %v831 = vpop.f32.mrf.mxu0
      %v832 = vadd.f32 %v743, %v831
      %v833 = vpop.f32.mrf.mxu0
      %v834 = vadd.f32 %v745, %v833
      %835 = vmatmul.bf16.gmra.mxu0 %v555
      %v836 = vpop.f32.mrf.mxu0
      %v837 = vadd.f32 %v748, %v836
      %v838 = vpop.f32.mrf.mxu0
      %v839 = vadd.f32 %v750, %v838
      %840 = vmatmul.bf16.gmra.mxu0 %v557
      %v841 = vpop.f32.mrf.mxu0
      %v842 = vadd.f32 %v753, %v841
      %v843 = vpop.f32.mrf.mxu0
      %v844 = vadd.f32 %v755, %v843
      %845 = vmatmul.bf16.gmra.mxu0 %v559
      %v846 = vpop.f32.mrf.mxu0
      %v847 = vadd.f32 %v758, %v846
      %v848 = vpop.f32.mrf.mxu0
      %v849 = vadd.f32 %v760, %v848
      %850 = vmatmul.bf16.gmra.mxu0 %v561
      %v851 = vpop.f32.mrf.mxu0
      %v852 = vadd.f32 %v763, %v851
      %v853 = vpop.f32.mrf.mxu0
      %v854 = vadd.f32 %v765, %v853
      %855 = vmatmul.bf16.gmra.mxu0 %v563
      %v856 = vpop.f32.mrf.mxu0
      %v857 = vadd.f32 %v768, %v856
      %v858 = vpop.f32.mrf.mxu0
      %v859 = vadd.f32 %v770, %v858
      %860 = vmatmul.bf16.gmra.mxu0 %v565
      %v861 = vpop.f32.mrf.mxu0
      %v862 = vadd.f32 %v773, %v861
      %v863 = vpop.f32.mrf.mxu0
      %v864 = vadd.f32 %v775, %v863
      %865 = vmatmul.bf16.gmra.mxu0 %v567
      %v866 = vpop.f32.mrf.mxu0
      %v867 = vadd.f32 %v778, %v866
      %v868 = vpop.f32.mrf.mxu0
      %v869 = vadd.f32 %v780, %v868
      %870 = vmatmul.bf16.gmra.mxu0 %v569
      %v871 = vpop.f32.mrf.mxu0
      %v872 = vadd.f32 %v783, %v871
      %v873 = vpop.f32.mrf.mxu0
      %v874 = vadd.f32 %v785, %v873
      %875 = vdwg.mxu0
      %v876 = vld [vmem:[%s3] sm:$0x1]
      %v878 = vperm.slane %v876, 0
      %v880 = vmul.f32 %v797, %v878
      %v881 = vmul.f32 %v799, %v878
      %v882 = vmul.f32 %v802, %v878
      %v883 = vmul.f32 %v804, %v878
      %v884 = vmul.f32 %v807, %v878
      %v885 = vmul.f32 %v809, %v878
      %v886 = vmul.f32 %v812, %v878
      %v887 = vmul.f32 %v814, %v878
      %v888 = vmul.f32 %v817, %v878
      %v889 = vmul.f32 %v819, %v878
      %v890 = vmul.f32 %v822, %v878
      %v891 = vmul.f32 %v824, %v878
      %v892 = vmul.f32 %v827, %v878
      %v893 = vmul.f32 %v829, %v878
      %v894 = vmul.f32 %v832, %v878
      %v895 = vmul.f32 %v834, %v878
      %v896 = vmul.f32 %v837, %v878
      %v897 = vmul.f32 %v839, %v878
      %v898 = vmul.f32 %v842, %v878
      %v899 = vmul.f32 %v844, %v878
      %v900 = vmul.f32 %v847, %v878
      %v901 = vmul.f32 %v849, %v878
      %v902 = vmul.f32 %v852, %v878
      %v903 = vmul.f32 %v854, %v878
      %v904 = vmul.f32 %v857, %v878
      %v905 = vmul.f32 %v859, %v878
      %v906 = vmul.f32 %v862, %v878
      %v907 = vmul.f32 %v864, %v878
      %v908 = vmul.f32 %v867, %v878
      %v909 = vmul.f32 %v869, %v878
      %v910 = vmul.f32 %v872, %v878
      %v911 = vmul.f32 %v874, %v878
      %v912 = vld [vmem:[%s4] sm:$0x1]
      %v914 = vperm.slane %v912, 0
      %v916 = vadd.f32 %v880, %v914
      %v917 = vadd.f32 %v881, %v914
      %v918 = vadd.f32 %v882, %v914
      %v919 = vadd.f32 %v883, %v914
      %v920 = vadd.f32 %v884, %v914
      %v921 = vadd.f32 %v885, %v914
      %v922 = vadd.f32 %v886, %v914
      %v923 = vadd.f32 %v887, %v914
      %v924 = vadd.f32 %v888, %v914
      %v925 = vadd.f32 %v889, %v914
      %v926 = vadd.f32 %v890, %v914
      %v927 = vadd.f32 %v891, %v914
      %v928 = vadd.f32 %v892, %v914
      %v929 = vadd.f32 %v893, %v914
      %v930 = vadd.f32 %v894, %v914
      %v931 = vadd.f32 %v895, %v914
      %v932 = vadd.f32 %v896, %v914
      %v933 = vadd.f32 %v897, %v914
      %v934 = vadd.f32 %v898, %v914
      %v935 = vadd.f32 %v899, %v914
      %v936 = vadd.f32 %v900, %v914
      %v937 = vadd.f32 %v901, %v914
      %v938 = vadd.f32 %v902, %v914
      %v939 = vadd.f32 %v903, %v914
      %v940 = vadd.f32 %v904, %v914
      %v941 = vadd.f32 %v905, %v914
      %v942 = vadd.f32 %v906, %v914
      %v943 = vadd.f32 %v907, %v914
      %v944 = vadd.f32 %v908, %v914
      %v945 = vadd.f32 %v909, %v914
      %v946 = vadd.f32 %v910, %v914
      %v947 = vadd.f32 %v911, %v914
      %v948 = vsub.f32 0.0, %v916
      %v949 = vsub.f32 0.0, %v917
      %v950 = vsub.f32 0.0, %v918
      %v951 = vsub.f32 0.0, %v919
      %v952 = vsub.f32 0.0, %v920
      %v953 = vsub.f32 0.0, %v921
      %v954 = vsub.f32 0.0, %v922
      %v955 = vsub.f32 0.0, %v923
      %v956 = vsub.f32 0.0, %v924
      %v957 = vsub.f32 0.0, %v925
      %v958 = vsub.f32 0.0, %v926
      %v959 = vsub.f32 0.0, %v927
      %v960 = vsub.f32 0.0, %v928
      %v961 = vsub.f32 0.0, %v929
      %v962 = vsub.f32 0.0, %v930
      %v963 = vsub.f32 0.0, %v931
      %v964 = vsub.f32 0.0, %v932
      %v965 = vsub.f32 0.0, %v933
      %v966 = vsub.f32 0.0, %v934
      %v967 = vsub.f32 0.0, %v935
      %v968 = vsub.f32 0.0, %v936
      %v969 = vsub.f32 0.0, %v937
      %v970 = vsub.f32 0.0, %v938
      %v971 = vsub.f32 0.0, %v939
      %v972 = vsub.f32 0.0, %v940
      %v973 = vsub.f32 0.0, %v941
      %v974 = vsub.f32 0.0, %v942
      %v975 = vsub.f32 0.0, %v943
      %v976 = vsub.f32 0.0, %v944
      %v977 = vsub.f32 0.0, %v945
      %v978 = vsub.f32 0.0, %v946
      %v979 = vsub.f32 0.0, %v947
      %v980 = vmul.f32 %v948, 1.442695
      %v981 = vpow.pop %v980
      %v982 = vmul.f32 %v949, 1.442695
      %v983 = vpow.pop %v982
      %v984 = vmul.f32 %v950, 1.442695
      %v985 = vpow.pop %v984
      %v986 = vmul.f32 %v951, 1.442695
      %v987 = vpow.pop %v986
      %v988 = vmul.f32 %v952, 1.442695
      %v989 = vpow.pop %v988
      %v990 = vmul.f32 %v953, 1.442695
      %v991 = vpow.pop %v990
      %v992 = vmul.f32 %v954, 1.442695
      %v993 = vpow.pop %v992
      %v994 = vmul.f32 %v955, 1.442695
      %v995 = vpow.pop %v994
      %v996 = vmul.f32 %v956, 1.442695
      %v997 = vpow.pop %v996
      %v998 = vmul.f32 %v957, 1.442695
      %v999 = vpow.pop %v998
      %v1000 = vmul.f32 %v958, 1.442695
      %v1001 = vpow.pop %v1000
      %v1002 = vmul.f32 %v959, 1.442695
      %v1003 = vpow.pop %v1002
      %v1004 = vmul.f32 %v960, 1.442695
      %v1005 = vpow.pop %v1004
      %v1006 = vmul.f32 %v961, 1.442695
      %v1007 = vpow.pop %v1006
      %v1008 = vmul.f32 %v962, 1.442695
      %v1009 = vpow.pop %v1008
      %v1010 = vmul.f32 %v963, 1.442695
      %v1011 = vpow.pop %v1010
      %v1012 = vmul.f32 %v964, 1.442695
      %v1013 = vpow.pop %v1012
      %v1014 = vmul.f32 %v965, 1.442695
      %v1015 = vpow.pop %v1014
      %v1016 = vmul.f32 %v966, 1.442695
      %v1017 = vpow.pop %v1016
      %v1018 = vmul.f32 %v967, 1.442695
      %v1019 = vpow.pop %v1018
      %v1020 = vmul.f32 %v968, 1.442695
      %v1021 = vpow.pop %v1020
      %v1022 = vmul.f32 %v969, 1.442695
      %v1023 = vpow.pop %v1022
      %v1024 = vmul.f32 %v970, 1.442695
      %v1025 = vpow.pop %v1024
      %v1026 = vmul.f32 %v971, 1.442695
      %v1027 = vpow.pop %v1026
      %v1028 = vmul.f32 %v972, 1.442695
      %v1029 = vpow.pop %v1028
      %v1030 = vmul.f32 %v973, 1.442695
      %v1031 = vpow.pop %v1030
      %v1032 = vmul.f32 %v974, 1.442695
      %v1033 = vpow.pop %v1032
      %v1034 = vmul.f32 %v975, 1.442695
      %v1035 = vpow.pop %v1034
      %v1036 = vmul.f32 %v976, 1.442695
      %v1037 = vpow.pop %v1036
      %v1038 = vmul.f32 %v977, 1.442695
      %v1039 = vpow.pop %v1038
      %v1040 = vmul.f32 %v978, 1.442695
      %v1041 = vpow.pop %v1040
      %v1042 = vmul.f32 %v979, 1.442695
      %v1043 = vpow.pop %v1042
      %v1044 = vadd.f32 %v981, 1.0
      %v1045 = vadd.f32 %v983, 1.0
      %v1046 = vadd.f32 %v985, 1.0
      %v1047 = vadd.f32 %v987, 1.0
      %v1048 = vadd.f32 %v989, 1.0
      %v1049 = vadd.f32 %v991, 1.0
      %v1050 = vadd.f32 %v993, 1.0
      %v1051 = vadd.f32 %v995, 1.0
      %v1052 = vadd.f32 %v997, 1.0
      %v1053 = vadd.f32 %v999, 1.0
      %v1054 = vadd.f32 %v1001, 1.0
      %v1055 = vadd.f32 %v1003, 1.0
      %v1056 = vadd.f32 %v1005, 1.0
      %v1057 = vadd.f32 %v1007, 1.0
      %v1058 = vadd.f32 %v1009, 1.0
      %v1059 = vadd.f32 %v1011, 1.0
      %v1060 = vadd.f32 %v1013, 1.0
      %v1061 = vadd.f32 %v1015, 1.0
      %v1062 = vadd.f32 %v1017, 1.0
      %v1063 = vadd.f32 %v1019, 1.0
      %v1064 = vadd.f32 %v1021, 1.0
      %v1065 = vadd.f32 %v1023, 1.0
      %v1066 = vadd.f32 %v1025, 1.0
      %v1067 = vadd.f32 %v1027, 1.0
      %v1068 = vadd.f32 %v1029, 1.0
      %v1069 = vadd.f32 %v1031, 1.0
      %v1070 = vadd.f32 %v1033, 1.0
      %v1071 = vadd.f32 %v1035, 1.0
      %v1072 = vadd.f32 %v1037, 1.0
      %v1073 = vadd.f32 %v1039, 1.0
      %v1074 = vadd.f32 %v1041, 1.0
      %v1075 = vadd.f32 %v1043, 1.0
      %v1076 = vrcp.pop %v1044
      %v1077 = vrcp.pop %v1045
      %v1078 = vrcp.pop %v1046
      %v1079 = vrcp.pop %v1047
      %v1080 = vrcp.pop %v1048
      %v1081 = vrcp.pop %v1049
      %v1082 = vrcp.pop %v1050
      %v1083 = vrcp.pop %v1051
      %v1084 = vrcp.pop %v1052
      %v1085 = vrcp.pop %v1053
      %v1086 = vrcp.pop %v1054
      %v1087 = vrcp.pop %v1055
      %v1088 = vrcp.pop %v1056
      %v1089 = vrcp.pop %v1057
      %v1090 = vrcp.pop %v1058
      %v1091 = vrcp.pop %v1059
      %v1092 = vrcp.pop %v1060
      %v1093 = vrcp.pop %v1061
      %v1094 = vrcp.pop %v1062
      %v1095 = vrcp.pop %v1063
      %v1096 = vrcp.pop %v1064
      %v1097 = vrcp.pop %v1065
      %v1098 = vrcp.pop %v1066
      %v1099 = vrcp.pop %v1067
      %v1100 = vrcp.pop %v1068
      %v1101 = vrcp.pop %v1069
      %v1102 = vrcp.pop %v1070
      %v1103 = vrcp.pop %v1071
      %v1104 = vrcp.pop %v1072
      %v1105 = vrcp.pop %v1073
      %v1106 = vrcp.pop %v1074
      %v1107 = vrcp.pop %v1075
      %v1108 = vmul.f32 %v916, %v1076
      %v1109 = vmul.f32 %v917, %v1077
      %v1110 = vmul.f32 %v918, %v1078
      %v1111 = vmul.f32 %v919, %v1079
      %v1112 = vmul.f32 %v920, %v1080
      %v1113 = vmul.f32 %v921, %v1081
      %v1114 = vmul.f32 %v922, %v1082
      %v1115 = vmul.f32 %v923, %v1083
      %v1116 = vmul.f32 %v924, %v1084
      %v1117 = vmul.f32 %v925, %v1085
      %v1118 = vmul.f32 %v926, %v1086
      %v1119 = vmul.f32 %v927, %v1087
      %v1120 = vmul.f32 %v928, %v1088
      %v1121 = vmul.f32 %v929, %v1089
      %v1122 = vmul.f32 %v930, %v1090
      %v1123 = vmul.f32 %v931, %v1091
      %v1124 = vmul.f32 %v932, %v1092
      %v1125 = vmul.f32 %v933, %v1093
      %v1126 = vmul.f32 %v934, %v1094
      %v1127 = vmul.f32 %v935, %v1095
      %v1128 = vmul.f32 %v936, %v1096
      %v1129 = vmul.f32 %v937, %v1097
      %v1130 = vmul.f32 %v938, %v1098
      %v1131 = vmul.f32 %v939, %v1099
      %v1132 = vmul.f32 %v940, %v1100
      %v1133 = vmul.f32 %v941, %v1101
      %v1134 = vmul.f32 %v942, %v1102
      %v1135 = vmul.f32 %v943, %v1103
      %v1136 = vmul.f32 %v944, %v1104
      %v1137 = vmul.f32 %v945, %v1105
      %v1138 = vmul.f32 %v946, %v1106
      %v1139 = vmul.f32 %v947, %v1107
      %1140 = vst [vmem:[%s248] sm:$0xff] %v1108
      %1141 = vst [vmem:[%s248 + $0x8] sm:$0xff] %v1109
      %1142 = vst [vmem:[%s248 + $0x10] sm:$0xff] %v1110
      %1143 = vst [vmem:[%s248 + $0x18] sm:$0xff] %v1111
      %1144 = vst [vmem:[%s248 + $0x20] sm:$0xff] %v1112
      %1145 = vst [vmem:[%s248 + $0x28] sm:$0xff] %v1113
      %1146 = vst [vmem:[%s248 + $0x30] sm:$0xff] %v1114
      %1147 = vst [vmem:[%s248 + $0x38] sm:$0xff] %v1115
      %1148 = vst [vmem:[%s248 + $0x40] sm:$0xff] %v1116
      %1149 = vst [vmem:[%s248 + $0x48] sm:$0xff] %v1117
      %1150 = vst [vmem:[%s248 + $0x50] sm:$0xff] %v1118
      %1151 = vst [vmem:[%s248 + $0x58] sm:$0xff] %v1119
      %1152 = vst [vmem:[%s248 + $0x60] sm:$0xff] %v1120
      %1153 = vst [vmem:[%s248 + $0x68] sm:$0xff] %v1121
      %1154 = vst [vmem:[%s248 + $0x70] sm:$0xff] %v1122
      %1155 = vst [vmem:[%s248 + $0x78] sm:$0xff] %v1123
      %1156 = vst [vmem:[%s248 + $0x80] sm:$0xff] %v1124
      %1157 = vst [vmem:[%s248 + $0x88] sm:$0xff] %v1125
      %1158 = vst [vmem:[%s248 + $0x90] sm:$0xff] %v1126
      %1159 = vst [vmem:[%s248 + $0x98] sm:$0xff] %v1127
      %1160 = vst [vmem:[%s248 + $0xa0] sm:$0xff] %v1128
      %1161 = vst [vmem:[%s248 + $0xa8] sm:$0xff] %v1129
      %1162 = vst [vmem:[%s248 + $0xb0] sm:$0xff] %v1130
      %1163 = vst [vmem:[%s248 + $0xb8] sm:$0xff] %v1131
      %1164 = vst [vmem:[%s248 + $0xc0] sm:$0xff] %v1132
      %1165 = vst [vmem:[%s248 + $0xc8] sm:$0xff] %v1133
      %1166 = vst [vmem:[%s248 + $0xd0] sm:$0xff] %v1134
      %1167 = vst [vmem:[%s248 + $0xd8] sm:$0xff] %v1135
      %1168 = vst [vmem:[%s248 + $0xe0] sm:$0xff] %v1136
      %1169 = vst [vmem:[%s248 + $0xe8] sm:$0xff] %v1137
      %1170 = vst [vmem:[%s248 + $0xf0] sm:$0xff] %v1138
      %1171 = vst [vmem:[%s248 + $0xf8] sm:$0xff] %v1139
      %s1172 = smul.u32 32, %s16
      %p1173 = scmp.lt.s32.totalorder %s1172, 63
      %s1174 = scalar_select %p1173, %s1172, 63
      %s1175 = smul.addr %s1174, 8
      %s1176 = scalar_lea.vmem %s5, %s1175
      // Predicated region
      $region41: #{c3_forward.5} parent=39 // pred_check
        %p1177 = pneg %p149
      $region42: #{c3_forward.5} parent=39 // pred_check_branch
        %1179 = sbr.rel (%p1177) target = $region44
      $region43: #{c3_forward.5} parent=39 // pred_region
        %s1180 = smul.u32 32, %s16
      $region44: #{c3_forward.5} parent=39 // pred_fallthru
        _
    $region40: #{c3_forward.5} parent=5 // pred_fallthru
      _
    %p1181 = scmp.le.s32.totalorder 2, %s11
    // Predicated region
    $region45: #{c3_forward.5} parent=5 // pred_check
      %p1182 = pneg %p1181
    $region46: #{c3_forward.5} parent=5 // pred_check_branch
      %1184 = sbr.rel (%p1182) target = $region48
    $region47: #{c3_forward.5} parent=5 // pred_region
      %s1185 = ssub.s32 %s11, 2
      // Predicated region
      $region49: #{c3_forward.5} parent=47 // pred_check
        %p1186 = pneg %p155
      $region50: #{c3_forward.5} parent=47 // pred_check_branch
        %1188 = sbr.rel (%p1186) target = $region52
      $region51: #{c3_forward.5} parent=47 // pred_region
        %s1189 = smul.u32 32, %s17
        %p1190 = scmp.lt.s32.totalorder %s1189, 63
        %s1191 = scalar_select %p1190, %s1189, 63
        %s1192 = smul.addr %s1191, 8
        %s1193 = scalar_lea.vmem %s5, %s1192
      $region52: #{c3_forward.5} parent=47 // pred_fallthru
        _
    $region48: #{c3_forward.5} parent=5 // pred_fallthru
      _
  $region6: #{c3_forward.5} parent=0 // loop_footer
    %s15 = sadd.s32 1, %s11
  $region7: #{c3_forward.5} parent=0 // loop_footer_branch
    %10 = sbr.rel target = $region3
  $region8: #{c3_forward.5} parent=0 // loop_exit
    _

// kernel: c3_forward.4
$region0: #{c3_forward.4}
  #allocation0 [shape = 'u32[]', space=smem, size = 0x4, offset = 0x4, fixed_abs, tag = 'smem constant byte address 0x4 - core index']
  #allocation1 [shape = 'u32[72,128]{1,0:T(1,128)}', space=vmem, size = 0x9000, scoped, tag = 'internal scratch']
  #allocation2 [shape = 'bf16[18,18,128]{2,1,0:T(8,128)(2,1)}', space=vmem, size = 0x1b000, scoped, tag = 'scratch operand']
  %s0 = inlined_call_operand.vmem [shape: bf16[2,256,128], index: 0, kind: input, shape index: {}]
  %s1 = inlined_call_operand.vmem [shape: bf16[128,128], index: 1, kind: input, shape index: {}]
  %s2 = inlined_call_operand.vmem [shape: f32[1,128], index: 2, kind: input, shape index: {}]
  %s3 = inlined_call_operand.vmem [shape: f32[1,128], index: 3, kind: input, shape index: {}]
  %s4 = inlined_call_operand.vmem [shape: bf16[9,128,128], index: 4, kind: input, shape index: {}]
  %s5 = inlined_call_operand.vmem [shape: f32[1,128], index: 5, kind: input, shape index: {}]
  %s6 = inlined_call_operand.vmem [shape: f32[1,128], index: 6, kind: input, shape index: {}]
  %s7 = inlined_call_operand.vmem [shape: bf16[2,256,128], index: 7, kind: output, shape index: {}]
  %s8 = sld [smem:[#allocation0]]
  $region61: #{c3_forward.4} parent=0
    _
  %s10 = ssub.s32 1, %s8
  %s11 = scalar_select 0, %s10, %s8
  loop: start=0, step=1, limit=4
  $region2: #{c3_forward.4} parent=0 // loop_pre_header
    _
  $region3: #{c3_forward.4} parent=0 // loop_header
    %s13 = sphi 0, %s17
    %p14 = scmp.ge.s32.totalorder %s13, 4
    %s23 = sphi 0, %s25
    %s26 = sphi 0, %s23
    %s27 = sphi 0, %s26
    %s43 = sphi 0, %s27
    %s47 = sphi 0, %s47
    %s49 = sphi 0, %s47
    %s50 = sphi 0, %s49
    %s64 = sphi 0, %s50
    %s68 = sphi 0, %s68
    %s70 = sphi 0, %s68
    %s71 = sphi 0, %s70
    %s85 = sphi 0, %s71
    %s89 = sphi 0, %s89
    %s91 = sphi 0, %s89
    %s92 = sphi 0, %s91
    %s106 = sphi 0, %s92
    %s110 = sphi 0, %s110
    %s112 = sphi 0, %s110
    %s113 = sphi 0, %s112
    %s127 = sphi 0, %s113
    %s131 = sphi 0, %s131
    %s133 = sphi 0, %s131
    %s134 = sphi 0, %s133
    %s148 = sphi 0, %s134
    %s152 = sphi 0, %s152
    %s154 = sphi 0, %s152
    %s155 = sphi 0, %s154
    %s169 = sphi 0, %s155
    %s175 = sphi 0, %s177
    %s178 = sphi 0, %s175
    %s179 = sphi 0, %s178
    %s195 = sphi 0, %s179
  $region4: #{c3_forward.4} parent=0 // loop_header_branch
    %16 = sbr.rel (%p14) target = $region8
  $region5: #{c3_forward.4} parent=0 // loop_body
    %s18 = ssub.s32 %s13, 1
    %s19 = ssub.s32 %s13, 2
    %s20 = sadd.s32 %s13, 1
    %s21 = ssub.s32 %s13, %s20
    %p22 = scmp.eq.s32.totalorder %s21, 0
    %s24 = sadd.s32 %s23, 1
    %s25 = scalar_select %p22, %s23, %s24
    %p28 = pneg %p22
    %p29 = scmp.eq.s32.totalorder %s13, 1
    %p30 = por %p28, %p29
    %p31 = scmp.ne.s32.totalorder %s23, %s26
    %p32 = scmp.eq.s32.totalorder %s13, 0
    %p33 = por %p31, %p32
    %p34 = scmp.ne.s32.totalorder %s23, %s26
    %p35 = scmp.eq.s32.totalorder %s18, 1
    %p36 = por %p34, %p35
    %p37 = scmp.ne.s32.totalorder %s26, %s27
    %p38 = scmp.eq.s32.totalorder %s18, 0
    %p39 = por %p37, %p38
    %p40 = scmp.ne.s32.totalorder %s26, %s27
    %p41 = scmp.eq.s32.totalorder %s19, 1
    %p42 = por %p40, %p41
    %p44 = scmp.ne.s32.totalorder %s27, %s43
    %p45 = scmp.eq.s32.totalorder %s19, 0
    %p46 = por %p44, %p45
    %s48 = sadd.s32 %s47, 1
    %p51 = scmp.eq.s32.totalorder %s13, 1
    %p52 = scmp.ne.s32.totalorder %s47, %s49
    %p53 = scmp.eq.s32.totalorder %s13, 0
    %p54 = por %p52, %p53
    %p55 = scmp.ne.s32.totalorder %s47, %s49
    %p56 = scmp.eq.s32.totalorder %s18, 1
    %p57 = por %p55, %p56
    %p58 = scmp.ne.s32.totalorder %s49, %s50
    %p59 = scmp.eq.s32.totalorder %s18, 0
    %p60 = por %p58, %p59
    %p61 = scmp.ne.s32.totalorder %s49, %s50
    %p62 = scmp.eq.s32.totalorder %s19, 1
    %p63 = por %p61, %p62
    %p65 = scmp.ne.s32.totalorder %s50, %s64
    %p66 = scmp.eq.s32.totalorder %s19, 0
    %p67 = por %p65, %p66
    %s69 = sadd.s32 %s68, 1
    %p72 = scmp.eq.s32.totalorder %s13, 1
    %p73 = scmp.ne.s32.totalorder %s68, %s70
    %p74 = scmp.eq.s32.totalorder %s13, 0
    %p75 = por %p73, %p74
    %p76 = scmp.ne.s32.totalorder %s68, %s70
    %p77 = scmp.eq.s32.totalorder %s18, 1
    %p78 = por %p76, %p77
    %p79 = scmp.ne.s32.totalorder %s70, %s71
    %p80 = scmp.eq.s32.totalorder %s18, 0
    %p81 = por %p79, %p80
    %p82 = scmp.ne.s32.totalorder %s70, %s71
    %p83 = scmp.eq.s32.totalorder %s19, 1
    %p84 = por %p82, %p83
    %p86 = scmp.ne.s32.totalorder %s71, %s85
    %p87 = scmp.eq.s32.totalorder %s19, 0
    %p88 = por %p86, %p87
    %s90 = sadd.s32 %s89, 1
    %p93 = scmp.eq.s32.totalorder %s13, 1
    %p94 = scmp.ne.s32.totalorder %s89, %s91
    %p95 = scmp.eq.s32.totalorder %s13, 0
    %p96 = por %p94, %p95
    %p97 = scmp.ne.s32.totalorder %s89, %s91
    %p98 = scmp.eq.s32.totalorder %s18, 1
    %p99 = por %p97, %p98
    %p100 = scmp.ne.s32.totalorder %s91, %s92
    %p101 = scmp.eq.s32.totalorder %s18, 0
    %p102 = por %p100, %p101
    %p103 = scmp.ne.s32.totalorder %s91, %s92
    %p104 = scmp.eq.s32.totalorder %s19, 1
    %p105 = por %p103, %p104
    %p107 = scmp.ne.s32.totalorder %s92, %s106
    %p108 = scmp.eq.s32.totalorder %s19, 0
    %p109 = por %p107, %p108
    %s111 = sadd.s32 %s110, 1
    %p114 = scmp.eq.s32.totalorder %s13, 1
    %p115 = scmp.ne.s32.totalorder %s110, %s112
    %p116 = scmp.eq.s32.totalorder %s13, 0
    %p117 = por %p115, %p116
    %p118 = scmp.ne.s32.totalorder %s110, %s112
    %p119 = scmp.eq.s32.totalorder %s18, 1
    %p120 = por %p118, %p119
    %p121 = scmp.ne.s32.totalorder %s112, %s113
    %p122 = scmp.eq.s32.totalorder %s18, 0
    %p123 = por %p121, %p122
    %p124 = scmp.ne.s32.totalorder %s112, %s113
    %p125 = scmp.eq.s32.totalorder %s19, 1
    %p126 = por %p124, %p125
    %p128 = scmp.ne.s32.totalorder %s113, %s127
    %p129 = scmp.eq.s32.totalorder %s19, 0
    %p130 = por %p128, %p129
    %s132 = sadd.s32 %s131, 1
    %p135 = scmp.eq.s32.totalorder %s13, 1
    %p136 = scmp.ne.s32.totalorder %s131, %s133
    %p137 = scmp.eq.s32.totalorder %s13, 0
    %p138 = por %p136, %p137
    %p139 = scmp.ne.s32.totalorder %s131, %s133
    %p140 = scmp.eq.s32.totalorder %s18, 1
    %p141 = por %p139, %p140
    %p142 = scmp.ne.s32.totalorder %s133, %s134
    %p143 = scmp.eq.s32.totalorder %s18, 0
    %p144 = por %p142, %p143
    %p145 = scmp.ne.s32.totalorder %s133, %s134
    %p146 = scmp.eq.s32.totalorder %s19, 1
    %p147 = por %p145, %p146
    %p149 = scmp.ne.s32.totalorder %s134, %s148
    %p150 = scmp.eq.s32.totalorder %s19, 0
    %p151 = por %p149, %p150
    %s153 = sadd.s32 %s152, 1
    %p156 = scmp.eq.s32.totalorder %s13, 1
    %p157 = scmp.ne.s32.totalorder %s152, %s154
    %p158 = scmp.eq.s32.totalorder %s13, 0
    %p159 = por %p157, %p158
    %p160 = scmp.ne.s32.totalorder %s152, %s154
    %p161 = scmp.eq.s32.totalorder %s18, 1
    %p162 = por %p160, %p161
    %p163 = scmp.ne.s32.totalorder %s154, %s155
    %p164 = scmp.eq.s32.totalorder %s18, 0
    %p165 = por %p163, %p164
    %p166 = scmp.ne.s32.totalorder %s154, %s155
    %p167 = scmp.eq.s32.totalorder %s19, 1
    %p168 = por %p166, %p167
    %p170 = scmp.ne.s32.totalorder %s155, %s169
    %p171 = scmp.eq.s32.totalorder %s19, 0
    %p172 = por %p170, %p171
    %s173 = ssub.s32 %s13, %s20
    %p174 = scmp.eq.s32.totalorder %s173, 0
    %s176 = sadd.s32 %s175, 1
    %s177 = scalar_select %p174, %s175, %s176
    %p180 = pneg %p174
    %p181 = scmp.eq.s32.totalorder %s13, 1
    %p182 = por %p180, %p181
    %p183 = scmp.ne.s32.totalorder %s175, %s178
    %p184 = scmp.eq.s32.totalorder %s13, 0
    %p185 = por %p183, %p184
    %p186 = scmp.ne.s32.totalorder %s175, %s178
    %p187 = scmp.eq.s32.totalorder %s18, 1
    %p188 = por %p186, %p187
    %p189 = scmp.ne.s32.totalorder %s178, %s179
    %p190 = scmp.eq.s32.totalorder %s18, 0
    %p191 = por %p189, %p190
    %p192 = scmp.ne.s32.totalorder %s178, %s179
    %p193 = scmp.eq.s32.totalorder %s19, 1
    %p194 = por %p192, %p193
    %p196 = scmp.ne.s32.totalorder %s179, %s195
    %p197 = scmp.eq.s32.totalorder %s19, 0
    %p198 = por %p196, %p197
    %p199 = scmp.le.s32.totalorder 1, %s13
    %p200 = scmp.lt.s32.totalorder %s13, 3
    %p201 = pnand %p199, %p200
    %p202 = pneg %p201
    // Predicated region
    $region9: #{c3_forward.4} parent=5 // pred_check
      _
    $region10: #{c3_forward.4} parent=5 // pred_check_branch
      %204 = sbr.rel (%p201) target = $region12
    $region11: #{c3_forward.4} parent=5 // pred_region
      %s205 = ssub.s32 %s13, 1
      // Predicated region
      $region13: #{c3_forward.4} parent=11 // pred_check
        %p206 = pneg %p60
      $region14: #{c3_forward.4} parent=11 // pred_check_branch
        %208 = sbr.rel (%p206) target = $region16
      $region15: #{c3_forward.4} parent=11 // pred_region
        _
      $region16: #{c3_forward.4} parent=11 // pred_fallthru
        _
      // Predicated region
      $region17: #{c3_forward.4} parent=11 // pred_check
        %p209 = pneg %p81
      $region18: #{c3_forward.4} parent=11 // pred_check_branch
        %211 = sbr.rel (%p209) target = $region20
      $region19: #{c3_forward.4} parent=11 // pred_region
        _
      $region20: #{c3_forward.4} parent=11 // pred_fallthru
        _
      // Predicated region
      $region21: #{c3_forward.4} parent=11 // pred_check
        %p212 = pneg %p102
      $region22: #{c3_forward.4} parent=11 // pred_check_branch
        %214 = sbr.rel (%p212) target = $region24
      $region23: #{c3_forward.4} parent=11 // pred_region
        _
      $region24: #{c3_forward.4} parent=11 // pred_fallthru
        _
      // Predicated region
      $region25: #{c3_forward.4} parent=11 // pred_check
        %p215 = pneg %p123
      $region26: #{c3_forward.4} parent=11 // pred_check_branch
        %217 = sbr.rel (%p215) target = $region28
      $region27: #{c3_forward.4} parent=11 // pred_region
        _
      $region28: #{c3_forward.4} parent=11 // pred_fallthru
        _
      // Predicated region
      $region29: #{c3_forward.4} parent=11 // pred_check
        %p218 = pneg %p144
      $region30: #{c3_forward.4} parent=11 // pred_check_branch
        %220 = sbr.rel (%p218) target = $region32
      $region31: #{c3_forward.4} parent=11 // pred_region
        _
      $region32: #{c3_forward.4} parent=11 // pred_fallthru
        _
      // Predicated region
      $region33: #{c3_forward.4} parent=11 // pred_check
        %p221 = pneg %p165
      $region34: #{c3_forward.4} parent=11 // pred_check_branch
        %223 = sbr.rel (%p221) target = $region36
      $region35: #{c3_forward.4} parent=11 // pred_region
        _
      $region36: #{c3_forward.4} parent=11 // pred_fallthru
        _
    $region12: #{c3_forward.4} parent=5 // pred_fallthru
      _
    %p224 = scmp.lt.s32.totalorder %s13, 2
    // Predicated region
    $region37: #{c3_forward.4} parent=5 // pred_check
      %p225 = pneg %p224
    $region38: #{c3_forward.4} parent=5 // pred_check_branch
      %227 = sbr.rel (%p225) target = $region40
    $region39: #{c3_forward.4} parent=5 // pred_region
      // Predicated region
      $region41: #{c3_forward.4} parent=39 // pred_check
        %p228 = pneg %p33
      $region42: #{c3_forward.4} parent=39 // pred_check_branch
        %230 = sbr.rel (%p228) target = $region44
      $region43: #{c3_forward.4} parent=39 // pred_region
        %p231 = scmp.lt.s32.totalorder %s13, 1
        %s232 = scalar_select %p231, %s13, 1
        %s233 = smul.addr %s232, 32
        %s234 = smul.addr %s233, 4
        %s235 = scalar_lea.vmem %s0, %s234
      $region44: #{c3_forward.4} parent=39 // pred_fallthru
        _
    $region40: #{c3_forward.4} parent=5 // pred_fallthru
      _
    %p236 = scmp.le.s32.totalorder 1, %s13
    %p237 = scmp.lt.s32.totalorder %s13, 3
    %p238 = pnand %p236, %p237
    %p239 = pneg %p238
    // Predicated region
    $region45: #{c3_forward.4} parent=5 // pred_check
      _
    $region46: #{c3_forward.4} parent=5 // pred_check_branch
      %241 = sbr.rel (%p238) target = $region48
    $region47: #{c3_forward.4} parent=5 // pred_region
      %s242 = ssub.s32 %s13, 1
      %p243 = scmp.lt.s32.totalorder %s18, 1
      %s244 = scalar_select %p243, %s18, 1
      %s245 = smul.addr %s244, 32
      %s246 = smul.addr %s245, 4
      %s247 = scalar_lea.vmem %s0, %s246
      %p248 = pneg %p39
      %p249 = pneg %p36
      %p250 = pneg %p60
      %p251 = pneg %p57
      %p252 = pneg %p81
      %p253 = pneg %p78
      %p254 = pneg %p102
      %p255 = pneg %p99
      %p256 = pneg %p123
      %p257 = pneg %p120
      %p258 = pneg %p144
      %p259 = pneg %p141
      %p260 = pneg %p165
      %p261 = pneg %p162
      %p262 = pneg %p191
      %p263 = pneg %p188
      %p264 = scmp.lt.s32.totalorder %s18, 1
      %s265 = scalar_select %p264, %s18, 1
      %s266 = smul.addr %s265, 32
      %s267 = smul.addr %s266, 4
      %s268 = scalar_lea.vmem %s7, %s267
      %p269 = scmp.lt.s32.totalorder %s18, 1
      %s270 = scalar_select %p269, %s18, 1
      %s271 = smul.addr %s270, 32
      %s272 = smul.addr %s271, 4
      %s273 = scalar_lea.vmem %s0, %s272
      %p274 = scmp.lt.s32.totalorder %s18, 1
      %s275 = scalar_select %p274, %s18, 1
      %s276 = smul.addr %s275, 32
      %s277 = smul.addr %s276, 4
      %s278 = scalar_lea.vmem %s7, %s277
      %v280 = vld [vmem:[%s273] sm:$0xf]
      %v281 = vld [vmem:[%s273 + $0x4] sm:$0xf]
      %v282 = vld [vmem:[%s273 + $0x8] sm:$0xf]
      %v283 = vld [vmem:[%s273 + $0xc] sm:$0xf]
      %v284 = vld [vmem:[%s273 + $0x10] sm:$0xf]
      %v285 = vld [vmem:[%s273 + $0x14] sm:$0xf]
      %v286 = vld [vmem:[%s273 + $0x18] sm:$0xf]
      %v287 = vld [vmem:[%s273 + $0x1c] sm:$0xf]
      %v288 = vld [vmem:[%s273 + $0x20] sm:$0xf]
      %v289 = vld [vmem:[%s273 + $0x24] sm:$0xf]
      %v290 = vld [vmem:[%s273 + $0x28] sm:$0xf]
      %v291 = vld [vmem:[%s273 + $0x2c] sm:$0xf]
      %v292 = vld [vmem:[%s273 + $0x30] sm:$0xf]
      %v293 = vld [vmem:[%s273 + $0x34] sm:$0xf]
      %v294 = vld [vmem:[%s273 + $0x38] sm:$0xf]
      %v295 = vld [vmem:[%s273 + $0x3c] sm:$0xf]
      %v296 = vld [vmem:[%s273 + $0x40] sm:$0xf]
      %v297 = vld [vmem:[%s273 + $0x44] sm:$0xf]
      %v298 = vld [vmem:[%s273 + $0x48] sm:$0xf]
      %v299 = vld [vmem:[%s273 + $0x4c] sm:$0xf]
      %v300 = vld [vmem:[%s273 + $0x50] sm:$0xf]
      %v301 = vld [vmem:[%s273 + $0x54] sm:$0xf]
      %v302 = vld [vmem:[%s273 + $0x58] sm:$0xf]
      %v303 = vld [vmem:[%s273 + $0x5c] sm:$0xf]
      %v304 = vld [vmem:[%s273 + $0x60] sm:$0xf]
      %v305 = vld [vmem:[%s273 + $0x64] sm:$0xf]
      %v306 = vld [vmem:[%s273 + $0x68] sm:$0xf]
      %v307 = vld [vmem:[%s273 + $0x6c] sm:$0xf]
      %v308 = vld [vmem:[%s273 + $0x70] sm:$0xf]
      %v309 = vld [vmem:[%s273 + $0x74] sm:$0xf]
      %v310 = vld [vmem:[%s273 + $0x78] sm:$0xf]
      %v311 = vld [vmem:[%s273 + $0x7c] sm:$0xf]
      %v312 = vld [vmem:[%s1] sm:$0xf]
      %v313 = vld [vmem:[%s1 + $0x4] sm:$0xf]
      %v314 = vld [vmem:[%s1 + $0x8] sm:$0xf]
      %v315 = vld [vmem:[%s1 + $0xc] sm:$0xf]
      %v316 = vld [vmem:[%s1 + $0x10] sm:$0xf]
      %v317 = vld [vmem:[%s1 + $0x14] sm:$0xf]
      %v318 = vld [vmem:[%s1 + $0x18] sm:$0xf]
      %v319 = vld [vmem:[%s1 + $0x1c] sm:$0xf]
      %v320 = vld [vmem:[%s1 + $0x20] sm:$0xf]
      %v321 = vld [vmem:[%s1 + $0x24] sm:$0xf]
      %v322 = vld [vmem:[%s1 + $0x28] sm:$0xf]
      %v323 = vld [vmem:[%s1 + $0x2c] sm:$0xf]
      %v324 = vld [vmem:[%s1 + $0x30] sm:$0xf]
      %v325 = vld [vmem:[%s1 + $0x34] sm:$0xf]
      %v326 = vld [vmem:[%s1 + $0x38] sm:$0xf]
      %v327 = vld [vmem:[%s1 + $0x3c] sm:$0xf]
      %v360 = vunpack.c.l.b16 %v280
      %v361 = vunpack.c.l.b16 %v281
      %v362 = vunpack.c.l.b16 %v282
      %v363 = vunpack.c.l.b16 %v283
      %v364 = vunpack.c.l.b16 %v284
      %v365 = vunpack.c.l.b16 %v285
      %v366 = vunpack.c.l.b16 %v286
      %v367 = vunpack.c.l.b16 %v287
      %v368 = vunpack.c.l.b16 %v288
      %v369 = vunpack.c.l.b16 %v289
      %v370 = vunpack.c.l.b16 %v290
      %v371 = vunpack.c.l.b16 %v291
      %v372 = vunpack.c.l.b16 %v292
      %v373 = vunpack.c.l.b16 %v293
      %v374 = vunpack.c.l.b16 %v294
      %v375 = vunpack.c.l.b16 %v295
      %v376 = vunpack.c.l.b16 %v296
      %v377 = vunpack.c.l.b16 %v297
      %v378 = vunpack.c.l.b16 %v298
      %v379 = vunpack.c.l.b16 %v299
      %v380 = vunpack.c.l.b16 %v300
      %v381 = vunpack.c.l.b16 %v301
      %v382 = vunpack.c.l.b16 %v302
      %v383 = vunpack.c.l.b16 %v303
      %v384 = vunpack.c.l.b16 %v304
      %v385 = vunpack.c.l.b16 %v305
      %v386 = vunpack.c.l.b16 %v306
      %v387 = vunpack.c.l.b16 %v307
      %v388 = vunpack.c.l.b16 %v308
      %v389 = vunpack.c.l.b16 %v309
      %v390 = vunpack.c.l.b16 %v310
      %v391 = vunpack.c.l.b16 %v311
      %v392 = vpack.c.b16 %v361, %v360
      %v393 = vpack.c.b16 %v363, %v362
      %v394 = vpack.c.b16 %v365, %v364
      %v395 = vpack.c.b16 %v367, %v366
      %v396 = vpack.c.b16 %v369, %v368
      %v397 = vpack.c.b16 %v371, %v370
      %v398 = vpack.c.b16 %v373, %v372
      %v399 = vpack.c.b16 %v375, %v374
      %v400 = vpack.c.b16 %v377, %v376
      %v401 = vpack.c.b16 %v379, %v378
      %v402 = vpack.c.b16 %v381, %v380
      %v403 = vpack.c.b16 %v383, %v382
      %v404 = vpack.c.b16 %v385, %v384
      %v405 = vpack.c.b16 %v387, %v386
      %v406 = vpack.c.b16 %v389, %v388
      %v407 = vpack.c.b16 %v391, %v390
      %v440 = vunpack.c.l.b16 %v312
      %v441 = vunpack.c.l.b16 %v313
      %v442 = vunpack.c.l.b16 %v314
      %v443 = vunpack.c.l.b16 %v315
      %v444 = vunpack.c.l.b16 %v316
      %v445 = vunpack.c.l.b16 %v317
      %v446 = vunpack.c.l.b16 %v318
      %v447 = vunpack.c.l.b16 %v319
      %v448 = vunpack.c.l.b16 %v320
      %v449 = vunpack.c.l.b16 %v321
      %v450 = vunpack.c.l.b16 %v322
      %v451 = vunpack.c.l.b16 %v323
      %v452 = vunpack.c.l.b16 %v324
      %v453 = vunpack.c.l.b16 %v325
      %v454 = vunpack.c.l.b16 %v326
      %v455 = vunpack.c.l.b16 %v327
      %v456 = vpack.c.b16 %v441, %v440
      %v457 = vpack.c.b16 %v443, %v442
      %v458 = vpack.c.b16 %v445, %v444
      %v459 = vpack.c.b16 %v447, %v446
      %v460 = vpack.c.b16 %v449, %v448
      %v461 = vpack.c.b16 %v451, %v450
      %v462 = vpack.c.b16 %v453, %v452
      %v463 = vpack.c.b16 %v455, %v454
      %472 = vmatpush.bf16.msra.mxu0 %v463
      %473 = vmatpush.bf16.msra.mxu0 %v462
      %474 = vmatpush.bf16.msra.mxu0 %v461
      %475 = vmatpush.bf16.msra.mxu0 %v460
      %476 = vmatpush.bf16.msra.mxu0 %v459
      %477 = vmatpush.bf16.msra.mxu0 %v458
      %478 = vmatpush.bf16.msra.mxu0 %v457
      %479 = vmatpush.bf16.msra.mxu0 %v456
      %480 = vmatmul.bf16.gmra.mxu0 %v392
      %v481 = vpop.f32.mrf.mxu0
      %v482 = vadd.f32 0.0, %v481
      %v483 = vpop.f32.mrf.mxu0
      %v484 = vadd.f32 0.0, %v483
      %485 = vmatmul.bf16.gmra.mxu0 %v393
      %v486 = vpop.f32.mrf.mxu0
      %v487 = vadd.f32 0.0, %v486
      %v488 = vpop.f32.mrf.mxu0
      %v489 = vadd.f32 0.0, %v488
      %490 = vmatmul.bf16.gmra.mxu0 %v394
      %v491 = vpop.f32.mrf.mxu0
      %v492 = vadd.f32 0.0, %v491
      %v493 = vpop.f32.mrf.mxu0
      %v494 = vadd.f32 0.0, %v493
      %495 = vmatmul.bf16.gmra.mxu0 %v395
      %v496 = vpop.f32.mrf.mxu0
      %v497 = vadd.f32 0.0, %v496
      %v498 = vpop.f32.mrf.mxu0
      %v499 = vadd.f32 0.0, %v498
      %500 = vmatmul.bf16.gmra.mxu0 %v396
      %v501 = vpop.f32.mrf.mxu0
      %v502 = vadd.f32 0.0, %v501
      %v503 = vpop.f32.mrf.mxu0
      %v504 = vadd.f32 0.0, %v503
      %505 = vmatmul.bf16.gmra.mxu0 %v397
      %v506 = vpop.f32.mrf.mxu0
      %v507 = vadd.f32 0.0, %v506
      %v508 = vpop.f32.mrf.mxu0
      %v509 = vadd.f32 0.0, %v508
      %510 = vmatmul.bf16.gmra.mxu0 %v398
      %v511 = vpop.f32.mrf.mxu0
      %v512 = vadd.f32 0.0, %v511
      %v513 = vpop.f32.mrf.mxu0
      %v514 = vadd.f32 0.0, %v513
      %515 = vmatmul.bf16.gmra.mxu0 %v399
      %v516 = vpop.f32.mrf.mxu0
      %v517 = vadd.f32 0.0, %v516
      %v518 = vpop.f32.mrf.mxu0
      %v519 = vadd.f32 0.0, %v518
      %520 = vmatmul.bf16.gmra.mxu0 %v400
      %v521 = vpop.f32.mrf.mxu0
      %v522 = vadd.f32 0.0, %v521
      %v523 = vpop.f32.mrf.mxu0
      %v524 = vadd.f32 0.0, %v523
      %525 = vmatmul.bf16.gmra.mxu0 %v401
      %v526 = vpop.f32.mrf.mxu0
      %v527 = vadd.f32 0.0, %v526
      %v528 = vpop.f32.mrf.mxu0
      %v529 = vadd.f32 0.0, %v528
      %530 = vmatmul.bf16.gmra.mxu0 %v402
      %v531 = vpop.f32.mrf.mxu0
      %v532 = vadd.f32 0.0, %v531
      %v533 = vpop.f32.mrf.mxu0
      %v534 = vadd.f32 0.0, %v533
      %535 = vmatmul.bf16.gmra.mxu0 %v403
      %v536 = vpop.f32.mrf.mxu0
      %v537 = vadd.f32 0.0, %v536
      %v538 = vpop.f32.mrf.mxu0
      %v539 = vadd.f32 0.0, %v538
      %540 = vmatmul.bf16.gmra.mxu0 %v404
      %v541 = vpop.f32.mrf.mxu0
      %v542 = vadd.f32 0.0, %v541
      %v543 = vpop.f32.mrf.mxu0
      %v544 = vadd.f32 0.0, %v543
      %545 = vmatmul.bf16.gmra.mxu0 %v405
      %v546 = vpop.f32.mrf.mxu0
      %v547 = vadd.f32 0.0, %v546
      %v548 = vpop.f32.mrf.mxu0
      %v549 = vadd.f32 0.0, %v548
      %550 = vmatmul.bf16.gmra.mxu0 %v406
      %v551 = vpop.f32.mrf.mxu0
      %v552 = vadd.f32 0.0, %v551
      %v553 = vpop.f32.mrf.mxu0
      %v554 = vadd.f32 0.0, %v553
      %555 = vmatmul.bf16.gmra.mxu0 %v407
      %v556 = vpop.f32.mrf.mxu0
      %v557 = vadd.f32 0.0, %v556
      %v558 = vpop.f32.mrf.mxu0
      %v559 = vadd.f32 0.0, %v558
      %560 = vdwg.mxu0
      %v561 = vld [vmem:[%s2] sm:$0x1]
      %v563 = vperm.slane %v561, 0
      %v565 = vmul.f32 %v482, %v563
      %v566 = vmul.f32 %v484, %v563
      %v567 = vmul.f32 %v487, %v563
      %v568 = vmul.f32 %v489, %v563
      %v569 = vmul.f32 %v492, %v563
      %v570 = vmul.f32 %v494, %v563
      %v571 = vmul.f32 %v497, %v563
      %v572 = vmul.f32 %v499, %v563
      %v573 = vmul.f32 %v502, %v563
      %v574 = vmul.f32 %v504, %v563
      %v575 = vmul.f32 %v507, %v563
      %v576 = vmul.f32 %v509, %v563
      %v577 = vmul.f32 %v512, %v563
      %v578 = vmul.f32 %v514, %v563
      %v579 = vmul.f32 %v517, %v563
      %v580 = vmul.f32 %v519, %v563
      %v581 = vmul.f32 %v522, %v563
      %v582 = vmul.f32 %v524, %v563
      %v583 = vmul.f32 %v527, %v563
      %v584 = vmul.f32 %v529, %v563
      %v585 = vmul.f32 %v532, %v563
      %v586 = vmul.f32 %v534, %v563
      %v587 = vmul.f32 %v537, %v563
      %v588 = vmul.f32 %v539, %v563
      %v589 = vmul.f32 %v542, %v563
      %v590 = vmul.f32 %v544, %v563
      %v591 = vmul.f32 %v547, %v563
      %v592 = vmul.f32 %v549, %v563
      %v593 = vmul.f32 %v552, %v563
      %v594 = vmul.f32 %v554, %v563
      %v595 = vmul.f32 %v557, %v563
      %v596 = vmul.f32 %v559, %v563
      %v597 = vld [vmem:[%s3] sm:$0x1]
      %v599 = vperm.slane %v597, 0
      %v601 = vadd.f32 %v565, %v599
      %v602 = vadd.f32 %v566, %v599
      %v603 = vadd.f32 %v567, %v599
      %v604 = vadd.f32 %v568, %v599
      %v605 = vadd.f32 %v569, %v599
      %v606 = vadd.f32 %v570, %v599
      %v607 = vadd.f32 %v571, %v599
      %v608 = vadd.f32 %v572, %v599
      %v609 = vadd.f32 %v573, %v599
      %v610 = vadd.f32 %v574, %v599
      %v611 = vadd.f32 %v575, %v599
      %v612 = vadd.f32 %v576, %v599
      %v613 = vadd.f32 %v577, %v599
      %v614 = vadd.f32 %v578, %v599
      %v615 = vadd.f32 %v579, %v599
      %v616 = vadd.f32 %v580, %v599
      %v617 = vadd.f32 %v581, %v599
      %v618 = vadd.f32 %v582, %v599
      %v619 = vadd.f32 %v583, %v599
      %v620 = vadd.f32 %v584, %v599
      %v621 = vadd.f32 %v585, %v599
      %v622 = vadd.f32 %v586, %v599
      %v623 = vadd.f32 %v587, %v599
      %v624 = vadd.f32 %v588, %v599
      %v625 = vadd.f32 %v589, %v599
      %v626 = vadd.f32 %v590, %v599
      %v627 = vadd.f32 %v591, %v599
      %v628 = vadd.f32 %v592, %v599
      %v629 = vadd.f32 %v593, %v599
      %v630 = vadd.f32 %v594, %v599
      %v631 = vadd.f32 %v595, %v599
      %v632 = vadd.f32 %v596, %v599
      %v633 = vsub.f32 0.0, %v601
      %v634 = vsub.f32 0.0, %v602
      %v635 = vsub.f32 0.0, %v603
      %v636 = vsub.f32 0.0, %v604
      %v637 = vsub.f32 0.0, %v605
      %v638 = vsub.f32 0.0, %v606
      %v639 = vsub.f32 0.0, %v607
      %v640 = vsub.f32 0.0, %v608
      %v641 = vsub.f32 0.0, %v609
      %v642 = vsub.f32 0.0, %v610
      %v643 = vsub.f32 0.0, %v611
      %v644 = vsub.f32 0.0, %v612
      %v645 = vsub.f32 0.0, %v613
      %v646 = vsub.f32 0.0, %v614
      %v647 = vsub.f32 0.0, %v615
      %v648 = vsub.f32 0.0, %v616
      %v649 = vsub.f32 0.0, %v617
      %v650 = vsub.f32 0.0, %v618
      %v651 = vsub.f32 0.0, %v619
      %v652 = vsub.f32 0.0, %v620
      %v653 = vsub.f32 0.0, %v621
      %v654 = vsub.f32 0.0, %v622
      %v655 = vsub.f32 0.0, %v623
      %v656 = vsub.f32 0.0, %v624
      %v657 = vsub.f32 0.0, %v625
      %v658 = vsub.f32 0.0, %v626
      %v659 = vsub.f32 0.0, %v627
      %v660 = vsub.f32 0.0, %v628
      %v661 = vsub.f32 0.0, %v629
      %v662 = vsub.f32 0.0, %v630
      %v663 = vsub.f32 0.0, %v631
      %v664 = vsub.f32 0.0, %v632
      %v665 = vmul.f32 %v633, 1.442695
      %v666 = vpow.pop %v665
      %v667 = vmul.f32 %v634, 1.442695
      %v668 = vpow.pop %v667
      %v669 = vmul.f32 %v635, 1.442695
      %v670 = vpow.pop %v669
      %v671 = vmul.f32 %v636, 1.442695
      %v672 = vpow.pop %v671
      %v673 = vmul.f32 %v637, 1.442695
      %v674 = vpow.pop %v673
      %v675 = vmul.f32 %v638, 1.442695
      %v676 = vpow.pop %v675
      %v677 = vmul.f32 %v639, 1.442695
      %v678 = vpow.pop %v677
      %v679 = vmul.f32 %v640, 1.442695
      %v680 = vpow.pop %v679
      %v681 = vmul.f32 %v641, 1.442695
      %v682 = vpow.pop %v681
      %v683 = vmul.f32 %v642, 1.442695
      %v684 = vpow.pop %v683
      %v685 = vmul.f32 %v643, 1.442695
      %v686 = vpow.pop %v685
      %v687 = vmul.f32 %v644, 1.442695
      %v688 = vpow.pop %v687
      %v689 = vmul.f32 %v645, 1.442695
      %v690 = vpow.pop %v689
      %v691 = vmul.f32 %v646, 1.442695
      %v692 = vpow.pop %v691
      %v693 = vmul.f32 %v647, 1.442695
      %v694 = vpow.pop %v693
      %v695 = vmul.f32 %v648, 1.442695
      %v696 = vpow.pop %v695
      %v697 = vmul.f32 %v649, 1.442695
      %v698 = vpow.pop %v697
      %v699 = vmul.f32 %v650, 1.442695
      %v700 = vpow.pop %v699
      %v701 = vmul.f32 %v651, 1.442695
      %v702 = vpow.pop %v701
      %v703 = vmul.f32 %v652, 1.442695
      %v704 = vpow.pop %v703
      %v705 = vmul.f32 %v653, 1.442695
      %v706 = vpow.pop %v705
      %v707 = vmul.f32 %v654, 1.442695
      %v708 = vpow.pop %v707
      %v709 = vmul.f32 %v655, 1.442695
      %v710 = vpow.pop %v709
      %v711 = vmul.f32 %v656, 1.442695
      %v712 = vpow.pop %v711
      %v713 = vmul.f32 %v657, 1.442695
      %v714 = vpow.pop %v713
      %v715 = vmul.f32 %v658, 1.442695
      %v716 = vpow.pop %v715
      %v717 = vmul.f32 %v659, 1.442695
      %v718 = vpow.pop %v717
      %v719 = vmul.f32 %v660, 1.442695
      %v720 = vpow.pop %v719
      %v721 = vmul.f32 %v661, 1.442695
      %v722 = vpow.pop %v721
      %v723 = vmul.f32 %v662, 1.442695
      %v724 = vpow.pop %v723
      %v725 = vmul.f32 %v663, 1.442695
      %v726 = vpow.pop %v725
      %v727 = vmul.f32 %v664, 1.442695
      %v728 = vpow.pop %v727
      %v729 = vadd.f32 %v666, 1.0
      %v730 = vadd.f32 %v668, 1.0
      %v731 = vadd.f32 %v670, 1.0
      %v732 = vadd.f32 %v672, 1.0
      %v733 = vadd.f32 %v674, 1.0
      %v734 = vadd.f32 %v676, 1.0
      %v735 = vadd.f32 %v678, 1.0
      %v736 = vadd.f32 %v680, 1.0
      %v737 = vadd.f32 %v682, 1.0
      %v738 = vadd.f32 %v684, 1.0
      %v739 = vadd.f32 %v686, 1.0
      %v740 = vadd.f32 %v688, 1.0
      %v741 = vadd.f32 %v690, 1.0
      %v742 = vadd.f32 %v692, 1.0
      %v743 = vadd.f32 %v694, 1.0
      %v744 = vadd.f32 %v696, 1.0
      %v745 = vadd.f32 %v698, 1.0
      %v746 = vadd.f32 %v700, 1.0
      %v747 = vadd.f32 %v702, 1.0
      %v748 = vadd.f32 %v704, 1.0
      %v749 = vadd.f32 %v706, 1.0
      %v750 = vadd.f32 %v708, 1.0
      %v751 = vadd.f32 %v710, 1.0
      %v752 = vadd.f32 %v712, 1.0
      %v753 = vadd.f32 %v714, 1.0
      %v754 = vadd.f32 %v716, 1.0
      %v755 = vadd.f32 %v718, 1.0
      %v756 = vadd.f32 %v720, 1.0
      %v757 = vadd.f32 %v722, 1.0
      %v758 = vadd.f32 %v724, 1.0
      %v759 = vadd.f32 %v726, 1.0
      %v760 = vadd.f32 %v728, 1.0
      %v761 = vrcp.pop %v729
      %v762 = vrcp.pop %v730
      %v763 = vrcp.pop %v731
      %v764 = vrcp.pop %v732
      %v765 = vrcp.pop %v733
      %v766 = vrcp.pop %v734
      %v767 = vrcp.pop %v735
      %v768 = vrcp.pop %v736
      %v769 = vrcp.pop %v737
      %v770 = vrcp.pop %v738
      %v771 = vrcp.pop %v739
      %v772 = vrcp.pop %v740
      %v773 = vrcp.pop %v741
      %v774 = vrcp.pop %v742
      %v775 = vrcp.pop %v743
      %v776 = vrcp.pop %v744
      %v777 = vrcp.pop %v745
      %v778 = vrcp.pop %v746
      %v779 = vrcp.pop %v747
      %v780 = vrcp.pop %v748
      %v781 = vrcp.pop %v749
      %v782 = vrcp.pop %v750
      %v783 = vrcp.pop %v751
      %v784 = vrcp.pop %v752
      %v785 = vrcp.pop %v753
      %v786 = vrcp.pop %v754
      %v787 = vrcp.pop %v755
      %v788 = vrcp.pop %v756
      %v789 = vrcp.pop %v757
      %v790 = vrcp.pop %v758
      %v791 = vrcp.pop %v759
      %v792 = vrcp.pop %v760
      %v793 = vmul.f32 %v601, %v761
      %v794 = vmul.f32 %v602, %v762
      %v795 = vmul.f32 %v603, %v763
      %v796 = vmul.f32 %v604, %v764
      %v797 = vmul.f32 %v605, %v765
      %v798 = vmul.f32 %v606, %v766
      %v799 = vmul.f32 %v607, %v767
      %v800 = vmul.f32 %v608, %v768
      %v801 = vmul.f32 %v609, %v769
      %v802 = vmul.f32 %v610, %v770
      %v803 = vmul.f32 %v611, %v771
      %v804 = vmul.f32 %v612, %v772
      %v805 = vmul.f32 %v613, %v773
      %v806 = vmul.f32 %v614, %v774
      %v807 = vmul.f32 %v615, %v775
      %v808 = vmul.f32 %v616, %v776
      %v809 = vmul.f32 %v617, %v777
      %v810 = vmul.f32 %v618, %v778
      %v811 = vmul.f32 %v619, %v779
      %v812 = vmul.f32 %v620, %v780
      %v813 = vmul.f32 %v621, %v781
      %v814 = vmul.f32 %v622, %v782
      %v815 = vmul.f32 %v623, %v783
      %v816 = vmul.f32 %v624, %v784
      %v817 = vmul.f32 %v625, %v785
      %v818 = vmul.f32 %v626, %v786
      %v819 = vmul.f32 %v627, %v787
      %v820 = vmul.f32 %v628, %v788
      %v821 = vmul.f32 %v629, %v789
      %v822 = vmul.f32 %v630, %v790
      %v823 = vmul.f32 %v631, %v791
      %v824 = vmul.f32 %v632, %v792
      %825 = vst [vmem:[#allocation2] sm:$0xf] 0
      %826 = vst [vmem:[#allocation2 + $0x4] sm:$0xf] 0
      %827 = vst [vmem:[#allocation2 + $0x8] sm:$0x1] 0
      %s828 = scalar_lea.vmem [#allocation2], 204
      %829 = vst [vmem:[%s828] sm:$0xf] 0
      %830 = vst [vmem:[%s828 + $0x4] sm:$0xf] 0
      %831 = vst [vmem:[%s828 + $0x8] sm:$0x1] 0
      %vm832 = vcmask 1040384
      %vm833 = vsmask.f32 256
      %vm834 = vmand %vm832, %vm833
      %v835 = vld [vmem:[#allocation2] sm:$0x1]
      %v836 = vsel %vm834, 0, %v835
      %837 = vst [vmem:[#allocation2] sm:$0x1] %v836
      %v838 = vld [vmem:[#allocation2 + $0xc] sm:$0x1]
      %v839 = vsel %vm834, 0, %v838
      %840 = vst [vmem:[#allocation2 + $0xc] sm:$0x1] %v839
      %v841 = vld [vmem:[#allocation2 + $0x18] sm:$0x1]
      %v842 = vsel %vm834, 0, %v841
      %843 = vst [vmem:[#allocation2 + $0x18] sm:$0x1] %v842
      %v844 = vld [vmem:[#allocation2 + $0x24] sm:$0x1]
      %v845 = vsel %vm834, 0, %v844
      %846 = vst [vmem:[#allocation2 + $0x24] sm:$0x1] %v845
      %v847 = vld [vmem:[#allocation2 + $0x30] sm:$0x1]
      %v848 = vsel %vm834, 0, %v847
      %849 = vst [vmem:[#allocation2 + $0x30] sm:$0x1] %v848
      %v850 = vld [vmem:[#allocation2 + $0x3c] sm:$0x1]
      %v851 = vsel %vm834, 0, %v850
      %852 = vst [vmem:[#allocation2 + $0x3c] sm:$0x1] %v851
      %v853 = vld [vmem:[#allocation2 + $0x48] sm:$0x1]
      %v854 = vsel %vm834, 0, %v853
      %855 = vst [vmem:[#allocation2 + $0x48] sm:$0x1] %v854
      %v856 = vld [vmem:[#allocation2 + $0x54] sm:$0x1]
      %v857 = vsel %vm834, 0, %v856
      %858 = vst [vmem:[#allocation2 + $0x54] sm:$0x1] %v857
      %v859 = vld [vmem:[#allocation2 + $0x60] sm:$0x1]
      %v860 = vsel %vm834, 0, %v859
      %861 = vst [vmem:[#allocation2 + $0x60] sm:$0x1] %v860
      %v862 = vld [vmem:[#allocation2 + $0x6c] sm:$0x1]
      %v863 = vsel %vm834, 0, %v862
      %864 = vst [vmem:[#allocation2 + $0x6c] sm:$0x1] %v863
      %v865 = vld [vmem:[#allocation2 + $0x78] sm:$0x1]
      %v866 = vsel %vm834, 0, %v865
      %867 = vst [vmem:[#allocation2 + $0x78] sm:$0x1] %v866
      %v868 = vld [vmem:[#allocation2 + $0x84] sm:$0x1]
      %v869 = vsel %vm834, 0, %v868
      %870 = vst [vmem:[#allocation2 + $0x84] sm:$0x1] %v869
      %v871 = vld [vmem:[#allocation2 + $0x90] sm:$0x1]
      %v872 = vsel %vm834, 0, %v871
      %873 = vst [vmem:[#allocation2 + $0x90] sm:$0x1] %v872
      %v874 = vld [vmem:[#allocation2 + $0x9c] sm:$0x1]
      %v875 = vsel %vm834, 0, %v874
      %876 = vst [vmem:[#allocation2 + $0x9c] sm:$0x1] %v875
      %v877 = vld [vmem:[#allocation2 + $0xa8] sm:$0x1]
      %v878 = vsel %vm834, 0, %v877
      %879 = vst [vmem:[#allocation2 + $0xa8] sm:$0x1] %v878
      %v880 = vld [vmem:[#allocation2 + $0xb4] sm:$0x1]
      %v881 = vsel %vm834, 0, %v880
      %882 = vst [vmem:[#allocation2 + $0xb4] sm:$0x1] %v881
      %v883 = vld [vmem:[#allocation2 + $0xc0] sm:$0x1]
      %v884 = vsel %vm834, 0, %v883
      %885 = vst [vmem:[#allocation2 + $0xc0] sm:$0x1] %v884
      %v886 = vld [vmem:[#allocation2 + $0xcc] sm:$0x1]
      %v887 = vsel %vm834, 0, %v886
      %888 = vst [vmem:[#allocation2 + $0xcc] sm:$0x1] %v887
      %vm889 = vsmask.f32 7938
      %vm890 = vmand %vm832, %vm889
      %v891 = vld [vmem:[#allocation2 + $0x8] sm:$0x1]
      %v892 = vsel %vm890, 0, %v891
      %893 = vst [vmem:[#allocation2 + $0x8] sm:$0x1] %v892
      %v894 = vld [vmem:[#allocation2 + $0x14] sm:$0x1]
      %v895 = vsel %vm890, 0, %v894
      %896 = vst [vmem:[#allocation2 + $0x14] sm:$0x1] %v895
      %v897 = vld [vmem:[#allocation2 + $0x20] sm:$0x1]
      %v898 = vsel %vm890, 0, %v897
      %899 = vst [vmem:[#allocation2 + $0x20] sm:$0x1] %v898
      %v900 = vld [vmem:[#allocation2 + $0x2c] sm:$0x1]
      %v901 = vsel %vm890, 0, %v900
      %902 = vst [vmem:[#allocation2 + $0x2c] sm:$0x1] %v901
      %v903 = vld [vmem:[#allocation2 + $0x38] sm:$0x1]
      %v904 = vsel %vm890, 0, %v903
      %905 = vst [vmem:[#allocation2 + $0x38] sm:$0x1] %v904
      %v906 = vld [vmem:[#allocation2 + $0x44] sm:$0x1]
      %v907 = vsel %vm890, 0, %v906
      %908 = vst [vmem:[#allocation2 + $0x44] sm:$0x1] %v907
      %v909 = vld [vmem:[#allocation2 + $0x50] sm:$0x1]
      %v910 = vsel %vm890, 0, %v909
      %911 = vst [vmem:[#allocation2 + $0x50] sm:$0x1] %v910
      %v912 = vld [vmem:[#allocation2 + $0x5c] sm:$0x1]
      %v913 = vsel %vm890, 0, %v912
      %914 = vst [vmem:[#allocation2 + $0x5c] sm:$0x1] %v913
      %v915 = vld [vmem:[#allocation2 + $0x68] sm:$0x1]
      %v916 = vsel %vm890, 0, %v915
      %917 = vst [vmem:[#allocation2 + $0x68] sm:$0x1] %v916
      %v918 = vld [vmem:[#allocation2 + $0x74] sm:$0x1]
      %v919 = vsel %vm890, 0, %v918
      %920 = vst [vmem:[#allocation2 + $0x74] sm:$0x1] %v919
      %v921 = vld [vmem:[#allocation2 + $0x80] sm:$0x1]
      %v922 = vsel %vm890, 0, %v921
      %923 = vst [vmem:[#allocation2 + $0x80] sm:$0x1] %v922
      %v924 = vld [vmem:[#allocation2 + $0x8c] sm:$0x1]
      %v925 = vsel %vm890, 0, %v924
      %926 = vst [vmem:[#allocation2 + $0x8c] sm:$0x1] %v925
      %v927 = vld [vmem:[#allocation2 + $0x98] sm:$0x1]
      %v928 = vsel %vm890, 0, %v927
      %929 = vst [vmem:[#allocation2 + $0x98] sm:$0x1] %v928
      %v930 = vld [vmem:[#allocation2 + $0xa4] sm:$0x1]
      %v931 = vsel %vm890, 0, %v930
      %932 = vst [vmem:[#allocation2 + $0xa4] sm:$0x1] %v931
      %v933 = vld [vmem:[#allocation2 + $0xb0] sm:$0x1]
      %v934 = vsel %vm890, 0, %v933
      %935 = vst [vmem:[#allocation2 + $0xb0] sm:$0x1] %v934
      %v936 = vld [vmem:[#allocation2 + $0xbc] sm:$0x1]
      %v937 = vsel %vm890, 0, %v936
      %938 = vst [vmem:[#allocation2 + $0xbc] sm:$0x1] %v937
      %v939 = vld [vmem:[#allocation2 + $0xc8] sm:$0x1]
      %v940 = vsel %vm890, 0, %v939
      %941 = vst [vmem:[#allocation2 + $0xc8] sm:$0x1] %v940
      %v942 = vld [vmem:[#allocation2 + $0xd4] sm:$0x1]
      %v943 = vsel %vm890, 0, %v942
      %944 = vst [vmem:[#allocation2 + $0xd4] sm:$0x1] %v943
      %v945 = vpack.c.bf16 %v793, %v793
      %v946 = vpack.c.bf16 %v794, %v794
      %v947 = vpack.c.bf16 %v795, %v795
      %v948 = vpack.c.bf16 %v796, %v796
      %v949 = vpack.c.bf16 %v797, %v797
      %v950 = vpack.c.bf16 %v798, %v798
      %v951 = vpack.c.bf16 %v799, %v799
      %v952 = vpack.c.bf16 %v800, %v800
      %v953 = vpack.c.bf16 %v801, %v801
      %v954 = vpack.c.bf16 %v802, %v802
      %v955 = vpack.c.bf16 %v803, %v803
      %v956 = vpack.c.bf16 %v804, %v804
      %v957 = vpack.c.bf16 %v805, %v805
      %v958 = vpack.c.bf16 %v806, %v806
      %v959 = vpack.c.bf16 %v807, %v807
      %v960 = vpack.c.bf16 %v808, %v808
      %v961 = vpack.c.bf16 %v809, %v809
      %v962 = vpack.c.bf16 %v810, %v810
      %v963 = vpack.c.bf16 %v811, %v811
      %v964 = vpack.c.bf16 %v812, %v812
      %v965 = vpack.c.bf16 %v813, %v813
      %v966 = vpack.c.bf16 %v814, %v814
      %v967 = vpack.c.bf16 %v815, %v815
      %v968 = vpack.c.bf16 %v816, %v816
      %v969 = vpack.c.bf16 %v817, %v817
      %v970 = vpack.c.bf16 %v818, %v818
      %v971 = vpack.c.bf16 %v819, %v819
      %v972 = vpack.c.bf16 %v820, %v820
      %v973 = vpack.c.bf16 %v821, %v821
      %v974 = vpack.c.bf16 %v822, %v822
      %v975 = vpack.c.bf16 %v823, %v823
      %v976 = vpack.c.bf16 %v824, %v824
      %vm977 = vsmask.f32 4368
      %vm978 = vmor %vm833, %vm977
      %v980 = vshrl.u32 %v945, 16
      %v982 = vrot.slane %v980, 7
      %v983 = vshll.u32 %v945, 16
      %v985 = vor.u32 %v982, %v983
      %v986 = vrot.slane %v982, 4
      %v988 = vshrl.u32 %v946, 16
      %v990 = vrot.slane %v988, 7
      %v991 = vshll.u32 %v946, 16
      %v993 = vor.u32 %v990, %v991
      %v994 = vsel %vm978, %v986, %v993
      %v995 = vrot.slane %v990, 4
      %v997 = vshrl.u32 %v947, 16
      %v999 = vrot.slane %v997, 7
      %v1000 = vshll.u32 %v947, 16
      %v1002 = vor.u32 %v999, %v1000
      %v1003 = vrot.slane %v999, 4
      %v1005 = vshrl.u32 %v948, 16
      %v1007 = vrot.slane %v1005, 7
      %v1008 = vshll.u32 %v948, 16
      %v1010 = vor.u32 %v1007, %v1008
      %v1011 = vsel %vm978, %v1003, %v1010
      %v1012 = vrot.slane %v1007, 4
      %v1014 = vshrl.u32 %v949, 16
      %v1016 = vrot.slane %v1014, 7
      %v1017 = vshll.u32 %v949, 16
      %v1019 = vor.u32 %v1016, %v1017
      %v1020 = vrot.slane %v1016, 4
      %v1022 = vshrl.u32 %v950, 16
      %v1024 = vrot.slane %v1022, 7
      %v1025 = vshll.u32 %v950, 16
      %v1027 = vor.u32 %v1024, %v1025
      %v1028 = vsel %vm978, %v1020, %v1027
      %v1029 = vrot.slane %v1024, 4
      %v1031 = vshrl.u32 %v951, 16
      %v1033 = vrot.slane %v1031, 7
      %v1034 = vshll.u32 %v951, 16
      %v1036 = vor.u32 %v1033, %v1034
      %v1037 = vrot.slane %v1033, 4
      %v1039 = vshrl.u32 %v952, 16
      %v1041 = vrot.slane %v1039, 7
      %v1042 = vshll.u32 %v952, 16
      %v1044 = vor.u32 %v1041, %v1042
      %v1045 = vsel %vm978, %v1037, %v1044
      %v1046 = vrot.slane %v1041, 4
      %v1048 = vshrl.u32 %v953, 16
      %v1050 = vrot.slane %v1048, 7
      %v1051 = vshll.u32 %v953, 16
      %v1053 = vor.u32 %v1050, %v1051
      %v1054 = vrot.slane %v1050, 4
      %v1056 = vshrl.u32 %v954, 16
      %v1058 = vrot.slane %v1056, 7
      %v1059 = vshll.u32 %v954, 16
      %v1061 = vor.u32 %v1058, %v1059
      %v1062 = vsel %vm978, %v1054, %v1061
      %v1063 = vrot.slane %v1058, 4
      %v1065 = vshrl.u32 %v955, 16
      %v1067 = vrot.slane %v1065, 7
      %v1068 = vshll.u32 %v955, 16
      %v1070 = vor.u32 %v1067, %v1068
      %v1071 = vrot.slane %v1067, 4
      %v1073 = vshrl.u32 %v956, 16
      %v1075 = vrot.slane %v1073, 7
      %v1076 = vshll.u32 %v956, 16
      %v1078 = vor.u32 %v1075, %v1076
      %v1079 = vsel %vm978, %v1071, %v1078
      %v1080 = vrot.slane %v1075, 4
      %v1082 = vshrl.u32 %v957, 16
      %v1084 = vrot.slane %v1082, 7
      %v1085 = vshll.u32 %v957, 16
      %v1087 = vor.u32 %v1084, %v1085
      %v1088 = vrot.slane %v1084, 4
      %v1090 = vshrl.u32 %v958, 16
      %v1092 = vrot.slane %v1090, 7
      %v1093 = vshll.u32 %v958, 16
      %v1095 = vor.u32 %v1092, %v1093
      %v1096 = vsel %vm978, %v1088, %v1095
      %v1097 = vrot.slane %v1092, 4
      %v1099 = vshrl.u32 %v959, 16
      %v1101 = vrot.slane %v1099, 7
      %v1102 = vshll.u32 %v959, 16
      %v1104 = vor.u32 %v1101, %v1102
      %v1105 = vrot.slane %v1101, 4
      %v1107 = vshrl.u32 %v960, 16
      %v1109 = vrot.slane %v1107, 7
      %v1110 = vshll.u32 %v960, 16
      %v1112 = vor.u32 %v1109, %v1110
      %v1113 = vsel %vm978, %v1105, %v1112
      %v1114 = vrot.slane %v1109, 4
      %v1116 = vshrl.u32 %v961, 16
      %v1118 = vrot.slane %v1116, 7
      %v1119 = vshll.u32 %v961, 16
      %v1121 = vor.u32 %v1118, %v1119
      %v1122 = vrot.slane %v1118, 4
      %v1124 = vshrl.u32 %v962, 16
      %v1126 = vrot.slane %v1124, 7
      %v1127 = vshll.u32 %v962, 16
      %v1129 = vor.u32 %v1126, %v1127
      %v1130 = vsel %vm978, %v1122, %v1129
      %v1131 = vrot.slane %v1126, 4
      %v1133 = vshrl.u32 %v963, 16
      %v1135 = vrot.slane %v1133, 7
      %v1136 = vshll.u32 %v963, 16
      %v1138 = vor.u32 %v1135, %v1136
      %v1139 = vrot.slane %v1135, 4
      %v1141 = vshrl.u32 %v964, 16
      %v1143 = vrot.slane %v1141, 7
      %v1144 = vshll.u32 %v964, 16
      %v1146 = vor.u32 %v1143, %v1144
      %v1147 = vsel %vm978, %v1139, %v1146
      %v1148 = vrot.slane %v1143, 4
      %v1150 = vshrl.u32 %v965, 16
      %v1152 = vrot.slane %v1150, 7
      %v1153 = vshll.u32 %v965, 16
      %v1155 = vor.u32 %v1152, %v1153
      %v1156 = vrot.slane %v1152, 4
      %v1158 = vshrl.u32 %v966, 16
      %v1160 = vrot.slane %v1158, 7
      %v1161 = vshll.u32 %v966, 16
      %v1163 = vor.u32 %v1160, %v1161
      %v1164 = vsel %vm978, %v1156, %v1163
      %v1165 = vrot.slane %v1160, 4
      %v1167 = vshrl.u32 %v967, 16
      %v1169 = vrot.slane %v1167, 7
      %v1170 = vshll.u32 %v967, 16
      %v1172 = vor.u32 %v1169, %v1170
      %v1173 = vrot.slane %v1169, 4
      %v1175 = vshrl.u32 %v968, 16
      %v1177 = vrot.slane %v1175, 7
      %v1178 = vshll.u32 %v968, 16
      %v1180 = vor.u32 %v1177, %v1178
      %v1181 = vsel %vm978, %v1173, %v1180
      %v1182 = vrot.slane %v1177, 4
      %v1184 = vshrl.u32 %v969, 16
      %v1186 = vrot.slane %v1184, 7
      %v1187 = vshll.u32 %v969, 16
      %v1189 = vor.u32 %v1186, %v1187
      %v1190 = vrot.slane %v1186, 4
      %v1192 = vshrl.u32 %v970, 16
      %v1194 = vrot.slane %v1192, 7
      %v1195 = vshll.u32 %v970, 16
      %v1197 = vor.u32 %v1194, %v1195
      %v1198 = vsel %vm978, %v1190, %v1197
      %v1199 = vrot.slane %v1194, 4
      %v1201 = vshrl.u32 %v971, 16
      %v1203 = vrot.slane %v1201, 7
      %v1204 = vshll.u32 %v971, 16
      %v1206 = vor.u32 %v1203, %v1204
      %v1207 = vrot.slane %v1203, 4
      %v1209 = vshrl.u32 %v972, 16
      %v1211 = vrot.slane %v1209, 7
      %v1212 = vshll.u32 %v972, 16
      %v1214 = vor.u32 %v1211, %v1212
      %v1215 = vsel %vm978, %v1207, %v1214
      %v1216 = vrot.slane %v1211, 4
      %v1218 = vshrl.u32 %v973, 16
      %v1220 = vrot.slane %v1218, 7
      %v1221 = vshll.u32 %v973, 16
      %v1223 = vor.u32 %v1220, %v1221
      %v1224 = vrot.slane %v1220, 4
      %v1226 = vshrl.u32 %v974, 16
      %v1228 = vrot.slane %v1226, 7
      %v1229 = vshll.u32 %v974, 16
      %v1231 = vor.u32 %v1228, %v1229
      %v1232 = vsel %vm978, %v1224, %v1231
      %v1233 = vrot.slane %v1228, 4
      %v1235 = vshrl.u32 %v975, 16
      %v1237 = vrot.slane %v1235, 7
      %v1238 = vshll.u32 %v975, 16
      %v1240 = vor.u32 %v1237, %v1238
      %v1241 = vrot.slane %v1237, 4
      %v1243 = vshrl.u32 %v976, 16
      %v1245 = vrot.slane %v1243, 7
      %v1246 = vshll.u32 %v976, 16
      %v1248 = vor.u32 %v1245, %v1246
      %v1249 = vsel %vm978, %v1241, %v1248
      %v1250 = vrot.slane %v1245, 4
      %s1299 = scalar_lea.vmem [#allocation2], 12
      %vm1300 = vcmask 1043456
      %vm1301 = vmand %vm1300, %vm889
      %v1302 = vld [vmem:[%s1299] sm:$0xf]
      %v1303 = vsel %vm1301, %v985, %v1302
      %1304 = vst [vmem:[%s1299] sm:$0xf] %v1303
      %1305 = vst [vmem:[%s1299 + $0x4] sm:$0xf] %v994
      %v1306 = vld [vmem:[%s1299 + $0x8] sm:$0x1]
      %v1307 = vsel %vm834, %v995, %v1306
      %1308 = vst [vmem:[%s1299 + $0x8] sm:$0x1] %v1307
      %v1309 = vld [vmem:[%s1299 + $0xc] sm:$0xf]
      %v1310 = vsel %vm1301, %v1002, %v1309
      %1311 = vst [vmem:[%s1299 + $0xc] sm:$0xf] %v1310
      %1312 = vst [vmem:[%s1299 + $0x10] sm:$0xf] %v1011
      %v1313 = vld [vmem:[%s1299 + $0x14] sm:$0x1]
      %v1314 = vsel %vm834, %v1012, %v1313
      %1315 = vst [vmem:[%s1299 + $0x14] sm:$0x1] %v1314
      %v1316 = vld [vmem:[%s1299 + $0x18] sm:$0xf]
      %v1317 = vsel %vm1301, %v1019, %v1316
      %1318 = vst [vmem:[%s1299 + $0x18] sm:$0xf] %v1317
      %1319 = vst [vmem:[%s1299 + $0x1c] sm:$0xf] %v1028
      %v1320 = vld [vmem:[%s1299 + $0x20] sm:$0x1]
      %v1321 = vsel %vm834, %v1029, %v1320
      %1322 = vst [vmem:[%s1299 + $0x20] sm:$0x1] %v1321
      %v1323 = vld [vmem:[%s1299 + $0x24] sm:$0xf]
      %v1324 = vsel %vm1301, %v1036, %v1323
      %1325 = vst [vmem:[%s1299 + $0x24] sm:$0xf] %v1324
      %1326 = vst [vmem:[%s1299 + $0x28] sm:$0xf] %v1045
      %v1327 = vld [vmem:[%s1299 + $0x2c] sm:$0x1]
      %v1328 = vsel %vm834, %v1046, %v1327
      %1329 = vst [vmem:[%s1299 + $0x2c] sm:$0x1] %v1328
      %v1330 = vld [vmem:[%s1299 + $0x30] sm:$0xf]
      %v1331 = vsel %vm1301, %v1053, %v1330
      %1332 = vst [vmem:[%s1299 + $0x30] sm:$0xf] %v1331
      %1333 = vst [vmem:[%s1299 + $0x34] sm:$0xf] %v1062
      %v1334 = vld [vmem:[%s1299 + $0x38] sm:$0x1]
      %v1335 = vsel %vm834, %v1063, %v1334
      %1336 = vst [vmem:[%s1299 + $0x38] sm:$0x1] %v1335
      %v1337 = vld [vmem:[%s1299 + $0x3c] sm:$0xf]
      %v1338 = vsel %vm1301, %v1070, %v1337
      %1339 = vst [vmem:[%s1299 + $0x3c] sm:$0xf] %v1338
      %1340 = vst [vmem:[%s1299 + $0x40] sm:$0xf] %v1079
      %v1341 = vld [vmem:[%s1299 + $0x44] sm:$0x1]
      %v1342 = vsel %vm834, %v1080, %v1341
      %1343 = vst [vmem:[%s1299 + $0x44] sm:$0x1] %v1342
      %v1344 = vld [vmem:[%s1299 + $0x48] sm:$0xf]
      %v1345 = vsel %vm1301, %v1087, %v1344
      %1346 = vst [vmem:[%s1299 + $0x48] sm:$0xf] %v1345
      %1347 = vst [vmem:[%s1299 + $0x4c] sm:$0xf] %v1096
      %v1348 = vld [vmem:[%s1299 + $0x50] sm:$0x1]
      %v1349 = vsel %vm834, %v1097, %v1348
      %1350 = vst [vmem:[%s1299 + $0x50] sm:$0x1] %v1349
      %v1351 = vld [vmem:[%s1299 + $0x54] sm:$0xf]
      %v1352 = vsel %vm1301, %v1104, %v1351
      %1353 = vst [vmem:[%s1299 + $0x54] sm:$0xf] %v1352
      %1354 = vst [vmem:[%s1299 + $0x58] sm:$0xf] %v1113
      %v1355 = vld [vmem:[%s1299 + $0x5c] sm:$0x1]
      %v1356 = vsel %vm834, %v1114, %v1355
      %1357 = vst [vmem:[%s1299 + $0x5c] sm:$0x1] %v1356
      %v1358 = vld [vmem:[%s1299 + $0x60] sm:$0xf]
      %v1359 = vsel %vm1301, %v1121, %v1358
      %1360 = vst [vmem:[%s1299 + $0x60] sm:$0xf] %v1359
      %1361 = vst [vmem:[%s1299 + $0x64] sm:$0xf] %v1130
      %v1362 = vld [vmem:[%s1299 + $0x68] sm:$0x1]
      %v1363 = vsel %vm834, %v1131, %v1362
      %1364 = vst [vmem:[%s1299 + $0x68] sm:$0x1] %v1363
      %v1365 = vld [vmem:[%s1299 + $0x6c] sm:$0xf]
      %v1366 = vsel %vm1301, %v1138, %v1365
      %1367 = vst [vmem:[%s1299 + $0x6c] sm:$0xf] %v1366
      %1368 = vst [vmem:[%s1299 + $0x70] sm:$0xf] %v1147
      %v1369 = vld [vmem:[%s1299 + $0x74] sm:$0x1]
      %v1370 = vsel %vm834, %v1148, %v1369
      %1371 = vst [vmem:[%s1299 + $0x74] sm:$0x1] %v1370
      %v1372 = vld [vmem:[%s1299 + $0x78] sm:$0xf]
      %v1373 = vsel %vm1301, %v1155, %v1372
      %1374 = vst [vmem:[%s1299 + $0x78] sm:$0xf] %v1373
      %1375 = vst [vmem:[%s1299 + $0x7c] sm:$0xf] %v1164
      %v1376 = vld [vmem:[%s1299 + $0x80] sm:$0x1]
      %v1377 = vsel %vm834, %v1165, %v1376
      %1378 = vst [vmem:[%s1299 + $0x80] sm:$0x1] %v1377
      %v1379 = vld [vmem:[%s1299 + $0x84] sm:$0xf]
      %v1380 = vsel %vm1301, %v1172, %v1379
      %1381 = vst [vmem:[%s1299 + $0x84] sm:$0xf] %v1380
      %1382 = vst [vmem:[%s1299 + $0x88] sm:$0xf] %v1181
      %v1383 = vld [vmem:[%s1299 + $0x8c] sm:$0x1]
      %v1384 = vsel %vm834, %v1182, %v1383
      %1385 = vst [vmem:[%s1299 + $0x8c] sm:$0x1] %v1384
      %v1386 = vld [vmem:[%s1299 + $0x90] sm:$0xf]
      %v1387 = vsel %vm1301, %v1189, %v1386
      %1388 = vst [vmem:[%s1299 + $0x90] sm:$0xf] %v1387
      %1389 = vst [vmem:[%s1299 + $0x94] sm:$0xf] %v1198
      %v1390 = vld [vmem:[%s1299 + $0x98] sm:$0x1]
      %v1391 = vsel %vm834, %v1199, %v1390
      %1392 = vst [vmem:[%s1299 + $0x98] sm:$0x1] %v1391
      %v1393 = vld [vmem:[%s1299 + $0x9c] sm:$0xf]
      %v1394 = vsel %vm1301, %v1206, %v1393
      %1395 = vst [vmem:[%s1299 + $0x9c] sm:$0xf] %v1394
      %1396 = vst [vmem:[%s1299 + $0xa0] sm:$0xf] %v1215
      %v1397 = vld [vmem:[%s1299 + $0xa4] sm:$0x1]
      %v1398 = vsel %vm834, %v1216, %v1397
      %1399 = vst [vmem:[%s1299 + $0xa4] sm:$0x1] %v1398
      %v1400 = vld [vmem:[%s1299 + $0xa8] sm:$0xf]
      %v1401 = vsel %vm1301, %v1223, %v1400
      %1402 = vst [vmem:[%s1299 + $0xa8] sm:$0xf] %v1401
      %1403 = vst [vmem:[%s1299 + $0xac] sm:$0xf] %v1232
      %v1404 = vld [vmem:[%s1299 + $0xb0] sm:$0x1]
      %v1405 = vsel %vm834, %v1233, %v1404
      %1406 = vst [vmem:[%s1299 + $0xb0] sm:$0x1] %v1405
      %v1407 = vld [vmem:[%s1299 + $0xb4] sm:$0xf]
      %v1408 = vsel %vm1301, %v1240, %v1407
      %1409 = vst [vmem:[%s1299 + $0xb4] sm:$0xf] %v1408
      %1410 = vst [vmem:[%s1299 + $0xb8] sm:$0xf] %v1249
      %v1411 = vld [vmem:[%s1299 + $0xbc] sm:$0x1]
      %v1412 = vsel %vm834, %v1250, %v1411
      %1413 = vst [vmem:[%s1299 + $0xbc] sm:$0x1] %v1412
      %v1414 = vld [vmem:[#allocation2] sm:$0xf]
      %v1415 = vld [vmem:[#allocation2 + $0x4] sm:$0xf]
      %v1416 = vld [vmem:[#allocation2 + $0xc] sm:$0xf]
      %v1417 = vld [vmem:[#allocation2 + $0x10] sm:$0xf]
      %v1418 = vld [vmem:[#allocation2 + $0x18] sm:$0xf]
      %v1419 = vld [vmem:[#allocation2 + $0x1c] sm:$0xf]
      %v1420 = vld [vmem:[#allocation2 + $0x24] sm:$0xf]
      %v1421 = vld [vmem:[#allocation2 + $0x28] sm:$0xf]
      %v1422 = vld [vmem:[#allocation2 + $0x30] sm:$0xf]
      %v1423 = vld [vmem:[#allocation2 + $0x34] sm:$0xf]
      %v1424 = vld [vmem:[#allocation2 + $0x3c] sm:$0xf]
      %v1425 = vld [vmem:[#allocation2 + $0x40] sm:$0xf]
      %v1426 = vld [vmem:[#allocation2 + $0x48] sm:$0xf]
      %v1427 = vld [vmem:[#allocation2 + $0x4c] sm:$0xf]
      %v1428 = vld [vmem:[#allocation2 + $0x54] sm:$0xf]
      %v1429 = vld [vmem:[#allocation2 + $0x58] sm:$0xf]
      %v1430 = vld [vmem:[#allocation2 + $0x60] sm:$0xf]
      %v1431 = vld [vmem:[#allocation2 + $0x64] sm:$0xf]
      %v1432 = vld [vmem:[#allocation2 + $0x6c] sm:$0xf]
      %v1433 = vld [vmem:[#allocation2 + $0x70] sm:$0xf]
      %v1434 = vld [vmem:[#allocation2 + $0x78] sm:$0xf]
      %v1435 = vld [vmem:[#allocation2 + $0x7c] sm:$0xf]
      %v1436 = vld [vmem:[#allocation2 + $0x84] sm:$0xf]
      %v1437 = vld [vmem:[#allocation2 + $0x88] sm:$0xf]
      %v1438 = vld [vmem:[#allocation2 + $0x90] sm:$0xf]
      %v1439 = vld [vmem:[#allocation2 + $0x94] sm:$0xf]
      %v1440 = vld [vmem:[#allocation2 + $0x9c] sm:$0xf]
      %v1441 = vld [vmem:[#allocation2 + $0xa0] sm:$0xf]
      %v1442 = vld [vmem:[#allocation2 + $0xa8] sm:$0xf]
      %v1443 = vld [vmem:[#allocation2 + $0xac] sm:$0xf]
      %v1444 = vld [vmem:[#allocation2 + $0xb4] sm:$0xf]
      %v1445 = vld [vmem:[#allocation2 + $0xb8] sm:$0xf]
      %v1446 = vld [vmem:[%s4] sm:$0xf]
      %v1447 = vld [vmem:[%s4 + $0x4] sm:$0xf]
      %v1448 = vld [vmem:[%s4 + $0x8] sm:$0xf]
      %v1449 = vld [vmem:[%s4 + $0xc] sm:$0xf]
      %v1450 = vld [vmem:[%s4 + $0x10] sm:$0xf]
      %v1451 = vld [vmem:[%s4 + $0x14] sm:$0xf]
      %v1452 = vld [vmem:[%s4 + $0x18] sm:$0xf]
      %v1453 = vld [vmem:[%s4 + $0x1c] sm:$0xf]
      %v1454 = vld [vmem:[%s4 + $0x20] sm:$0xf]
      %v1455 = vld [vmem:[%s4 + $0x24] sm:$0xf]
      %v1456 = vld [vmem:[%s4 + $0x28] sm:$0xf]
      %v1457 = vld [vmem:[%s4 + $0x2c] sm:$0xf]
      %v1458 = vld [vmem:[%s4 + $0x30] sm:$0xf]
      %v1459 = vld [vmem:[%s4 + $0x34] sm:$0xf]
      %v1460 = vld [vmem:[%s4 + $0x38] sm:$0xf]
      %v1461 = vld [vmem:[%s4 + $0x3c] sm:$0xf]
      %v1462 = vld [vmem:[#allocation2 + $0x8] sm:$0x1]
      %v1463 = vld [vmem:[#allocation2 + $0x14] sm:$0x1]
      %v1464 = vld [vmem:[#allocation2 + $0x20] sm:$0x1]
      %v1465 = vld [vmem:[#allocation2 + $0x2c] sm:$0x1]
      %v1466 = vld [vmem:[#allocation2 + $0x38] sm:$0x1]
      %v1467 = vld [vmem:[#allocation2 + $0x44] sm:$0x1]
      %v1468 = vld [vmem:[#allocation2 + $0x50] sm:$0x1]
      %v1469 = vld [vmem:[#allocation2 + $0x5c] sm:$0x1]
      %v1470 = vld [vmem:[#allocation2 + $0x68] sm:$0x1]
      %v1471 = vld [vmem:[#allocation2 + $0x74] sm:$0x1]
      %v1472 = vld [vmem:[#allocation2 + $0x80] sm:$0x1]
      %v1473 = vld [vmem:[#allocation2 + $0x8c] sm:$0x1]
      %v1474 = vld [vmem:[#allocation2 + $0x98] sm:$0x1]
      %v1475 = vld [vmem:[#allocation2 + $0xa4] sm:$0x1]
      %v1476 = vld [vmem:[#allocation2 + $0xb0] sm:$0x1]
      %v1477 = vld [vmem:[#allocation2 + $0xbc] sm:$0x1]
      %vm1478 = vsmask.f32 3328
      %vm1479 = vsmask.f32 7440
      %vm1480 = vmor %vm1478, %vm1479
      %v1482 = vshrl.u32 %v1414, 16
      %v1484 = vrot.slane %v1482, 4
      %v1485 = vshll.u32 %v1414, 16
      %v1487 = vrot.slane %v1485, 5
      %v1488 = vor.u32 %v1484, %v1487
      %v1489 = vrot.slane %v1488, 4
      %v1491 = vshll.u32 %v1415, 16
      %v1493 = vrot.slane %v1491, 5
      %v1494 = vsel %vm1480, %v1489, %v1493
      %v1495 = vshrl.u32 %v1415, 16
      %v1497 = vrot.slane %v1495, 4
      %v1498 = vor.u32 %v1497, %v1493
      %v1499 = vrot.slane %v1498, 4
      %v1501 = vshll.u32 %v1462, 16
      %v1503 = vrot.slane %v1501, 5
      %v1504 = vsel %vm1480, %v1499, %v1503
      %v1506 = vshrl.u32 %v1416, 16
      %v1508 = vrot.slane %v1506, 4
      %v1509 = vshll.u32 %v1416, 16
      %v1511 = vrot.slane %v1509, 5
      %v1512 = vor.u32 %v1508, %v1511
      %v1513 = vrot.slane %v1512, 4
      %v1515 = vshll.u32 %v1417, 16
      %v1517 = vrot.slane %v1515, 5
      %v1518 = vsel %vm1480, %v1513, %v1517
      %v1519 = vshrl.u32 %v1417, 16
      %v1521 = vrot.slane %v1519, 4
      %v1522 = vor.u32 %v1521, %v1517
      %v1523 = vrot.slane %v1522, 4
      %v1525 = vshll.u32 %v1463, 16
      %v1527 = vrot.slane %v1525, 5
      %v1528 = vsel %vm1480, %v1523, %v1527
      %v1530 = vshrl.u32 %v1418, 16
      %v1532 = vrot.slane %v1530, 4
      %v1533 = vshll.u32 %v1418, 16
      %v1535 = vrot.slane %v1533, 5
      %v1536 = vor.u32 %v1532, %v1535
      %v1537 = vrot.slane %v1536, 4
      %v1539 = vshll.u32 %v1419, 16
      %v1541 = vrot.slane %v1539, 5
      %v1542 = vsel %vm1480, %v1537, %v1541
      %v1543 = vshrl.u32 %v1419, 16
      %v1545 = vrot.slane %v1543, 4
      %v1546 = vor.u32 %v1545, %v1541
      %v1547 = vrot.slane %v1546, 4
      %v1549 = vshll.u32 %v1464, 16
      %v1551 = vrot.slane %v1549, 5
      %v1552 = vsel %vm1480, %v1547, %v1551
      %v1554 = vshrl.u32 %v1420, 16
      %v1556 = vrot.slane %v1554, 4
      %v1557 = vshll.u32 %v1420, 16
      %v1559 = vrot.slane %v1557, 5
      %v1560 = vor.u32 %v1556, %v1559
      %v1561 = vrot.slane %v1560, 4
      %v1563 = vshll.u32 %v1421, 16
      %v1565 = vrot.slane %v1563, 5
      %v1566 = vsel %vm1480, %v1561, %v1565
      %v1567 = vshrl.u32 %v1421, 16
      %v1569 = vrot.slane %v1567, 4
      %v1570 = vor.u32 %v1569, %v1565
      %v1571 = vrot.slane %v1570, 4
      %v1573 = vshll.u32 %v1465, 16
      %v1575 = vrot.slane %v1573, 5
      %v1576 = vsel %vm1480, %v1571, %v1575
      %v1578 = vshrl.u32 %v1422, 16
      %v1580 = vrot.slane %v1578, 4
      %v1581 = vshll.u32 %v1422, 16
      %v1583 = vrot.slane %v1581, 5
      %v1584 = vor.u32 %v1580, %v1583
      %v1585 = vrot.slane %v1584, 4
      %v1587 = vshll.u32 %v1423, 16
      %v1589 = vrot.slane %v1587, 5
      %v1590 = vsel %vm1480, %v1585, %v1589
      %v1591 = vshrl.u32 %v1423, 16
      %v1593 = vrot.slane %v1591, 4
      %v1594 = vor.u32 %v1593, %v1589
      %v1595 = vrot.slane %v1594, 4
      %v1597 = vshll.u32 %v1466, 16
      %v1599 = vrot.slane %v1597, 5
      %v1600 = vsel %vm1480, %v1595, %v1599
      %v1602 = vshrl.u32 %v1424, 16
      %v1604 = vrot.slane %v1602, 4
      %v1605 = vshll.u32 %v1424, 16
      %v1607 = vrot.slane %v1605, 5
      %v1608 = vor.u32 %v1604, %v1607
      %v1609 = vrot.slane %v1608, 4
      %v1611 = vshll.u32 %v1425, 16
      %v1613 = vrot.slane %v1611, 5
      %v1614 = vsel %vm1480, %v1609, %v1613
      %v1615 = vshrl.u32 %v1425, 16
      %v1617 = vrot.slane %v1615, 4
      %v1618 = vor.u32 %v1617, %v1613
      %v1619 = vrot.slane %v1618, 4
      %v1621 = vshll.u32 %v1467, 16
      %v1623 = vrot.slane %v1621, 5
      %v1624 = vsel %vm1480, %v1619, %v1623
      %v1626 = vshrl.u32 %v1426, 16
      %v1628 = vrot.slane %v1626, 4
      %v1629 = vshll.u32 %v1426, 16
      %v1631 = vrot.slane %v1629, 5
      %v1632 = vor.u32 %v1628, %v1631
      %v1633 = vrot.slane %v1632, 4
      %v1635 = vshll.u32 %v1427, 16
      %v1637 = vrot.slane %v1635, 5
      %v1638 = vsel %vm1480, %v1633, %v1637
      %v1639 = vshrl.u32 %v1427, 16
      %v1641 = vrot.slane %v1639, 4
      %v1642 = vor.u32 %v1641, %v1637
      %v1643 = vrot.slane %v1642, 4
      %v1645 = vshll.u32 %v1468, 16
      %v1647 = vrot.slane %v1645, 5
      %v1648 = vsel %vm1480, %v1643, %v1647
      %v1650 = vshrl.u32 %v1428, 16
      %v1652 = vrot.slane %v1650, 4
      %v1653 = vshll.u32 %v1428, 16
      %v1655 = vrot.slane %v1653, 5
      %v1656 = vor.u32 %v1652, %v1655
      %v1657 = vrot.slane %v1656, 4
      %v1659 = vshll.u32 %v1429, 16
      %v1661 = vrot.slane %v1659, 5
      %v1662 = vsel %vm1480, %v1657, %v1661
      %v1663 = vshrl.u32 %v1429, 16
      %v1665 = vrot.slane %v1663, 4
      %v1666 = vor.u32 %v1665, %v1661
      %v1667 = vrot.slane %v1666, 4
      %v1669 = vshll.u32 %v1469, 16
      %v1671 = vrot.slane %v1669, 5
      %v1672 = vsel %vm1480, %v1667, %v1671
      %v1674 = vshrl.u32 %v1430, 16
      %v1676 = vrot.slane %v1674, 4
      %v1677 = vshll.u32 %v1430, 16
      %v1679 = vrot.slane %v1677, 5
      %v1680 = vor.u32 %v1676, %v1679
      %v1681 = vrot.slane %v1680, 4
      %v1683 = vshll.u32 %v1431, 16
      %v1685 = vrot.slane %v1683, 5
      %v1686 = vsel %vm1480, %v1681, %v1685
      %v1687 = vshrl.u32 %v1431, 16
      %v1689 = vrot.slane %v1687, 4
      %v1690 = vor.u32 %v1689, %v1685
      %v1691 = vrot.slane %v1690, 4
      %v1693 = vshll.u32 %v1470, 16
      %v1695 = vrot.slane %v1693, 5
      %v1696 = vsel %vm1480, %v1691, %v1695
      %v1698 = vshrl.u32 %v1432, 16
      %v1700 = vrot.slane %v1698, 4
      %v1701 = vshll.u32 %v1432, 16
      %v1703 = vrot.slane %v1701, 5
      %v1704 = vor.u32 %v1700, %v1703
      %v1705 = vrot.slane %v1704, 4
      %v1707 = vshll.u32 %v1433, 16
      %v1709 = vrot.slane %v1707, 5
      %v1710 = vsel %vm1480, %v1705, %v1709
      %v1711 = vshrl.u32 %v1433, 16
      %v1713 = vrot.slane %v1711, 4
      %v1714 = vor.u32 %v1713, %v1709
      %v1715 = vrot.slane %v1714, 4
      %v1717 = vshll.u32 %v1471, 16
      %v1719 = vrot.slane %v1717, 5
      %v1720 = vsel %vm1480, %v1715, %v1719
      %v1722 = vshrl.u32 %v1434, 16
      %v1724 = vrot.slane %v1722, 4
      %v1725 = vshll.u32 %v1434, 16
      %v1727 = vrot.slane %v1725, 5
      %v1728 = vor.u32 %v1724, %v1727
      %v1729 = vrot.slane %v1728, 4
      %v1731 = vshll.u32 %v1435, 16
      %v1733 = vrot.slane %v1731, 5
      %v1734 = vsel %vm1480, %v1729, %v1733
      %v1735 = vshrl.u32 %v1435, 16
      %v1737 = vrot.slane %v1735, 4
      %v1738 = vor.u32 %v1737, %v1733
      %v1739 = vrot.slane %v1738, 4
      %v1741 = vshll.u32 %v1472, 16
      %v1743 = vrot.slane %v1741, 5
      %v1744 = vsel %vm1480, %v1739, %v1743
      %v1746 = vshrl.u32 %v1436, 16
      %v1748 = vrot.slane %v1746, 4
      %v1749 = vshll.u32 %v1436, 16
      %v1751 = vrot.slane %v1749, 5
      %v1752 = vor.u32 %v1748, %v1751
      %v1753 = vrot.slane %v1752, 4
      %v1755 = vshll.u32 %v1437, 16
      %v1757 = vrot.slane %v1755, 5
      %v1758 = vsel %vm1480, %v1753, %v1757
      %v1759 = vshrl.u32 %v1437, 16
      %v1761 = vrot.slane %v1759, 4
      %v1762 = vor.u32 %v1761, %v1757
      %v1763 = vrot.slane %v1762, 4
      %v1765 = vshll.u32 %v1473, 16
      %v1767 = vrot.slane %v1765, 5
      %v1768 = vsel %vm1480, %v1763, %v1767
      %v1770 = vshrl.u32 %v1438, 16
      %v1772 = vrot.slane %v1770, 4
      %v1773 = vshll.u32 %v1438, 16
      %v1775 = vrot.slane %v1773, 5
      %v1776 = vor.u32 %v1772, %v1775
      %v1777 = vrot.slane %v1776, 4
      %v1779 = vshll.u32 %v1439, 16
      %v1781 = vrot.slane %v1779, 5
      %v1782 = vsel %vm1480, %v1777, %v1781
      %v1783 = vshrl.u32 %v1439, 16
      %v1785 = vrot.slane %v1783, 4
      %v1786 = vor.u32 %v1785, %v1781
      %v1787 = vrot.slane %v1786, 4
      %v1789 = vshll.u32 %v1474, 16
      %v1791 = vrot.slane %v1789, 5
      %v1792 = vsel %vm1480, %v1787, %v1791
      %v1794 = vshrl.u32 %v1440, 16
      %v1796 = vrot.slane %v1794, 4
      %v1797 = vshll.u32 %v1440, 16
      %v1799 = vrot.slane %v1797, 5
      %v1800 = vor.u32 %v1796, %v1799
      %v1801 = vrot.slane %v1800, 4
      %v1803 = vshll.u32 %v1441, 16
      %v1805 = vrot.slane %v1803, 5
      %v1806 = vsel %vm1480, %v1801, %v1805
      %v1807 = vshrl.u32 %v1441, 16
      %v1809 = vrot.slane %v1807, 4
      %v1810 = vor.u32 %v1809, %v1805
      %v1811 = vrot.slane %v1810, 4
      %v1813 = vshll.u32 %v1475, 16
      %v1815 = vrot.slane %v1813, 5
      %v1816 = vsel %vm1480, %v1811, %v1815
      %v1818 = vshrl.u32 %v1442, 16
      %v1820 = vrot.slane %v1818, 4
      %v1821 = vshll.u32 %v1442, 16
      %v1823 = vrot.slane %v1821, 5
      %v1824 = vor.u32 %v1820, %v1823
      %v1825 = vrot.slane %v1824, 4
      %v1827 = vshll.u32 %v1443, 16
      %v1829 = vrot.slane %v1827, 5
      %v1830 = vsel %vm1480, %v1825, %v1829
      %v1831 = vshrl.u32 %v1443, 16
      %v1833 = vrot.slane %v1831, 4
      %v1834 = vor.u32 %v1833, %v1829
      %v1835 = vrot.slane %v1834, 4
      %v1837 = vshll.u32 %v1476, 16
      %v1839 = vrot.slane %v1837, 5
      %v1840 = vsel %vm1480, %v1835, %v1839
      %v1842 = vshrl.u32 %v1444, 16
      %v1844 = vrot.slane %v1842, 4
      %v1845 = vshll.u32 %v1444, 16
      %v1847 = vrot.slane %v1845, 5
      %v1848 = vor.u32 %v1844, %v1847
      %v1849 = vrot.slane %v1848, 4
      %v1851 = vshll.u32 %v1445, 16
      %v1853 = vrot.slane %v1851, 5
      %v1854 = vsel %vm1480, %v1849, %v1853
      %v1855 = vshrl.u32 %v1445, 16
      %v1857 = vrot.slane %v1855, 4
      %v1858 = vor.u32 %v1857, %v1853
      %v1859 = vrot.slane %v1858, 4
      %v1861 = vshll.u32 %v1477, 16
      %v1863 = vrot.slane %v1861, 5
      %v1864 = vsel %vm1480, %v1859, %v1863
      %s1865 = scalar_lea.vmem %s4, 64
      %v1866 = vld [vmem:[%s1865] sm:$0xf]
      %v1867 = vld [vmem:[%s1865 + $0x4] sm:$0xf]
      %v1868 = vld [vmem:[%s1865 + $0x8] sm:$0xf]
      %v1869 = vld [vmem:[%s1865 + $0xc] sm:$0xf]
      %v1870 = vld [vmem:[%s1865 + $0x10] sm:$0xf]
      %v1871 = vld [vmem:[%s1865 + $0x14] sm:$0xf]
      %v1872 = vld [vmem:[%s1865 + $0x18] sm:$0xf]
      %v1873 = vld [vmem:[%s1865 + $0x1c] sm:$0xf]
      %v1874 = vld [vmem:[%s1865 + $0x20] sm:$0xf]
      %v1875 = vld [vmem:[%s1865 + $0x24] sm:$0xf]
      %v1876 = vld [vmem:[%s1865 + $0x28] sm:$0xf]
      %v1877 = vld [vmem:[%s1865 + $0x2c] sm:$0xf]
      %v1878 = vld [vmem:[%s1865 + $0x30] sm:$0xf]
      %v1879 = vld [vmem:[%s1865 + $0x34] sm:$0xf]
      %v1880 = vld [vmem:[%s1865 + $0x38] sm:$0xf]
      %v1881 = vld [vmem:[%s1865 + $0x3c] sm:$0xf]
      %v1882 = vunpack.c.l.b16 %v1494
      %v1883 = vunpack.c.l.b16 %v1504
      %v1884 = vunpack.c.l.b16 %v1518
      %v1885 = vunpack.c.l.b16 %v1528
      %v1886 = vunpack.c.l.b16 %v1542
      %v1887 = vunpack.c.l.b16 %v1552
      %v1888 = vunpack.c.l.b16 %v1566
      %v1889 = vunpack.c.l.b16 %v1576
      %v1890 = vunpack.c.l.b16 %v1590
      %v1891 = vunpack.c.l.b16 %v1600
      %v1892 = vunpack.c.l.b16 %v1614
      %v1893 = vunpack.c.l.b16 %v1624
      %v1894 = vunpack.c.l.b16 %v1638
      %v1895 = vunpack.c.l.b16 %v1648
      %v1896 = vunpack.c.l.b16 %v1662
      %v1897 = vunpack.c.l.b16 %v1672
      %v1898 = vunpack.c.l.b16 %v1686
      %v1899 = vunpack.c.l.b16 %v1696
      %v1900 = vunpack.c.l.b16 %v1710
      %v1901 = vunpack.c.l.b16 %v1720
      %v1902 = vunpack.c.l.b16 %v1734
      %v1903 = vunpack.c.l.b16 %v1744
      %v1904 = vunpack.c.l.b16 %v1758
      %v1905 = vunpack.c.l.b16 %v1768
      %v1906 = vunpack.c.l.b16 %v1782
      %v1907 = vunpack.c.l.b16 %v1792
      %v1908 = vunpack.c.l.b16 %v1806
      %v1909 = vunpack.c.l.b16 %v1816
      %v1910 = vunpack.c.l.b16 %v1830
      %v1911 = vunpack.c.l.b16 %v1840
      %v1912 = vunpack.c.l.b16 %v1854
      %v1913 = vunpack.c.l.b16 %v1864
      %v1914 = vpack.c.b16 %v1883, %v1882
      %v1915 = vpack.c.b16 %v1885, %v1884
      %v1916 = vpack.c.b16 %v1887, %v1886
      %v1917 = vpack.c.b16 %v1889, %v1888
      %v1918 = vpack.c.b16 %v1891, %v1890
      %v1919 = vpack.c.b16 %v1893, %v1892
      %v1920 = vpack.c.b16 %v1895, %v1894
      %v1921 = vpack.c.b16 %v1897, %v1896
      %v1922 = vpack.c.b16 %v1899, %v1898
      %v1923 = vpack.c.b16 %v1901, %v1900
      %v1924 = vpack.c.b16 %v1903, %v1902
      %v1925 = vpack.c.b16 %v1905, %v1904
      %v1926 = vpack.c.b16 %v1907, %v1906
      %v1927 = vpack.c.b16 %v1909, %v1908
      %v1928 = vpack.c.b16 %v1911, %v1910
      %v1929 = vpack.c.b16 %v1913, %v1912
      %v1962 = vunpack.c.l.b16 %v1866
      %v1963 = vunpack.c.l.b16 %v1867
      %v1964 = vunpack.c.l.b16 %v1868
      %v1965 = vunpack.c.l.b16 %v1869
      %v1966 = vunpack.c.l.b16 %v1870
      %v1967 = vunpack.c.l.b16 %v1871
      %v1968 = vunpack.c.l.b16 %v1872
      %v1969 = vunpack.c.l.b16 %v1873
      %v1970 = vunpack.c.l.b16 %v1874
      %v1971 = vunpack.c.l.b16 %v1875
      %v1972 = vunpack.c.l.b16 %v1876
      %v1973 = vunpack.c.l.b16 %v1877
      %v1974 = vunpack.c.l.b16 %v1878
      %v1975 = vunpack.c.l.b16 %v1879
      %v1976 = vunpack.c.l.b16 %v1880
      %v1977 = vunpack.c.l.b16 %v1881
      %v1978 = vpack.c.b16 %v1963, %v1962
      %v1979 = vpack.c.b16 %v1965, %v1964
      %v1980 = vpack.c.b16 %v1967, %v1966
      %v1981 = vpack.c.b16 %v1969, %v1968
      %v1982 = vpack.c.b16 %v1971, %v1970
      %v1983 = vpack.c.b16 %v1973, %v1972
      %v1984 = vpack.c.b16 %v1975, %v1974
      %v1985 = vpack.c.b16 %v1977, %v1976
      %1994 = vmatpush.bf16.msra.mxu0 %v1985
      %1995 = vmatpush.bf16.msra.mxu0 %v1984
      %1996 = vmatpush.bf16.msra.mxu0 %v1983
      %1997 = vmatpush.bf16.msra.mxu0 %v1982
      %1998 = vmatpush.bf16.msra.mxu0 %v1981
      %1999 = vmatpush.bf16.msra.mxu0 %v1980
      %2000 = vmatpush.bf16.msra.mxu0 %v1979
      %2001 = vmatpush.bf16.msra.mxu0 %v1978
      %2002 = vmatmul.bf16.gmra.mxu0 %v1914
      %v2003 = vpop.f32.mrf.mxu0
      %v2004 = vadd.f32 0.0, %v2003
      %v2005 = vpop.f32.mrf.mxu0
      %v2006 = vadd.f32 0.0, %v2005
      %2007 = vmatmul.bf16.gmra.mxu0 %v1915
      %v2008 = vpop.f32.mrf.mxu0
      %v2009 = vadd.f32 0.0, %v2008
      %v2010 = vpop.f32.mrf.mxu0
      %v2011 = vadd.f32 0.0, %v2010
      %2012 = vmatmul.bf16.gmra.mxu0 %v1916
      %v2013 = vpop.f32.mrf.mxu0
      %v2014 = vadd.f32 0.0, %v2013
      %v2015 = vpop.f32.mrf.mxu0
      %v2016 = vadd.f32 0.0, %v2015
      %2017 = vmatmul.bf16.gmra.mxu0 %v1917
      %v2018 = vpop.f32.mrf.mxu0
      %v2019 = vadd.f32 0.0, %v2018
      %v2020 = vpop.f32.mrf.mxu0
      %v2021 = vadd.f32 0.0, %v2020
      %2022 = vmatmul.bf16.gmra.mxu0 %v1918
      %v2023 = vpop.f32.mrf.mxu0
      %v2024 = vadd.f32 0.0, %v2023
      %v2025 = vpop.f32.mrf.mxu0
      %v2026 = vadd.f32 0.0, %v2025
      %2027 = vmatmul.bf16.gmra.mxu0 %v1919
      %v2028 = vpop.f32.mrf.mxu0
      %v2029 = vadd.f32 0.0, %v2028
      %v2030 = vpop.f32.mrf.mxu0
      %v2031 = vadd.f32 0.0, %v2030
      %2032 = vmatmul.bf16.gmra.mxu0 %v1920
      %v2033 = vpop.f32.mrf.mxu0
      %v2034 = vadd.f32 0.0, %v2033
      %v2035 = vpop.f32.mrf.mxu0
      %v2036 = vadd.f32 0.0, %v2035
      %2037 = vmatmul.bf16.gmra.mxu0 %v1921
      %v2038 = vpop.f32.mrf.mxu0
      %v2039 = vadd.f32 0.0, %v2038
      %v2040 = vpop.f32.mrf.mxu0
      %v2041 = vadd.f32 0.0, %v2040
      %2042 = vmatmul.bf16.gmra.mxu0 %v1922
      %v2043 = vpop.f32.mrf.mxu0
      %v2044 = vadd.f32 0.0, %v2043
      %v2045 = vpop.f32.mrf.mxu0
      %v2046 = vadd.f32 0.0, %v2045
      %2047 = vmatmul.bf16.gmra.mxu0 %v1923
      %v2048 = vpop.f32.mrf.mxu0
      %v2049 = vadd.f32 0.0, %v2048
      %v2050 = vpop.f32.mrf.mxu0
      %v2051 = vadd.f32 0.0, %v2050
      %2052 = vmatmul.bf16.gmra.mxu0 %v1924
      %v2053 = vpop.f32.mrf.mxu0
      %v2054 = vadd.f32 0.0, %v2053
      %v2055 = vpop.f32.mrf.mxu0
      %v2056 = vadd.f32 0.0, %v2055
      %2057 = vmatmul.bf16.gmra.mxu0 %v1925
      %v2058 = vpop.f32.mrf.mxu0
      %v2059 = vadd.f32 0.0, %v2058
      %v2060 = vpop.f32.mrf.mxu0
      %v2061 = vadd.f32 0.0, %v2060
      %2062 = vmatmul.bf16.gmra.mxu0 %v1926
      %v2063 = vpop.f32.mrf.mxu0
      %v2064 = vadd.f32 0.0, %v2063
      %v2065 = vpop.f32.mrf.mxu0
      %v2066 = vadd.f32 0.0, %v2065
      %2067 = vmatmul.bf16.gmra.mxu0 %v1927
      %v2068 = vpop.f32.mrf.mxu0
      %v2069 = vadd.f32 0.0, %v2068
      %v2070 = vpop.f32.mrf.mxu0
      %v2071 = vadd.f32 0.0, %v2070
      %2072 = vmatmul.bf16.gmra.mxu0 %v1928
      %v2073 = vpop.f32.mrf.mxu0
      %v2074 = vadd.f32 0.0, %v2073
      %v2075 = vpop.f32.mrf.mxu0
      %v2076 = vadd.f32 0.0, %v2075
      %2077 = vmatmul.bf16.gmra.mxu0 %v1929
      %v2078 = vpop.f32.mrf.mxu0
      %v2079 = vadd.f32 0.0, %v2078
      %v2080 = vpop.f32.mrf.mxu0
      %v2081 = vadd.f32 0.0, %v2080
      %2082 = vdwg.mxu0
      %v2115 = vunpack.c.l.b16 %v1414
      %v2116 = vunpack.c.l.b16 %v1415
      %v2117 = vunpack.c.l.b16 %v1416
      %v2118 = vunpack.c.l.b16 %v1417
      %v2119 = vunpack.c.l.b16 %v1418
      %v2120 = vunpack.c.l.b16 %v1419
      %v2121 = vunpack.c.l.b16 %v1420
      %v2122 = vunpack.c.l.b16 %v1421
      %v2123 = vunpack.c.l.b16 %v1422
      %v2124 = vunpack.c.l.b16 %v1423
      %v2125 = vunpack.c.l.b16 %v1424
      %v2126 = vunpack.c.l.b16 %v1425
      %v2127 = vunpack.c.l.b16 %v1426
      %v2128 = vunpack.c.l.b16 %v1427
      %v2129 = vunpack.c.l.b16 %v1428
      %v2130 = vunpack.c.l.b16 %v1429
      %v2131 = vunpack.c.l.b16 %v1430
      %v2132 = vunpack.c.l.b16 %v1431
      %v2133 = vunpack.c.l.b16 %v1432
      %v2134 = vunpack.c.l.b16 %v1433
      %v2135 = vunpack.c.l.b16 %v1434
      %v2136 = vunpack.c.l.b16 %v1435
      %v2137 = vunpack.c.l.b16 %v1436
      %v2138 = vunpack.c.l.b16 %v1437
      %v2139 = vunpack.c.l.b16 %v1438
      %v2140 = vunpack.c.l.b16 %v1439
      %v2141 = vunpack.c.l.b16 %v1440
      %v2142 = vunpack.c.l.b16 %v1441
      %v2143 = vunpack.c.l.b16 %v1442
      %v2144 = vunpack.c.l.b16 %v1443
      %v2145 = vunpack.c.l.b16 %v1444
      %v2146 = vunpack.c.l.b16 %v1445
      %v2147 = vpack.c.b16 %v2116, %v2115
      %v2148 = vpack.c.b16 %v2118, %v2117
      %v2149 = vpack.c.b16 %v2120, %v2119
      %v2150 = vpack.c.b16 %v2122, %v2121
      %v2151 = vpack.c.b16 %v2124, %v2123
      %v2152 = vpack.c.b16 %v2126, %v2125
      %v2153 = vpack.c.b16 %v2128, %v2127
      %v2154 = vpack.c.b16 %v2130, %v2129
      %v2155 = vpack.c.b16 %v2132, %v2131
      %v2156 = vpack.c.b16 %v2134, %v2133
      %v2157 = vpack.c.b16 %v2136, %v2135
      %v2158 = vpack.c.b16 %v2138, %v2137
      %v2159 = vpack.c.b16 %v2140, %v2139
      %v2160 = vpack.c.b16 %v2142, %v2141
      %v2161 = vpack.c.b16 %v2144, %v2143
      %v2162 = vpack.c.b16 %v2146, %v2145
      %v2195 = vunpack.c.l.b16 %v1446
      %v2196 = vunpack.c.l.b16 %v1447
      %v2197 = vunpack.c.l.b16 %v1448
      %v2198 = vunpack.c.l.b16 %v1449
      %v2199 = vunpack.c.l.b16 %v1450
      %v2200 = vunpack.c.l.b16 %v1451
      %v2201 = vunpack.c.l.b16 %v1452
      %v2202 = vunpack.c.l.b16 %v1453
      %v2203 = vunpack.c.l.b16 %v1454
      %v2204 = vunpack.c.l.b16 %v1455
      %v2205 = vunpack.c.l.b16 %v1456
      %v2206 = vunpack.c.l.b16 %v1457
      %v2207 = vunpack.c.l.b16 %v1458
      %v2208 = vunpack.c.l.b16 %v1459
      %v2209 = vunpack.c.l.b16 %v1460
      %v2210 = vunpack.c.l.b16 %v1461
      %v2211 = vpack.c.b16 %v2196, %v2195
      %v2212 = vpack.c.b16 %v2198, %v2197
      %v2213 = vpack.c.b16 %v2200, %v2199
      %v2214 = vpack.c.b16 %v2202, %v2201
      %v2215 = vpack.c.b16 %v2204, %v2203
      %v2216 = vpack.c.b16 %v2206, %v2205
      %v2217 = vpack.c.b16 %v2208, %v2207
      %v2218 = vpack.c.b16 %v2210, %v2209
      %2227 = vmatpush.bf16.msra.mxu0 %v2218
      %2228 = vmatpush.bf16.msra.mxu0 %v2217
      %2229 = vmatpush.bf16.msra.mxu0 %v2216
      %2230 = vmatpush.bf16.msra.mxu0 %v2215
      %2231 = vmatpush.bf16.msra.mxu0 %v2214
      %2232 = vmatpush.bf16.msra.mxu0 %v2213
      %2233 = vmatpush.bf16.msra.mxu0 %v2212
      %2234 = vmatpush.bf16.msra.mxu0 %v2211
      %2235 = vmatmul.bf16.gmra.mxu0 %v2147
      %v2236 = vpop.f32.mrf.mxu0
      %v2237 = vadd.f32 %v2004, %v2236
      %v2238 = vpop.f32.mrf.mxu0
      %v2239 = vadd.f32 %v2006, %v2238
      %2240 = vmatmul.bf16.gmra.mxu0 %v2148
      %v2241 = vpop.f32.mrf.mxu0
      %v2242 = vadd.f32 %v2009, %v2241
      %v2243 = vpop.f32.mrf.mxu0
      %v2244 = vadd.f32 %v2011, %v2243
      %2245 = vmatmul.bf16.gmra.mxu0 %v2149
      %v2246 = vpop.f32.mrf.mxu0
      %v2247 = vadd.f32 %v2014, %v2246
      %v2248 = vpop.f32.mrf.mxu0
      %v2249 = vadd.f32 %v2016, %v2248
      %2250 = vmatmul.bf16.gmra.mxu0 %v2150
      %v2251 = vpop.f32.mrf.mxu0
      %v2252 = vadd.f32 %v2019, %v2251
      %v2253 = vpop.f32.mrf.mxu0
      %v2254 = vadd.f32 %v2021, %v2253
      %2255 = vmatmul.bf16.gmra.mxu0 %v2151
      %v2256 = vpop.f32.mrf.mxu0
      %v2257 = vadd.f32 %v2024, %v2256
      %v2258 = vpop.f32.mrf.mxu0
      %v2259 = vadd.f32 %v2026, %v2258
      %2260 = vmatmul.bf16.gmra.mxu0 %v2152
      %v2261 = vpop.f32.mrf.mxu0
      %v2262 = vadd.f32 %v2029, %v2261
      %v2263 = vpop.f32.mrf.mxu0
      %v2264 = vadd.f32 %v2031, %v2263
      %2265 = vmatmul.bf16.gmra.mxu0 %v2153
      %v2266 = vpop.f32.mrf.mxu0
      %v2267 = vadd.f32 %v2034, %v2266
      %v2268 = vpop.f32.mrf.mxu0
      %v2269 = vadd.f32 %v2036, %v2268
      %2270 = vmatmul.bf16.gmra.mxu0 %v2154
      %v2271 = vpop.f32.mrf.mxu0
      %v2272 = vadd.f32 %v2039, %v2271
      %v2273 = vpop.f32.mrf.mxu0
      %v2274 = vadd.f32 %v2041, %v2273
      %2275 = vmatmul.bf16.gmra.mxu0 %v2155
      %v2276 = vpop.f32.mrf.mxu0
      %v2277 = vadd.f32 %v2044, %v2276
      %v2278 = vpop.f32.mrf.mxu0
      %v2279 = vadd.f32 %v2046, %v2278
      %2280 = vmatmul.bf16.gmra.mxu0 %v2156
      %v2281 = vpop.f32.mrf.mxu0
      %v2282 = vadd.f32 %v2049, %v2281
      %v2283 = vpop.f32.mrf.mxu0
      %v2284 = vadd.f32 %v2051, %v2283
      %2285 = vmatmul.bf16.gmra.mxu0 %v2157
      %v2286 = vpop.f32.mrf.mxu0
      %v2287 = vadd.f32 %v2054, %v2286
      %v2288 = vpop.f32.mrf.mxu0
      %v2289 = vadd.f32 %v2056, %v2288
      %2290 = vmatmul.bf16.gmra.mxu0 %v2158
      %v2291 = vpop.f32.mrf.mxu0
      %v2292 = vadd.f32 %v2059, %v2291
      %v2293 = vpop.f32.mrf.mxu0
      %v2294 = vadd.f32 %v2061, %v2293
      %2295 = vmatmul.bf16.gmra.mxu0 %v2159
      %v2296 = vpop.f32.mrf.mxu0
      %v2297 = vadd.f32 %v2064, %v2296
      %v2298 = vpop.f32.mrf.mxu0
      %v2299 = vadd.f32 %v2066, %v2298
      %2300 = vmatmul.bf16.gmra.mxu0 %v2160
      %v2301 = vpop.f32.mrf.mxu0
      %v2302 = vadd.f32 %v2069, %v2301
      %v2303 = vpop.f32.mrf.mxu0
      %v2304 = vadd.f32 %v2071, %v2303
      %2305 = vmatmul.bf16.gmra.mxu0 %v2161
      %v2306 = vpop.f32.mrf.mxu0
      %v2307 = vadd.f32 %v2074, %v2306
      %v2308 = vpop.f32.mrf.mxu0
      %v2309 = vadd.f32 %v2076, %v2308
      %2310 = vmatmul.bf16.gmra.mxu0 %v2162
      %v2311 = vpop.f32.mrf.mxu0
      %v2312 = vadd.f32 %v2079, %v2311
      %v2313 = vpop.f32.mrf.mxu0
      %v2314 = vadd.f32 %v2081, %v2313
      %2315 = vdwg.mxu0
      %v2316 = vld [vmem:[#allocation2] sm:$0xe]
      %v2317 = vld [vmem:[#allocation2 + $0xc] sm:$0xe]
      %v2318 = vld [vmem:[#allocation2 + $0x18] sm:$0xe]
      %v2319 = vld [vmem:[#allocation2 + $0x24] sm:$0xe]
      %v2320 = vld [vmem:[#allocation2 + $0x30] sm:$0xe]
      %v2321 = vld [vmem:[#allocation2 + $0x3c] sm:$0xe]
      %v2322 = vld [vmem:[#allocation2 + $0x48] sm:$0xe]
      %v2323 = vld [vmem:[#allocation2 + $0x54] sm:$0xe]
      %v2324 = vld [vmem:[#allocation2 + $0x60] sm:$0xe]
      %v2325 = vld [vmem:[#allocation2 + $0x6c] sm:$0xe]
      %v2326 = vld [vmem:[#allocation2 + $0x78] sm:$0xe]
      %v2327 = vld [vmem:[#allocation2 + $0x84] sm:$0xe]
      %v2328 = vld [vmem:[#allocation2 + $0x90] sm:$0xe]
      %v2329 = vld [vmem:[#allocation2 + $0x9c] sm:$0xe]
      %v2330 = vld [vmem:[#allocation2 + $0xa8] sm:$0xe]
      %v2331 = vld [vmem:[#allocation2 + $0xb4] sm:$0xe]
      %vm2364 = vcmask 1042432
      %vm2365 = vcmask 1046532
      %vm2366 = vmor %vm2364, %vm2365
      %v2367 = vrot.slane %v2316, 5
      %v2368 = vrot.slane %v2367, 4
      %v2369 = vrot.slane %v1415, 5
      %v2370 = vsel %vm2366, %v2368, %v2369
      %v2371 = vrot.slane %v2369, 4
      %v2372 = vrot.slane %v1462, 5
      %v2373 = vsel %vm2366, %v2371, %v2372
      %v2374 = vrot.slane %v2317, 5
      %v2375 = vrot.slane %v2374, 4
      %v2376 = vrot.slane %v1417, 5
      %v2377 = vsel %vm2366, %v2375, %v2376
      %v2378 = vrot.slane %v2376, 4
      %v2379 = vrot.slane %v1463, 5
      %v2380 = vsel %vm2366, %v2378, %v2379
      %v2381 = vrot.slane %v2318, 5
      %v2382 = vrot.slane %v2381, 4
      %v2383 = vrot.slane %v1419, 5
      %v2384 = vsel %vm2366, %v2382, %v2383
      %v2385 = vrot.slane %v2383, 4
      %v2386 = vrot.slane %v1464, 5
      %v2387 = vsel %vm2366, %v2385, %v2386
      %v2388 = vrot.slane %v2319, 5
      %v2389 = vrot.slane %v2388, 4
      %v2390 = vrot.slane %v1421, 5
      %v2391 = vsel %vm2366, %v2389, %v2390
      %v2392 = vrot.slane %v2390, 4
      %v2393 = vrot.slane %v1465, 5
      %v2394 = vsel %vm2366, %v2392, %v2393
      %v2395 = vrot.slane %v2320, 5
      %v2396 = vrot.slane %v2395, 4
      %v2397 = vrot.slane %v1423, 5
      %v2398 = vsel %vm2366, %v2396, %v2397
      %v2399 = vrot.slane %v2397, 4
      %v2400 = vrot.slane %v1466, 5
      %v2401 = vsel %vm2366, %v2399, %v2400
      %v2402 = vrot.slane %v2321, 5
      %v2403 = vrot.slane %v2402, 4
      %v2404 = vrot.slane %v1425, 5
      %v2405 = vsel %vm2366, %v2403, %v2404
      %v2406 = vrot.slane %v2404, 4
      %v2407 = vrot.slane %v1467, 5
      %v2408 = vsel %vm2366, %v2406, %v2407
      %v2409 = vrot.slane %v2322, 5
      %v2410 = vrot.slane %v2409, 4
      %v2411 = vrot.slane %v1427, 5
      %v2412 = vsel %vm2366, %v2410, %v2411
      %v2413 = vrot.slane %v2411, 4
      %v2414 = vrot.slane %v1468, 5
      %v2415 = vsel %vm2366, %v2413, %v2414
      %v2416 = vrot.slane %v2323, 5
      %v2417 = vrot.slane %v2416, 4
      %v2418 = vrot.slane %v1429, 5
      %v2419 = vsel %vm2366, %v2417, %v2418
      %v2420 = vrot.slane %v2418, 4
      %v2421 = vrot.slane %v1469, 5
      %v2422 = vsel %vm2366, %v2420, %v2421
      %v2423 = vrot.slane %v2324, 5
      %v2424 = vrot.slane %v2423, 4
      %v2425 = vrot.slane %v1431, 5
      %v2426 = vsel %vm2366, %v2424, %v2425
      %v2427 = vrot.slane %v2425, 4
      %v2428 = vrot.slane %v1470, 5
      %v2429 = vsel %vm2366, %v2427, %v2428
      %v2430 = vrot.slane %v2325, 5
      %v2431 = vrot.slane %v2430, 4
      %v2432 = vrot.slane %v1433, 5
      %v2433 = vsel %vm2366, %v2431, %v2432
      %v2434 = vrot.slane %v2432, 4
      %v2435 = vrot.slane %v1471, 5
      %v2436 = vsel %vm2366, %v2434, %v2435
      %v2437 = vrot.slane %v2326, 5
      %v2438 = vrot.slane %v2437, 4
      %v2439 = vrot.slane %v1435, 5
      %v2440 = vsel %vm2366, %v2438, %v2439
      %v2441 = vrot.slane %v2439, 4
      %v2442 = vrot.slane %v1472, 5
      %v2443 = vsel %vm2366, %v2441, %v2442
      %v2444 = vrot.slane %v2327, 5
      %v2445 = vrot.slane %v2444, 4
      %v2446 = vrot.slane %v1437, 5
      %v2447 = vsel %vm2366, %v2445, %v2446
      %v2448 = vrot.slane %v2446, 4
      %v2449 = vrot.slane %v1473, 5
      %v2450 = vsel %vm2366, %v2448, %v2449
      %v2451 = vrot.slane %v2328, 5
      %v2452 = vrot.slane %v2451, 4
      %v2453 = vrot.slane %v1439, 5
      %v2454 = vsel %vm2366, %v2452, %v2453
      %v2455 = vrot.slane %v2453, 4
      %v2456 = vrot.slane %v1474, 5
      %v2457 = vsel %vm2366, %v2455, %v2456
      %v2458 = vrot.slane %v2329, 5
      %v2459 = vrot.slane %v2458, 4
      %v2460 = vrot.slane %v1441, 5
      %v2461 = vsel %vm2366, %v2459, %v2460
      %v2462 = vrot.slane %v2460, 4
      %v2463 = vrot.slane %v1475, 5
      %v2464 = vsel %vm2366, %v2462, %v2463
      %v2465 = vrot.slane %v2330, 5
      %v2466 = vrot.slane %v2465, 4
      %v2467 = vrot.slane %v1443, 5
      %v2468 = vsel %vm2366, %v2466, %v2467
      %v2469 = vrot.slane %v2467, 4
      %v2470 = vrot.slane %v1476, 5
      %v2471 = vsel %vm2366, %v2469, %v2470
      %v2472 = vrot.slane %v2331, 5
      %v2473 = vrot.slane %v2472, 4
      %v2474 = vrot.slane %v1445, 5
      %v2475 = vsel %vm2366, %v2473, %v2474
      %v2476 = vrot.slane %v2474, 4
      %v2477 = vrot.slane %v1477, 5
      %v2478 = vsel %vm2366, %v2476, %v2477
      %s2479 = scalar_lea.vmem %s4, 128
      %v2480 = vld [vmem:[%s2479] sm:$0xf]
      %v2481 = vld [vmem:[%s2479 + $0x4] sm:$0xf]
      %v2482 = vld [vmem:[%s2479 + $0x8] sm:$0xf]
      %v2483 = vld [vmem:[%s2479 + $0xc] sm:$0xf]
      %v2484 = vld [vmem:[%s2479 + $0x10] sm:$0xf]
      %v2485 = vld [vmem:[%s2479 + $0x14] sm:$0xf]
      %v2486 = vld [vmem:[%s2479 + $0x18] sm:$0xf]
      %v2487 = vld [vmem:[%s2479 + $0x1c] sm:$0xf]
      %v2488 = vld [vmem:[%s2479 + $0x20] sm:$0xf]
      %v2489 = vld [vmem:[%s2479 + $0x24] sm:$0xf]
      %v2490 = vld [vmem:[%s2479 + $0x28] sm:$0xf]
      %v2491 = vld [vmem:[%s2479 + $0x2c] sm:$0xf]
      %v2492 = vld [vmem:[%s2479 + $0x30] sm:$0xf]
      %v2493 = vld [vmem:[%s2479 + $0x34] sm:$0xf]
      %v2494 = vld [vmem:[%s2479 + $0x38] sm:$0xf]
      %v2495 = vld [vmem:[%s2479 + $0x3c] sm:$0xf]
      %v2496 = vunpack.c.l.b16 %v2370
      %v2497 = vunpack.c.l.b16 %v2373
      %v2498 = vunpack.c.l.b16 %v2377
      %v2499 = vunpack.c.l.b16 %v2380
      %v2500 = vunpack.c.l.b16 %v2384
      %v2501 = vunpack.c.l.b16 %v2387
      %v2502 = vunpack.c.l.b16 %v2391
      %v2503 = vunpack.c.l.b16 %v2394
      %v2504 = vunpack.c.l.b16 %v2398
      %v2505 = vunpack.c.l.b16 %v2401
      %v2506 = vunpack.c.l.b16 %v2405
      %v2507 = vunpack.c.l.b16 %v2408
      %v2508 = vunpack.c.l.b16 %v2412
      %v2509 = vunpack.c.l.b16 %v2415
      %v2510 = vunpack.c.l.b16 %v2419
      %v2511 = vunpack.c.l.b16 %v2422
      %v2512 = vunpack.c.l.b16 %v2426
      %v2513 = vunpack.c.l.b16 %v2429
      %v2514 = vunpack.c.l.b16 %v2433
      %v2515 = vunpack.c.l.b16 %v2436
      %v2516 = vunpack.c.l.b16 %v2440
      %v2517 = vunpack.c.l.b16 %v2443
      %v2518 = vunpack.c.l.b16 %v2447
      %v2519 = vunpack.c.l.b16 %v2450
      %v2520 = vunpack.c.l.b16 %v2454
      %v2521 = vunpack.c.l.b16 %v2457
      %v2522 = vunpack.c.l.b16 %v2461
      %v2523 = vunpack.c.l.b16 %v2464
      %v2524 = vunpack.c.l.b16 %v2468
      %v2525 = vunpack.c.l.b16 %v2471
      %v2526 = vunpack.c.l.b16 %v2475
      %v2527 = vunpack.c.l.b16 %v2478
      %v2528 = vpack.c.b16 %v2497, %v2496
      %v2529 = vpack.c.b16 %v2499, %v2498
      %v2530 = vpack.c.b16 %v2501, %v2500
      %v2531 = vpack.c.b16 %v2503, %v2502
      %v2532 = vpack.c.b16 %v2505, %v2504
      %v2533 = vpack.c.b16 %v2507, %v2506
      %v2534 = vpack.c.b16 %v2509, %v2508
      %v2535 = vpack.c.b16 %v2511, %v2510
      %v2536 = vpack.c.b16 %v2513, %v2512
      %v2537 = vpack.c.b16 %v2515, %v2514
      %v2538 = vpack.c.b16 %v2517, %v2516
      %v2539 = vpack.c.b16 %v2519, %v2518
      %v2540 = vpack.c.b16 %v2521, %v2520
      %v2541 = vpack.c.b16 %v2523, %v2522
      %v2542 = vpack.c.b16 %v2525, %v2524
      %v2543 = vpack.c.b16 %v2527, %v2526
      %v2576 = vunpack.c.l.b16 %v2480
      %v2577 = vunpack.c.l.b16 %v2481
      %v2578 = vunpack.c.l.b16 %v2482
      %v2579 = vunpack.c.l.b16 %v2483
      %v2580 = vunpack.c.l.b16 %v2484
      %v2581 = vunpack.c.l.b16 %v2485
      %v2582 = vunpack.c.l.b16 %v2486
      %v2583 = vunpack.c.l.b16 %v2487
      %v2584 = vunpack.c.l.b16 %v2488
      %v2585 = vunpack.c.l.b16 %v2489
      %v2586 = vunpack.c.l.b16 %v2490
      %v2587 = vunpack.c.l.b16 %v2491
      %v2588 = vunpack.c.l.b16 %v2492
      %v2589 = vunpack.c.l.b16 %v2493
      %v2590 = vunpack.c.l.b16 %v2494
      %v2591 = vunpack.c.l.b16 %v2495
      %v2592 = vpack.c.b16 %v2577, %v2576
      %v2593 = vpack.c.b16 %v2579, %v2578
      %v2594 = vpack.c.b16 %v2581, %v2580
      %v2595 = vpack.c.b16 %v2583, %v2582
      %v2596 = vpack.c.b16 %v2585, %v2584
      %v2597 = vpack.c.b16 %v2587, %v2586
      %v2598 = vpack.c.b16 %v2589, %v2588
      %v2599 = vpack.c.b16 %v2591, %v2590
      %2608 = vmatpush.bf16.msra.mxu0 %v2599
      %2609 = vmatpush.bf16.msra.mxu0 %v2598
      %2610 = vmatpush.bf16.msra.mxu0 %v2597
      %2611 = vmatpush.bf16.msra.mxu0 %v2596
      %2612 = vmatpush.bf16.msra.mxu0 %v2595
      %2613 = vmatpush.bf16.msra.mxu0 %v2594
      %2614 = vmatpush.bf16.msra.mxu0 %v2593
      %2615 = vmatpush.bf16.msra.mxu0 %v2592
      %2616 = vmatmul.bf16.gmra.mxu0 %v2528
      %v2617 = vpop.f32.mrf.mxu0
      %v2618 = vadd.f32 0.0, %v2617
      %v2619 = vpop.f32.mrf.mxu0
      %v2620 = vadd.f32 0.0, %v2619
      %2621 = vmatmul.bf16.gmra.mxu0 %v2529
      %v2622 = vpop.f32.mrf.mxu0
      %v2623 = vadd.f32 0.0, %v2622
      %v2624 = vpop.f32.mrf.mxu0
      %v2625 = vadd.f32 0.0, %v2624
      %2626 = vmatmul.bf16.gmra.mxu0 %v2530
      %v2627 = vpop.f32.mrf.mxu0
      %v2628 = vadd.f32 0.0, %v2627
      %v2629 = vpop.f32.mrf.mxu0
      %v2630 = vadd.f32 0.0, %v2629
      %2631 = vmatmul.bf16.gmra.mxu0 %v2531
      %v2632 = vpop.f32.mrf.mxu0
      %v2633 = vadd.f32 0.0, %v2632
      %v2634 = vpop.f32.mrf.mxu0
      %v2635 = vadd.f32 0.0, %v2634
      %2636 = vmatmul.bf16.gmra.mxu0 %v2532
      %v2637 = vpop.f32.mrf.mxu0
      %v2638 = vadd.f32 0.0, %v2637
      %v2639 = vpop.f32.mrf.mxu0
      %v2640 = vadd.f32 0.0, %v2639
      %2641 = vmatmul.bf16.gmra.mxu0 %v2533
      %v2642 = vpop.f32.mrf.mxu0
      %v2643 = vadd.f32 0.0, %v2642
      %v2644 = vpop.f32.mrf.mxu0
      %v2645 = vadd.f32 0.0, %v2644
      %2646 = vmatmul.bf16.gmra.mxu0 %v2534
      %v2647 = vpop.f32.mrf.mxu0
      %v2648 = vadd.f32 0.0, %v2647
      %v2649 = vpop.f32.mrf.mxu0
      %v2650 = vadd.f32 0.0, %v2649
      %2651 = vmatmul.bf16.gmra.mxu0 %v2535
      %v2652 = vpop.f32.mrf.mxu0
      %v2653 = vadd.f32 0.0, %v2652
      %v2654 = vpop.f32.mrf.mxu0
      %v2655 = vadd.f32 0.0, %v2654
      %2656 = vmatmul.bf16.gmra.mxu0 %v2536
      %v2657 = vpop.f32.mrf.mxu0
      %v2658 = vadd.f32 0.0, %v2657
      %v2659 = vpop.f32.mrf.mxu0
      %v2660 = vadd.f32 0.0, %v2659
      %2661 = vmatmul.bf16.gmra.mxu0 %v2537
      %v2662 = vpop.f32.mrf.mxu0
      %v2663 = vadd.f32 0.0, %v2662
      %v2664 = vpop.f32.mrf.mxu0
      %v2665 = vadd.f32 0.0, %v2664
      %2666 = vmatmul.bf16.gmra.mxu0 %v2538
      %v2667 = vpop.f32.mrf.mxu0
      %v2668 = vadd.f32 0.0, %v2667
      %v2669 = vpop.f32.mrf.mxu0
      %v2670 = vadd.f32 0.0, %v2669
      %2671 = vmatmul.bf16.gmra.mxu0 %v2539
      %v2672 = vpop.f32.mrf.mxu0
      %v2673 = vadd.f32 0.0, %v2672
      %v2674 = vpop.f32.mrf.mxu0
      %v2675 = vadd.f32 0.0, %v2674
      %2676 = vmatmul.bf16.gmra.mxu0 %v2540
      %v2677 = vpop.f32.mrf.mxu0
      %v2678 = vadd.f32 0.0, %v2677
      %v2679 = vpop.f32.mrf.mxu0
      %v2680 = vadd.f32 0.0, %v2679
      %2681 = vmatmul.bf16.gmra.mxu0 %v2541
      %v2682 = vpop.f32.mrf.mxu0
      %v2683 = vadd.f32 0.0, %v2682
      %v2684 = vpop.f32.mrf.mxu0
      %v2685 = vadd.f32 0.0, %v2684
      %2686 = vmatmul.bf16.gmra.mxu0 %v2542
      %v2687 = vpop.f32.mrf.mxu0
      %v2688 = vadd.f32 0.0, %v2687
      %v2689 = vpop.f32.mrf.mxu0
      %v2690 = vadd.f32 0.0, %v2689
      %2691 = vmatmul.bf16.gmra.mxu0 %v2543
      %v2692 = vpop.f32.mrf.mxu0
      %v2693 = vadd.f32 0.0, %v2692
      %v2694 = vpop.f32.mrf.mxu0
      %v2695 = vadd.f32 0.0, %v2694
      %2696 = vdwg.mxu0
      %v2697 = vadd.f32 %v2237, %v2618
      %v2698 = vadd.f32 %v2239, %v2620
      %v2699 = vadd.f32 %v2242, %v2623
      %v2700 = vadd.f32 %v2244, %v2625
      %v2701 = vadd.f32 %v2247, %v2628
      %v2702 = vadd.f32 %v2249, %v2630
      %v2703 = vadd.f32 %v2252, %v2633
      %v2704 = vadd.f32 %v2254, %v2635
      %v2705 = vadd.f32 %v2257, %v2638
      %v2706 = vadd.f32 %v2259, %v2640
      %v2707 = vadd.f32 %v2262, %v2643
      %v2708 = vadd.f32 %v2264, %v2645
      %v2709 = vadd.f32 %v2267, %v2648
      %v2710 = vadd.f32 %v2269, %v2650
      %v2711 = vadd.f32 %v2272, %v2653
      %v2712 = vadd.f32 %v2274, %v2655
      %v2713 = vadd.f32 %v2277, %v2658
      %v2714 = vadd.f32 %v2279, %v2660
      %v2715 = vadd.f32 %v2282, %v2663
      %v2716 = vadd.f32 %v2284, %v2665
      %v2717 = vadd.f32 %v2287, %v2668
      %v2718 = vadd.f32 %v2289, %v2670
      %v2719 = vadd.f32 %v2292, %v2673
      %v2720 = vadd.f32 %v2294, %v2675
      %v2721 = vadd.f32 %v2297, %v2678
      %v2722 = vadd.f32 %v2299, %v2680
      %v2723 = vadd.f32 %v2302, %v2683
      %v2724 = vadd.f32 %v2304, %v2685
      %v2725 = vadd.f32 %v2307, %v2688
      %v2726 = vadd.f32 %v2309, %v2690
      %v2727 = vadd.f32 %v2312, %v2693
      %v2728 = vadd.f32 %v2314, %v2695
      %v2729 = vld [vmem:[%s1299] sm:$0xf]
      %v2730 = vld [vmem:[%s1299 + $0x4] sm:$0xf]
      %v2731 = vld [vmem:[%s1299 + $0xc] sm:$0xf]
      %v2732 = vld [vmem:[%s1299 + $0x10] sm:$0xf]
      %v2733 = vld [vmem:[%s1299 + $0x18] sm:$0xf]
      %v2734 = vld [vmem:[%s1299 + $0x1c] sm:$0xf]
      %v2735 = vld [vmem:[%s1299 + $0x24] sm:$0xf]
      %v2736 = vld [vmem:[%s1299 + $0x28] sm:$0xf]
      %v2737 = vld [vmem:[%s1299 + $0x30] sm:$0xf]
      %v2738 = vld [vmem:[%s1299 + $0x34] sm:$0xf]
      %v2739 = vld [vmem:[%s1299 + $0x3c] sm:$0xf]
      %v2740 = vld [vmem:[%s1299 + $0x40] sm:$0xf]
      %v2741 = vld [vmem:[%s1299 + $0x48] sm:$0xf]
      %v2742 = vld [vmem:[%s1299 + $0x4c] sm:$0xf]
      %v2743 = vld [vmem:[%s1299 + $0x54] sm:$0xf]
      %v2744 = vld [vmem:[%s1299 + $0x58] sm:$0xf]
      %v2745 = vld [vmem:[%s1299 + $0x60] sm:$0xf]
      %v2746 = vld [vmem:[%s1299 + $0x64] sm:$0xf]
      %v2747 = vld [vmem:[%s1299 + $0x6c] sm:$0xf]
      %v2748 = vld [vmem:[%s1299 + $0x70] sm:$0xf]
      %v2749 = vld [vmem:[%s1299 + $0x78] sm:$0xf]
      %v2750 = vld [vmem:[%s1299 + $0x7c] sm:$0xf]
      %v2751 = vld [vmem:[%s1299 + $0x84] sm:$0xf]
      %v2752 = vld [vmem:[%s1299 + $0x88] sm:$0xf]
      %v2753 = vld [vmem:[%s1299 + $0x90] sm:$0xf]
      %v2754 = vld [vmem:[%s1299 + $0x94] sm:$0xf]
      %v2755 = vld [vmem:[%s1299 + $0x9c] sm:$0xf]
      %v2756 = vld [vmem:[%s1299 + $0xa0] sm:$0xf]
      %v2757 = vld [vmem:[%s1299 + $0xa8] sm:$0xf]
      %v2758 = vld [vmem:[%s1299 + $0xac] sm:$0xf]
      %v2759 = vld [vmem:[%s1299 + $0xb4] sm:$0xf]
      %v2760 = vld [vmem:[%s1299 + $0xb8] sm:$0xf]
      %s2761 = scalar_lea.vmem %s4, 192
      %v2762 = vld [vmem:[%s2761] sm:$0xf]
      %v2763 = vld [vmem:[%s2761 + $0x4] sm:$0xf]
      %v2764 = vld [vmem:[%s2761 + $0x8] sm:$0xf]
      %v2765 = vld [vmem:[%s2761 + $0xc] sm:$0xf]
      %v2766 = vld [vmem:[%s2761 + $0x10] sm:$0xf]
      %v2767 = vld [vmem:[%s2761 + $0x14] sm:$0xf]
      %v2768 = vld [vmem:[%s2761 + $0x18] sm:$0xf]
      %v2769 = vld [vmem:[%s2761 + $0x1c] sm:$0xf]
      %v2770 = vld [vmem:[%s2761 + $0x20] sm:$0xf]
      %v2771 = vld [vmem:[%s2761 + $0x24] sm:$0xf]
      %v2772 = vld [vmem:[%s2761 + $0x28] sm:$0xf]
      %v2773 = vld [vmem:[%s2761 + $0x2c] sm:$0xf]
      %v2774 = vld [vmem:[%s2761 + $0x30] sm:$0xf]
      %v2775 = vld [vmem:[%s2761 + $0x34] sm:$0xf]
      %v2776 = vld [vmem:[%s2761 + $0x38] sm:$0xf]
      %v2777 = vld [vmem:[%s2761 + $0x3c] sm:$0xf]
      %v2810 = vunpack.c.l.b16 %v2729
      %v2811 = vunpack.c.l.b16 %v2730
      %v2812 = vunpack.c.l.b16 %v2731
      %v2813 = vunpack.c.l.b16 %v2732
      %v2814 = vunpack.c.l.b16 %v2733
      %v2815 = vunpack.c.l.b16 %v2734
      %v2816 = vunpack.c.l.b16 %v2735
      %v2817 = vunpack.c.l.b16 %v2736
      %v2818 = vunpack.c.l.b16 %v2737
      %v2819 = vunpack.c.l.b16 %v2738
      %v2820 = vunpack.c.l.b16 %v2739
      %v2821 = vunpack.c.l.b16 %v2740
      %v2822 = vunpack.c.l.b16 %v2741
      %v2823 = vunpack.c.l.b16 %v2742
      %v2824 = vunpack.c.l.b16 %v2743
      %v2825 = vunpack.c.l.b16 %v2744
      %v2826 = vunpack.c.l.b16 %v2745
      %v2827 = vunpack.c.l.b16 %v2746
      %v2828 = vunpack.c.l.b16 %v2747
      %v2829 = vunpack.c.l.b16 %v2748
      %v2830 = vunpack.c.l.b16 %v2749
      %v2831 = vunpack.c.l.b16 %v2750
      %v2832 = vunpack.c.l.b16 %v2751
      %v2833 = vunpack.c.l.b16 %v2752
      %v2834 = vunpack.c.l.b16 %v2753
      %v2835 = vunpack.c.l.b16 %v2754
      %v2836 = vunpack.c.l.b16 %v2755
      %v2837 = vunpack.c.l.b16 %v2756
      %v2838 = vunpack.c.l.b16 %v2757
      %v2839 = vunpack.c.l.b16 %v2758
      %v2840 = vunpack.c.l.b16 %v2759
      %v2841 = vunpack.c.l.b16 %v2760
      %v2842 = vpack.c.b16 %v2811, %v2810
      %v2843 = vpack.c.b16 %v2813, %v2812
      %v2844 = vpack.c.b16 %v2815, %v2814
      %v2845 = vpack.c.b16 %v2817, %v2816
      %v2846 = vpack.c.b16 %v2819, %v2818
      %v2847 = vpack.c.b16 %v2821, %v2820
      %v2848 = vpack.c.b16 %v2823, %v2822
      %v2849 = vpack.c.b16 %v2825, %v2824
      %v2850 = vpack.c.b16 %v2827, %v2826
      %v2851 = vpack.c.b16 %v2829, %v2828
      %v2852 = vpack.c.b16 %v2831, %v2830
      %v2853 = vpack.c.b16 %v2833, %v2832
      %v2854 = vpack.c.b16 %v2835, %v2834
      %v2855 = vpack.c.b16 %v2837, %v2836
      %v2856 = vpack.c.b16 %v2839, %v2838
      %v2857 = vpack.c.b16 %v2841, %v2840
      %v2890 = vunpack.c.l.b16 %v2762
      %v2891 = vunpack.c.l.b16 %v2763
      %v2892 = vunpack.c.l.b16 %v2764
      %v2893 = vunpack.c.l.b16 %v2765
      %v2894 = vunpack.c.l.b16 %v2766
      %v2895 = vunpack.c.l.b16 %v2767
      %v2896 = vunpack.c.l.b16 %v2768
      %v2897 = vunpack.c.l.b16 %v2769
      %v2898 = vunpack.c.l.b16 %v2770
      %v2899 = vunpack.c.l.b16 %v2771
      %v2900 = vunpack.c.l.b16 %v2772
      %v2901 = vunpack.c.l.b16 %v2773
      %v2902 = vunpack.c.l.b16 %v2774
      %v2903 = vunpack.c.l.b16 %v2775
      %v2904 = vunpack.c.l.b16 %v2776
      %v2905 = vunpack.c.l.b16 %v2777
      %v2906 = vpack.c.b16 %v2891, %v2890
      %v2907 = vpack.c.b16 %v2893, %v2892
      %v2908 = vpack.c.b16 %v2895, %v2894
      %v2909 = vpack.c.b16 %v2897, %v2896
      %v2910 = vpack.c.b16 %v2899, %v2898
      %v2911 = vpack.c.b16 %v2901, %v2900
      %v2912 = vpack.c.b16 %v2903, %v2902
      %v2913 = vpack.c.b16 %v2905, %v2904
      %2922 = vmatpush.bf16.msra.mxu0 %v2913
      %2923 = vmatpush.bf16.msra.mxu0 %v2912
      %2924 = vmatpush.bf16.msra.mxu0 %v2911
      %2925 = vmatpush.bf16.msra.mxu0 %v2910
      %2926 = vmatpush.bf16.msra.mxu0 %v2909
      %2927 = vmatpush.bf16.msra.mxu0 %v2908
      %2928 = vmatpush.bf16.msra.mxu0 %v2907
      %2929 = vmatpush.bf16.msra.mxu0 %v2906
      %2930 = vmatmul.bf16.gmra.mxu0 %v2842
      %v2931 = vpop.f32.mrf.mxu0
      %v2932 = vadd.f32 0.0, %v2931
      %v2933 = vpop.f32.mrf.mxu0
      %v2934 = vadd.f32 0.0, %v2933
      %2935 = vmatmul.bf16.gmra.mxu0 %v2843
      %v2936 = vpop.f32.mrf.mxu0
      %v2937 = vadd.f32 0.0, %v2936
      %v2938 = vpop.f32.mrf.mxu0
      %v2939 = vadd.f32 0.0, %v2938
      %2940 = vmatmul.bf16.gmra.mxu0 %v2844
      %v2941 = vpop.f32.mrf.mxu0
      %v2942 = vadd.f32 0.0, %v2941
      %v2943 = vpop.f32.mrf.mxu0
      %v2944 = vadd.f32 0.0, %v2943
      %2945 = vmatmul.bf16.gmra.mxu0 %v2845
      %v2946 = vpop.f32.mrf.mxu0
      %v2947 = vadd.f32 0.0, %v2946
      %v2948 = vpop.f32.mrf.mxu0
      %v2949 = vadd.f32 0.0, %v2948
      %2950 = vmatmul.bf16.gmra.mxu0 %v2846
      %v2951 = vpop.f32.mrf.mxu0
      %v2952 = vadd.f32 0.0, %v2951
      %v2953 = vpop.f32.mrf.mxu0
      %v2954 = vadd.f32 0.0, %v2953
      %2955 = vmatmul.bf16.gmra.mxu0 %v2847
      %v2956 = vpop.f32.mrf.mxu0
      %v2957 = vadd.f32 0.0, %v2956
      %v2958 = vpop.f32.mrf.mxu0
      %v2959 = vadd.f32 0.0, %v2958
      %2960 = vmatmul.bf16.gmra.mxu0 %v2848
      %v2961 = vpop.f32.mrf.mxu0
      %v2962 = vadd.f32 0.0, %v2961
      %v2963 = vpop.f32.mrf.mxu0
      %v2964 = vadd.f32 0.0, %v2963
      %2965 = vmatmul.bf16.gmra.mxu0 %v2849
      %v2966 = vpop.f32.mrf.mxu0
      %v2967 = vadd.f32 0.0, %v2966
      %v2968 = vpop.f32.mrf.mxu0
      %v2969 = vadd.f32 0.0, %v2968
      %2970 = vmatmul.bf16.gmra.mxu0 %v2850
      %v2971 = vpop.f32.mrf.mxu0
      %v2972 = vadd.f32 0.0, %v2971
      %v2973 = vpop.f32.mrf.mxu0
      %v2974 = vadd.f32 0.0, %v2973
      %2975 = vmatmul.bf16.gmra.mxu0 %v2851
      %v2976 = vpop.f32.mrf.mxu0
      %v2977 = vadd.f32 0.0, %v2976
      %v2978 = vpop.f32.mrf.mxu0
      %v2979 = vadd.f32 0.0, %v2978
      %2980 = vmatmul.bf16.gmra.mxu0 %v2852
      %v2981 = vpop.f32.mrf.mxu0
      %v2982 = vadd.f32 0.0, %v2981
      %v2983 = vpop.f32.mrf.mxu0
      %v2984 = vadd.f32 0.0, %v2983
      %2985 = vmatmul.bf16.gmra.mxu0 %v2853
      %v2986 = vpop.f32.mrf.mxu0
      %v2987 = vadd.f32 0.0, %v2986
      %v2988 = vpop.f32.mrf.mxu0
      %v2989 = vadd.f32 0.0, %v2988
      %2990 = vmatmul.bf16.gmra.mxu0 %v2854
      %v2991 = vpop.f32.mrf.mxu0
      %v2992 = vadd.f32 0.0, %v2991
      %v2993 = vpop.f32.mrf.mxu0
      %v2994 = vadd.f32 0.0, %v2993
      %2995 = vmatmul.bf16.gmra.mxu0 %v2855
      %v2996 = vpop.f32.mrf.mxu0
      %v2997 = vadd.f32 0.0, %v2996
      %v2998 = vpop.f32.mrf.mxu0
      %v2999 = vadd.f32 0.0, %v2998
      %3000 = vmatmul.bf16.gmra.mxu0 %v2856
      %v3001 = vpop.f32.mrf.mxu0
      %v3002 = vadd.f32 0.0, %v3001
      %v3003 = vpop.f32.mrf.mxu0
      %v3004 = vadd.f32 0.0, %v3003
      %3005 = vmatmul.bf16.gmra.mxu0 %v2857
      %v3006 = vpop.f32.mrf.mxu0
      %v3007 = vadd.f32 0.0, %v3006
      %v3008 = vpop.f32.mrf.mxu0
      %v3009 = vadd.f32 0.0, %v3008
      %3010 = vdwg.mxu0
      %v3011 = vadd.f32 %v2697, %v2932
      %v3012 = vadd.f32 %v2698, %v2934
      %v3013 = vadd.f32 %v2699, %v2937
      %v3014 = vadd.f32 %v2700, %v2939
      %v3015 = vadd.f32 %v2701, %v2942
      %v3016 = vadd.f32 %v2702, %v2944
      %v3017 = vadd.f32 %v2703, %v2947
      %v3018 = vadd.f32 %v2704, %v2949
      %v3019 = vadd.f32 %v2705, %v2952
      %v3020 = vadd.f32 %v2706, %v2954
      %v3021 = vadd.f32 %v2707, %v2957
      %v3022 = vadd.f32 %v2708, %v2959
      %v3023 = vadd.f32 %v2709, %v2962
      %v3024 = vadd.f32 %v2710, %v2964
      %v3025 = vadd.f32 %v2711, %v2967
      %v3026 = vadd.f32 %v2712, %v2969
      %v3027 = vadd.f32 %v2713, %v2972
      %v3028 = vadd.f32 %v2714, %v2974
      %v3029 = vadd.f32 %v2715, %v2977
      %v3030 = vadd.f32 %v2716, %v2979
      %v3031 = vadd.f32 %v2717, %v2982
      %v3032 = vadd.f32 %v2718, %v2984
      %v3033 = vadd.f32 %v2719, %v2987
      %v3034 = vadd.f32 %v2720, %v2989
      %v3035 = vadd.f32 %v2721, %v2992
      %v3036 = vadd.f32 %v2722, %v2994
      %v3037 = vadd.f32 %v2723, %v2997
      %v3038 = vadd.f32 %v2724, %v2999
      %v3039 = vadd.f32 %v2725, %v3002
      %v3040 = vadd.f32 %v2726, %v3004
      %v3041 = vadd.f32 %v2727, %v3007
      %v3042 = vadd.f32 %v2728, %v3009
      %v3043 = vld [vmem:[%s1299] sm:$0xf]
      %v3044 = vld [vmem:[%s1299 + $0x4] sm:$0xf]
      %v3045 = vld [vmem:[%s1299 + $0x8] sm:$0x1]
      %v3046 = vld [vmem:[%s1299 + $0xc] sm:$0xf]
      %v3047 = vld [vmem:[%s1299 + $0x10] sm:$0xf]
      %v3048 = vld [vmem:[%s1299 + $0x14] sm:$0x1]
      %v3049 = vld [vmem:[%s1299 + $0x18] sm:$0xf]
      %v3050 = vld [vmem:[%s1299 + $0x1c] sm:$0xf]
      %v3051 = vld [vmem:[%s1299 + $0x20] sm:$0x1]
      %v3052 = vld [vmem:[%s1299 + $0x24] sm:$0xf]
      %v3053 = vld [vmem:[%s1299 + $0x28] sm:$0xf]
      %v3054 = vld [vmem:[%s1299 + $0x2c] sm:$0x1]
      %v3055 = vld [vmem:[%s1299 + $0x30] sm:$0xf]
      %v3056 = vld [vmem:[%s1299 + $0x34] sm:$0xf]
      %v3057 = vld [vmem:[%s1299 + $0x38] sm:$0x1]
      %v3058 = vld [vmem:[%s1299 + $0x3c] sm:$0xf]
      %v3059 = vld [vmem:[%s1299 + $0x40] sm:$0xf]
      %v3060 = vld [vmem:[%s1299 + $0x44] sm:$0x1]
      %v3061 = vld [vmem:[%s1299 + $0x48] sm:$0xf]
      %v3062 = vld [vmem:[%s1299 + $0x4c] sm:$0xf]
      %v3063 = vld [vmem:[%s1299 + $0x50] sm:$0x1]
      %v3064 = vld [vmem:[%s1299 + $0x54] sm:$0xf]
      %v3065 = vld [vmem:[%s1299 + $0x58] sm:$0xf]
      %v3066 = vld [vmem:[%s1299 + $0x5c] sm:$0x1]
      %v3067 = vld [vmem:[%s1299 + $0x60] sm:$0xf]
      %v3068 = vld [vmem:[%s1299 + $0x64] sm:$0xf]
      %v3069 = vld [vmem:[%s1299 + $0x68] sm:$0x1]
      %v3070 = vld [vmem:[%s1299 + $0x6c] sm:$0xf]
      %v3071 = vld [vmem:[%s1299 + $0x70] sm:$0xf]
      %v3072 = vld [vmem:[%s1299 + $0x74] sm:$0x1]
      %v3073 = vld [vmem:[%s1299 + $0x78] sm:$0xf]
      %v3074 = vld [vmem:[%s1299 + $0x7c] sm:$0xf]
      %v3075 = vld [vmem:[%s1299 + $0x80] sm:$0x1]
      %v3076 = vld [vmem:[%s1299 + $0x84] sm:$0xf]
      %v3077 = vld [vmem:[%s1299 + $0x88] sm:$0xf]
      %v3078 = vld [vmem:[%s1299 + $0x8c] sm:$0x1]
      %v3079 = vld [vmem:[%s1299 + $0x90] sm:$0xf]
      %v3080 = vld [vmem:[%s1299 + $0x94] sm:$0xf]
      %v3081 = vld [vmem:[%s1299 + $0x98] sm:$0x1]
      %v3082 = vld [vmem:[%s1299 + $0x9c] sm:$0xf]
      %v3083 = vld [vmem:[%s1299 + $0xa0] sm:$0xf]
      %v3084 = vld [vmem:[%s1299 + $0xa4] sm:$0x1]
      %v3085 = vld [vmem:[%s1299 + $0xa8] sm:$0xf]
      %v3086 = vld [vmem:[%s1299 + $0xac] sm:$0xf]
      %v3087 = vld [vmem:[%s1299 + $0xb0] sm:$0x1]
      %v3088 = vld [vmem:[%s1299 + $0xb4] sm:$0xf]
      %v3089 = vld [vmem:[%s1299 + $0xb8] sm:$0xf]
      %v3090 = vld [vmem:[%s1299 + $0xbc] sm:$0x1]
      %v3092 = vshrl.u32 %v3043, 16
      %v3094 = vrot.slane %v3092, 4
      %v3095 = vshll.u32 %v3043, 16
      %v3097 = vrot.slane %v3095, 5
      %v3098 = vor.u32 %v3094, %v3097
      %v3099 = vrot.slane %v3098, 4
      %v3101 = vshll.u32 %v3044, 16
      %v3103 = vrot.slane %v3101, 5
      %v3104 = vsel %vm1480, %v3099, %v3103
      %v3105 = vshrl.u32 %v3044, 16
      %v3107 = vrot.slane %v3105, 4
      %v3108 = vor.u32 %v3107, %v3103
      %v3109 = vrot.slane %v3108, 4
      %v3111 = vshll.u32 %v3045, 16
      %v3113 = vrot.slane %v3111, 5
      %v3114 = vsel %vm1480, %v3109, %v3113
      %v3116 = vshrl.u32 %v3046, 16
      %v3118 = vrot.slane %v3116, 4
      %v3119 = vshll.u32 %v3046, 16
      %v3121 = vrot.slane %v3119, 5
      %v3122 = vor.u32 %v3118, %v3121
      %v3123 = vrot.slane %v3122, 4
      %v3125 = vshll.u32 %v3047, 16
      %v3127 = vrot.slane %v3125, 5
      %v3128 = vsel %vm1480, %v3123, %v3127
      %v3129 = vshrl.u32 %v3047, 16
      %v3131 = vrot.slane %v3129, 4
      %v3132 = vor.u32 %v3131, %v3127
      %v3133 = vrot.slane %v3132, 4
      %v3135 = vshll.u32 %v3048, 16
      %v3137 = vrot.slane %v3135, 5
      %v3138 = vsel %vm1480, %v3133, %v3137
      %v3140 = vshrl.u32 %v3049, 16
      %v3142 = vrot.slane %v3140, 4
      %v3143 = vshll.u32 %v3049, 16
      %v3145 = vrot.slane %v3143, 5
      %v3146 = vor.u32 %v3142, %v3145
      %v3147 = vrot.slane %v3146, 4
      %v3149 = vshll.u32 %v3050, 16
      %v3151 = vrot.slane %v3149, 5
      %v3152 = vsel %vm1480, %v3147, %v3151
      %v3153 = vshrl.u32 %v3050, 16
      %v3155 = vrot.slane %v3153, 4
      %v3156 = vor.u32 %v3155, %v3151
      %v3157 = vrot.slane %v3156, 4
      %v3159 = vshll.u32 %v3051, 16
      %v3161 = vrot.slane %v3159, 5
      %v3162 = vsel %vm1480, %v3157, %v3161
      %v3164 = vshrl.u32 %v3052, 16
      %v3166 = vrot.slane %v3164, 4
      %v3167 = vshll.u32 %v3052, 16
      %v3169 = vrot.slane %v3167, 5
      %v3170 = vor.u32 %v3166, %v3169
      %v3171 = vrot.slane %v3170, 4
      %v3173 = vshll.u32 %v3053, 16
      %v3175 = vrot.slane %v3173, 5
      %v3176 = vsel %vm1480, %v3171, %v3175
      %v3177 = vshrl.u32 %v3053, 16
      %v3179 = vrot.slane %v3177, 4
      %v3180 = vor.u32 %v3179, %v3175
      %v3181 = vrot.slane %v3180, 4
      %v3183 = vshll.u32 %v3054, 16
      %v3185 = vrot.slane %v3183, 5
      %v3186 = vsel %vm1480, %v3181, %v3185
      %v3188 = vshrl.u32 %v3055, 16
      %v3190 = vrot.slane %v3188, 4
      %v3191 = vshll.u32 %v3055, 16
      %v3193 = vrot.slane %v3191, 5
      %v3194 = vor.u32 %v3190, %v3193
      %v3195 = vrot.slane %v3194, 4
      %v3197 = vshll.u32 %v3056, 16
      %v3199 = vrot.slane %v3197, 5
      %v3200 = vsel %vm1480, %v3195, %v3199
      %v3201 = vshrl.u32 %v3056, 16
      %v3203 = vrot.slane %v3201, 4
      %v3204 = vor.u32 %v3203, %v3199
      %v3205 = vrot.slane %v3204, 4
      %v3207 = vshll.u32 %v3057, 16
      %v3209 = vrot.slane %v3207, 5
      %v3210 = vsel %vm1480, %v3205, %v3209
      %v3212 = vshrl.u32 %v3058, 16
      %v3214 = vrot.slane %v3212, 4
      %v3215 = vshll.u32 %v3058, 16
      %v3217 = vrot.slane %v3215, 5
      %v3218 = vor.u32 %v3214, %v3217
      %v3219 = vrot.slane %v3218, 4
      %v3221 = vshll.u32 %v3059, 16
      %v3223 = vrot.slane %v3221, 5
      %v3224 = vsel %vm1480, %v3219, %v3223
      %v3225 = vshrl.u32 %v3059, 16
      %v3227 = vrot.slane %v3225, 4
      %v3228 = vor.u32 %v3227, %v3223
      %v3229 = vrot.slane %v3228, 4
      %v3231 = vshll.u32 %v3060, 16
      %v3233 = vrot.slane %v3231, 5
      %v3234 = vsel %vm1480, %v3229, %v3233
      %v3236 = vshrl.u32 %v3061, 16
      %v3238 = vrot.slane %v3236, 4
      %v3239 = vshll.u32 %v3061, 16
      %v3241 = vrot.slane %v3239, 5
      %v3242 = vor.u32 %v3238, %v3241
      %v3243 = vrot.slane %v3242, 4
      %v3245 = vshll.u32 %v3062, 16
      %v3247 = vrot.slane %v3245, 5
      %v3248 = vsel %vm1480, %v3243, %v3247
      %v3249 = vshrl.u32 %v3062, 16
      %v3251 = vrot.slane %v3249, 4
      %v3252 = vor.u32 %v3251, %v3247
      %v3253 = vrot.slane %v3252, 4
      %v3255 = vshll.u32 %v3063, 16
      %v3257 = vrot.slane %v3255, 5
      %v3258 = vsel %vm1480, %v3253, %v3257
      %v3260 = vshrl.u32 %v3064, 16
      %v3262 = vrot.slane %v3260, 4
      %v3263 = vshll.u32 %v3064, 16
      %v3265 = vrot.slane %v3263, 5
      %v3266 = vor.u32 %v3262, %v3265
      %v3267 = vrot.slane %v3266, 4
      %v3269 = vshll.u32 %v3065, 16
      %v3271 = vrot.slane %v3269, 5
      %v3272 = vsel %vm1480, %v3267, %v3271
      %v3273 = vshrl.u32 %v3065, 16
      %v3275 = vrot.slane %v3273, 4
      %v3276 = vor.u32 %v3275, %v3271
      %v3277 = vrot.slane %v3276, 4
      %v3279 = vshll.u32 %v3066, 16
      %v3281 = vrot.slane %v3279, 5
      %v3282 = vsel %vm1480, %v3277, %v3281
      %v3284 = vshrl.u32 %v3067, 16
      %v3286 = vrot.slane %v3284, 4
      %v3287 = vshll.u32 %v3067, 16
      %v3289 = vrot.slane %v3287, 5
      %v3290 = vor.u32 %v3286, %v3289
      %v3291 = vrot.slane %v3290, 4
      %v3293 = vshll.u32 %v3068, 16
      %v3295 = vrot.slane %v3293, 5
      %v3296 = vsel %vm1480, %v3291, %v3295
      %v3297 = vshrl.u32 %v3068, 16
      %v3299 = vrot.slane %v3297, 4
      %v3300 = vor.u32 %v3299, %v3295
      %v3301 = vrot.slane %v3300, 4
      %v3303 = vshll.u32 %v3069, 16
      %v3305 = vrot.slane %v3303, 5
      %v3306 = vsel %vm1480, %v3301, %v3305
      %v3308 = vshrl.u32 %v3070, 16
      %v3310 = vrot.slane %v3308, 4
      %v3311 = vshll.u32 %v3070, 16
      %v3313 = vrot.slane %v3311, 5
      %v3314 = vor.u32 %v3310, %v3313
      %v3315 = vrot.slane %v3314, 4
      %v3317 = vshll.u32 %v3071, 16
      %v3319 = vrot.slane %v3317, 5
      %v3320 = vsel %vm1480, %v3315, %v3319
      %v3321 = vshrl.u32 %v3071, 16
      %v3323 = vrot.slane %v3321, 4
      %v3324 = vor.u32 %v3323, %v3319
      %v3325 = vrot.slane %v3324, 4
      %v3327 = vshll.u32 %v3072, 16
      %v3329 = vrot.slane %v3327, 5
      %v3330 = vsel %vm1480, %v3325, %v3329
      %v3332 = vshrl.u32 %v3073, 16
      %v3334 = vrot.slane %v3332, 4
      %v3335 = vshll.u32 %v3073, 16
      %v3337 = vrot.slane %v3335, 5
      %v3338 = vor.u32 %v3334, %v3337
      %v3339 = vrot.slane %v3338, 4
      %v3341 = vshll.u32 %v3074, 16
      %v3343 = vrot.slane %v3341, 5
      %v3344 = vsel %vm1480, %v3339, %v3343
      %v3345 = vshrl.u32 %v3074, 16
      %v3347 = vrot.slane %v3345, 4
      %v3348 = vor.u32 %v3347, %v3343
      %v3349 = vrot.slane %v3348, 4
      %v3351 = vshll.u32 %v3075, 16
      %v3353 = vrot.slane %v3351, 5
      %v3354 = vsel %vm1480, %v3349, %v3353
      %v3356 = vshrl.u32 %v3076, 16
      %v3358 = vrot.slane %v3356, 4
      %v3359 = vshll.u32 %v3076, 16
      %v3361 = vrot.slane %v3359, 5
      %v3362 = vor.u32 %v3358, %v3361
      %v3363 = vrot.slane %v3362, 4
      %v3365 = vshll.u32 %v3077, 16
      %v3367 = vrot.slane %v3365, 5
      %v3368 = vsel %vm1480, %v3363, %v3367
      %v3369 = vshrl.u32 %v3077, 16
      %v3371 = vrot.slane %v3369, 4
      %v3372 = vor.u32 %v3371, %v3367
      %v3373 = vrot.slane %v3372, 4
      %v3375 = vshll.u32 %v3078, 16
      %v3377 = vrot.slane %v3375, 5
      %v3378 = vsel %vm1480, %v3373, %v3377
      %v3380 = vshrl.u32 %v3079, 16
      %v3382 = vrot.slane %v3380, 4
      %v3383 = vshll.u32 %v3079, 16
      %v3385 = vrot.slane %v3383, 5
      %v3386 = vor.u32 %v3382, %v3385
      %v3387 = vrot.slane %v3386, 4
      %v3389 = vshll.u32 %v3080, 16
      %v3391 = vrot.slane %v3389, 5
      %v3392 = vsel %vm1480, %v3387, %v3391
      %v3393 = vshrl.u32 %v3080, 16
      %v3395 = vrot.slane %v3393, 4
      %v3396 = vor.u32 %v3395, %v3391
      %v3397 = vrot.slane %v3396, 4
      %v3399 = vshll.u32 %v3081, 16
      %v3401 = vrot.slane %v3399, 5
      %v3402 = vsel %vm1480, %v3397, %v3401
      %v3404 = vshrl.u32 %v3082, 16
      %v3406 = vrot.slane %v3404, 4
      %v3407 = vshll.u32 %v3082, 16
      %v3409 = vrot.slane %v3407, 5
      %v3410 = vor.u32 %v3406, %v3409
      %v3411 = vrot.slane %v3410, 4
      %v3413 = vshll.u32 %v3083, 16
      %v3415 = vrot.slane %v3413, 5
      %v3416 = vsel %vm1480, %v3411, %v3415
      %v3417 = vshrl.u32 %v3083, 16
      %v3419 = vrot.slane %v3417, 4
      %v3420 = vor.u32 %v3419, %v3415
      %v3421 = vrot.slane %v3420, 4
      %v3423 = vshll.u32 %v3084, 16
      %v3425 = vrot.slane %v3423, 5
      %v3426 = vsel %vm1480, %v3421, %v3425
      %v3428 = vshrl.u32 %v3085, 16
      %v3430 = vrot.slane %v3428, 4
      %v3431 = vshll.u32 %v3085, 16
      %v3433 = vrot.slane %v3431, 5
      %v3434 = vor.u32 %v3430, %v3433
      %v3435 = vrot.slane %v3434, 4
      %v3437 = vshll.u32 %v3086, 16
      %v3439 = vrot.slane %v3437, 5
      %v3440 = vsel %vm1480, %v3435, %v3439
      %v3441 = vshrl.u32 %v3086, 16
      %v3443 = vrot.slane %v3441, 4
      %v3444 = vor.u32 %v3443, %v3439
      %v3445 = vrot.slane %v3444, 4
      %v3447 = vshll.u32 %v3087, 16
      %v3449 = vrot.slane %v3447, 5
      %v3450 = vsel %vm1480, %v3445, %v3449
      %v3452 = vshrl.u32 %v3088, 16
      %v3454 = vrot.slane %v3452, 4
      %v3455 = vshll.u32 %v3088, 16
      %v3457 = vrot.slane %v3455, 5
      %v3458 = vor.u32 %v3454, %v3457
      %v3459 = vrot.slane %v3458, 4
      %v3461 = vshll.u32 %v3089, 16
      %v3463 = vrot.slane %v3461, 5
      %v3464 = vsel %vm1480, %v3459, %v3463
      %v3465 = vshrl.u32 %v3089, 16
      %v3467 = vrot.slane %v3465, 4
      %v3468 = vor.u32 %v3467, %v3463
      %v3469 = vrot.slane %v3468, 4
      %v3471 = vshll.u32 %v3090, 16
      %v3473 = vrot.slane %v3471, 5
      %v3474 = vsel %vm1480, %v3469, %v3473
      %s3475 = scalar_lea.vmem %s4, 256
      %v3476 = vld [vmem:[%s3475] sm:$0xf]
      %v3477 = vld [vmem:[%s3475 + $0x4] sm:$0xf]
      %v3478 = vld [vmem:[%s3475 + $0x8] sm:$0xf]
      %v3479 = vld [vmem:[%s3475 + $0xc] sm:$0xf]
      %v3480 = vld [vmem:[%s3475 + $0x10] sm:$0xf]
      %v3481 = vld [vmem:[%s3475 + $0x14] sm:$0xf]
      %v3482 = vld [vmem:[%s3475 + $0x18] sm:$0xf]
      %v3483 = vld [vmem:[%s3475 + $0x1c] sm:$0xf]
      %v3484 = vld [vmem:[%s3475 + $0x20] sm:$0xf]
      %v3485 = vld [vmem:[%s3475 + $0x24] sm:$0xf]
      %v3486 = vld [vmem:[%s3475 + $0x28] sm:$0xf]
      %v3487 = vld [vmem:[%s3475 + $0x2c] sm:$0xf]
      %v3488 = vld [vmem:[%s3475 + $0x30] sm:$0xf]
      %v3489 = vld [vmem:[%s3475 + $0x34] sm:$0xf]
      %v3490 = vld [vmem:[%s3475 + $0x38] sm:$0xf]
      %v3491 = vld [vmem:[%s3475 + $0x3c] sm:$0xf]
      %v3492 = vunpack.c.l.b16 %v3104
      %v3493 = vunpack.c.l.b16 %v3114
      %v3494 = vunpack.c.l.b16 %v3128
      %v3495 = vunpack.c.l.b16 %v3138
      %v3496 = vunpack.c.l.b16 %v3152
      %v3497 = vunpack.c.l.b16 %v3162
      %v3498 = vunpack.c.l.b16 %v3176
      %v3499 = vunpack.c.l.b16 %v3186
      %v3500 = vunpack.c.l.b16 %v3200
      %v3501 = vunpack.c.l.b16 %v3210
      %v3502 = vunpack.c.l.b16 %v3224
      %v3503 = vunpack.c.l.b16 %v3234
      %v3504 = vunpack.c.l.b16 %v3248
      %v3505 = vunpack.c.l.b16 %v3258
      %v3506 = vunpack.c.l.b16 %v3272
      %v3507 = vunpack.c.l.b16 %v3282
      %v3508 = vunpack.c.l.b16 %v3296
      %v3509 = vunpack.c.l.b16 %v3306
      %v3510 = vunpack.c.l.b16 %v3320
      %v3511 = vunpack.c.l.b16 %v3330
      %v3512 = vunpack.c.l.b16 %v3344
      %v3513 = vunpack.c.l.b16 %v3354
      %v3514 = vunpack.c.l.b16 %v3368
      %v3515 = vunpack.c.l.b16 %v3378
      %v3516 = vunpack.c.l.b16 %v3392
      %v3517 = vunpack.c.l.b16 %v3402
      %v3518 = vunpack.c.l.b16 %v3416
      %v3519 = vunpack.c.l.b16 %v3426
      %v3520 = vunpack.c.l.b16 %v3440
      %v3521 = vunpack.c.l.b16 %v3450
      %v3522 = vunpack.c.l.b16 %v3464
      %v3523 = vunpack.c.l.b16 %v3474
      %v3524 = vpack.c.b16 %v3493, %v3492
      %v3525 = vpack.c.b16 %v3495, %v3494
      %v3526 = vpack.c.b16 %v3497, %v3496
      %v3527 = vpack.c.b16 %v3499, %v3498
      %v3528 = vpack.c.b16 %v3501, %v3500
      %v3529 = vpack.c.b16 %v3503, %v3502
      %v3530 = vpack.c.b16 %v3505, %v3504
      %v3531 = vpack.c.b16 %v3507, %v3506
      %v3532 = vpack.c.b16 %v3509, %v3508
      %v3533 = vpack.c.b16 %v3511, %v3510
      %v3534 = vpack.c.b16 %v3513, %v3512
      %v3535 = vpack.c.b16 %v3515, %v3514
      %v3536 = vpack.c.b16 %v3517, %v3516
      %v3537 = vpack.c.b16 %v3519, %v3518
      %v3538 = vpack.c.b16 %v3521, %v3520
      %v3539 = vpack.c.b16 %v3523, %v3522
      %v3572 = vunpack.c.l.b16 %v3476
      %v3573 = vunpack.c.l.b16 %v3477
      %v3574 = vunpack.c.l.b16 %v3478
      %v3575 = vunpack.c.l.b16 %v3479
      %v3576 = vunpack.c.l.b16 %v3480
      %v3577 = vunpack.c.l.b16 %v3481
      %v3578 = vunpack.c.l.b16 %v3482
      %v3579 = vunpack.c.l.b16 %v3483
      %v3580 = vunpack.c.l.b16 %v3484
      %v3581 = vunpack.c.l.b16 %v3485
      %v3582 = vunpack.c.l.b16 %v3486
      %v3583 = vunpack.c.l.b16 %v3487
      %v3584 = vunpack.c.l.b16 %v3488
      %v3585 = vunpack.c.l.b16 %v3489
      %v3586 = vunpack.c.l.b16 %v3490
      %v3587 = vunpack.c.l.b16 %v3491
      %v3588 = vpack.c.b16 %v3573, %v3572
      %v3589 = vpack.c.b16 %v3575, %v3574
      %v3590 = vpack.c.b16 %v3577, %v3576
      %v3591 = vpack.c.b16 %v3579, %v3578
      %v3592 = vpack.c.b16 %v3581, %v3580
      %v3593 = vpack.c.b16 %v3583, %v3582
      %v3594 = vpack.c.b16 %v3585, %v3584
      %v3595 = vpack.c.b16 %v3587, %v3586
      %3604 = vmatpush.bf16.msra.mxu0 %v3595
      %3605 = vmatpush.bf16.msra.mxu0 %v3594
      %3606 = vmatpush.bf16.msra.mxu0 %v3593
      %3607 = vmatpush.bf16.msra.mxu0 %v3592
      %3608 = vmatpush.bf16.msra.mxu0 %v3591
      %3609 = vmatpush.bf16.msra.mxu0 %v3590
      %3610 = vmatpush.bf16.msra.mxu0 %v3589
      %3611 = vmatpush.bf16.msra.mxu0 %v3588
      %3612 = vmatmul.bf16.gmra.mxu0 %v3524
      %v3613 = vpop.f32.mrf.mxu0
      %v3614 = vadd.f32 0.0, %v3613
      %v3615 = vpop.f32.mrf.mxu0
      %v3616 = vadd.f32 0.0, %v3615
      %3617 = vmatmul.bf16.gmra.mxu0 %v3525
      %v3618 = vpop.f32.mrf.mxu0
      %v3619 = vadd.f32 0.0, %v3618
      %v3620 = vpop.f32.mrf.mxu0
      %v3621 = vadd.f32 0.0, %v3620
      %3622 = vmatmul.bf16.gmra.mxu0 %v3526
      %v3623 = vpop.f32.mrf.mxu0
      %v3624 = vadd.f32 0.0, %v3623
      %v3625 = vpop.f32.mrf.mxu0
      %v3626 = vadd.f32 0.0, %v3625
      %3627 = vmatmul.bf16.gmra.mxu0 %v3527
      %v3628 = vpop.f32.mrf.mxu0
      %v3629 = vadd.f32 0.0, %v3628
      %v3630 = vpop.f32.mrf.mxu0
      %v3631 = vadd.f32 0.0, %v3630
      %3632 = vmatmul.bf16.gmra.mxu0 %v3528
      %v3633 = vpop.f32.mrf.mxu0
      %v3634 = vadd.f32 0.0, %v3633
      %v3635 = vpop.f32.mrf.mxu0
      %v3636 = vadd.f32 0.0, %v3635
      %3637 = vmatmul.bf16.gmra.mxu0 %v3529
      %v3638 = vpop.f32.mrf.mxu0
      %v3639 = vadd.f32 0.0, %v3638
      %v3640 = vpop.f32.mrf.mxu0
      %v3641 = vadd.f32 0.0, %v3640
      %3642 = vmatmul.bf16.gmra.mxu0 %v3530
      %v3643 = vpop.f32.mrf.mxu0
      %v3644 = vadd.f32 0.0, %v3643
      %v3645 = vpop.f32.mrf.mxu0
      %v3646 = vadd.f32 0.0, %v3645
      %3647 = vmatmul.bf16.gmra.mxu0 %v3531
      %v3648 = vpop.f32.mrf.mxu0
      %v3649 = vadd.f32 0.0, %v3648
      %v3650 = vpop.f32.mrf.mxu0
      %v3651 = vadd.f32 0.0, %v3650
      %3652 = vmatmul.bf16.gmra.mxu0 %v3532
      %v3653 = vpop.f32.mrf.mxu0
      %v3654 = vadd.f32 0.0, %v3653
      %v3655 = vpop.f32.mrf.mxu0
      %v3656 = vadd.f32 0.0, %v3655
      %3657 = vmatmul.bf16.gmra.mxu0 %v3533
      %v3658 = vpop.f32.mrf.mxu0
      %v3659 = vadd.f32 0.0, %v3658
      %v3660 = vpop.f32.mrf.mxu0
      %v3661 = vadd.f32 0.0, %v3660
      %3662 = vmatmul.bf16.gmra.mxu0 %v3534
      %v3663 = vpop.f32.mrf.mxu0
      %v3664 = vadd.f32 0.0, %v3663
      %v3665 = vpop.f32.mrf.mxu0
      %v3666 = vadd.f32 0.0, %v3665
      %3667 = vmatmul.bf16.gmra.mxu0 %v3535
      %v3668 = vpop.f32.mrf.mxu0
      %v3669 = vadd.f32 0.0, %v3668
      %v3670 = vpop.f32.mrf.mxu0
      %v3671 = vadd.f32 0.0, %v3670
      %3672 = vmatmul.bf16.gmra.mxu0 %v3536
      %v3673 = vpop.f32.mrf.mxu0
      %v3674 = vadd.f32 0.0, %v3673
      %v3675 = vpop.f32.mrf.mxu0
      %v3676 = vadd.f32 0.0, %v3675
      %3677 = vmatmul.bf16.gmra.mxu0 %v3537
      %v3678 = vpop.f32.mrf.mxu0
      %v3679 = vadd.f32 0.0, %v3678
      %v3680 = vpop.f32.mrf.mxu0
      %v3681 = vadd.f32 0.0, %v3680
      %3682 = vmatmul.bf16.gmra.mxu0 %v3538
      %v3683 = vpop.f32.mrf.mxu0
      %v3684 = vadd.f32 0.0, %v3683
      %v3685 = vpop.f32.mrf.mxu0
      %v3686 = vadd.f32 0.0, %v3685
      %3687 = vmatmul.bf16.gmra.mxu0 %v3539
      %v3688 = vpop.f32.mrf.mxu0
      %v3689 = vadd.f32 0.0, %v3688
      %v3690 = vpop.f32.mrf.mxu0
      %v3691 = vadd.f32 0.0, %v3690
      %3692 = vdwg.mxu0
      %v3693 = vadd.f32 %v3011, %v3614
      %v3694 = vadd.f32 %v3012, %v3616
      %v3695 = vadd.f32 %v3013, %v3619
      %v3696 = vadd.f32 %v3014, %v3621
      %v3697 = vadd.f32 %v3015, %v3624
      %v3698 = vadd.f32 %v3016, %v3626
      %v3699 = vadd.f32 %v3017, %v3629
      %v3700 = vadd.f32 %v3018, %v3631
      %v3701 = vadd.f32 %v3019, %v3634
      %v3702 = vadd.f32 %v3020, %v3636
      %v3703 = vadd.f32 %v3021, %v3639
      %v3704 = vadd.f32 %v3022, %v3641
      %v3705 = vadd.f32 %v3023, %v3644
      %v3706 = vadd.f32 %v3024, %v3646
      %v3707 = vadd.f32 %v3025, %v3649
      %v3708 = vadd.f32 %v3026, %v3651
      %v3709 = vadd.f32 %v3027, %v3654
      %v3710 = vadd.f32 %v3028, %v3656
      %v3711 = vadd.f32 %v3029, %v3659
      %v3712 = vadd.f32 %v3030, %v3661
      %v3713 = vadd.f32 %v3031, %v3664
      %v3714 = vadd.f32 %v3032, %v3666
      %v3715 = vadd.f32 %v3033, %v3669
      %v3716 = vadd.f32 %v3034, %v3671
      %v3717 = vadd.f32 %v3035, %v3674
      %v3718 = vadd.f32 %v3036, %v3676
      %v3719 = vadd.f32 %v3037, %v3679
      %v3720 = vadd.f32 %v3038, %v3681
      %v3721 = vadd.f32 %v3039, %v3684
      %v3722 = vadd.f32 %v3040, %v3686
      %v3723 = vadd.f32 %v3041, %v3689
      %v3724 = vadd.f32 %v3042, %v3691
      %v3725 = vld [vmem:[%s1299] sm:$0xe]
      %v3726 = vld [vmem:[%s1299 + $0xc] sm:$0xe]
      %v3727 = vld [vmem:[%s1299 + $0x18] sm:$0xe]
      %v3728 = vld [vmem:[%s1299 + $0x24] sm:$0xe]
      %v3729 = vld [vmem:[%s1299 + $0x30] sm:$0xe]
      %v3730 = vld [vmem:[%s1299 + $0x3c] sm:$0xe]
      %v3731 = vld [vmem:[%s1299 + $0x48] sm:$0xe]
      %v3732 = vld [vmem:[%s1299 + $0x54] sm:$0xe]
      %v3733 = vld [vmem:[%s1299 + $0x60] sm:$0xe]
      %v3734 = vld [vmem:[%s1299 + $0x6c] sm:$0xe]
      %v3735 = vld [vmem:[%s1299 + $0x78] sm:$0xe]
      %v3736 = vld [vmem:[%s1299 + $0x84] sm:$0xe]
      %v3737 = vld [vmem:[%s1299 + $0x90] sm:$0xe]
      %v3738 = vld [vmem:[%s1299 + $0x9c] sm:$0xe]
      %v3739 = vld [vmem:[%s1299 + $0xa8] sm:$0xe]
      %v3740 = vld [vmem:[%s1299 + $0xb4] sm:$0xe]
      %v3789 = vrot.slane %v3725, 5
      %v3790 = vrot.slane %v3789, 4
      %v3791 = vrot.slane %v3044, 5
      %v3792 = vsel %vm2366, %v3790, %v3791
      %v3793 = vrot.slane %v3791, 4
      %v3794 = vrot.slane %v3045, 5
      %v3795 = vsel %vm2366, %v3793, %v3794
      %v3796 = vrot.slane %v3726, 5
      %v3797 = vrot.slane %v3796, 4
      %v3798 = vrot.slane %v3047, 5
      %v3799 = vsel %vm2366, %v3797, %v3798
      %v3800 = vrot.slane %v3798, 4
      %v3801 = vrot.slane %v3048, 5
      %v3802 = vsel %vm2366, %v3800, %v3801
      %v3803 = vrot.slane %v3727, 5
      %v3804 = vrot.slane %v3803, 4
      %v3805 = vrot.slane %v3050, 5
      %v3806 = vsel %vm2366, %v3804, %v3805
      %v3807 = vrot.slane %v3805, 4
      %v3808 = vrot.slane %v3051, 5
      %v3809 = vsel %vm2366, %v3807, %v3808
      %v3810 = vrot.slane %v3728, 5
      %v3811 = vrot.slane %v3810, 4
      %v3812 = vrot.slane %v3053, 5
      %v3813 = vsel %vm2366, %v3811, %v3812
      %v3814 = vrot.slane %v3812, 4
      %v3815 = vrot.slane %v3054, 5
      %v3816 = vsel %vm2366, %v3814, %v3815
      %v3817 = vrot.slane %v3729, 5
      %v3818 = vrot.slane %v3817, 4
      %v3819 = vrot.slane %v3056, 5
      %v3820 = vsel %vm2366, %v3818, %v3819
      %v3821 = vrot.slane %v3819, 4
      %v3822 = vrot.slane %v3057, 5
      %v3823 = vsel %vm2366, %v3821, %v3822
      %v3824 = vrot.slane %v3730, 5
      %v3825 = vrot.slane %v3824, 4
      %v3826 = vrot.slane %v3059, 5
      %v3827 = vsel %vm2366, %v3825, %v3826
      %v3828 = vrot.slane %v3826, 4
      %v3829 = vrot.slane %v3060, 5
      %v3830 = vsel %vm2366, %v3828, %v3829
      %v3831 = vrot.slane %v3731, 5
      %v3832 = vrot.slane %v3831, 4
      %v3833 = vrot.slane %v3062, 5
      %v3834 = vsel %vm2366, %v3832, %v3833
      %v3835 = vrot.slane %v3833, 4
      %v3836 = vrot.slane %v3063, 5
      %v3837 = vsel %vm2366, %v3835, %v3836
      %v3838 = vrot.slane %v3732, 5
      %v3839 = vrot.slane %v3838, 4
      %v3840 = vrot.slane %v3065, 5
      %v3841 = vsel %vm2366, %v3839, %v3840
      %v3842 = vrot.slane %v3840, 4
      %v3843 = vrot.slane %v3066, 5
      %v3844 = vsel %vm2366, %v3842, %v3843
      %v3845 = vrot.slane %v3733, 5
      %v3846 = vrot.slane %v3845, 4
      %v3847 = vrot.slane %v3068, 5
      %v3848 = vsel %vm2366, %v3846, %v3847
      %v3849 = vrot.slane %v3847, 4
      %v3850 = vrot.slane %v3069, 5
      %v3851 = vsel %vm2366, %v3849, %v3850
      %v3852 = vrot.slane %v3734, 5
      %v3853 = vrot.slane %v3852, 4
      %v3854 = vrot.slane %v3071, 5
      %v3855 = vsel %vm2366, %v3853, %v3854
      %v3856 = vrot.slane %v3854, 4
      %v3857 = vrot.slane %v3072, 5
      %v3858 = vsel %vm2366, %v3856, %v3857
      %v3859 = vrot.slane %v3735, 5
      %v3860 = vrot.slane %v3859, 4
      %v3861 = vrot.slane %v3074, 5
      %v3862 = vsel %vm2366, %v3860, %v3861
      %v3863 = vrot.slane %v3861, 4
      %v3864 = vrot.slane %v3075, 5
      %v3865 = vsel %vm2366, %v3863, %v3864
      %v3866 = vrot.slane %v3736, 5
      %v3867 = vrot.slane %v3866, 4
      %v3868 = vrot.slane %v3077, 5
      %v3869 = vsel %vm2366, %v3867, %v3868
      %v3870 = vrot.slane %v3868, 4
      %v3871 = vrot.slane %v3078, 5
      %v3872 = vsel %vm2366, %v3870, %v3871
      %v3873 = vrot.slane %v3737, 5
      %v3874 = vrot.slane %v3873, 4
      %v3875 = vrot.slane %v3080, 5
      %v3876 = vsel %vm2366, %v3874, %v3875
      %v3877 = vrot.slane %v3875, 4
      %v3878 = vrot.slane %v3081, 5
      %v3879 = vsel %vm2366, %v3877, %v3878
      %v3880 = vrot.slane %v3738, 5
      %v3881 = vrot.slane %v3880, 4
      %v3882 = vrot.slane %v3083, 5
      %v3883 = vsel %vm2366, %v3881, %v3882
      %v3884 = vrot.slane %v3882, 4
      %v3885 = vrot.slane %v3084, 5
      %v3886 = vsel %vm2366, %v3884, %v3885
      %v3887 = vrot.slane %v3739, 5
      %v3888 = vrot.slane %v3887, 4
      %v3889 = vrot.slane %v3086, 5
      %v3890 = vsel %vm2366, %v3888, %v3889
      %v3891 = vrot.slane %v3889, 4
      %v3892 = vrot.slane %v3087, 5
      %v3893 = vsel %vm2366, %v3891, %v3892
      %v3894 = vrot.slane %v3740, 5
      %v3895 = vrot.slane %v3894, 4
      %v3896 = vrot.slane %v3089, 5
      %v3897 = vsel %vm2366, %v3895, %v3896
      %v3898 = vrot.slane %v3896, 4
      %v3899 = vrot.slane %v3090, 5
      %v3900 = vsel %vm2366, %v3898, %v3899
      %s3901 = scalar_lea.vmem %s4, 320
      %v3902 = vld [vmem:[%s3901] sm:$0xf]
      %v3903 = vld [vmem:[%s3901 + $0x4] sm:$0xf]
      %v3904 = vld [vmem:[%s3901 + $0x8] sm:$0xf]
      %v3905 = vld [vmem:[%s3901 + $0xc] sm:$0xf]
      %v3906 = vld [vmem:[%s3901 + $0x10] sm:$0xf]
      %v3907 = vld [vmem:[%s3901 + $0x14] sm:$0xf]
      %v3908 = vld [vmem:[%s3901 + $0x18] sm:$0xf]
      %v3909 = vld [vmem:[%s3901 + $0x1c] sm:$0xf]
      %v3910 = vld [vmem:[%s3901 + $0x20] sm:$0xf]
      %v3911 = vld [vmem:[%s3901 + $0x24] sm:$0xf]
      %v3912 = vld [vmem:[%s3901 + $0x28] sm:$0xf]
      %v3913 = vld [vmem:[%s3901 + $0x2c] sm:$0xf]
      %v3914 = vld [vmem:[%s3901 + $0x30] sm:$0xf]
      %v3915 = vld [vmem:[%s3901 + $0x34] sm:$0xf]
      %v3916 = vld [vmem:[%s3901 + $0x38] sm:$0xf]
      %v3917 = vld [vmem:[%s3901 + $0x3c] sm:$0xf]
      %v3918 = vunpack.c.l.b16 %v3792
      %v3919 = vunpack.c.l.b16 %v3795
      %v3920 = vunpack.c.l.b16 %v3799
      %v3921 = vunpack.c.l.b16 %v3802
      %v3922 = vunpack.c.l.b16 %v3806
      %v3923 = vunpack.c.l.b16 %v3809
      %v3924 = vunpack.c.l.b16 %v3813
      %v3925 = vunpack.c.l.b16 %v3816
      %v3926 = vunpack.c.l.b16 %v3820
      %v3927 = vunpack.c.l.b16 %v3823
      %v3928 = vunpack.c.l.b16 %v3827
      %v3929 = vunpack.c.l.b16 %v3830
      %v3930 = vunpack.c.l.b16 %v3834
      %v3931 = vunpack.c.l.b16 %v3837
      %v3932 = vunpack.c.l.b16 %v3841
      %v3933 = vunpack.c.l.b16 %v3844
      %v3934 = vunpack.c.l.b16 %v3848
      %v3935 = vunpack.c.l.b16 %v3851
      %v3936 = vunpack.c.l.b16 %v3855
      %v3937 = vunpack.c.l.b16 %v3858
      %v3938 = vunpack.c.l.b16 %v3862
      %v3939 = vunpack.c.l.b16 %v3865
      %v3940 = vunpack.c.l.b16 %v3869
      %v3941 = vunpack.c.l.b16 %v3872
      %v3942 = vunpack.c.l.b16 %v3876
      %v3943 = vunpack.c.l.b16 %v3879
      %v3944 = vunpack.c.l.b16 %v3883
      %v3945 = vunpack.c.l.b16 %v3886
      %v3946 = vunpack.c.l.b16 %v3890
      %v3947 = vunpack.c.l.b16 %v3893
      %v3948 = vunpack.c.l.b16 %v3897
      %v3949 = vunpack.c.l.b16 %v3900
      %v3950 = vpack.c.b16 %v3919, %v3918
      %v3951 = vpack.c.b16 %v3921, %v3920
      %v3952 = vpack.c.b16 %v3923, %v3922
      %v3953 = vpack.c.b16 %v3925, %v3924
      %v3954 = vpack.c.b16 %v3927, %v3926
      %v3955 = vpack.c.b16 %v3929, %v3928
      %v3956 = vpack.c.b16 %v3931, %v3930
      %v3957 = vpack.c.b16 %v3933, %v3932
      %v3958 = vpack.c.b16 %v3935, %v3934
      %v3959 = vpack.c.b16 %v3937, %v3936
      %v3960 = vpack.c.b16 %v3939, %v3938
      %v3961 = vpack.c.b16 %v3941, %v3940
      %v3962 = vpack.c.b16 %v3943, %v3942
      %v3963 = vpack.c.b16 %v3945, %v3944
      %v3964 = vpack.c.b16 %v3947, %v3946
      %v3965 = vpack.c.b16 %v3949, %v3948
      %v3998 = vunpack.c.l.b16 %v3902
      %v3999 = vunpack.c.l.b16 %v3903
      %v4000 = vunpack.c.l.b16 %v3904
      %v4001 = vunpack.c.l.b16 %v3905
      %v4002 = vunpack.c.l.b16 %v3906
      %v4003 = vunpack.c.l.b16 %v3907
      %v4004 = vunpack.c.l.b16 %v3908
      %v4005 = vunpack.c.l.b16 %v3909
      %v4006 = vunpack.c.l.b16 %v3910
      %v4007 = vunpack.c.l.b16 %v3911
      %v4008 = vunpack.c.l.b16 %v3912
      %v4009 = vunpack.c.l.b16 %v3913
      %v4010 = vunpack.c.l.b16 %v3914
      %v4011 = vunpack.c.l.b16 %v3915
      %v4012 = vunpack.c.l.b16 %v3916
      %v4013 = vunpack.c.l.b16 %v3917
      %v4014 = vpack.c.b16 %v3999, %v3998
      %v4015 = vpack.c.b16 %v4001, %v4000
      %v4016 = vpack.c.b16 %v4003, %v4002
      %v4017 = vpack.c.b16 %v4005, %v4004
      %v4018 = vpack.c.b16 %v4007, %v4006
      %v4019 = vpack.c.b16 %v4009, %v4008
      %v4020 = vpack.c.b16 %v4011, %v4010
      %v4021 = vpack.c.b16 %v4013, %v4012
      %4030 = vmatpush.bf16.msra.mxu0 %v4021
      %4031 = vmatpush.bf16.msra.mxu0 %v4020
      %4032 = vmatpush.bf16.msra.mxu0 %v4019
      %4033 = vmatpush.bf16.msra.mxu0 %v4018
      %4034 = vmatpush.bf16.msra.mxu0 %v4017
      %4035 = vmatpush.bf16.msra.mxu0 %v4016
      %4036 = vmatpush.bf16.msra.mxu0 %v4015
      %4037 = vmatpush.bf16.msra.mxu0 %v4014
      %4038 = vmatmul.bf16.gmra.mxu0 %v3950
      %v4039 = vpop.f32.mrf.mxu0
      %v4040 = vadd.f32 0.0, %v4039
      %v4041 = vpop.f32.mrf.mxu0
      %v4042 = vadd.f32 0.0, %v4041
      %4043 = vmatmul.bf16.gmra.mxu0 %v3951
      %v4044 = vpop.f32.mrf.mxu0
      %v4045 = vadd.f32 0.0, %v4044
      %v4046 = vpop.f32.mrf.mxu0
      %v4047 = vadd.f32 0.0, %v4046
      %4048 = vmatmul.bf16.gmra.mxu0 %v3952
      %v4049 = vpop.f32.mrf.mxu0
      %v4050 = vadd.f32 0.0, %v4049
      %v4051 = vpop.f32.mrf.mxu0
      %v4052 = vadd.f32 0.0, %v4051
      %4053 = vmatmul.bf16.gmra.mxu0 %v3953
      %v4054 = vpop.f32.mrf.mxu0
      %v4055 = vadd.f32 0.0, %v4054
      %v4056 = vpop.f32.mrf.mxu0
      %v4057 = vadd.f32 0.0, %v4056
      %4058 = vmatmul.bf16.gmra.mxu0 %v3954
      %v4059 = vpop.f32.mrf.mxu0
      %v4060 = vadd.f32 0.0, %v4059
      %v4061 = vpop.f32.mrf.mxu0
      %v4062 = vadd.f32 0.0, %v4061
      %4063 = vmatmul.bf16.gmra.mxu0 %v3955
      %v4064 = vpop.f32.mrf.mxu0
      %v4065 = vadd.f32 0.0, %v4064
      %v4066 = vpop.f32.mrf.mxu0
      %v4067 = vadd.f32 0.0, %v4066
      %4068 = vmatmul.bf16.gmra.mxu0 %v3956
      %v4069 = vpop.f32.mrf.mxu0
      %v4070 = vadd.f32 0.0, %v4069
      %v4071 = vpop.f32.mrf.mxu0
      %v4072 = vadd.f32 0.0, %v4071
      %4073 = vmatmul.bf16.gmra.mxu0 %v3957
      %v4074 = vpop.f32.mrf.mxu0
      %v4075 = vadd.f32 0.0, %v4074
      %v4076 = vpop.f32.mrf.mxu0
      %v4077 = vadd.f32 0.0, %v4076
      %4078 = vmatmul.bf16.gmra.mxu0 %v3958
      %v4079 = vpop.f32.mrf.mxu0
      %v4080 = vadd.f32 0.0, %v4079
      %v4081 = vpop.f32.mrf.mxu0
      %v4082 = vadd.f32 0.0, %v4081
      %4083 = vmatmul.bf16.gmra.mxu0 %v3959
      %v4084 = vpop.f32.mrf.mxu0
      %v4085 = vadd.f32 0.0, %v4084
      %v4086 = vpop.f32.mrf.mxu0
      %v4087 = vadd.f32 0.0, %v4086
      %4088 = vmatmul.bf16.gmra.mxu0 %v3960
      %v4089 = vpop.f32.mrf.mxu0
      %v4090 = vadd.f32 0.0, %v4089
      %v4091 = vpop.f32.mrf.mxu0
      %v4092 = vadd.f32 0.0, %v4091
      %4093 = vmatmul.bf16.gmra.mxu0 %v3961
      %v4094 = vpop.f32.mrf.mxu0
      %v4095 = vadd.f32 0.0, %v4094
      %v4096 = vpop.f32.mrf.mxu0
      %v4097 = vadd.f32 0.0, %v4096
      %4098 = vmatmul.bf16.gmra.mxu0 %v3962
      %v4099 = vpop.f32.mrf.mxu0
      %v4100 = vadd.f32 0.0, %v4099
      %v4101 = vpop.f32.mrf.mxu0
      %v4102 = vadd.f32 0.0, %v4101
      %4103 = vmatmul.bf16.gmra.mxu0 %v3963
      %v4104 = vpop.f32.mrf.mxu0
      %v4105 = vadd.f32 0.0, %v4104
      %v4106 = vpop.f32.mrf.mxu0
      %v4107 = vadd.f32 0.0, %v4106
      %4108 = vmatmul.bf16.gmra.mxu0 %v3964
      %v4109 = vpop.f32.mrf.mxu0
      %v4110 = vadd.f32 0.0, %v4109
      %v4111 = vpop.f32.mrf.mxu0
      %v4112 = vadd.f32 0.0, %v4111
      %4113 = vmatmul.bf16.gmra.mxu0 %v3965
      %v4114 = vpop.f32.mrf.mxu0
      %v4115 = vadd.f32 0.0, %v4114
      %v4116 = vpop.f32.mrf.mxu0
      %v4117 = vadd.f32 0.0, %v4116
      %4118 = vdwg.mxu0
      %v4119 = vadd.f32 %v3693, %v4040
      %v4120 = vadd.f32 %v3694, %v4042
      %v4121 = vadd.f32 %v3695, %v4045
      %v4122 = vadd.f32 %v3696, %v4047
      %v4123 = vadd.f32 %v3697, %v4050
      %v4124 = vadd.f32 %v3698, %v4052
      %v4125 = vadd.f32 %v3699, %v4055
      %v4126 = vadd.f32 %v3700, %v4057
      %v4127 = vadd.f32 %v3701, %v4060
      %v4128 = vadd.f32 %v3702, %v4062
      %v4129 = vadd.f32 %v3703, %v4065
      %v4130 = vadd.f32 %v3704, %v4067
      %v4131 = vadd.f32 %v3705, %v4070
      %v4132 = vadd.f32 %v3706, %v4072
      %v4133 = vadd.f32 %v3707, %v4075
      %v4134 = vadd.f32 %v3708, %v4077
      %v4135 = vadd.f32 %v3709, %v4080
      %v4136 = vadd.f32 %v3710, %v4082
      %v4137 = vadd.f32 %v3711, %v4085
      %v4138 = vadd.f32 %v3712, %v4087
      %v4139 = vadd.f32 %v3713, %v4090
      %v4140 = vadd.f32 %v3714, %v4092
      %v4141 = vadd.f32 %v3715, %v4095
      %v4142 = vadd.f32 %v3716, %v4097
      %v4143 = vadd.f32 %v3717, %v4100
      %v4144 = vadd.f32 %v3718, %v4102
      %v4145 = vadd.f32 %v3719, %v4105
      %v4146 = vadd.f32 %v3720, %v4107
      %v4147 = vadd.f32 %v3721, %v4110
      %v4148 = vadd.f32 %v3722, %v4112
      %v4149 = vadd.f32 %v3723, %v4115
      %v4150 = vadd.f32 %v3724, %v4117
      %s4151 = scalar_lea.vmem [#allocation2], 24
      %v4152 = vld [vmem:[%s4151] sm:$0xf]
      %v4153 = vld [vmem:[%s4151 + $0x4] sm:$0xf]
      %v4154 = vld [vmem:[%s4151 + $0xc] sm:$0xf]
      %v4155 = vld [vmem:[%s4151 + $0x10] sm:$0xf]
      %v4156 = vld [vmem:[%s4151 + $0x18] sm:$0xf]
      %v4157 = vld [vmem:[%s4151 + $0x1c] sm:$0xf]
      %v4158 = vld [vmem:[%s4151 + $0x24] sm:$0xf]
      %v4159 = vld [vmem:[%s4151 + $0x28] sm:$0xf]
      %v4160 = vld [vmem:[%s4151 + $0x30] sm:$0xf]
      %v4161 = vld [vmem:[%s4151 + $0x34] sm:$0xf]
      %v4162 = vld [vmem:[%s4151 + $0x3c] sm:$0xf]
      %v4163 = vld [vmem:[%s4151 + $0x40] sm:$0xf]
      %v4164 = vld [vmem:[%s4151 + $0x48] sm:$0xf]
      %v4165 = vld [vmem:[%s4151 + $0x4c] sm:$0xf]
      %v4166 = vld [vmem:[%s4151 + $0x54] sm:$0xf]
      %v4167 = vld [vmem:[%s4151 + $0x58] sm:$0xf]
      %v4168 = vld [vmem:[%s4151 + $0x60] sm:$0xf]
      %v4169 = vld [vmem:[%s4151 + $0x64] sm:$0xf]
      %v4170 = vld [vmem:[%s4151 + $0x6c] sm:$0xf]
      %v4171 = vld [vmem:[%s4151 + $0x70] sm:$0xf]
      %v4172 = vld [vmem:[%s4151 + $0x78] sm:$0xf]
      %v4173 = vld [vmem:[%s4151 + $0x7c] sm:$0xf]
      %v4174 = vld [vmem:[%s4151 + $0x84] sm:$0xf]
      %v4175 = vld [vmem:[%s4151 + $0x88] sm:$0xf]
      %v4176 = vld [vmem:[%s4151 + $0x90] sm:$0xf]
      %v4177 = vld [vmem:[%s4151 + $0x94] sm:$0xf]
      %v4178 = vld [vmem:[%s4151 + $0x9c] sm:$0xf]
      %v4179 = vld [vmem:[%s4151 + $0xa0] sm:$0xf]
      %v4180 = vld [vmem:[%s4151 + $0xa8] sm:$0xf]
      %v4181 = vld [vmem:[%s4151 + $0xac] sm:$0xf]
      %v4182 = vld [vmem:[%s4151 + $0xb4] sm:$0xf]
      %v4183 = vld [vmem:[%s4151 + $0xb8] sm:$0xf]
      %s4184 = scalar_lea.vmem %s4, 384
      %v4185 = vld [vmem:[%s4184] sm:$0xf]
      %v4186 = vld [vmem:[%s4184 + $0x4] sm:$0xf]
      %v4187 = vld [vmem:[%s4184 + $0x8] sm:$0xf]
      %v4188 = vld [vmem:[%s4184 + $0xc] sm:$0xf]
      %v4189 = vld [vmem:[%s4184 + $0x10] sm:$0xf]
      %v4190 = vld [vmem:[%s4184 + $0x14] sm:$0xf]
      %v4191 = vld [vmem:[%s4184 + $0x18] sm:$0xf]
      %v4192 = vld [vmem:[%s4184 + $0x1c] sm:$0xf]
      %v4193 = vld [vmem:[%s4184 + $0x20] sm:$0xf]
      %v4194 = vld [vmem:[%s4184 + $0x24] sm:$0xf]
      %v4195 = vld [vmem:[%s4184 + $0x28] sm:$0xf]
      %v4196 = vld [vmem:[%s4184 + $0x2c] sm:$0xf]
      %v4197 = vld [vmem:[%s4184 + $0x30] sm:$0xf]
      %v4198 = vld [vmem:[%s4184 + $0x34] sm:$0xf]
      %v4199 = vld [vmem:[%s4184 + $0x38] sm:$0xf]
      %v4200 = vld [vmem:[%s4184 + $0x3c] sm:$0xf]
      %v4233 = vunpack.c.l.b16 %v4152
      %v4234 = vunpack.c.l.b16 %v4153
      %v4235 = vunpack.c.l.b16 %v4154
      %v4236 = vunpack.c.l.b16 %v4155
      %v4237 = vunpack.c.l.b16 %v4156
      %v4238 = vunpack.c.l.b16 %v4157
      %v4239 = vunpack.c.l.b16 %v4158
      %v4240 = vunpack.c.l.b16 %v4159
      %v4241 = vunpack.c.l.b16 %v4160
      %v4242 = vunpack.c.l.b16 %v4161
      %v4243 = vunpack.c.l.b16 %v4162
      %v4244 = vunpack.c.l.b16 %v4163
      %v4245 = vunpack.c.l.b16 %v4164
      %v4246 = vunpack.c.l.b16 %v4165
      %v4247 = vunpack.c.l.b16 %v4166
      %v4248 = vunpack.c.l.b16 %v4167
      %v4249 = vunpack.c.l.b16 %v4168
      %v4250 = vunpack.c.l.b16 %v4169
      %v4251 = vunpack.c.l.b16 %v4170
      %v4252 = vunpack.c.l.b16 %v4171
      %v4253 = vunpack.c.l.b16 %v4172
      %v4254 = vunpack.c.l.b16 %v4173
      %v4255 = vunpack.c.l.b16 %v4174
      %v4256 = vunpack.c.l.b16 %v4175
      %v4257 = vunpack.c.l.b16 %v4176
      %v4258 = vunpack.c.l.b16 %v4177
      %v4259 = vunpack.c.l.b16 %v4178
      %v4260 = vunpack.c.l.b16 %v4179
      %v4261 = vunpack.c.l.b16 %v4180
      %v4262 = vunpack.c.l.b16 %v4181
      %v4263 = vunpack.c.l.b16 %v4182
      %v4264 = vunpack.c.l.b16 %v4183
      %v4265 = vpack.c.b16 %v4234, %v4233
      %v4266 = vpack.c.b16 %v4236, %v4235
      %v4267 = vpack.c.b16 %v4238, %v4237
      %v4268 = vpack.c.b16 %v4240, %v4239
      %v4269 = vpack.c.b16 %v4242, %v4241
      %v4270 = vpack.c.b16 %v4244, %v4243
      %v4271 = vpack.c.b16 %v4246, %v4245
      %v4272 = vpack.c.b16 %v4248, %v4247
      %v4273 = vpack.c.b16 %v4250, %v4249
      %v4274 = vpack.c.b16 %v4252, %v4251
      %v4275 = vpack.c.b16 %v4254, %v4253
      %v4276 = vpack.c.b16 %v4256, %v4255
      %v4277 = vpack.c.b16 %v4258, %v4257
      %v4278 = vpack.c.b16 %v4260, %v4259
      %v4279 = vpack.c.b16 %v4262, %v4261
      %v4280 = vpack.c.b16 %v4264, %v4263
      %v4313 = vunpack.c.l.b16 %v4185
      %v4314 = vunpack.c.l.b16 %v4186
      %v4315 = vunpack.c.l.b16 %v4187
      %v4316 = vunpack.c.l.b16 %v4188
      %v4317 = vunpack.c.l.b16 %v4189
      %v4318 = vunpack.c.l.b16 %v4190
      %v4319 = vunpack.c.l.b16 %v4191
      %v4320 = vunpack.c.l.b16 %v4192
      %v4321 = vunpack.c.l.b16 %v4193
      %v4322 = vunpack.c.l.b16 %v4194
      %v4323 = vunpack.c.l.b16 %v4195
      %v4324 = vunpack.c.l.b16 %v4196
      %v4325 = vunpack.c.l.b16 %v4197
      %v4326 = vunpack.c.l.b16 %v4198
      %v4327 = vunpack.c.l.b16 %v4199
      %v4328 = vunpack.c.l.b16 %v4200
      %v4329 = vpack.c.b16 %v4314, %v4313
      %v4330 = vpack.c.b16 %v4316, %v4315
      %v4331 = vpack.c.b16 %v4318, %v4317
      %v4332 = vpack.c.b16 %v4320, %v4319
      %v4333 = vpack.c.b16 %v4322, %v4321
      %v4334 = vpack.c.b16 %v4324, %v4323
      %v4335 = vpack.c.b16 %v4326, %v4325
      %v4336 = vpack.c.b16 %v4328, %v4327
      %4345 = vmatpush.bf16.msra.mxu0 %v4336
      %4346 = vmatpush.bf16.msra.mxu0 %v4335
      %4347 = vmatpush.bf16.msra.mxu0 %v4334
      %4348 = vmatpush.bf16.msra.mxu0 %v4333
      %4349 = vmatpush.bf16.msra.mxu0 %v4332
      %4350 = vmatpush.bf16.msra.mxu0 %v4331
      %4351 = vmatpush.bf16.msra.mxu0 %v4330
      %4352 = vmatpush.bf16.msra.mxu0 %v4329
      %4353 = vmatmul.bf16.gmra.mxu0 %v4265
      %v4354 = vpop.f32.mrf.mxu0
      %v4355 = vadd.f32 0.0, %v4354
      %v4356 = vpop.f32.mrf.mxu0
      %v4357 = vadd.f32 0.0, %v4356
      %4358 = vmatmul.bf16.gmra.mxu0 %v4266
      %v4359 = vpop.f32.mrf.mxu0
      %v4360 = vadd.f32 0.0, %v4359
      %v4361 = vpop.f32.mrf.mxu0
      %v4362 = vadd.f32 0.0, %v4361
      %4363 = vmatmul.bf16.gmra.mxu0 %v4267
      %v4364 = vpop.f32.mrf.mxu0
      %v4365 = vadd.f32 0.0, %v4364
      %v4366 = vpop.f32.mrf.mxu0
      %v4367 = vadd.f32 0.0, %v4366
      %4368 = vmatmul.bf16.gmra.mxu0 %v4268
      %v4369 = vpop.f32.mrf.mxu0
      %v4370 = vadd.f32 0.0, %v4369
      %v4371 = vpop.f32.mrf.mxu0
      %v4372 = vadd.f32 0.0, %v4371
      %4373 = vmatmul.bf16.gmra.mxu0 %v4269
      %v4374 = vpop.f32.mrf.mxu0
      %v4375 = vadd.f32 0.0, %v4374
      %v4376 = vpop.f32.mrf.mxu0
      %v4377 = vadd.f32 0.0, %v4376
      %4378 = vmatmul.bf16.gmra.mxu0 %v4270
      %v4379 = vpop.f32.mrf.mxu0
      %v4380 = vadd.f32 0.0, %v4379
      %v4381 = vpop.f32.mrf.mxu0
      %v4382 = vadd.f32 0.0, %v4381
      %4383 = vmatmul.bf16.gmra.mxu0 %v4271
      %v4384 = vpop.f32.mrf.mxu0
      %v4385 = vadd.f32 0.0, %v4384
      %v4386 = vpop.f32.mrf.mxu0
      %v4387 = vadd.f32 0.0, %v4386
      %4388 = vmatmul.bf16.gmra.mxu0 %v4272
      %v4389 = vpop.f32.mrf.mxu0
      %v4390 = vadd.f32 0.0, %v4389
      %v4391 = vpop.f32.mrf.mxu0
      %v4392 = vadd.f32 0.0, %v4391
      %4393 = vmatmul.bf16.gmra.mxu0 %v4273
      %v4394 = vpop.f32.mrf.mxu0
      %v4395 = vadd.f32 0.0, %v4394
      %v4396 = vpop.f32.mrf.mxu0
      %v4397 = vadd.f32 0.0, %v4396
      %4398 = vmatmul.bf16.gmra.mxu0 %v4274
      %v4399 = vpop.f32.mrf.mxu0
      %v4400 = vadd.f32 0.0, %v4399
      %v4401 = vpop.f32.mrf.mxu0
      %v4402 = vadd.f32 0.0, %v4401
      %4403 = vmatmul.bf16.gmra.mxu0 %v4275
      %v4404 = vpop.f32.mrf.mxu0
      %v4405 = vadd.f32 0.0, %v4404
      %v4406 = vpop.f32.mrf.mxu0
      %v4407 = vadd.f32 0.0, %v4406
      %4408 = vmatmul.bf16.gmra.mxu0 %v4276
      %v4409 = vpop.f32.mrf.mxu0
      %v4410 = vadd.f32 0.0, %v4409
      %v4411 = vpop.f32.mrf.mxu0
      %v4412 = vadd.f32 0.0, %v4411
      %4413 = vmatmul.bf16.gmra.mxu0 %v4277
      %v4414 = vpop.f32.mrf.mxu0
      %v4415 = vadd.f32 0.0, %v4414
      %v4416 = vpop.f32.mrf.mxu0
      %v4417 = vadd.f32 0.0, %v4416
      %4418 = vmatmul.bf16.gmra.mxu0 %v4278
      %v4419 = vpop.f32.mrf.mxu0
      %v4420 = vadd.f32 0.0, %v4419
      %v4421 = vpop.f32.mrf.mxu0
      %v4422 = vadd.f32 0.0, %v4421
      %4423 = vmatmul.bf16.gmra.mxu0 %v4279
      %v4424 = vpop.f32.mrf.mxu0
      %v4425 = vadd.f32 0.0, %v4424
      %v4426 = vpop.f32.mrf.mxu0
      %v4427 = vadd.f32 0.0, %v4426
      %4428 = vmatmul.bf16.gmra.mxu0 %v4280
      %v4429 = vpop.f32.mrf.mxu0
      %v4430 = vadd.f32 0.0, %v4429
      %v4431 = vpop.f32.mrf.mxu0
      %v4432 = vadd.f32 0.0, %v4431
      %4433 = vdwg.mxu0
      %v4434 = vadd.f32 %v4119, %v4355
      %v4435 = vadd.f32 %v4120, %v4357
      %v4436 = vadd.f32 %v4121, %v4360
      %v4437 = vadd.f32 %v4122, %v4362
      %v4438 = vadd.f32 %v4123, %v4365
      %v4439 = vadd.f32 %v4124, %v4367
      %v4440 = vadd.f32 %v4125, %v4370
      %v4441 = vadd.f32 %v4126, %v4372
      %v4442 = vadd.f32 %v4127, %v4375
      %v4443 = vadd.f32 %v4128, %v4377
      %v4444 = vadd.f32 %v4129, %v4380
      %v4445 = vadd.f32 %v4130, %v4382
      %v4446 = vadd.f32 %v4131, %v4385
      %v4447 = vadd.f32 %v4132, %v4387
      %v4448 = vadd.f32 %v4133, %v4390
      %v4449 = vadd.f32 %v4134, %v4392
      %v4450 = vadd.f32 %v4135, %v4395
      %v4451 = vadd.f32 %v4136, %v4397
      %v4452 = vadd.f32 %v4137, %v4400
      %v4453 = vadd.f32 %v4138, %v4402
      %v4454 = vadd.f32 %v4139, %v4405
      %v4455 = vadd.f32 %v4140, %v4407
      %v4456 = vadd.f32 %v4141, %v4410
      %v4457 = vadd.f32 %v4142, %v4412
      %v4458 = vadd.f32 %v4143, %v4415
      %v4459 = vadd.f32 %v4144, %v4417
      %v4460 = vadd.f32 %v4145, %v4420
      %v4461 = vadd.f32 %v4146, %v4422
      %v4462 = vadd.f32 %v4147, %v4425
      %v4463 = vadd.f32 %v4148, %v4427
      %v4464 = vadd.f32 %v4149, %v4430
      %v4465 = vadd.f32 %v4150, %v4432
      %v4466 = vld [vmem:[%s4151] sm:$0xf]
      %v4467 = vld [vmem:[%s4151 + $0x4] sm:$0xf]
      %v4468 = vld [vmem:[%s4151 + $0x8] sm:$0x1]
      %v4469 = vld [vmem:[%s4151 + $0xc] sm:$0xf]
      %v4470 = vld [vmem:[%s4151 + $0x10] sm:$0xf]
      %v4471 = vld [vmem:[%s4151 + $0x14] sm:$0x1]
      %v4472 = vld [vmem:[%s4151 + $0x18] sm:$0xf]
      %v4473 = vld [vmem:[%s4151 + $0x1c] sm:$0xf]
      %v4474 = vld [vmem:[%s4151 + $0x20] sm:$0x1]
      %v4475 = vld [vmem:[%s4151 + $0x24] sm:$0xf]
      %v4476 = vld [vmem:[%s4151 + $0x28] sm:$0xf]
      %v4477 = vld [vmem:[%s4151 + $0x2c] sm:$0x1]
      %v4478 = vld [vmem:[%s4151 + $0x30] sm:$0xf]
      %v4479 = vld [vmem:[%s4151 + $0x34] sm:$0xf]
      %v4480 = vld [vmem:[%s4151 + $0x38] sm:$0x1]
      %v4481 = vld [vmem:[%s4151 + $0x3c] sm:$0xf]
      %v4482 = vld [vmem:[%s4151 + $0x40] sm:$0xf]
      %v4483 = vld [vmem:[%s4151 + $0x44] sm:$0x1]
      %v4484 = vld [vmem:[%s4151 + $0x48] sm:$0xf]
      %v4485 = vld [vmem:[%s4151 + $0x4c] sm:$0xf]
      %v4486 = vld [vmem:[%s4151 + $0x50] sm:$0x1]
      %v4487 = vld [vmem:[%s4151 + $0x54] sm:$0xf]
      %v4488 = vld [vmem:[%s4151 + $0x58] sm:$0xf]
      %v4489 = vld [vmem:[%s4151 + $0x5c] sm:$0x1]
      %v4490 = vld [vmem:[%s4151 + $0x60] sm:$0xf]
      %v4491 = vld [vmem:[%s4151 + $0x64] sm:$0xf]
      %v4492 = vld [vmem:[%s4151 + $0x68] sm:$0x1]
      %v4493 = vld [vmem:[%s4151 + $0x6c] sm:$0xf]
      %v4494 = vld [vmem:[%s4151 + $0x70] sm:$0xf]
      %v4495 = vld [vmem:[%s4151 + $0x74] sm:$0x1]
      %v4496 = vld [vmem:[%s4151 + $0x78] sm:$0xf]
      %v4497 = vld [vmem:[%s4151 + $0x7c] sm:$0xf]
      %v4498 = vld [vmem:[%s4151 + $0x80] sm:$0x1]
      %v4499 = vld [vmem:[%s4151 + $0x84] sm:$0xf]
      %v4500 = vld [vmem:[%s4151 + $0x88] sm:$0xf]
      %v4501 = vld [vmem:[%s4151 + $0x8c] sm:$0x1]
      %v4502 = vld [vmem:[%s4151 + $0x90] sm:$0xf]
      %v4503 = vld [vmem:[%s4151 + $0x94] sm:$0xf]
      %v4504 = vld [vmem:[%s4151 + $0x98] sm:$0x1]
      %v4505 = vld [vmem:[%s4151 + $0x9c] sm:$0xf]
      %v4506 = vld [vmem:[%s4151 + $0xa0] sm:$0xf]
      %v4507 = vld [vmem:[%s4151 + $0xa4] sm:$0x1]
      %v4508 = vld [vmem:[%s4151 + $0xa8] sm:$0xf]
      %v4509 = vld [vmem:[%s4151 + $0xac] sm:$0xf]
      %v4510 = vld [vmem:[%s4151 + $0xb0] sm:$0x1]
      %v4511 = vld [vmem:[%s4151 + $0xb4] sm:$0xf]
      %v4512 = vld [vmem:[%s4151 + $0xb8] sm:$0xf]
      %v4513 = vld [vmem:[%s4151 + $0xbc] sm:$0x1]
      %v4515 = vshrl.u32 %v4466, 16
      %v4517 = vrot.slane %v4515, 4
      %v4518 = vshll.u32 %v4466, 16
      %v4520 = vrot.slane %v4518, 5
      %v4521 = vor.u32 %v4517, %v4520
      %v4522 = vrot.slane %v4521, 4
      %v4524 = vshll.u32 %v4467, 16
      %v4526 = vrot.slane %v4524, 5
      %v4527 = vsel %vm1480, %v4522, %v4526
      %v4528 = vshrl.u32 %v4467, 16
      %v4530 = vrot.slane %v4528, 4
      %v4531 = vor.u32 %v4530, %v4526
      %v4532 = vrot.slane %v4531, 4
      %v4534 = vshll.u32 %v4468, 16
      %v4536 = vrot.slane %v4534, 5
      %v4537 = vsel %vm1480, %v4532, %v4536
      %v4539 = vshrl.u32 %v4469, 16
      %v4541 = vrot.slane %v4539, 4
      %v4542 = vshll.u32 %v4469, 16
      %v4544 = vrot.slane %v4542, 5
      %v4545 = vor.u32 %v4541, %v4544
      %v4546 = vrot.slane %v4545, 4
      %v4548 = vshll.u32 %v4470, 16
      %v4550 = vrot.slane %v4548, 5
      %v4551 = vsel %vm1480, %v4546, %v4550
      %v4552 = vshrl.u32 %v4470, 16
      %v4554 = vrot.slane %v4552, 4
      %v4555 = vor.u32 %v4554, %v4550
      %v4556 = vrot.slane %v4555, 4
      %v4558 = vshll.u32 %v4471, 16
      %v4560 = vrot.slane %v4558, 5
      %v4561 = vsel %vm1480, %v4556, %v4560
      %v4563 = vshrl.u32 %v4472, 16
      %v4565 = vrot.slane %v4563, 4
      %v4566 = vshll.u32 %v4472, 16
      %v4568 = vrot.slane %v4566, 5
      %v4569 = vor.u32 %v4565, %v4568
      %v4570 = vrot.slane %v4569, 4
      %v4572 = vshll.u32 %v4473, 16
      %v4574 = vrot.slane %v4572, 5
      %v4575 = vsel %vm1480, %v4570, %v4574
      %v4576 = vshrl.u32 %v4473, 16
      %v4578 = vrot.slane %v4576, 4
      %v4579 = vor.u32 %v4578, %v4574
      %v4580 = vrot.slane %v4579, 4
      %v4582 = vshll.u32 %v4474, 16
      %v4584 = vrot.slane %v4582, 5
      %v4585 = vsel %vm1480, %v4580, %v4584
      %v4587 = vshrl.u32 %v4475, 16
      %v4589 = vrot.slane %v4587, 4
      %v4590 = vshll.u32 %v4475, 16
      %v4592 = vrot.slane %v4590, 5
      %v4593 = vor.u32 %v4589, %v4592
      %v4594 = vrot.slane %v4593, 4
      %v4596 = vshll.u32 %v4476, 16
      %v4598 = vrot.slane %v4596, 5
      %v4599 = vsel %vm1480, %v4594, %v4598
      %v4600 = vshrl.u32 %v4476, 16
      %v4602 = vrot.slane %v4600, 4
      %v4603 = vor.u32 %v4602, %v4598
      %v4604 = vrot.slane %v4603, 4
      %v4606 = vshll.u32 %v4477, 16
      %v4608 = vrot.slane %v4606, 5
      %v4609 = vsel %vm1480, %v4604, %v4608
      %v4611 = vshrl.u32 %v4478, 16
      %v4613 = vrot.slane %v4611, 4
      %v4614 = vshll.u32 %v4478, 16
      %v4616 = vrot.slane %v4614, 5
      %v4617 = vor.u32 %v4613, %v4616
      %v4618 = vrot.slane %v4617, 4
      %v4620 = vshll.u32 %v4479, 16
      %v4622 = vrot.slane %v4620, 5
      %v4623 = vsel %vm1480, %v4618, %v4622
      %v4624 = vshrl.u32 %v4479, 16
      %v4626 = vrot.slane %v4624, 4
      %v4627 = vor.u32 %v4626, %v4622
      %v4628 = vrot.slane %v4627, 4
      %v4630 = vshll.u32 %v4480, 16
      %v4632 = vrot.slane %v4630, 5
      %v4633 = vsel %vm1480, %v4628, %v4632
      %v4635 = vshrl.u32 %v4481, 16
      %v4637 = vrot.slane %v4635, 4
      %v4638 = vshll.u32 %v4481, 16
      %v4640 = vrot.slane %v4638, 5
      %v4641 = vor.u32 %v4637, %v4640
      %v4642 = vrot.slane %v4641, 4
      %v4644 = vshll.u32 %v4482, 16
      %v4646 = vrot.slane %v4644, 5
      %v4647 = vsel %vm1480, %v4642, %v4646
      %v4648 = vshrl.u32 %v4482, 16
      %v4650 = vrot.slane %v4648, 4
      %v4651 = vor.u32 %v4650, %v4646
      %v4652 = vrot.slane %v4651, 4
      %v4654 = vshll.u32 %v4483, 16
      %v4656 = vrot.slane %v4654, 5
      %v4657 = vsel %vm1480, %v4652, %v4656
      %v4659 = vshrl.u32 %v4484, 16
      %v4661 = vrot.slane %v4659, 4
      %v4662 = vshll.u32 %v4484, 16
      %v4664 = vrot.slane %v4662, 5
      %v4665 = vor.u32 %v4661, %v4664
      %v4666 = vrot.slane %v4665, 4
      %v4668 = vshll.u32 %v4485, 16
      %v4670 = vrot.slane %v4668, 5
      %v4671 = vsel %vm1480, %v4666, %v4670
      %v4672 = vshrl.u32 %v4485, 16
      %v4674 = vrot.slane %v4672, 4
      %v4675 = vor.u32 %v4674, %v4670
      %v4676 = vrot.slane %v4675, 4
      %v4678 = vshll.u32 %v4486, 16
      %v4680 = vrot.slane %v4678, 5
      %v4681 = vsel %vm1480, %v4676, %v4680
      %v4683 = vshrl.u32 %v4487, 16
      %v4685 = vrot.slane %v4683, 4
      %v4686 = vshll.u32 %v4487, 16
      %v4688 = vrot.slane %v4686, 5
      %v4689 = vor.u32 %v4685, %v4688
      %v4690 = vrot.slane %v4689, 4
      %v4692 = vshll.u32 %v4488, 16
      %v4694 = vrot.slane %v4692, 5
      %v4695 = vsel %vm1480, %v4690, %v4694
      %v4696 = vshrl.u32 %v4488, 16
      %v4698 = vrot.slane %v4696, 4
      %v4699 = vor.u32 %v4698, %v4694
      %v4700 = vrot.slane %v4699, 4
      %v4702 = vshll.u32 %v4489, 16
      %v4704 = vrot.slane %v4702, 5
      %v4705 = vsel %vm1480, %v4700, %v4704
      %v4707 = vshrl.u32 %v4490, 16
      %v4709 = vrot.slane %v4707, 4
      %v4710 = vshll.u32 %v4490, 16
      %v4712 = vrot.slane %v4710, 5
      %v4713 = vor.u32 %v4709, %v4712
      %v4714 = vrot.slane %v4713, 4
      %v4716 = vshll.u32 %v4491, 16
      %v4718 = vrot.slane %v4716, 5
      %v4719 = vsel %vm1480, %v4714, %v4718
      %v4720 = vshrl.u32 %v4491, 16
      %v4722 = vrot.slane %v4720, 4
      %v4723 = vor.u32 %v4722, %v4718
      %v4724 = vrot.slane %v4723, 4
      %v4726 = vshll.u32 %v4492, 16
      %v4728 = vrot.slane %v4726, 5
      %v4729 = vsel %vm1480, %v4724, %v4728
      %v4731 = vshrl.u32 %v4493, 16
      %v4733 = vrot.slane %v4731, 4
      %v4734 = vshll.u32 %v4493, 16
      %v4736 = vrot.slane %v4734, 5
      %v4737 = vor.u32 %v4733, %v4736
      %v4738 = vrot.slane %v4737, 4
      %v4740 = vshll.u32 %v4494, 16
      %v4742 = vrot.slane %v4740, 5
      %v4743 = vsel %vm1480, %v4738, %v4742
      %v4744 = vshrl.u32 %v4494, 16
      %v4746 = vrot.slane %v4744, 4
      %v4747 = vor.u32 %v4746, %v4742
      %v4748 = vrot.slane %v4747, 4
      %v4750 = vshll.u32 %v4495, 16
      %v4752 = vrot.slane %v4750, 5
      %v4753 = vsel %vm1480, %v4748, %v4752
      %v4755 = vshrl.u32 %v4496, 16
      %v4757 = vrot.slane %v4755, 4
      %v4758 = vshll.u32 %v4496, 16
      %v4760 = vrot.slane %v4758, 5
      %v4761 = vor.u32 %v4757, %v4760
      %v4762 = vrot.slane %v4761, 4
      %v4764 = vshll.u32 %v4497, 16
      %v4766 = vrot.slane %v4764, 5
      %v4767 = vsel %vm1480, %v4762, %v4766
      %v4768 = vshrl.u32 %v4497, 16
      %v4770 = vrot.slane %v4768, 4
      %v4771 = vor.u32 %v4770, %v4766
      %v4772 = vrot.slane %v4771, 4
      %v4774 = vshll.u32 %v4498, 16
      %v4776 = vrot.slane %v4774, 5
      %v4777 = vsel %vm1480, %v4772, %v4776
      %v4779 = vshrl.u32 %v4499, 16
      %v4781 = vrot.slane %v4779, 4
      %v4782 = vshll.u32 %v4499, 16
      %v4784 = vrot.slane %v4782, 5
      %v4785 = vor.u32 %v4781, %v4784
      %v4786 = vrot.slane %v4785, 4
      %v4788 = vshll.u32 %v4500, 16
      %v4790 = vrot.slane %v4788, 5
      %v4791 = vsel %vm1480, %v4786, %v4790
      %v4792 = vshrl.u32 %v4500, 16
      %v4794 = vrot.slane %v4792, 4
      %v4795 = vor.u32 %v4794, %v4790
      %v4796 = vrot.slane %v4795, 4
      %v4798 = vshll.u32 %v4501, 16
      %v4800 = vrot.slane %v4798, 5
      %v4801 = vsel %vm1480, %v4796, %v4800
      %v4803 = vshrl.u32 %v4502, 16
      %v4805 = vrot.slane %v4803, 4
      %v4806 = vshll.u32 %v4502, 16
      %v4808 = vrot.slane %v4806, 5
      %v4809 = vor.u32 %v4805, %v4808
      %v4810 = vrot.slane %v4809, 4
      %v4812 = vshll.u32 %v4503, 16
      %v4814 = vrot.slane %v4812, 5
      %v4815 = vsel %vm1480, %v4810, %v4814
      %v4816 = vshrl.u32 %v4503, 16
      %v4818 = vrot.slane %v4816, 4
      %v4819 = vor.u32 %v4818, %v4814
      %v4820 = vrot.slane %v4819, 4
      %v4822 = vshll.u32 %v4504, 16
      %v4824 = vrot.slane %v4822, 5
      %v4825 = vsel %vm1480, %v4820, %v4824
      %v4827 = vshrl.u32 %v4505, 16
      %v4829 = vrot.slane %v4827, 4
      %v4830 = vshll.u32 %v4505, 16
      %v4832 = vrot.slane %v4830, 5
      %v4833 = vor.u32 %v4829, %v4832
      %v4834 = vrot.slane %v4833, 4
      %v4836 = vshll.u32 %v4506, 16
      %v4838 = vrot.slane %v4836, 5
      %v4839 = vsel %vm1480, %v4834, %v4838
      %v4840 = vshrl.u32 %v4506, 16
      %v4842 = vrot.slane %v4840, 4
      %v4843 = vor.u32 %v4842, %v4838
      %v4844 = vrot.slane %v4843, 4
      %v4846 = vshll.u32 %v4507, 16
      %v4848 = vrot.slane %v4846, 5
      %v4849 = vsel %vm1480, %v4844, %v4848
      %v4851 = vshrl.u32 %v4508, 16
      %v4853 = vrot.slane %v4851, 4
      %v4854 = vshll.u32 %v4508, 16
      %v4856 = vrot.slane %v4854, 5
      %v4857 = vor.u32 %v4853, %v4856
      %v4858 = vrot.slane %v4857, 4
      %v4860 = vshll.u32 %v4509, 16
      %v4862 = vrot.slane %v4860, 5
      %v4863 = vsel %vm1480, %v4858, %v4862
      %v4864 = vshrl.u32 %v4509, 16
      %v4866 = vrot.slane %v4864, 4
      %v4867 = vor.u32 %v4866, %v4862
      %v4868 = vrot.slane %v4867, 4
      %v4870 = vshll.u32 %v4510, 16
      %v4872 = vrot.slane %v4870, 5
      %v4873 = vsel %vm1480, %v4868, %v4872
      %v4875 = vshrl.u32 %v4511, 16
      %v4877 = vrot.slane %v4875, 4
      %v4878 = vshll.u32 %v4511, 16
      %v4880 = vrot.slane %v4878, 5
      %v4881 = vor.u32 %v4877, %v4880
      %v4882 = vrot.slane %v4881, 4
      %v4884 = vshll.u32 %v4512, 16
      %v4886 = vrot.slane %v4884, 5
      %v4887 = vsel %vm1480, %v4882, %v4886
      %v4888 = vshrl.u32 %v4512, 16
      %v4890 = vrot.slane %v4888, 4
      %v4891 = vor.u32 %v4890, %v4886
      %v4892 = vrot.slane %v4891, 4
      %v4894 = vshll.u32 %v4513, 16
      %v4896 = vrot.slane %v4894, 5
      %v4897 = vsel %vm1480, %v4892, %v4896
      %s4898 = scalar_lea.vmem %s4, 448
      %v4899 = vld [vmem:[%s4898] sm:$0xf]
      %v4900 = vld [vmem:[%s4898 + $0x4] sm:$0xf]
      %v4901 = vld [vmem:[%s4898 + $0x8] sm:$0xf]
      %v4902 = vld [vmem:[%s4898 + $0xc] sm:$0xf]
      %v4903 = vld [vmem:[%s4898 + $0x10] sm:$0xf]
      %v4904 = vld [vmem:[%s4898 + $0x14] sm:$0xf]
      %v4905 = vld [vmem:[%s4898 + $0x18] sm:$0xf]
      %v4906 = vld [vmem:[%s4898 + $0x1c] sm:$0xf]
      %v4907 = vld [vmem:[%s4898 + $0x20] sm:$0xf]
      %v4908 = vld [vmem:[%s4898 + $0x24] sm:$0xf]
      %v4909 = vld [vmem:[%s4898 + $0x28] sm:$0xf]
      %v4910 = vld [vmem:[%s4898 + $0x2c] sm:$0xf]
      %v4911 = vld [vmem:[%s4898 + $0x30] sm:$0xf]
      %v4912 = vld [vmem:[%s4898 + $0x34] sm:$0xf]
      %v4913 = vld [vmem:[%s4898 + $0x38] sm:$0xf]
      %v4914 = vld [vmem:[%s4898 + $0x3c] sm:$0xf]
      %v4915 = vunpack.c.l.b16 %v4527
      %v4916 = vunpack.c.l.b16 %v4537
      %v4917 = vunpack.c.l.b16 %v4551
      %v4918 = vunpack.c.l.b16 %v4561
      %v4919 = vunpack.c.l.b16 %v4575
      %v4920 = vunpack.c.l.b16 %v4585
      %v4921 = vunpack.c.l.b16 %v4599
      %v4922 = vunpack.c.l.b16 %v4609
      %v4923 = vunpack.c.l.b16 %v4623
      %v4924 = vunpack.c.l.b16 %v4633
      %v4925 = vunpack.c.l.b16 %v4647
      %v4926 = vunpack.c.l.b16 %v4657
      %v4927 = vunpack.c.l.b16 %v4671
      %v4928 = vunpack.c.l.b16 %v4681
      %v4929 = vunpack.c.l.b16 %v4695
      %v4930 = vunpack.c.l.b16 %v4705
      %v4931 = vunpack.c.l.b16 %v4719
      %v4932 = vunpack.c.l.b16 %v4729
      %v4933 = vunpack.c.l.b16 %v4743
      %v4934 = vunpack.c.l.b16 %v4753
      %v4935 = vunpack.c.l.b16 %v4767
      %v4936 = vunpack.c.l.b16 %v4777
      %v4937 = vunpack.c.l.b16 %v4791
      %v4938 = vunpack.c.l.b16 %v4801
      %v4939 = vunpack.c.l.b16 %v4815
      %v4940 = vunpack.c.l.b16 %v4825
      %v4941 = vunpack.c.l.b16 %v4839
      %v4942 = vunpack.c.l.b16 %v4849
      %v4943 = vunpack.c.l.b16 %v4863
      %v4944 = vunpack.c.l.b16 %v4873
      %v4945 = vunpack.c.l.b16 %v4887
      %v4946 = vunpack.c.l.b16 %v4897
      %v4947 = vpack.c.b16 %v4916, %v4915
      %v4948 = vpack.c.b16 %v4918, %v4917
      %v4949 = vpack.c.b16 %v4920, %v4919
      %v4950 = vpack.c.b16 %v4922, %v4921
      %v4951 = vpack.c.b16 %v4924, %v4923
      %v4952 = vpack.c.b16 %v4926, %v4925
      %v4953 = vpack.c.b16 %v4928, %v4927
      %v4954 = vpack.c.b16 %v4930, %v4929
      %v4955 = vpack.c.b16 %v4932, %v4931
      %v4956 = vpack.c.b16 %v4934, %v4933
      %v4957 = vpack.c.b16 %v4936, %v4935
      %v4958 = vpack.c.b16 %v4938, %v4937
      %v4959 = vpack.c.b16 %v4940, %v4939
      %v4960 = vpack.c.b16 %v4942, %v4941
      %v4961 = vpack.c.b16 %v4944, %v4943
      %v4962 = vpack.c.b16 %v4946, %v4945
      %v4995 = vunpack.c.l.b16 %v4899
      %v4996 = vunpack.c.l.b16 %v4900
      %v4997 = vunpack.c.l.b16 %v4901
      %v4998 = vunpack.c.l.b16 %v4902
      %v4999 = vunpack.c.l.b16 %v4903
      %v5000 = vunpack.c.l.b16 %v4904
      %v5001 = vunpack.c.l.b16 %v4905
      %v5002 = vunpack.c.l.b16 %v4906
      %v5003 = vunpack.c.l.b16 %v4907
      %v5004 = vunpack.c.l.b16 %v4908
      %v5005 = vunpack.c.l.b16 %v4909
      %v5006 = vunpack.c.l.b16 %v4910
      %v5007 = vunpack.c.l.b16 %v4911
      %v5008 = vunpack.c.l.b16 %v4912
      %v5009 = vunpack.c.l.b16 %v4913
      %v5010 = vunpack.c.l.b16 %v4914
      %v5011 = vpack.c.b16 %v4996, %v4995
      %v5012 = vpack.c.b16 %v4998, %v4997
      %v5013 = vpack.c.b16 %v5000, %v4999
      %v5014 = vpack.c.b16 %v5002, %v5001
      %v5015 = vpack.c.b16 %v5004, %v5003
      %v5016 = vpack.c.b16 %v5006, %v5005
      %v5017 = vpack.c.b16 %v5008, %v5007
      %v5018 = vpack.c.b16 %v5010, %v5009
      %5027 = vmatpush.bf16.msra.mxu0 %v5018
      %5028 = vmatpush.bf16.msra.mxu0 %v5017
      %5029 = vmatpush.bf16.msra.mxu0 %v5016
      %5030 = vmatpush.bf16.msra.mxu0 %v5015
      %5031 = vmatpush.bf16.msra.mxu0 %v5014
      %5032 = vmatpush.bf16.msra.mxu0 %v5013
      %5033 = vmatpush.bf16.msra.mxu0 %v5012
      %5034 = vmatpush.bf16.msra.mxu0 %v5011
      %5035 = vmatmul.bf16.gmra.mxu0 %v4947
      %v5036 = vpop.f32.mrf.mxu0
      %v5037 = vadd.f32 0.0, %v5036
      %v5038 = vpop.f32.mrf.mxu0
      %v5039 = vadd.f32 0.0, %v5038
      %5040 = vmatmul.bf16.gmra.mxu0 %v4948
      %v5041 = vpop.f32.mrf.mxu0
      %v5042 = vadd.f32 0.0, %v5041
      %v5043 = vpop.f32.mrf.mxu0
      %v5044 = vadd.f32 0.0, %v5043
      %5045 = vmatmul.bf16.gmra.mxu0 %v4949
      %v5046 = vpop.f32.mrf.mxu0
      %v5047 = vadd.f32 0.0, %v5046
      %v5048 = vpop.f32.mrf.mxu0
      %v5049 = vadd.f32 0.0, %v5048
      %5050 = vmatmul.bf16.gmra.mxu0 %v4950
      %v5051 = vpop.f32.mrf.mxu0
      %v5052 = vadd.f32 0.0, %v5051
      %v5053 = vpop.f32.mrf.mxu0
      %v5054 = vadd.f32 0.0, %v5053
      %5055 = vmatmul.bf16.gmra.mxu0 %v4951
      %v5056 = vpop.f32.mrf.mxu0
      %v5057 = vadd.f32 0.0, %v5056
      %v5058 = vpop.f32.mrf.mxu0
      %v5059 = vadd.f32 0.0, %v5058
      %5060 = vmatmul.bf16.gmra.mxu0 %v4952
      %v5061 = vpop.f32.mrf.mxu0
      %v5062 = vadd.f32 0.0, %v5061
      %v5063 = vpop.f32.mrf.mxu0
      %v5064 = vadd.f32 0.0, %v5063
      %5065 = vmatmul.bf16.gmra.mxu0 %v4953
      %v5066 = vpop.f32.mrf.mxu0
      %v5067 = vadd.f32 0.0, %v5066
      %v5068 = vpop.f32.mrf.mxu0
      %v5069 = vadd.f32 0.0, %v5068
      %5070 = vmatmul.bf16.gmra.mxu0 %v4954
      %v5071 = vpop.f32.mrf.mxu0
      %v5072 = vadd.f32 0.0, %v5071
      %v5073 = vpop.f32.mrf.mxu0
      %v5074 = vadd.f32 0.0, %v5073
      %5075 = vmatmul.bf16.gmra.mxu0 %v4955
      %v5076 = vpop.f32.mrf.mxu0
      %v5077 = vadd.f32 0.0, %v5076
      %v5078 = vpop.f32.mrf.mxu0
      %v5079 = vadd.f32 0.0, %v5078
      %5080 = vmatmul.bf16.gmra.mxu0 %v4956
      %v5081 = vpop.f32.mrf.mxu0
      %v5082 = vadd.f32 0.0, %v5081
      %v5083 = vpop.f32.mrf.mxu0
      %v5084 = vadd.f32 0.0, %v5083
      %5085 = vmatmul.bf16.gmra.mxu0 %v4957
      %v5086 = vpop.f32.mrf.mxu0
      %v5087 = vadd.f32 0.0, %v5086
      %v5088 = vpop.f32.mrf.mxu0
      %v5089 = vadd.f32 0.0, %v5088
      %5090 = vmatmul.bf16.gmra.mxu0 %v4958
      %v5091 = vpop.f32.mrf.mxu0
      %v5092 = vadd.f32 0.0, %v5091
      %v5093 = vpop.f32.mrf.mxu0
      %v5094 = vadd.f32 0.0, %v5093
      %5095 = vmatmul.bf16.gmra.mxu0 %v4959
      %v5096 = vpop.f32.mrf.mxu0
      %v5097 = vadd.f32 0.0, %v5096
      %v5098 = vpop.f32.mrf.mxu0
      %v5099 = vadd.f32 0.0, %v5098
      %5100 = vmatmul.bf16.gmra.mxu0 %v4960
      %v5101 = vpop.f32.mrf.mxu0
      %v5102 = vadd.f32 0.0, %v5101
      %v5103 = vpop.f32.mrf.mxu0
      %v5104 = vadd.f32 0.0, %v5103
      %5105 = vmatmul.bf16.gmra.mxu0 %v4961
      %v5106 = vpop.f32.mrf.mxu0
      %v5107 = vadd.f32 0.0, %v5106
      %v5108 = vpop.f32.mrf.mxu0
      %v5109 = vadd.f32 0.0, %v5108
      %5110 = vmatmul.bf16.gmra.mxu0 %v4962
      %v5111 = vpop.f32.mrf.mxu0
      %v5112 = vadd.f32 0.0, %v5111
      %v5113 = vpop.f32.mrf.mxu0
      %v5114 = vadd.f32 0.0, %v5113
      %5115 = vdwg.mxu0
      %v5116 = vadd.f32 %v4434, %v5037
      %v5117 = vadd.f32 %v4435, %v5039
      %v5118 = vadd.f32 %v4436, %v5042
      %v5119 = vadd.f32 %v4437, %v5044
      %v5120 = vadd.f32 %v4438, %v5047
      %v5121 = vadd.f32 %v4439, %v5049
      %v5122 = vadd.f32 %v4440, %v5052
      %v5123 = vadd.f32 %v4441, %v5054
      %v5124 = vadd.f32 %v4442, %v5057
      %v5125 = vadd.f32 %v4443, %v5059
      %v5126 = vadd.f32 %v4444, %v5062
      %v5127 = vadd.f32 %v4445, %v5064
      %v5128 = vadd.f32 %v4446, %v5067
      %v5129 = vadd.f32 %v4447, %v5069
      %v5130 = vadd.f32 %v4448, %v5072
      %v5131 = vadd.f32 %v4449, %v5074
      %v5132 = vadd.f32 %v4450, %v5077
      %v5133 = vadd.f32 %v4451, %v5079
      %v5134 = vadd.f32 %v4452, %v5082
      %v5135 = vadd.f32 %v4453, %v5084
      %v5136 = vadd.f32 %v4454, %v5087
      %v5137 = vadd.f32 %v4455, %v5089
      %v5138 = vadd.f32 %v4456, %v5092
      %v5139 = vadd.f32 %v4457, %v5094
      %v5140 = vadd.f32 %v4458, %v5097
      %v5141 = vadd.f32 %v4459, %v5099
      %v5142 = vadd.f32 %v4460, %v5102
      %v5143 = vadd.f32 %v4461, %v5104
      %v5144 = vadd.f32 %v4462, %v5107
      %v5145 = vadd.f32 %v4463, %v5109
      %v5146 = vadd.f32 %v4464, %v5112
      %v5147 = vadd.f32 %v4465, %v5114
      %v5148 = vld [vmem:[%s4151] sm:$0xe]
      %v5149 = vld [vmem:[%s4151 + $0xc] sm:$0xe]
      %v5150 = vld [vmem:[%s4151 + $0x18] sm:$0xe]
      %v5151 = vld [vmem:[%s4151 + $0x24] sm:$0xe]
      %v5152 = vld [vmem:[%s4151 + $0x30] sm:$0xe]
      %v5153 = vld [vmem:[%s4151 + $0x3c] sm:$0xe]
      %v5154 = vld [vmem:[%s4151 + $0x48] sm:$0xe]
      %v5155 = vld [vmem:[%s4151 + $0x54] sm:$0xe]
      %v5156 = vld [vmem:[%s4151 + $0x60] sm:$0xe]
      %v5157 = vld [vmem:[%s4151 + $0x6c] sm:$0xe]
      %v5158 = vld [vmem:[%s4151 + $0x78] sm:$0xe]
      %v5159 = vld [vmem:[%s4151 + $0x84] sm:$0xe]
      %v5160 = vld [vmem:[%s4151 + $0x90] sm:$0xe]
      %v5161 = vld [vmem:[%s4151 + $0x9c] sm:$0xe]
      %v5162 = vld [vmem:[%s4151 + $0xa8] sm:$0xe]
      %v5163 = vld [vmem:[%s4151 + $0xb4] sm:$0xe]
      %v5212 = vrot.slane %v5148, 5
      %v5213 = vrot.slane %v5212, 4
      %v5214 = vrot.slane %v4467, 5
      %v5215 = vsel %vm2366, %v5213, %v5214
      %v5216 = vrot.slane %v5214, 4
      %v5217 = vrot.slane %v4468, 5
      %v5218 = vsel %vm2366, %v5216, %v5217
      %v5219 = vrot.slane %v5149, 5
      %v5220 = vrot.slane %v5219, 4
      %v5221 = vrot.slane %v4470, 5
      %v5222 = vsel %vm2366, %v5220, %v5221
      %v5223 = vrot.slane %v5221, 4
      %v5224 = vrot.slane %v4471, 5
      %v5225 = vsel %vm2366, %v5223, %v5224
      %v5226 = vrot.slane %v5150, 5
      %v5227 = vrot.slane %v5226, 4
      %v5228 = vrot.slane %v4473, 5
      %v5229 = vsel %vm2366, %v5227, %v5228
      %v5230 = vrot.slane %v5228, 4
      %v5231 = vrot.slane %v4474, 5
      %v5232 = vsel %vm2366, %v5230, %v5231
      %v5233 = vrot.slane %v5151, 5
      %v5234 = vrot.slane %v5233, 4
      %v5235 = vrot.slane %v4476, 5
      %v5236 = vsel %vm2366, %v5234, %v5235
      %v5237 = vrot.slane %v5235, 4
      %v5238 = vrot.slane %v4477, 5
      %v5239 = vsel %vm2366, %v5237, %v5238
      %v5240 = vrot.slane %v5152, 5
      %v5241 = vrot.slane %v5240, 4
      %v5242 = vrot.slane %v4479, 5
      %v5243 = vsel %vm2366, %v5241, %v5242
      %v5244 = vrot.slane %v5242, 4
      %v5245 = vrot.slane %v4480, 5
      %v5246 = vsel %vm2366, %v5244, %v5245
      %v5247 = vrot.slane %v5153, 5
      %v5248 = vrot.slane %v5247, 4
      %v5249 = vrot.slane %v4482, 5
      %v5250 = vsel %vm2366, %v5248, %v5249
      %v5251 = vrot.slane %v5249, 4
      %v5252 = vrot.slane %v4483, 5
      %v5253 = vsel %vm2366, %v5251, %v5252
      %v5254 = vrot.slane %v5154, 5
      %v5255 = vrot.slane %v5254, 4
      %v5256 = vrot.slane %v4485, 5
      %v5257 = vsel %vm2366, %v5255, %v5256
      %v5258 = vrot.slane %v5256, 4
      %v5259 = vrot.slane %v4486, 5
      %v5260 = vsel %vm2366, %v5258, %v5259
      %v5261 = vrot.slane %v5155, 5
      %v5262 = vrot.slane %v5261, 4
      %v5263 = vrot.slane %v4488, 5
      %v5264 = vsel %vm2366, %v5262, %v5263
      %v5265 = vrot.slane %v5263, 4
      %v5266 = vrot.slane %v4489, 5
      %v5267 = vsel %vm2366, %v5265, %v5266
      %v5268 = vrot.slane %v5156, 5
      %v5269 = vrot.slane %v5268, 4
      %v5270 = vrot.slane %v4491, 5
      %v5271 = vsel %vm2366, %v5269, %v5270
      %v5272 = vrot.slane %v5270, 4
      %v5273 = vrot.slane %v4492, 5
      %v5274 = vsel %vm2366, %v5272, %v5273
      %v5275 = vrot.slane %v5157, 5
      %v5276 = vrot.slane %v5275, 4
      %v5277 = vrot.slane %v4494, 5
      %v5278 = vsel %vm2366, %v5276, %v5277
      %v5279 = vrot.slane %v5277, 4
      %v5280 = vrot.slane %v4495, 5
      %v5281 = vsel %vm2366, %v5279, %v5280
      %v5282 = vrot.slane %v5158, 5
      %v5283 = vrot.slane %v5282, 4
      %v5284 = vrot.slane %v4497, 5
      %v5285 = vsel %vm2366, %v5283, %v5284
      %v5286 = vrot.slane %v5284, 4
      %v5287 = vrot.slane %v4498, 5
      %v5288 = vsel %vm2366, %v5286, %v5287
      %v5289 = vrot.slane %v5159, 5
      %v5290 = vrot.slane %v5289, 4
      %v5291 = vrot.slane %v4500, 5
      %v5292 = vsel %vm2366, %v5290, %v5291
      %v5293 = vrot.slane %v5291, 4
      %v5294 = vrot.slane %v4501, 5
      %v5295 = vsel %vm2366, %v5293, %v5294
      %v5296 = vrot.slane %v5160, 5
      %v5297 = vrot.slane %v5296, 4
      %v5298 = vrot.slane %v4503, 5
      %v5299 = vsel %vm2366, %v5297, %v5298
      %v5300 = vrot.slane %v5298, 4
      %v5301 = vrot.slane %v4504, 5
      %v5302 = vsel %vm2366, %v5300, %v5301
      %v5303 = vrot.slane %v5161, 5
      %v5304 = vrot.slane %v5303, 4
      %v5305 = vrot.slane %v4506, 5
      %v5306 = vsel %vm2366, %v5304, %v5305
      %v5307 = vrot.slane %v5305, 4
      %v5308 = vrot.slane %v4507, 5
      %v5309 = vsel %vm2366, %v5307, %v5308
      %v5310 = vrot.slane %v5162, 5
      %v5311 = vrot.slane %v5310, 4
      %v5312 = vrot.slane %v4509, 5
      %v5313 = vsel %vm2366, %v5311, %v5312
      %v5314 = vrot.slane %v5312, 4
      %v5315 = vrot.slane %v4510, 5
      %v5316 = vsel %vm2366, %v5314, %v5315
      %v5317 = vrot.slane %v5163, 5
      %v5318 = vrot.slane %v5317, 4
      %v5319 = vrot.slane %v4512, 5
      %v5320 = vsel %vm2366, %v5318, %v5319
      %v5321 = vrot.slane %v5319, 4
      %v5322 = vrot.slane %v4513, 5
      %v5323 = vsel %vm2366, %v5321, %v5322
      %s5324 = scalar_lea.vmem %s4, 512
      %v5325 = vld [vmem:[%s5324] sm:$0xf]
      %v5326 = vld [vmem:[%s5324 + $0x4] sm:$0xf]
      %v5327 = vld [vmem:[%s5324 + $0x8] sm:$0xf]
      %v5328 = vld [vmem:[%s5324 + $0xc] sm:$0xf]
      %v5329 = vld [vmem:[%s5324 + $0x10] sm:$0xf]
      %v5330 = vld [vmem:[%s5324 + $0x14] sm:$0xf]
      %v5331 = vld [vmem:[%s5324 + $0x18] sm:$0xf]
      %v5332 = vld [vmem:[%s5324 + $0x1c] sm:$0xf]
      %v5333 = vld [vmem:[%s5324 + $0x20] sm:$0xf]
      %v5334 = vld [vmem:[%s5324 + $0x24] sm:$0xf]
      %v5335 = vld [vmem:[%s5324 + $0x28] sm:$0xf]
      %v5336 = vld [vmem:[%s5324 + $0x2c] sm:$0xf]
      %v5337 = vld [vmem:[%s5324 + $0x30] sm:$0xf]
      %v5338 = vld [vmem:[%s5324 + $0x34] sm:$0xf]
      %v5339 = vld [vmem:[%s5324 + $0x38] sm:$0xf]
      %v5340 = vld [vmem:[%s5324 + $0x3c] sm:$0xf]
      %v5341 = vunpack.c.l.b16 %v5215
      %v5342 = vunpack.c.l.b16 %v5218
      %v5343 = vunpack.c.l.b16 %v5222
      %v5344 = vunpack.c.l.b16 %v5225
      %v5345 = vunpack.c.l.b16 %v5229
      %v5346 = vunpack.c.l.b16 %v5232
      %v5347 = vunpack.c.l.b16 %v5236
      %v5348 = vunpack.c.l.b16 %v5239
      %v5349 = vunpack.c.l.b16 %v5243
      %v5350 = vunpack.c.l.b16 %v5246
      %v5351 = vunpack.c.l.b16 %v5250
      %v5352 = vunpack.c.l.b16 %v5253
      %v5353 = vunpack.c.l.b16 %v5257
      %v5354 = vunpack.c.l.b16 %v5260
      %v5355 = vunpack.c.l.b16 %v5264
      %v5356 = vunpack.c.l.b16 %v5267
      %v5357 = vunpack.c.l.b16 %v5271
      %v5358 = vunpack.c.l.b16 %v5274
      %v5359 = vunpack.c.l.b16 %v5278
      %v5360 = vunpack.c.l.b16 %v5281
      %v5361 = vunpack.c.l.b16 %v5285
      %v5362 = vunpack.c.l.b16 %v5288
      %v5363 = vunpack.c.l.b16 %v5292
      %v5364 = vunpack.c.l.b16 %v5295
      %v5365 = vunpack.c.l.b16 %v5299
      %v5366 = vunpack.c.l.b16 %v5302
      %v5367 = vunpack.c.l.b16 %v5306
      %v5368 = vunpack.c.l.b16 %v5309
      %v5369 = vunpack.c.l.b16 %v5313
      %v5370 = vunpack.c.l.b16 %v5316
      %v5371 = vunpack.c.l.b16 %v5320
      %v5372 = vunpack.c.l.b16 %v5323
      %v5373 = vpack.c.b16 %v5342, %v5341
      %v5374 = vpack.c.b16 %v5344, %v5343
      %v5375 = vpack.c.b16 %v5346, %v5345
      %v5376 = vpack.c.b16 %v5348, %v5347
      %v5377 = vpack.c.b16 %v5350, %v5349
      %v5378 = vpack.c.b16 %v5352, %v5351
      %v5379 = vpack.c.b16 %v5354, %v5353
      %v5380 = vpack.c.b16 %v5356, %v5355
      %v5381 = vpack.c.b16 %v5358, %v5357
      %v5382 = vpack.c.b16 %v5360, %v5359
      %v5383 = vpack.c.b16 %v5362, %v5361
      %v5384 = vpack.c.b16 %v5364, %v5363
      %v5385 = vpack.c.b16 %v5366, %v5365
      %v5386 = vpack.c.b16 %v5368, %v5367
      %v5387 = vpack.c.b16 %v5370, %v5369
      %v5388 = vpack.c.b16 %v5372, %v5371
      %v5421 = vunpack.c.l.b16 %v5325
      %v5422 = vunpack.c.l.b16 %v5326
      %v5423 = vunpack.c.l.b16 %v5327
      %v5424 = vunpack.c.l.b16 %v5328
      %v5425 = vunpack.c.l.b16 %v5329
      %v5426 = vunpack.c.l.b16 %v5330
      %v5427 = vunpack.c.l.b16 %v5331
      %v5428 = vunpack.c.l.b16 %v5332
      %v5429 = vunpack.c.l.b16 %v5333
      %v5430 = vunpack.c.l.b16 %v5334
      %v5431 = vunpack.c.l.b16 %v5335
      %v5432 = vunpack.c.l.b16 %v5336
      %v5433 = vunpack.c.l.b16 %v5337
      %v5434 = vunpack.c.l.b16 %v5338
      %v5435 = vunpack.c.l.b16 %v5339
      %v5436 = vunpack.c.l.b16 %v5340
      %v5437 = vpack.c.b16 %v5422, %v5421
      %v5438 = vpack.c.b16 %v5424, %v5423
      %v5439 = vpack.c.b16 %v5426, %v5425
      %v5440 = vpack.c.b16 %v5428, %v5427
      %v5441 = vpack.c.b16 %v5430, %v5429
      %v5442 = vpack.c.b16 %v5432, %v5431
      %v5443 = vpack.c.b16 %v5434, %v5433
      %v5444 = vpack.c.b16 %v5436, %v5435
      %5453 = vmatpush.bf16.msra.mxu0 %v5444
      %5454 = vmatpush.bf16.msra.mxu0 %v5443
      %5455 = vmatpush.bf16.msra.mxu0 %v5442
      %5456 = vmatpush.bf16.msra.mxu0 %v5441
      %5457 = vmatpush.bf16.msra.mxu0 %v5440
      %5458 = vmatpush.bf16.msra.mxu0 %v5439
      %5459 = vmatpush.bf16.msra.mxu0 %v5438
      %5460 = vmatpush.bf16.msra.mxu0 %v5437
      %5461 = vmatmul.bf16.gmra.mxu0 %v5373
      %v5462 = vpop.f32.mrf.mxu0
      %v5463 = vadd.f32 0.0, %v5462
      %v5464 = vpop.f32.mrf.mxu0
      %v5465 = vadd.f32 0.0, %v5464
      %5466 = vmatmul.bf16.gmra.mxu0 %v5374
      %v5467 = vpop.f32.mrf.mxu0
      %v5468 = vadd.f32 0.0, %v5467
      %v5469 = vpop.f32.mrf.mxu0
      %v5470 = vadd.f32 0.0, %v5469
      %5471 = vmatmul.bf16.gmra.mxu0 %v5375
      %v5472 = vpop.f32.mrf.mxu0
      %v5473 = vadd.f32 0.0, %v5472
      %v5474 = vpop.f32.mrf.mxu0
      %v5475 = vadd.f32 0.0, %v5474
      %5476 = vmatmul.bf16.gmra.mxu0 %v5376
      %v5477 = vpop.f32.mrf.mxu0
      %v5478 = vadd.f32 0.0, %v5477
      %v5479 = vpop.f32.mrf.mxu0
      %v5480 = vadd.f32 0.0, %v5479
      %5481 = vmatmul.bf16.gmra.mxu0 %v5377
      %v5482 = vpop.f32.mrf.mxu0
      %v5483 = vadd.f32 0.0, %v5482
      %v5484 = vpop.f32.mrf.mxu0
      %v5485 = vadd.f32 0.0, %v5484
      %5486 = vmatmul.bf16.gmra.mxu0 %v5378
      %v5487 = vpop.f32.mrf.mxu0
      %v5488 = vadd.f32 0.0, %v5487
      %v5489 = vpop.f32.mrf.mxu0
      %v5490 = vadd.f32 0.0, %v5489
      %5491 = vmatmul.bf16.gmra.mxu0 %v5379
      %v5492 = vpop.f32.mrf.mxu0
      %v5493 = vadd.f32 0.0, %v5492
      %v5494 = vpop.f32.mrf.mxu0
      %v5495 = vadd.f32 0.0, %v5494
      %5496 = vmatmul.bf16.gmra.mxu0 %v5380
      %v5497 = vpop.f32.mrf.mxu0
      %v5498 = vadd.f32 0.0, %v5497
      %v5499 = vpop.f32.mrf.mxu0
      %v5500 = vadd.f32 0.0, %v5499
      %5501 = vmatmul.bf16.gmra.mxu0 %v5381
      %v5502 = vpop.f32.mrf.mxu0
      %v5503 = vadd.f32 0.0, %v5502
      %v5504 = vpop.f32.mrf.mxu0
      %v5505 = vadd.f32 0.0, %v5504
      %5506 = vmatmul.bf16.gmra.mxu0 %v5382
      %v5507 = vpop.f32.mrf.mxu0
      %v5508 = vadd.f32 0.0, %v5507
      %v5509 = vpop.f32.mrf.mxu0
      %v5510 = vadd.f32 0.0, %v5509
      %5511 = vmatmul.bf16.gmra.mxu0 %v5383
      %v5512 = vpop.f32.mrf.mxu0
      %v5513 = vadd.f32 0.0, %v5512
      %v5514 = vpop.f32.mrf.mxu0
      %v5515 = vadd.f32 0.0, %v5514
      %5516 = vmatmul.bf16.gmra.mxu0 %v5384
      %v5517 = vpop.f32.mrf.mxu0
      %v5518 = vadd.f32 0.0, %v5517
      %v5519 = vpop.f32.mrf.mxu0
      %v5520 = vadd.f32 0.0, %v5519
      %5521 = vmatmul.bf16.gmra.mxu0 %v5385
      %v5522 = vpop.f32.mrf.mxu0
      %v5523 = vadd.f32 0.0, %v5522
      %v5524 = vpop.f32.mrf.mxu0
      %v5525 = vadd.f32 0.0, %v5524
      %5526 = vmatmul.bf16.gmra.mxu0 %v5386
      %v5527 = vpop.f32.mrf.mxu0
      %v5528 = vadd.f32 0.0, %v5527
      %v5529 = vpop.f32.mrf.mxu0
      %v5530 = vadd.f32 0.0, %v5529
      %5531 = vmatmul.bf16.gmra.mxu0 %v5387
      %v5532 = vpop.f32.mrf.mxu0
      %v5533 = vadd.f32 0.0, %v5532
      %v5534 = vpop.f32.mrf.mxu0
      %v5535 = vadd.f32 0.0, %v5534
      %5536 = vmatmul.bf16.gmra.mxu0 %v5388
      %v5537 = vpop.f32.mrf.mxu0
      %v5538 = vadd.f32 0.0, %v5537
      %v5539 = vpop.f32.mrf.mxu0
      %v5540 = vadd.f32 0.0, %v5539
      %5541 = vdwg.mxu0
      %v5542 = vadd.f32 %v5116, %v5463
      %v5543 = vadd.f32 %v5117, %v5465
      %v5544 = vadd.f32 %v5118, %v5468
      %v5545 = vadd.f32 %v5119, %v5470
      %v5546 = vadd.f32 %v5120, %v5473
      %v5547 = vadd.f32 %v5121, %v5475
      %v5548 = vadd.f32 %v5122, %v5478
      %v5549 = vadd.f32 %v5123, %v5480
      %v5550 = vadd.f32 %v5124, %v5483
      %v5551 = vadd.f32 %v5125, %v5485
      %v5552 = vadd.f32 %v5126, %v5488
      %v5553 = vadd.f32 %v5127, %v5490
      %v5554 = vadd.f32 %v5128, %v5493
      %v5555 = vadd.f32 %v5129, %v5495
      %v5556 = vadd.f32 %v5130, %v5498
      %v5557 = vadd.f32 %v5131, %v5500
      %v5558 = vadd.f32 %v5132, %v5503
      %v5559 = vadd.f32 %v5133, %v5505
      %v5560 = vadd.f32 %v5134, %v5508
      %v5561 = vadd.f32 %v5135, %v5510
      %v5562 = vadd.f32 %v5136, %v5513
      %v5563 = vadd.f32 %v5137, %v5515
      %v5564 = vadd.f32 %v5138, %v5518
      %v5565 = vadd.f32 %v5139, %v5520
      %v5566 = vadd.f32 %v5140, %v5523
      %v5567 = vadd.f32 %v5141, %v5525
      %v5568 = vadd.f32 %v5142, %v5528
      %v5569 = vadd.f32 %v5143, %v5530
      %v5570 = vadd.f32 %v5144, %v5533
      %v5571 = vadd.f32 %v5145, %v5535
      %v5572 = vadd.f32 %v5146, %v5538
      %v5573 = vadd.f32 %v5147, %v5540
      %v5574 = vld [vmem:[%s5] sm:$0x1]
      %v5576 = vperm.slane %v5574, 0
      %v5578 = vmul.f32 %v5542, %v5576
      %v5579 = vmul.f32 %v5543, %v5576
      %v5580 = vmul.f32 %v5544, %v5576
      %v5581 = vmul.f32 %v5545, %v5576
      %v5582 = vmul.f32 %v5546, %v5576
      %v5583 = vmul.f32 %v5547, %v5576
      %v5584 = vmul.f32 %v5548, %v5576
      %v5585 = vmul.f32 %v5549, %v5576
      %v5586 = vmul.f32 %v5550, %v5576
      %v5587 = vmul.f32 %v5551, %v5576
      %v5588 = vmul.f32 %v5552, %v5576
      %v5589 = vmul.f32 %v5553, %v5576
      %v5590 = vmul.f32 %v5554, %v5576
      %v5591 = vmul.f32 %v5555, %v5576
      %v5592 = vmul.f32 %v5556, %v5576
      %v5593 = vmul.f32 %v5557, %v5576
      %v5594 = vmul.f32 %v5558, %v5576
      %v5595 = vmul.f32 %v5559, %v5576
      %v5596 = vmul.f32 %v5560, %v5576
      %v5597 = vmul.f32 %v5561, %v5576
      %v5598 = vmul.f32 %v5562, %v5576
      %v5599 = vmul.f32 %v5563, %v5576
      %v5600 = vmul.f32 %v5564, %v5576
      %v5601 = vmul.f32 %v5565, %v5576
      %v5602 = vmul.f32 %v5566, %v5576
      %v5603 = vmul.f32 %v5567, %v5576
      %v5604 = vmul.f32 %v5568, %v5576
      %v5605 = vmul.f32 %v5569, %v5576
      %v5606 = vmul.f32 %v5570, %v5576
      %v5607 = vmul.f32 %v5571, %v5576
      %v5608 = vmul.f32 %v5572, %v5576
      %v5609 = vmul.f32 %v5573, %v5576
      %v5610 = vld [vmem:[%s6] sm:$0x1]
      %v5612 = vperm.slane %v5610, 0
      %v5614 = vadd.f32 %v5578, %v5612
      %v5615 = vadd.f32 %v5579, %v5612
      %v5616 = vadd.f32 %v5580, %v5612
      %v5617 = vadd.f32 %v5581, %v5612
      %v5618 = vadd.f32 %v5582, %v5612
      %v5619 = vadd.f32 %v5583, %v5612
      %v5620 = vadd.f32 %v5584, %v5612
      %v5621 = vadd.f32 %v5585, %v5612
      %v5622 = vadd.f32 %v5586, %v5612
      %v5623 = vadd.f32 %v5587, %v5612
      %v5624 = vadd.f32 %v5588, %v5612
      %v5625 = vadd.f32 %v5589, %v5612
      %v5626 = vadd.f32 %v5590, %v5612
      %v5627 = vadd.f32 %v5591, %v5612
      %v5628 = vadd.f32 %v5592, %v5612
      %v5629 = vadd.f32 %v5593, %v5612
      %v5630 = vadd.f32 %v5594, %v5612
      %v5631 = vadd.f32 %v5595, %v5612
      %v5632 = vadd.f32 %v5596, %v5612
      %v5633 = vadd.f32 %v5597, %v5612
      %v5634 = vadd.f32 %v5598, %v5612
      %v5635 = vadd.f32 %v5599, %v5612
      %v5636 = vadd.f32 %v5600, %v5612
      %v5637 = vadd.f32 %v5601, %v5612
      %v5638 = vadd.f32 %v5602, %v5612
      %v5639 = vadd.f32 %v5603, %v5612
      %v5640 = vadd.f32 %v5604, %v5612
      %v5641 = vadd.f32 %v5605, %v5612
      %v5642 = vadd.f32 %v5606, %v5612
      %v5643 = vadd.f32 %v5607, %v5612
      %v5644 = vadd.f32 %v5608, %v5612
      %v5645 = vadd.f32 %v5609, %v5612
      %v5646 = vsub.f32 0.0, %v5614
      %v5647 = vsub.f32 0.0, %v5615
      %v5648 = vsub.f32 0.0, %v5616
      %v5649 = vsub.f32 0.0, %v5617
      %v5650 = vsub.f32 0.0, %v5618
      %v5651 = vsub.f32 0.0, %v5619
      %v5652 = vsub.f32 0.0, %v5620
      %v5653 = vsub.f32 0.0, %v5621
      %v5654 = vsub.f32 0.0, %v5622
      %v5655 = vsub.f32 0.0, %v5623
      %v5656 = vsub.f32 0.0, %v5624
      %v5657 = vsub.f32 0.0, %v5625
      %v5658 = vsub.f32 0.0, %v5626
      %v5659 = vsub.f32 0.0, %v5627
      %v5660 = vsub.f32 0.0, %v5628
      %v5661 = vsub.f32 0.0, %v5629
      %v5662 = vsub.f32 0.0, %v5630
      %v5663 = vsub.f32 0.0, %v5631
      %v5664 = vsub.f32 0.0, %v5632
      %v5665 = vsub.f32 0.0, %v5633
      %v5666 = vsub.f32 0.0, %v5634
      %v5667 = vsub.f32 0.0, %v5635
      %v5668 = vsub.f32 0.0, %v5636
      %v5669 = vsub.f32 0.0, %v5637
      %v5670 = vsub.f32 0.0, %v5638
      %v5671 = vsub.f32 0.0, %v5639
      %v5672 = vsub.f32 0.0, %v5640
      %v5673 = vsub.f32 0.0, %v5641
      %v5674 = vsub.f32 0.0, %v5642
      %v5675 = vsub.f32 0.0, %v5643
      %v5676 = vsub.f32 0.0, %v5644
      %v5677 = vsub.f32 0.0, %v5645
      %v5678 = vmul.f32 %v5646, 1.442695
      %v5679 = vpow.pop %v5678
      %v5680 = vmul.f32 %v5647, 1.442695
      %v5681 = vpow.pop %v5680
      %v5682 = vmul.f32 %v5648, 1.442695
      %v5683 = vpow.pop %v5682
      %v5684 = vmul.f32 %v5649, 1.442695
      %v5685 = vpow.pop %v5684
      %v5686 = vmul.f32 %v5650, 1.442695
      %v5687 = vpow.pop %v5686
      %v5688 = vmul.f32 %v5651, 1.442695
      %v5689 = vpow.pop %v5688
      %v5690 = vmul.f32 %v5652, 1.442695
      %v5691 = vpow.pop %v5690
      %v5692 = vmul.f32 %v5653, 1.442695
      %v5693 = vpow.pop %v5692
      %v5694 = vmul.f32 %v5654, 1.442695
      %v5695 = vpow.pop %v5694
      %v5696 = vmul.f32 %v5655, 1.442695
      %v5697 = vpow.pop %v5696
      %v5698 = vmul.f32 %v5656, 1.442695
      %v5699 = vpow.pop %v5698
      %v5700 = vmul.f32 %v5657, 1.442695
      %v5701 = vpow.pop %v5700
      %v5702 = vmul.f32 %v5658, 1.442695
      %v5703 = vpow.pop %v5702
      %v5704 = vmul.f32 %v5659, 1.442695
      %v5705 = vpow.pop %v5704
      %v5706 = vmul.f32 %v5660, 1.442695
      %v5707 = vpow.pop %v5706
      %v5708 = vmul.f32 %v5661, 1.442695
      %v5709 = vpow.pop %v5708
      %v5710 = vmul.f32 %v5662, 1.442695
      %v5711 = vpow.pop %v5710
      %v5712 = vmul.f32 %v5663, 1.442695
      %v5713 = vpow.pop %v5712
      %v5714 = vmul.f32 %v5664, 1.442695
      %v5715 = vpow.pop %v5714
      %v5716 = vmul.f32 %v5665, 1.442695
      %v5717 = vpow.pop %v5716
      %v5718 = vmul.f32 %v5666, 1.442695
      %v5719 = vpow.pop %v5718
      %v5720 = vmul.f32 %v5667, 1.442695
      %v5721 = vpow.pop %v5720
      %v5722 = vmul.f32 %v5668, 1.442695
      %v5723 = vpow.pop %v5722
      %v5724 = vmul.f32 %v5669, 1.442695
      %v5725 = vpow.pop %v5724
      %v5726 = vmul.f32 %v5670, 1.442695
      %v5727 = vpow.pop %v5726
      %v5728 = vmul.f32 %v5671, 1.442695
      %v5729 = vpow.pop %v5728
      %v5730 = vmul.f32 %v5672, 1.442695
      %v5731 = vpow.pop %v5730
      %v5732 = vmul.f32 %v5673, 1.442695
      %v5733 = vpow.pop %v5732
      %v5734 = vmul.f32 %v5674, 1.442695
      %v5735 = vpow.pop %v5734
      %v5736 = vmul.f32 %v5675, 1.442695
      %v5737 = vpow.pop %v5736
      %v5738 = vmul.f32 %v5676, 1.442695
      %v5739 = vpow.pop %v5738
      %v5740 = vmul.f32 %v5677, 1.442695
      %v5741 = vpow.pop %v5740
      %v5742 = vadd.f32 %v5679, 1.0
      %v5743 = vadd.f32 %v5681, 1.0
      %v5744 = vadd.f32 %v5683, 1.0
      %v5745 = vadd.f32 %v5685, 1.0
      %v5746 = vadd.f32 %v5687, 1.0
      %v5747 = vadd.f32 %v5689, 1.0
      %v5748 = vadd.f32 %v5691, 1.0
      %v5749 = vadd.f32 %v5693, 1.0
      %v5750 = vadd.f32 %v5695, 1.0
      %v5751 = vadd.f32 %v5697, 1.0
      %v5752 = vadd.f32 %v5699, 1.0
      %v5753 = vadd.f32 %v5701, 1.0
      %v5754 = vadd.f32 %v5703, 1.0
      %v5755 = vadd.f32 %v5705, 1.0
      %v5756 = vadd.f32 %v5707, 1.0
      %v5757 = vadd.f32 %v5709, 1.0
      %v5758 = vadd.f32 %v5711, 1.0
      %v5759 = vadd.f32 %v5713, 1.0
      %v5760 = vadd.f32 %v5715, 1.0
      %v5761 = vadd.f32 %v5717, 1.0
      %v5762 = vadd.f32 %v5719, 1.0
      %v5763 = vadd.f32 %v5721, 1.0
      %v5764 = vadd.f32 %v5723, 1.0
      %v5765 = vadd.f32 %v5725, 1.0
      %v5766 = vadd.f32 %v5727, 1.0
      %v5767 = vadd.f32 %v5729, 1.0
      %v5768 = vadd.f32 %v5731, 1.0
      %v5769 = vadd.f32 %v5733, 1.0
      %v5770 = vadd.f32 %v5735, 1.0
      %v5771 = vadd.f32 %v5737, 1.0
      %v5772 = vadd.f32 %v5739, 1.0
      %v5773 = vadd.f32 %v5741, 1.0
      %v5774 = vrcp.pop %v5742
      %v5775 = vrcp.pop %v5743
      %v5776 = vrcp.pop %v5744
      %v5777 = vrcp.pop %v5745
      %v5778 = vrcp.pop %v5746
      %v5779 = vrcp.pop %v5747
      %v5780 = vrcp.pop %v5748
      %v5781 = vrcp.pop %v5749
      %v5782 = vrcp.pop %v5750
      %v5783 = vrcp.pop %v5751
      %v5784 = vrcp.pop %v5752
      %v5785 = vrcp.pop %v5753
      %v5786 = vrcp.pop %v5754
      %v5787 = vrcp.pop %v5755
      %v5788 = vrcp.pop %v5756
      %v5789 = vrcp.pop %v5757
      %v5790 = vrcp.pop %v5758
      %v5791 = vrcp.pop %v5759
      %v5792 = vrcp.pop %v5760
      %v5793 = vrcp.pop %v5761
      %v5794 = vrcp.pop %v5762
      %v5795 = vrcp.pop %v5763
      %v5796 = vrcp.pop %v5764
      %v5797 = vrcp.pop %v5765
      %v5798 = vrcp.pop %v5766
      %v5799 = vrcp.pop %v5767
      %v5800 = vrcp.pop %v5768
      %v5801 = vrcp.pop %v5769
      %v5802 = vrcp.pop %v5770
      %v5803 = vrcp.pop %v5771
      %v5804 = vrcp.pop %v5772
      %v5805 = vrcp.pop %v5773
      %v5806 = vmul.f32 %v5614, %v5774
      %v5807 = vmul.f32 %v5615, %v5775
      %v5808 = vmul.f32 %v5616, %v5776
      %v5809 = vmul.f32 %v5617, %v5777
      %v5810 = vmul.f32 %v5618, %v5778
      %v5811 = vmul.f32 %v5619, %v5779
      %v5812 = vmul.f32 %v5620, %v5780
      %v5813 = vmul.f32 %v5621, %v5781
      %v5814 = vmul.f32 %v5622, %v5782
      %v5815 = vmul.f32 %v5623, %v5783
      %v5816 = vmul.f32 %v5624, %v5784
      %v5817 = vmul.f32 %v5625, %v5785
      %v5818 = vmul.f32 %v5626, %v5786
      %v5819 = vmul.f32 %v5627, %v5787
      %v5820 = vmul.f32 %v5628, %v5788
      %v5821 = vmul.f32 %v5629, %v5789
      %v5822 = vmul.f32 %v5630, %v5790
      %v5823 = vmul.f32 %v5631, %v5791
      %v5824 = vmul.f32 %v5632, %v5792
      %v5825 = vmul.f32 %v5633, %v5793
      %v5826 = vmul.f32 %v5634, %v5794
      %v5827 = vmul.f32 %v5635, %v5795
      %v5828 = vmul.f32 %v5636, %v5796
      %v5829 = vmul.f32 %v5637, %v5797
      %v5830 = vmul.f32 %v5638, %v5798
      %v5831 = vmul.f32 %v5639, %v5799
      %v5832 = vmul.f32 %v5640, %v5800
      %v5833 = vmul.f32 %v5641, %v5801
      %v5834 = vmul.f32 %v5642, %v5802
      %v5835 = vmul.f32 %v5643, %v5803
      %v5836 = vmul.f32 %v5644, %v5804
      %v5837 = vmul.f32 %v5645, %v5805
      %v5838 = vunpack.c.l.bf16 %v280
      %v5839 = vunpack.c.l.bf16 %v281
      %v5840 = vunpack.c.l.bf16 %v282
      %v5841 = vunpack.c.l.bf16 %v283
      %v5842 = vunpack.c.l.bf16 %v284
      %v5843 = vunpack.c.l.bf16 %v285
      %v5844 = vunpack.c.l.bf16 %v286
      %v5845 = vunpack.c.l.bf16 %v287
      %v5846 = vunpack.c.l.bf16 %v288
      %v5847 = vunpack.c.l.bf16 %v289
      %v5848 = vunpack.c.l.bf16 %v290
      %v5849 = vunpack.c.l.bf16 %v291
      %v5850 = vunpack.c.l.bf16 %v292
      %v5851 = vunpack.c.l.bf16 %v293
      %v5852 = vunpack.c.l.bf16 %v294
      %v5853 = vunpack.c.l.bf16 %v295
      %v5854 = vunpack.c.l.bf16 %v296
      %v5855 = vunpack.c.l.bf16 %v297
      %v5856 = vunpack.c.l.bf16 %v298
      %v5857 = vunpack.c.l.bf16 %v299
      %v5858 = vunpack.c.l.bf16 %v300
      %v5859 = vunpack.c.l.bf16 %v301
      %v5860 = vunpack.c.l.bf16 %v302
      %v5861 = vunpack.c.l.bf16 %v303
      %v5862 = vunpack.c.l.bf16 %v304
      %v5863 = vunpack.c.l.bf16 %v305
      %v5864 = vunpack.c.l.bf16 %v306
      %v5865 = vunpack.c.l.bf16 %v307
      %v5866 = vunpack.c.l.bf16 %v308
      %v5867 = vunpack.c.l.bf16 %v309
      %v5868 = vunpack.c.l.bf16 %v310
      %v5869 = vunpack.c.l.bf16 %v311
      %v5870 = vadd.f32 %v5806, %v5838
      %v5871 = vadd.f32 %v5807, %v5839
      %v5872 = vadd.f32 %v5808, %v5840
      %v5873 = vadd.f32 %v5809, %v5841
      %v5874 = vadd.f32 %v5810, %v5842
      %v5875 = vadd.f32 %v5811, %v5843
      %v5876 = vadd.f32 %v5812, %v5844
      %v5877 = vadd.f32 %v5813, %v5845
      %v5878 = vadd.f32 %v5814, %v5846
      %v5879 = vadd.f32 %v5815, %v5847
      %v5880 = vadd.f32 %v5816, %v5848
      %v5881 = vadd.f32 %v5817, %v5849
      %v5882 = vadd.f32 %v5818, %v5850
      %v5883 = vadd.f32 %v5819, %v5851
      %v5884 = vadd.f32 %v5820, %v5852
      %v5885 = vadd.f32 %v5821, %v5853
      %v5886 = vadd.f32 %v5822, %v5854
      %v5887 = vadd.f32 %v5823, %v5855
      %v5888 = vadd.f32 %v5824, %v5856
      %v5889 = vadd.f32 %v5825, %v5857
      %v5890 = vadd.f32 %v5826, %v5858
      %v5891 = vadd.f32 %v5827, %v5859
      %v5892 = vadd.f32 %v5828, %v5860
      %v5893 = vadd.f32 %v5829, %v5861
      %v5894 = vadd.f32 %v5830, %v5862
      %v5895 = vadd.f32 %v5831, %v5863
      %v5896 = vadd.f32 %v5832, %v5864
      %v5897 = vadd.f32 %v5833, %v5865
      %v5898 = vadd.f32 %v5834, %v5866
      %v5899 = vadd.f32 %v5835, %v5867
      %v5900 = vadd.f32 %v5836, %v5868
      %v5901 = vadd.f32 %v5837, %v5869
      %v5902 = vpack.c.bf16 %v5870, %v5870
      %v5903 = vpack.c.bf16 %v5871, %v5871
      %v5904 = vpack.c.bf16 %v5872, %v5872
      %v5905 = vpack.c.bf16 %v5873, %v5873
      %v5906 = vpack.c.bf16 %v5874, %v5874
      %v5907 = vpack.c.bf16 %v5875, %v5875
      %v5908 = vpack.c.bf16 %v5876, %v5876
      %v5909 = vpack.c.bf16 %v5877, %v5877
      %v5910 = vpack.c.bf16 %v5878, %v5878
      %v5911 = vpack.c.bf16 %v5879, %v5879
      %v5912 = vpack.c.bf16 %v5880, %v5880
      %v5913 = vpack.c.bf16 %v5881, %v5881
      %v5914 = vpack.c.bf16 %v5882, %v5882
      %v5915 = vpack.c.bf16 %v5883, %v5883
      %v5916 = vpack.c.bf16 %v5884, %v5884
      %v5917 = vpack.c.bf16 %v5885, %v5885
      %v5918 = vpack.c.bf16 %v5886, %v5886
      %v5919 = vpack.c.bf16 %v5887, %v5887
      %v5920 = vpack.c.bf16 %v5888, %v5888
      %v5921 = vpack.c.bf16 %v5889, %v5889
      %v5922 = vpack.c.bf16 %v5890, %v5890
      %v5923 = vpack.c.bf16 %v5891, %v5891
      %v5924 = vpack.c.bf16 %v5892, %v5892
      %v5925 = vpack.c.bf16 %v5893, %v5893
      %v5926 = vpack.c.bf16 %v5894, %v5894
      %v5927 = vpack.c.bf16 %v5895, %v5895
      %v5928 = vpack.c.bf16 %v5896, %v5896
      %v5929 = vpack.c.bf16 %v5897, %v5897
      %v5930 = vpack.c.bf16 %v5898, %v5898
      %v5931 = vpack.c.bf16 %v5899, %v5899
      %v5932 = vpack.c.bf16 %v5900, %v5900
      %v5933 = vpack.c.bf16 %v5901, %v5901
      %5934 = vst [vmem:[%s278] sm:$0xf] %v5902
      %5935 = vst [vmem:[%s278 + $0x4] sm:$0xf] %v5903
      %5936 = vst [vmem:[%s278 + $0x8] sm:$0xf] %v5904
      %5937 = vst [vmem:[%s278 + $0xc] sm:$0xf] %v5905
      %5938 = vst [vmem:[%s278 + $0x10] sm:$0xf] %v5906
      %5939 = vst [vmem:[%s278 + $0x14] sm:$0xf] %v5907
      %5940 = vst [vmem:[%s278 + $0x18] sm:$0xf] %v5908
      %5941 = vst [vmem:[%s278 + $0x1c] sm:$0xf] %v5909
      %5942 = vst [vmem:[%s278 + $0x20] sm:$0xf] %v5910
      %5943 = vst [vmem:[%s278 + $0x24] sm:$0xf] %v5911
      %5944 = vst [vmem:[%s278 + $0x28] sm:$0xf] %v5912
      %5945 = vst [vmem:[%s278 + $0x2c] sm:$0xf] %v5913
      %5946 = vst [vmem:[%s278 + $0x30] sm:$0xf] %v5914
      %5947 = vst [vmem:[%s278 + $0x34] sm:$0xf] %v5915
      %5948 = vst [vmem:[%s278 + $0x38] sm:$0xf] %v5916
      %5949 = vst [vmem:[%s278 + $0x3c] sm:$0xf] %v5917
      %5950 = vst [vmem:[%s278 + $0x40] sm:$0xf] %v5918
      %5951 = vst [vmem:[%s278 + $0x44] sm:$0xf] %v5919
      %5952 = vst [vmem:[%s278 + $0x48] sm:$0xf] %v5920
      %5953 = vst [vmem:[%s278 + $0x4c] sm:$0xf] %v5921
      %5954 = vst [vmem:[%s278 + $0x50] sm:$0xf] %v5922
      %5955 = vst [vmem:[%s278 + $0x54] sm:$0xf] %v5923
      %5956 = vst [vmem:[%s278 + $0x58] sm:$0xf] %v5924
      %5957 = vst [vmem:[%s278 + $0x5c] sm:$0xf] %v5925
      %5958 = vst [vmem:[%s278 + $0x60] sm:$0xf] %v5926
      %5959 = vst [vmem:[%s278 + $0x64] sm:$0xf] %v5927
      %5960 = vst [vmem:[%s278 + $0x68] sm:$0xf] %v5928
      %5961 = vst [vmem:[%s278 + $0x6c] sm:$0xf] %v5929
      %5962 = vst [vmem:[%s278 + $0x70] sm:$0xf] %v5930
      %5963 = vst [vmem:[%s278 + $0x74] sm:$0xf] %v5931
      %5964 = vst [vmem:[%s278 + $0x78] sm:$0xf] %v5932
      %5965 = vst [vmem:[%s278 + $0x7c] sm:$0xf] %v5933
      %p5966 = scmp.lt.s32.totalorder %s18, 1
      %s5967 = scalar_select %p5966, %s18, 1
      %s5968 = smul.addr %s5967, 32
      %s5969 = smul.addr %s5968, 4
      %s5970 = scalar_lea.vmem %s7, %s5969
      // Predicated region
      $region49: #{c3_forward.4} parent=47 // pred_check
        %p5971 = pneg %p188
      $region50: #{c3_forward.4} parent=47 // pred_check_branch
        %5973 = sbr.rel (%p5971) target = $region52
      $region51: #{c3_forward.4} parent=47 // pred_region
        _
      $region52: #{c3_forward.4} parent=47 // pred_fallthru
        _
    $region48: #{c3_forward.4} parent=5 // pred_fallthru
      _
    %p5974 = scmp.le.s32.totalorder 2, %s13
    // Predicated region
    $region53: #{c3_forward.4} parent=5 // pred_check
      %p5975 = pneg %p5974
    $region54: #{c3_forward.4} parent=5 // pred_check_branch
      %5977 = sbr.rel (%p5975) target = $region56
    $region55: #{c3_forward.4} parent=5 // pred_region
      %s5978 = ssub.s32 %s13, 2
      // Predicated region
      $region57: #{c3_forward.4} parent=55 // pred_check
        %p5979 = pneg %p194
      $region58: #{c3_forward.4} parent=55 // pred_check_branch
        %5981 = sbr.rel (%p5979) target = $region60
      $region59: #{c3_forward.4} parent=55 // pred_region
        %p5982 = scmp.lt.s32.totalorder %s19, 1
        %s5983 = scalar_select %p5982, %s19, 1
        %s5984 = smul.addr %s5983, 32
        %s5985 = smul.addr %s5984, 4
        %s5986 = scalar_lea.vmem %s7, %s5985
      $region60: #{c3_forward.4} parent=55 // pred_fallthru
        _
    $region56: #{c3_forward.4} parent=5 // pred_fallthru
      _
  $region6: #{c3_forward.4} parent=0 // loop_footer
    %s17 = sadd.s32 1, %s13
  $region7: #{c3_forward.4} parent=0 // loop_footer_branch
    %12 = sbr.rel target = $region3
  $region8: #{c3_forward.4} parent=0 // loop_exit
    _

</llo_original>
